<compile_context>
chip_gen: v6e
topology: v6e:2x2x1
jax: 0.10.0
libtpu: 0.0.40
codegen_flags: <defaults>
</compile_context>

<pallas_src>
import jax
import jax.numpy as jnp
from jax import lax
from jax.experimental import pallas as pl
from jax.experimental.pallas import tpu as pltpu

LANE = 128  # TPU lane width; the output-channel dim is padded to this.


def _round_up(x, m):
    return (x + m - 1) // m * m


def _largest_divisor_leq(n, upper):
    upper = max(1, min(n, upper))
    for c in range(upper, 0, -1):
        if n % c == 0:
            return c
    return 1


def _pick_pass2_rows(m_total, target=2048):
    """Largest row-tile (multiple of 8, divisor of m_total) <= target."""
    if m_total <= target:
        return m_total
    for c in range(target, 7, -1):
        if m_total % c == 0 and c % 8 == 0:
            return c
    return m_total


def _vmem_limit_bytes():
    """Generation-conditional VMEM budget: ~3/4 of physical, clamped."""
    try:
        cap = int(pltpu.get_tpu_info().vmem_capacity_bytes)
    except Exception:
        cap = 128 * 1024 * 1024
    return int(min(max(cap * 3 // 4, 32 * 1024 * 1024), 100 * 1024 * 1024))


def _conv_stats_kernel(x_ref, w_ref, o_ref, stats_ref, acc_ref):
    """One grid step: 3x3 conv over a (batch-block x row-tile) window.

    The conv is 9 accumulating MXU matmuls (one per tap, K = Cin unpadded) into
    an f32 VMEM scratch, plus per-step *centered* BN partial statistics.

    x_ref    : (B, Hb+2, W+2, Cin)   input window (1-row halo on each side)
    w_ref    : (3, 3, Cin, Cpo)      tap weights, Cout padded to lane width
    o_ref    : (B, Hb, W, Cpo)       conv output (pre-BN), bf16 by default
    stats_ref: (1, 1, 2, Cpo)        f32 [sum, centered sum-of-squares]
    acc_ref  : (B*Hb*W, Cpo)         f32 accumulator scratch
    """
    b, hp2, wp2, cin = x_ref.shape
    hb, w = hp2 - 2, wp2 - 2
    cpo = o_ref.shape[-1]
    m = b * hb * w

    first = True
    for dy in range(3):
        for dx in range(3):
            xs = x_ref[:, dy:dy + hb, dx:dx + w, :].reshape(m, cin)
            contrib = jnp.dot(xs, w_ref[dy, dx],
                              preferred_element_type=jnp.float32)
            if first:
                acc_ref[...] = contrib
                first = False
            else:
                acc_ref[...] += contrib

    acc = acc_ref[...]
    o_ref[...] = acc.reshape(b, hb, w, cpo).astype(o_ref.dtype)

    # Centered per-step partial statistics (stable parallel-variance form).
    s = jnp.sum(acc, axis=0, keepdims=True)                 # (1, Cpo)
    mean = s * (1.0 / m)
    m2 = jnp.sum((acc - mean) ** 2, axis=0, keepdims=True)  # (1, Cpo)
    stats_ref[...] = jnp.concatenate([s, m2], axis=0).reshape(1, 1, 2, cpo)


def _bn_relu_kernel(y_ref, scale_ref, shift_ref, o_ref):
    """Fused BN affine + ReLU: out = max(y * scale + shift, 0)."""
    y = y_ref[...].astype(jnp.float32)
    o_ref[...] = jnp.maximum(y * scale_ref[...] + shift_ref[...],
                             0.0).astype(o_ref.dtype)


def conv_module_forward(x_nchw, weight_oihw, bias, gamma, beta,
                        eps=1e-5, mxu_dtype=jnp.bfloat16):
    """Equivalent of Conv(nin, nout).forward for a train-mode module."""
    N, Cin, H, W = x_nchw.shape
    Cout = weight_oihw.shape[0]
    del bias  # no-op under train-mode BatchNorm (only shifts the batch mean)

    Cpo = _round_up(Cout, LANE)

    # ---- layout prep (XLA): NCHW -> NHWC, spatial pad 1, bf16 MXU operands.
    x_nhwc = jnp.transpose(x_nchw, (0, 2, 3, 1)).astype(mxu_dtype)
    x_pad = jnp.pad(x_nhwc, ((0, 0), (1, 1), (1, 1), (0, 0)))

    # OIHW -> (kh, kw, Cin, Cout); pad only Cout to lane width (K stays = Cin).
    w = jnp.transpose(weight_oihw, (2, 3, 1, 0)).astype(mxu_dtype)
    w = jnp.pad(w, ((0, 0), (0, 0), (0, 0), (0, Cpo - Cout)))

    # ---- pass-1 tiling: row tiles + batch block, sized against a ~6 MiB f32
    # accumulator budget (fits v7x VMEM) while keeping matmul M >= 256.
    max_rows = max(256, (6 * 1024 * 1024) // (4 * Cpo))
    Hb = _largest_divisor_leq(H, max(1, max_rows // max(W, 1)))
    R = H // Hb
    Bimg = _largest_divisor_leq(N, max(1, max_rows // (Hb * W)))
    NB = N // Bimg
    m_step = Bimg * Hb * W

    # Overlapping row windows (1-row halo each side); R == 1 is just the padded
    # image with a singleton window axis.
    if R == 1:
        x_win = x_pad[:, None]
    else:
        x_win = jnp.stack(
            [x_pad[:, r * Hb:r * Hb + Hb + 2] for r in range(R)], axis=1)
    # x_win: (N, R, Hb+2, W+2, Cin)

    vmem_limit = _vmem_limit_bytes()
    cparams1 = pltpu.CompilerParams(
        dimension_semantics=("parallel", "parallel"),
        vmem_limit_bytes=vmem_limit)

    # ---- pass 1: conv (9 accumulating matmuls) + per-step BN partials.
    conv_out, stats = pl.pallas_call(
        _conv_stats_kernel,
        out_shape=(
            jax.ShapeDtypeStruct((N, H, W, Cpo), mxu_dtype),
            jax.ShapeDtypeStruct((NB, R, 2, Cpo), jnp.float32),
        ),
        grid=(NB, R),
        in_specs=[
            pl.BlockSpec((Bimg, None, Hb + 2, W + 2, Cin),
                         lambda bi, ri: (bi, ri, 0, 0, 0)),
            pl.BlockSpec((3, 3, Cin, Cpo), lambda bi, ri: (0, 0, 0, 0)),
        ],
        out_specs=(
            pl.BlockSpec((Bimg, Hb, W, Cpo), lambda bi, ri: (bi, ri, 0, 0)),
            pl.BlockSpec((1, 1, 2, Cpo), lambda bi, ri: (bi, ri, 0, 0)),
        ),
        scratch_shapes=[pltpu.VMEM((m_step, Cpo), jnp.float32)],
        compiler_params=cparams1,
    )(x_win, w)

    # ---- global train-mode BN stats via the parallel-variance combine.
    total = N * H * W
    G = NB * R
    s_g = stats[..., 0, :].reshape(G, Cpo)
    m2_g = stats[..., 1, :].reshape(G, Cpo)
    mean = jnp.sum(s_g, axis=0) / total
    m_g = s_g / m_step
    m2 = jnp.sum(m2_g, axis=0) + m_step * jnp.sum((m_g - mean) ** 2, axis=0)
    var = jnp.maximum(m2 / total, 0.0)          # biased variance (BN train)

    gamma_p = jnp.pad(gamma.astype(jnp.float32), (0, Cpo - Cout))
    beta_p = jnp.pad(beta.astype(jnp.float32), (0, Cpo - Cout))
    scale = gamma_p * lax.rsqrt(var + eps)
    shift = beta_p - mean * scale

    # ---- pass 2: fused affine + ReLU over large lane-dense tiles, writing
    # in place over conv_out (input_output_aliases halves peak HBM footprint).
    m_total = N * H * W
    bm = _pick_pass2_rows(m_total)
    cparams2 = pltpu.CompilerParams(
        dimension_semantics=("parallel",),
        vmem_limit_bytes=vmem_limit)

    out_flat = pl.pallas_call(
        _bn_relu_kernel,
        out_shape=jax.ShapeDtypeStruct((m_total, Cpo), mxu_dtype),
        grid=(m_total // bm,),
        in_specs=[
            pl.BlockSpec((bm, Cpo), lambda i: (i, 0)),
            pl.BlockSpec((1, Cpo), lambda i: (0, 0)),
            pl.BlockSpec((1, Cpo), lambda i: (0, 0)),
        ],
        out_specs=pl.BlockSpec((bm, Cpo), lambda i: (i, 0)),
        input_output_aliases={0: 0},
        compiler_params=cparams2,
    )(conv_out.reshape(m_total, Cpo), scale.reshape(1, Cpo),
      shift.reshape(1, Cpo))

    out_nhwc = out_flat.reshape(N, H, W, Cpo)
    # Un-pad channels and return the PyTorch module's NCHW float32 layout.
    return jnp.transpose(out_nhwc[..., :Cout], (0, 3, 1, 2)).astype(jnp.float32)


def _reference(x_nchw, weight_oihw, bias, gamma, beta):
    """Pure-JAX f32 reference of the same forward pass (for verification)."""
    conv = jax.lax.conv_general_dilated(
        x_nchw.astype(jnp.float32), weight_oihw.astype(jnp.float32),
        window_strides=(1, 1), padding="SAME",
        dimension_numbers=("NCHW", "OIHW", "NCHW"),
    ) + bias[None, :, None, None]
    mean = conv.mean(axis=(0, 2, 3), keepdims=True)
    var = ((conv - mean) ** 2).mean(axis=(0, 2, 3), keepdims=True)
    normed = (conv - mean) / jnp.sqrt(var + 1e-5)
    out = normed * gamma[None, :, None, None] + beta[None, :, None, None]
    return jnp.maximum(out, 0.0)


if __name__ == "__main__":
    # Small shapes: batch=2, nin=4, nout=8, spatial=16x16.
    N, Cin, Cout, H, W = 2, 4, 8, 16, 16

    key = jax.random.PRNGKey(0)
    kx, kw, kb = jax.random.split(key, 3)

    x = jax.random.normal(kx, (N, Cin, H, W), dtype=jnp.float32)
    weight = jax.random.normal(kw, (Cout, Cin, 3, 3), dtype=jnp.float32) * 0.1
    bias = jax.random.normal(kb, (Cout,), dtype=jnp.float32) * 0.1
    gamma = jnp.ones((Cout,), dtype=jnp.float32)   # BatchNorm2d default weight
    beta = jnp.zeros((Cout,), dtype=jnp.float32)   # BatchNorm2d default bias

    out = conv_module_forward(x, weight, bias, gamma, beta)
    out = jax.block_until_ready(out)

    ref = _reference(x, weight, bias, gamma, beta)
    assert out.shape == (N, Cout, H, W)
    # bf16 MXU operands + bf16 intermediate => looser tolerance than pure f32.
    assert jnp.allclose(out, ref, atol=5e-2, rtol=5e-2), "mismatch vs reference"

    print("KERNEL_OK")
</pallas_src>

<mosaic_0001>
module attributes {stable_mosaic.version = 11 : i64} {
  func.func @_conv_stats_kernel(%arg0: i32, %arg1: i32, %arg2: memref<2x1x18x18x4xbf16, #tpu.memory_space<vmem>>, %arg3: memref<3x3x4x128xbf16, #tpu.memory_space<vmem>>, %arg4: memref<2x16x16x128xbf16, #tpu.memory_space<vmem>>, %arg5: memref<1x1x2x128xf32, #tpu.memory_space<vmem>>, %arg6: memref<512x128xf32, #tpu.memory_space<vmem>>) attributes {dimension_semantics = [#tpu.dimension_semantics<parallel>, #tpu.dimension_semantics<parallel>], iteration_bounds = array<i64: 1, 1>, scalar_prefetch = 0 : i64, scratch_operands = 1 : i64, tpu.core_type = #tpu.core_type<tc>, window_params = [{transform_indices = @transform_0, window_bounds = array<i64: 2, 1, 18, 18, 4>}, {pipeline_mode = #tpu.pipeline_mode<synchronous>, transform_indices = @transform_1, window_bounds = array<i64: 3, 3, 4, 128>}, {transform_indices = @transform_2, window_bounds = array<i64: 2, 16, 16, 128>}, {transform_indices = @transform_3, window_bounds = array<i64: 1, 1, 2, 128>}]} {
    %c0 = arith.constant 0 : index
    %c0_0 = arith.constant 0 : index
    %c0_1 = arith.constant 0 : index
    %c0_2 = arith.constant 0 : index
    %c0_3 = arith.constant 0 : index
    %0 = vector.load %arg2[%c0, %c0_0, %c0_1, %c0_2, %c0_3] : memref<2x1x18x18x4xbf16, #tpu.memory_space<vmem>>, vector<2x1x16x16x4xbf16>
    %1 = vector.shape_cast %0 : vector<2x1x16x16x4xbf16> to vector<2x16x16x4xbf16>
    %2 = vector.shape_cast %1 : vector<2x16x16x4xbf16> to vector<512x4xbf16>
    %c0_4 = arith.constant 0 : index
    %c0_5 = arith.constant 0 : index
    %c0_6 = arith.constant 0 : index
    %c0_7 = arith.constant 0 : index
    %3 = vector.load %arg3[%c0_4, %c0_5, %c0_6, %c0_7] : memref<3x3x4x128xbf16, #tpu.memory_space<vmem>>, vector<1x1x4x128xbf16>
    %4 = vector.shape_cast %3 : vector<1x1x4x128xbf16> to vector<4x128xbf16>
    %cst = arith.constant dense<0.000000e+00> : vector<512x128xf32>
    %5 = tpu.matmul %2, %4, %cst {dimension_numbers = #tpu.dot_dimension_numbers<[1], [0], [0], [1], [0, 0, 1, 1], [], []>} : vector<512x4xbf16>, vector<4x128xbf16>, vector<512x128xf32> -> vector<512x128xf32>
    %c0_8 = arith.constant 0 : index
    %c0_9 = arith.constant 0 : index
    %6 = vector.load %arg6[%c0_8, %c0_9] : memref<512x128xf32, #tpu.memory_space<vmem>>, vector<512x128xf32>
    tpu.vector_store %arg6[%c0_8, %c0_9], %5 {strides = array<i32>} : memref<512x128xf32, #tpu.memory_space<vmem>>, vector<512x128xf32>,
    %c0_10 = arith.constant 0 : index
    %c0_11 = arith.constant 0 : index
    %c0_12 = arith.constant 0 : index
    %c1 = arith.constant 1 : index
    %c0_13 = arith.constant 0 : index
    %7 = vector.load %arg2[%c0_10, %c0_11, %c0_12, %c1, %c0_13] : memref<2x1x18x18x4xbf16, #tpu.memory_space<vmem>>, vector<2x1x16x16x4xbf16>
    %8 = vector.shape_cast %7 : vector<2x1x16x16x4xbf16> to vector<2x16x16x4xbf16>
    %9 = vector.shape_cast %8 : vector<2x16x16x4xbf16> to vector<512x4xbf16>
    %c0_14 = arith.constant 0 : index
    %c1_15 = arith.constant 1 : index
    %c0_16 = arith.constant 0 : index
    %c0_17 = arith.constant 0 : index
    %10 = vector.load %arg3[%c0_14, %c1_15, %c0_16, %c0_17] : memref<3x3x4x128xbf16, #tpu.memory_space<vmem>>, vector<1x1x4x128xbf16>
    %11 = vector.shape_cast %10 : vector<1x1x4x128xbf16> to vector<4x128xbf16>
    %cst_18 = arith.constant dense<0.000000e+00> : vector<512x128xf32>
    %12 = tpu.matmul %9, %11, %cst_18 {dimension_numbers = #tpu.dot_dimension_numbers<[1], [0], [0], [1], [0, 0, 1, 1], [], []>} : vector<512x4xbf16>, vector<4x128xbf16>, vector<512x128xf32> -> vector<512x128xf32>
    %c0_19 = arith.constant 0 : index
    %c0_20 = arith.constant 0 : index
    %13 = vector.load %arg6[%c0_19, %c0_20] : memref<512x128xf32, #tpu.memory_space<vmem>>, vector<512x128xf32>
    %14 = arith.addf %13, %12 : vector<512x128xf32>
    %c0_21 = arith.constant 0 : index
    %c0_22 = arith.constant 0 : index
    %15 = vector.load %arg6[%c0_21, %c0_22] : memref<512x128xf32, #tpu.memory_space<vmem>>, vector<512x128xf32>
    tpu.vector_store %arg6[%c0_21, %c0_22], %14 {strides = array<i32>} : memref<512x128xf32, #tpu.memory_space<vmem>>, vector<512x128xf32>,
    %c0_23 = arith.constant 0 : index
    %c0_24 = arith.constant 0 : index
    %c0_25 = arith.constant 0 : index
    %c2 = arith.constant 2 : index
    %c0_26 = arith.constant 0 : index
    %16 = vector.load %arg2[%c0_23, %c0_24, %c0_25, %c2, %c0_26] : memref<2x1x18x18x4xbf16, #tpu.memory_space<vmem>>, vector<2x1x16x16x4xbf16>
    %17 = vector.shape_cast %16 : vector<2x1x16x16x4xbf16> to vector<2x16x16x4xbf16>
    %18 = vector.shape_cast %17 : vector<2x16x16x4xbf16> to vector<512x4xbf16>
    %c0_27 = arith.constant 0 : index
    %c2_28 = arith.constant 2 : index
    %c0_29 = arith.constant 0 : index
    %c0_30 = arith.constant 0 : index
    %19 = vector.load %arg3[%c0_27, %c2_28, %c0_29, %c0_30] : memref<3x3x4x128xbf16, #tpu.memory_space<vmem>>, vector<1x1x4x128xbf16>
    %20 = vector.shape_cast %19 : vector<1x1x4x128xbf16> to vector<4x128xbf16>
    %cst_31 = arith.constant dense<0.000000e+00> : vector<512x128xf32>
    %21 = tpu.matmul %18, %20, %cst_31 {dimension_numbers = #tpu.dot_dimension_numbers<[1], [0], [0], [1], [0, 0, 1, 1], [], []>} : vector<512x4xbf16>, vector<4x128xbf16>, vector<512x128xf32> -> vector<512x128xf32>
    %c0_32 = arith.constant 0 : index
    %c0_33 = arith.constant 0 : index
    %22 = vector.load %arg6[%c0_32, %c0_33] : memref<512x128xf32, #tpu.memory_space<vmem>>, vector<512x128xf32>
    %23 = arith.addf %22, %21 : vector<512x128xf32>
    %c0_34 = arith.constant 0 : index
    %c0_35 = arith.constant 0 : index
    %24 = vector.load %arg6[%c0_34, %c0_35] : memref<512x128xf32, #tpu.memory_space<vmem>>, vector<512x128xf32>
    tpu.vector_store %arg6[%c0_34, %c0_35], %23 {strides = array<i32>} : memref<512x128xf32, #tpu.memory_space<vmem>>, vector<512x128xf32>,
    %c0_36 = arith.constant 0 : index
    %c0_37 = arith.constant 0 : index
    %c1_38 = arith.constant 1 : index
    %c0_39 = arith.constant 0 : index
    %c0_40 = arith.constant 0 : index
    %25 = vector.load %arg2[%c0_36, %c0_37, %c1_38, %c0_39, %c0_40] : memref<2x1x18x18x4xbf16, #tpu.memory_space<vmem>>, vector<2x1x16x16x4xbf16>
    %26 = vector.shape_cast %25 : vector<2x1x16x16x4xbf16> to vector<2x16x16x4xbf16>
    %27 = vector.shape_cast %26 : vector<2x16x16x4xbf16> to vector<512x4xbf16>
    %c1_41 = arith.constant 1 : index
    %c0_42 = arith.constant 0 : index
    %c0_43 = arith.constant 0 : index
    %c0_44 = arith.constant 0 : index
    %28 = vector.load %arg3[%c1_41, %c0_42, %c0_43, %c0_44] : memref<3x3x4x128xbf16, #tpu.memory_space<vmem>>, vector<1x1x4x128xbf16>
    %29 = vector.shape_cast %28 : vector<1x1x4x128xbf16> to vector<4x128xbf16>
    %cst_45 = arith.constant dense<0.000000e+00> : vector<512x128xf32>
    %30 = tpu.matmul %27, %29, %cst_45 {dimension_numbers = #tpu.dot_dimension_numbers<[1], [0], [0], [1], [0, 0, 1, 1], [], []>} : vector<512x4xbf16>, vector<4x128xbf16>, vector<512x128xf32> -> vector<512x128xf32>
    %c0_46 = arith.constant 0 : index
    %c0_47 = arith.constant 0 : index
    %31 = vector.load %arg6[%c0_46, %c0_47] : memref<512x128xf32, #tpu.memory_space<vmem>>, vector<512x128xf32>
    %32 = arith.addf %31, %30 : vector<512x128xf32>
    %c0_48 = arith.constant 0 : index
    %c0_49 = arith.constant 0 : index
    %33 = vector.load %arg6[%c0_48, %c0_49] : memref<512x128xf32, #tpu.memory_space<vmem>>, vector<512x128xf32>
    tpu.vector_store %arg6[%c0_48, %c0_49], %32 {strides = array<i32>} : memref<512x128xf32, #tpu.memory_space<vmem>>, vector<512x128xf32>,
    %c0_50 = arith.constant 0 : index
    %c0_51 = arith.constant 0 : index
    %c1_52 = arith.constant 1 : index
    %c1_53 = arith.constant 1 : index
    %c0_54 = arith.constant 0 : index
    %34 = vector.load %arg2[%c0_50, %c0_51, %c1_52, %c1_53, %c0_54] : memref<2x1x18x18x4xbf16, #tpu.memory_space<vmem>>, vector<2x1x16x16x4xbf16>
    %35 = vector.shape_cast %34 : vector<2x1x16x16x4xbf16> to vector<2x16x16x4xbf16>
    %36 = vector.shape_cast %35 : vector<2x16x16x4xbf16> to vector<512x4xbf16>
    %c1_55 = arith.constant 1 : index
    %c1_56 = arith.constant 1 : index
    %c0_57 = arith.constant 0 : index
    %c0_58 = arith.constant 0 : index
    %37 = vector.load %arg3[%c1_55, %c1_56, %c0_57, %c0_58] : memref<3x3x4x128xbf16, #tpu.memory_space<vmem>>, vector<1x1x4x128xbf16>
    %38 = vector.shape_cast %37 : vector<1x1x4x128xbf16> to vector<4x128xbf16>
    %cst_59 = arith.constant dense<0.000000e+00> : vector<512x128xf32>
    %39 = tpu.matmul %36, %38, %cst_59 {dimension_numbers = #tpu.dot_dimension_numbers<[1], [0], [0], [1], [0, 0, 1, 1], [], []>} : vector<512x4xbf16>, vector<4x128xbf16>, vector<512x128xf32> -> vector<512x128xf32>
    %c0_60 = arith.constant 0 : index
    %c0_61 = arith.constant 0 : index
    %40 = vector.load %arg6[%c0_60, %c0_61] : memref<512x128xf32, #tpu.memory_space<vmem>>, vector<512x128xf32>
    %41 = arith.addf %40, %39 : vector<512x128xf32>
    %c0_62 = arith.constant 0 : index
    %c0_63 = arith.constant 0 : index
    %42 = vector.load %arg6[%c0_62, %c0_63] : memref<512x128xf32, #tpu.memory_space<vmem>>, vector<512x128xf32>
    tpu.vector_store %arg6[%c0_62, %c0_63], %41 {strides = array<i32>} : memref<512x128xf32, #tpu.memory_space<vmem>>, vector<512x128xf32>,
    %c0_64 = arith.constant 0 : index
    %c0_65 = arith.constant 0 : index
    %c1_66 = arith.constant 1 : index
    %c2_67 = arith.constant 2 : index
    %c0_68 = arith.constant 0 : index
    %43 = vector.load %arg2[%c0_64, %c0_65, %c1_66, %c2_67, %c0_68] : memref<2x1x18x18x4xbf16, #tpu.memory_space<vmem>>, vector<2x1x16x16x4xbf16>
    %44 = vector.shape_cast %43 : vector<2x1x16x16x4xbf16> to vector<2x16x16x4xbf16>
    %45 = vector.shape_cast %44 : vector<2x16x16x4xbf16> to vector<512x4xbf16>
    %c1_69 = arith.constant 1 : index
    %c2_70 = arith.constant 2 : index
    %c0_71 = arith.constant 0 : index
    %c0_72 = arith.constant 0 : index
    %46 = vector.load %arg3[%c1_69, %c2_70, %c0_71, %c0_72] : memref<3x3x4x128xbf16, #tpu.memory_space<vmem>>, vector<1x1x4x128xbf16>
    %47 = vector.shape_cast %46 : vector<1x1x4x128xbf16> to vector<4x128xbf16>
    %cst_73 = arith.constant dense<0.000000e+00> : vector<512x128xf32>
    %48 = tpu.matmul %45, %47, %cst_73 {dimension_numbers = #tpu.dot_dimension_numbers<[1], [0], [0], [1], [0, 0, 1, 1], [], []>} : vector<512x4xbf16>, vector<4x128xbf16>, vector<512x128xf32> -> vector<512x128xf32>
    %c0_74 = arith.constant 0 : index
    %c0_75 = arith.constant 0 : index
    %49 = vector.load %arg6[%c0_74, %c0_75] : memref<512x128xf32, #tpu.memory_space<vmem>>, vector<512x128xf32>
    %50 = arith.addf %49, %48 : vector<512x128xf32>
    %c0_76 = arith.constant 0 : index
    %c0_77 = arith.constant 0 : index
    %51 = vector.load %arg6[%c0_76, %c0_77] : memref<512x128xf32, #tpu.memory_space<vmem>>, vector<512x128xf32>
    tpu.vector_store %arg6[%c0_76, %c0_77], %50 {strides = array<i32>} : memref<512x128xf32, #tpu.memory_space<vmem>>, vector<512x128xf32>,
    %c0_78 = arith.constant 0 : index
    %c0_79 = arith.constant 0 : index
    %c2_80 = arith.constant 2 : index
    %c0_81 = arith.constant 0 : index
    %c0_82 = arith.constant 0 : index
    %52 = vector.load %arg2[%c0_78, %c0_79, %c2_80, %c0_81, %c0_82] : memref<2x1x18x18x4xbf16, #tpu.memory_space<vmem>>, vector<2x1x16x16x4xbf16>
    %53 = vector.shape_cast %52 : vector<2x1x16x16x4xbf16> to vector<2x16x16x4xbf16>
    %54 = vector.shape_cast %53 : vector<2x16x16x4xbf16> to vector<512x4xbf16>
    %c2_83 = arith.constant 2 : index
    %c0_84 = arith.constant 0 : index
    %c0_85 = arith.constant 0 : index
    %c0_86 = arith.constant 0 : index
    %55 = vector.load %arg3[%c2_83, %c0_84, %c0_85, %c0_86] : memref<3x3x4x128xbf16, #tpu.memory_space<vmem>>, vector<1x1x4x128xbf16>
    %56 = vector.shape_cast %55 : vector<1x1x4x128xbf16> to vector<4x128xbf16>
    %cst_87 = arith.constant dense<0.000000e+00> : vector<512x128xf32>
    %57 = tpu.matmul %54, %56, %cst_87 {dimension_numbers = #tpu.dot_dimension_numbers<[1], [0], [0], [1], [0, 0, 1, 1], [], []>} : vector<512x4xbf16>, vector<4x128xbf16>, vector<512x128xf32> -> vector<512x128xf32>
    %c0_88 = arith.constant 0 : index
    %c0_89 = arith.constant 0 : index
    %58 = vector.load %arg6[%c0_88, %c0_89] : memref<512x128xf32, #tpu.memory_space<vmem>>, vector<512x128xf32>
    %59 = arith.addf %58, %57 : vector<512x128xf32>
    %c0_90 = arith.constant 0 : index
    %c0_91 = arith.constant 0 : index
    %60 = vector.load %arg6[%c0_90, %c0_91] : memref<512x128xf32, #tpu.memory_space<vmem>>, vector<512x128xf32>
    tpu.vector_store %arg6[%c0_90, %c0_91], %59 {strides = array<i32>} : memref<512x128xf32, #tpu.memory_space<vmem>>, vector<512x128xf32>,
    %c0_92 = arith.constant 0 : index
    %c0_93 = arith.constant 0 : index
    %c2_94 = arith.constant 2 : index
    %c1_95 = arith.constant 1 : index
    %c0_96 = arith.constant 0 : index
    %61 = vector.load %arg2[%c0_92, %c0_93, %c2_94, %c1_95, %c0_96] : memref<2x1x18x18x4xbf16, #tpu.memory_space<vmem>>, vector<2x1x16x16x4xbf16>
    %62 = vector.shape_cast %61 : vector<2x1x16x16x4xbf16> to vector<2x16x16x4xbf16>
    %63 = vector.shape_cast %62 : vector<2x16x16x4xbf16> to vector<512x4xbf16>
    %c2_97 = arith.constant 2 : index
    %c1_98 = arith.constant 1 : index
    %c0_99 = arith.constant 0 : index
    %c0_100 = arith.constant 0 : index
    %64 = vector.load %arg3[%c2_97, %c1_98, %c0_99, %c0_100] : memref<3x3x4x128xbf16, #tpu.memory_space<vmem>>, vector<1x1x4x128xbf16>
    %65 = vector.shape_cast %64 : vector<1x1x4x128xbf16> to vector<4x128xbf16>
    %cst_101 = arith.constant dense<0.000000e+00> : vector<512x128xf32>
    %66 = tpu.matmul %63, %65, %cst_101 {dimension_numbers = #tpu.dot_dimension_numbers<[1], [0], [0], [1], [0, 0, 1, 1], [], []>} : vector<512x4xbf16>, vector<4x128xbf16>, vector<512x128xf32> -> vector<512x128xf32>
    %c0_102 = arith.constant 0 : index
    %c0_103 = arith.constant 0 : index
    %67 = vector.load %arg6[%c0_102, %c0_103] : memref<512x128xf32, #tpu.memory_space<vmem>>, vector<512x128xf32>
    %68 = arith.addf %67, %66 : vector<512x128xf32>
    %c0_104 = arith.constant 0 : index
    %c0_105 = arith.constant 0 : index
    %69 = vector.load %arg6[%c0_104, %c0_105] : memref<512x128xf32, #tpu.memory_space<vmem>>, vector<512x128xf32>
    tpu.vector_store %arg6[%c0_104, %c0_105], %68 {strides = array<i32>} : memref<512x128xf32, #tpu.memory_space<vmem>>, vector<512x128xf32>,
    %c0_106 = arith.constant 0 : index
    %c0_107 = arith.constant 0 : index
    %c2_108 = arith.constant 2 : index
    %c2_109 = arith.constant 2 : index
    %c0_110 = arith.constant 0 : index
    %70 = vector.load %arg2[%c0_106, %c0_107, %c2_108, %c2_109, %c0_110] : memref<2x1x18x18x4xbf16, #tpu.memory_space<vmem>>, vector<2x1x16x16x4xbf16>
    %71 = vector.shape_cast %70 : vector<2x1x16x16x4xbf16> to vector<2x16x16x4xbf16>
    %72 = vector.shape_cast %71 : vector<2x16x16x4xbf16> to vector<512x4xbf16>
    %c2_111 = arith.constant 2 : index
    %c2_112 = arith.constant 2 : index
    %c0_113 = arith.constant 0 : index
    %c0_114 = arith.constant 0 : index
    %73 = vector.load %arg3[%c2_111, %c2_112, %c0_113, %c0_114] : memref<3x3x4x128xbf16, #tpu.memory_space<vmem>>, vector<1x1x4x128xbf16>
    %74 = vector.shape_cast %73 : vector<1x1x4x128xbf16> to vector<4x128xbf16>
    %cst_115 = arith.constant dense<0.000000e+00> : vector<512x128xf32>
    %75 = tpu.matmul %72, %74, %cst_115 {dimension_numbers = #tpu.dot_dimension_numbers<[1], [0], [0], [1], [0, 0, 1, 1], [], []>} : vector<512x4xbf16>, vector<4x128xbf16>, vector<512x128xf32> -> vector<512x128xf32>
    %c0_116 = arith.constant 0 : index
    %c0_117 = arith.constant 0 : index
    %76 = vector.load %arg6[%c0_116, %c0_117] : memref<512x128xf32, #tpu.memory_space<vmem>>, vector<512x128xf32>
    %77 = arith.addf %76, %75 : vector<512x128xf32>
    %c0_118 = arith.constant 0 : index
    %c0_119 = arith.constant 0 : index
    %78 = vector.load %arg6[%c0_118, %c0_119] : memref<512x128xf32, #tpu.memory_space<vmem>>, vector<512x128xf32>
    tpu.vector_store %arg6[%c0_118, %c0_119], %77 {strides = array<i32>} : memref<512x128xf32, #tpu.memory_space<vmem>>, vector<512x128xf32>,
    %c0_120 = arith.constant 0 : index
    %c0_121 = arith.constant 0 : index
    %79 = vector.load %arg6[%c0_120, %c0_121] : memref<512x128xf32, #tpu.memory_space<vmem>>, vector<512x128xf32>
    %80 = vector.shape_cast %79 : vector<512x128xf32> to vector<2x16x16x128xf32>
    %81 = arith.truncf %80 : vector<2x16x16x128xf32> to vector<2x16x16x128xbf16>
    %c0_122 = arith.constant 0 : index
    %c0_123 = arith.constant 0 : index
    %c0_124 = arith.constant 0 : index
    %c0_125 = arith.constant 0 : index
    %82 = vector.load %arg4[%c0_122, %c0_123, %c0_124, %c0_125] : memref<2x16x16x128xbf16, #tpu.memory_space<vmem>>, vector<2x16x16x128xbf16>
    tpu.vector_store %arg4[%c0_122, %c0_123, %c0_124, %c0_125], %81 {strides = array<i32>} : memref<2x16x16x128xbf16, #tpu.memory_space<vmem>>, vector<2x16x16x128xbf16>,
    %cst_126 = arith.constant dense<0.000000e+00> : vector<128xf32>
    %83 = vector.multi_reduction <add>, %79, %cst_126 [0] : vector<512x128xf32> to vector<128xf32>
    %84 = vector.shape_cast %83 : vector<128xf32> to vector<1x128xf32>
    %cst_127 = arith.constant 0.001953125 : f32
    %85 = vector.broadcast %cst_127 : f32 to vector<1x128xf32>
    %86 = arith.mulf %84, %85 : vector<1x128xf32>
    %87 = vector.broadcast %86 : vector<1x128xf32> to vector<512x128xf32>
    %88 = arith.subf %79, %87 : vector<512x128xf32>
    %89 = arith.mulf %88, %88 : vector<512x128xf32>
    %cst_128 = arith.constant dense<0.000000e+00> : vector<128xf32>
    %90 = vector.multi_reduction <add>, %89, %cst_128 [0] : vector<512x128xf32> to vector<128xf32>
    %91 = vector.shape_cast %90 : vector<128xf32> to vector<1x128xf32>
    %92 = tpu.concatenate %84, %91 in 0 : vector<1x128xf32>, vector<1x128xf32> -> vector<2x128xf32>
    %93 = vector.shape_cast %92 : vector<2x128xf32> to vector<1x1x2x128xf32>
    %c0_129 = arith.constant 0 : index
    %c0_130 = arith.constant 0 : index
    %c0_131 = arith.constant 0 : index
    %c0_132 = arith.constant 0 : index
    %94 = vector.load %arg5[%c0_129, %c0_130, %c0_131, %c0_132] : memref<1x1x2x128xf32, #tpu.memory_space<vmem>>, vector<1x1x2x128xf32>
    tpu.vector_store %arg5[%c0_129, %c0_130, %c0_131, %c0_132], %93 {strides = array<i32>} : memref<1x1x2x128xf32, #tpu.memory_space<vmem>>, vector<1x1x2x128xf32>,
    return
  }
  func.func @transform_0(%arg0: i32, %arg1: i32) -> (i32, i32, i32, i32, i32) {
    %c0_i32 = arith.constant 0 : i32
    %c0_i32_0 = arith.constant 0 : i32
    %c0_i32_1 = arith.constant 0 : i32
    %c0_i32_2 = arith.constant 0 : i32
    return %arg0, %arg1, %c0_i32, %c0_i32_0, %c0_i32_1 : i32, i32, i32, i32, i32
  }
  func.func @transform_1(%arg0: i32, %arg1: i32) -> (i32, i32, i32, i32) {
    %c0_i32 = arith.constant 0 : i32
    %c0_i32_0 = arith.constant 0 : i32
    %c0_i32_1 = arith.constant 0 : i32
    %c0_i32_2 = arith.constant 0 : i32
    %c0_i32_3 = arith.constant 0 : i32
    return %c0_i32, %c0_i32_0, %c0_i32_1, %c0_i32_2 : i32, i32, i32, i32
  }
  func.func @transform_2(%arg0: i32, %arg1: i32) -> (i32, i32, i32, i32) {
    %c0_i32 = arith.constant 0 : i32
    %c0_i32_0 = arith.constant 0 : i32
    %c0_i32_1 = arith.constant 0 : i32
    return %arg0, %arg1, %c0_i32, %c0_i32_0 : i32, i32, i32, i32
  }
  func.func @transform_3(%arg0: i32, %arg1: i32) -> (i32, i32, i32, i32) {
    %c0_i32 = arith.constant 0 : i32
    %c0_i32_0 = arith.constant 0 : i32
    %c0_i32_1 = arith.constant 0 : i32
    return %arg0, %arg1, %c0_i32, %c0_i32_0 : i32, i32, i32, i32
  }
}

</mosaic_0001>

<llo_original>
// kernel: tpu_custom_call.1
$region0: #{tpu_custom_call.1}
  #allocation0 [shape = 'u32[]', space=smem, size = 0x4, offset = 0x4, fixed_abs, tag = 'smem constant byte address 0x4 - core index']
  #allocation1 [shape = 'u32[144,128]{1,0:T(1,128)}', space=vmem, size = 0x12000, scoped, tag = 'internal scratch']
  #allocation2 [shape = 'f32[512,128]{1,0:T(8,128)}', space=vmem, size = 0x40000, scoped, tag = 'scratch operand']
  %s0 = inlined_call_operand.vmem [shape: bf16[2,1,18,18,4], index: 0, kind: input, shape index: {}]
  %s1 = inlined_call_operand.vmem [shape: bf16[3,3,4,128], index: 1, kind: input, shape index: {}]
  %s2 = inlined_call_operand.hbm [shape: bf16[2,16,16,128], index: 2, kind: output, shape index: {0}]
  %s3 = inlined_call_operand.hbm [shape: f32[1,1,2,128], index: 3, kind: output, shape index: {1}]
  %4 = xla_tuple %s2, %s3
  %s5 = sld [smem:[#allocation0]]
  $region26: #{tpu_custom_call.1} parent=0
    _
  %s7 = ssub.s32 1, %s5
  %s8 = scalar_select 0, %s7, %s5
  $region1: #{tpu_custom_call.1} parent=0
    #allocation3 [shape = 'u8[131072]{0}', space=vmem, size = 0x20000, scoped, tag = 'output window, operand 0, single buffered']
    #allocation4 [shape = 's32[1]{0}', space=sflag, size = 0x4, scoped, tag = 'scoped memory for tpu_custom_call.1']
    #allocation5 [shape = 'u8[1024]{0}', space=vmem, size = 0x400, scoped, tag = 'output window, operand 1, single buffered']
    #allocation6 [shape = 's32[1]{0}', space=sflag, size = 0x4, scoped, tag = 'scoped memory for tpu_custom_call.1']
    %9 = vsyncpa [#allocation4], 0
    %10 = vsyncpa [#allocation6], 0
    // Predicated region
    $region2: #{tpu_custom_call.1} parent=1 // pred_check
      _
    $region3: #{tpu_custom_call.1} parent=1 // pred_check_branch
      %12 = sbr.rel (0) target = $region5
    $region4: #{tpu_custom_call.1} parent=1 // pred_region
      _
    $region5: #{tpu_custom_call.1} parent=1 // pred_fallthru
      _
    // Predicated region
    $region6: #{tpu_custom_call.1} parent=1 // pred_check
      _
    $region7: #{tpu_custom_call.1} parent=1 // pred_check_branch
      %14 = sbr.rel (0) target = $region9
    $region8: #{tpu_custom_call.1} parent=1 // pred_region
      _
    $region9: #{tpu_custom_call.1} parent=1 // pred_fallthru
      _
    %v16 = vld [vmem:[%s0] sm:$0xf]
    %v17 = vld [vmem:[%s0 + $0x4] sm:$0xf]
    %v18 = vld [vmem:[%s0 + $0xc] sm:$0xf]
    %v19 = vld [vmem:[%s0 + $0x10] sm:$0xf]
    %v20 = vld [vmem:[%s0 + $0x18] sm:$0xf]
    %v21 = vld [vmem:[%s0 + $0x1c] sm:$0xf]
    %v22 = vld [vmem:[%s0 + $0x24] sm:$0xf]
    %v23 = vld [vmem:[%s0 + $0x28] sm:$0xf]
    %v24 = vld [vmem:[%s0 + $0x30] sm:$0xf]
    %v25 = vld [vmem:[%s0 + $0x34] sm:$0xf]
    %v26 = vld [vmem:[%s0 + $0x3c] sm:$0xf]
    %v27 = vld [vmem:[%s0 + $0x40] sm:$0xf]
    %v28 = vld [vmem:[%s0 + $0x48] sm:$0xf]
    %v29 = vld [vmem:[%s0 + $0x4c] sm:$0xf]
    %v30 = vld [vmem:[%s0 + $0x54] sm:$0xf]
    %v31 = vld [vmem:[%s0 + $0x58] sm:$0xf]
    %v32 = vld [vmem:[%s0 + $0x60] sm:$0xf]
    %v33 = vld [vmem:[%s0 + $0x64] sm:$0xf]
    %v34 = vld [vmem:[%s0 + $0x6c] sm:$0xf]
    %v35 = vld [vmem:[%s0 + $0x70] sm:$0xf]
    %v36 = vld [vmem:[%s0 + $0x78] sm:$0xf]
    %v37 = vld [vmem:[%s0 + $0x7c] sm:$0xf]
    %v38 = vld [vmem:[%s0 + $0x84] sm:$0xf]
    %v39 = vld [vmem:[%s0 + $0x88] sm:$0xf]
    %v40 = vld [vmem:[%s0 + $0x90] sm:$0xf]
    %v41 = vld [vmem:[%s0 + $0x94] sm:$0xf]
    %v42 = vld [vmem:[%s0 + $0x9c] sm:$0xf]
    %v43 = vld [vmem:[%s0 + $0xa0] sm:$0xf]
    %v44 = vld [vmem:[%s0 + $0xa8] sm:$0xf]
    %v45 = vld [vmem:[%s0 + $0xac] sm:$0xf]
    %v46 = vld [vmem:[%s0 + $0xb4] sm:$0xf]
    %v47 = vld [vmem:[%s0 + $0xb8] sm:$0xf]
    %v48 = vld [vmem:[%s0 + $0xd8] sm:$0xf]
    %v49 = vld [vmem:[%s0 + $0xdc] sm:$0xf]
    %v50 = vld [vmem:[%s0 + $0xe4] sm:$0xf]
    %v51 = vld [vmem:[%s0 + $0xe8] sm:$0xf]
    %v52 = vld [vmem:[%s0 + $0xf0] sm:$0xf]
    %v53 = vld [vmem:[%s0 + $0xf4] sm:$0xf]
    %v54 = vld [vmem:[%s0 + $0xfc] sm:$0xf]
    %v55 = vld [vmem:[%s0 + $0x100] sm:$0xf]
    %v56 = vld [vmem:[%s0 + $0x108] sm:$0xf]
    %v57 = vld [vmem:[%s0 + $0x10c] sm:$0xf]
    %v58 = vld [vmem:[%s0 + $0x114] sm:$0xf]
    %v59 = vld [vmem:[%s0 + $0x118] sm:$0xf]
    %v60 = vld [vmem:[%s0 + $0x120] sm:$0xf]
    %v61 = vld [vmem:[%s0 + $0x124] sm:$0xf]
    %v62 = vld [vmem:[%s0 + $0x12c] sm:$0xf]
    %v63 = vld [vmem:[%s0 + $0x130] sm:$0xf]
    %v64 = vld [vmem:[%s0 + $0x138] sm:$0xf]
    %v65 = vld [vmem:[%s0 + $0x13c] sm:$0xf]
    %v66 = vld [vmem:[%s0 + $0x144] sm:$0xf]
    %v67 = vld [vmem:[%s0 + $0x148] sm:$0xf]
    %v68 = vld [vmem:[%s0 + $0x150] sm:$0xf]
    %v69 = vld [vmem:[%s0 + $0x154] sm:$0xf]
    %v70 = vld [vmem:[%s0 + $0x15c] sm:$0xf]
    %v71 = vld [vmem:[%s0 + $0x160] sm:$0xf]
    %v72 = vld [vmem:[%s0 + $0x168] sm:$0xf]
    %v73 = vld [vmem:[%s0 + $0x16c] sm:$0xf]
    %v74 = vld [vmem:[%s0 + $0x174] sm:$0xf]
    %v75 = vld [vmem:[%s0 + $0x178] sm:$0xf]
    %v76 = vld [vmem:[%s0 + $0x180] sm:$0xf]
    %v77 = vld [vmem:[%s0 + $0x184] sm:$0xf]
    %v78 = vld [vmem:[%s0 + $0x18c] sm:$0xf]
    %v79 = vld [vmem:[%s0 + $0x190] sm:$0xf]
    %v80 = vld [vmem:[%s1] sm:$0x3]
    %v145 = vunpack.c.l.b16 %v16
    %v146 = vunpack.c.l.b16 %v17
    %v147 = vunpack.c.l.b16 %v18
    %v148 = vunpack.c.l.b16 %v19
    %v149 = vunpack.c.l.b16 %v20
    %v150 = vunpack.c.l.b16 %v21
    %v151 = vunpack.c.l.b16 %v22
    %v152 = vunpack.c.l.b16 %v23
    %v153 = vunpack.c.l.b16 %v24
    %v154 = vunpack.c.l.b16 %v25
    %v155 = vunpack.c.l.b16 %v26
    %v156 = vunpack.c.l.b16 %v27
    %v157 = vunpack.c.l.b16 %v28
    %v158 = vunpack.c.l.b16 %v29
    %v159 = vunpack.c.l.b16 %v30
    %v160 = vunpack.c.l.b16 %v31
    %v161 = vunpack.c.l.b16 %v32
    %v162 = vunpack.c.l.b16 %v33
    %v163 = vunpack.c.l.b16 %v34
    %v164 = vunpack.c.l.b16 %v35
    %v165 = vunpack.c.l.b16 %v36
    %v166 = vunpack.c.l.b16 %v37
    %v167 = vunpack.c.l.b16 %v38
    %v168 = vunpack.c.l.b16 %v39
    %v169 = vunpack.c.l.b16 %v40
    %v170 = vunpack.c.l.b16 %v41
    %v171 = vunpack.c.l.b16 %v42
    %v172 = vunpack.c.l.b16 %v43
    %v173 = vunpack.c.l.b16 %v44
    %v174 = vunpack.c.l.b16 %v45
    %v175 = vunpack.c.l.b16 %v46
    %v176 = vunpack.c.l.b16 %v47
    %v177 = vunpack.c.l.b16 %v48
    %v178 = vunpack.c.l.b16 %v49
    %v179 = vunpack.c.l.b16 %v50
    %v180 = vunpack.c.l.b16 %v51
    %v181 = vunpack.c.l.b16 %v52
    %v182 = vunpack.c.l.b16 %v53
    %v183 = vunpack.c.l.b16 %v54
    %v184 = vunpack.c.l.b16 %v55
    %v185 = vunpack.c.l.b16 %v56
    %v186 = vunpack.c.l.b16 %v57
    %v187 = vunpack.c.l.b16 %v58
    %v188 = vunpack.c.l.b16 %v59
    %v189 = vunpack.c.l.b16 %v60
    %v190 = vunpack.c.l.b16 %v61
    %v191 = vunpack.c.l.b16 %v62
    %v192 = vunpack.c.l.b16 %v63
    %v193 = vunpack.c.l.b16 %v64
    %v194 = vunpack.c.l.b16 %v65
    %v195 = vunpack.c.l.b16 %v66
    %v196 = vunpack.c.l.b16 %v67
    %v197 = vunpack.c.l.b16 %v68
    %v198 = vunpack.c.l.b16 %v69
    %v199 = vunpack.c.l.b16 %v70
    %v200 = vunpack.c.l.b16 %v71
    %v201 = vunpack.c.l.b16 %v72
    %v202 = vunpack.c.l.b16 %v73
    %v203 = vunpack.c.l.b16 %v74
    %v204 = vunpack.c.l.b16 %v75
    %v205 = vunpack.c.l.b16 %v76
    %v206 = vunpack.c.l.b16 %v77
    %v207 = vunpack.c.l.b16 %v78
    %v208 = vunpack.c.l.b16 %v79
    %v209 = vpack.c.b16 %v146, %v145
    %v210 = vpack.c.b16 %v148, %v147
    %v211 = vpack.c.b16 %v150, %v149
    %v212 = vpack.c.b16 %v152, %v151
    %v213 = vpack.c.b16 %v154, %v153
    %v214 = vpack.c.b16 %v156, %v155
    %v215 = vpack.c.b16 %v158, %v157
    %v216 = vpack.c.b16 %v160, %v159
    %v217 = vpack.c.b16 %v162, %v161
    %v218 = vpack.c.b16 %v164, %v163
    %v219 = vpack.c.b16 %v166, %v165
    %v220 = vpack.c.b16 %v168, %v167
    %v221 = vpack.c.b16 %v170, %v169
    %v222 = vpack.c.b16 %v172, %v171
    %v223 = vpack.c.b16 %v174, %v173
    %v224 = vpack.c.b16 %v176, %v175
    %v225 = vpack.c.b16 %v178, %v177
    %v226 = vpack.c.b16 %v180, %v179
    %v227 = vpack.c.b16 %v182, %v181
    %v228 = vpack.c.b16 %v184, %v183
    %v229 = vpack.c.b16 %v186, %v185
    %v230 = vpack.c.b16 %v188, %v187
    %v231 = vpack.c.b16 %v190, %v189
    %v232 = vpack.c.b16 %v192, %v191
    %v233 = vpack.c.b16 %v194, %v193
    %v234 = vpack.c.b16 %v196, %v195
    %v235 = vpack.c.b16 %v198, %v197
    %v236 = vpack.c.b16 %v200, %v199
    %v237 = vpack.c.b16 %v202, %v201
    %v238 = vpack.c.b16 %v204, %v203
    %v239 = vpack.c.b16 %v206, %v205
    %v240 = vpack.c.b16 %v208, %v207
    %vm241 = vcmask 31744
    %v243 = vsel %vm241, %v209, 0
    %v246 = vsel %vm241, %v210, 0
    %v249 = vsel %vm241, %v211, 0
    %v252 = vsel %vm241, %v212, 0
    %v255 = vsel %vm241, %v213, 0
    %v258 = vsel %vm241, %v214, 0
    %v261 = vsel %vm241, %v215, 0
    %v264 = vsel %vm241, %v216, 0
    %v267 = vsel %vm241, %v217, 0
    %v270 = vsel %vm241, %v218, 0
    %v273 = vsel %vm241, %v219, 0
    %v276 = vsel %vm241, %v220, 0
    %v279 = vsel %vm241, %v221, 0
    %v282 = vsel %vm241, %v222, 0
    %v285 = vsel %vm241, %v223, 0
    %v288 = vsel %vm241, %v224, 0
    %v291 = vsel %vm241, %v225, 0
    %v294 = vsel %vm241, %v226, 0
    %v297 = vsel %vm241, %v227, 0
    %v300 = vsel %vm241, %v228, 0
    %v303 = vsel %vm241, %v229, 0
    %v306 = vsel %vm241, %v230, 0
    %v309 = vsel %vm241, %v231, 0
    %v312 = vsel %vm241, %v232, 0
    %v315 = vsel %vm241, %v233, 0
    %v318 = vsel %vm241, %v234, 0
    %v321 = vsel %vm241, %v235, 0
    %v324 = vsel %vm241, %v236, 0
    %v327 = vsel %vm241, %v237, 0
    %v330 = vsel %vm241, %v238, 0
    %v333 = vsel %vm241, %v239, 0
    %v336 = vsel %vm241, %v240, 0
    %vm338 = vcmask 1041408
    %v340 = vsel %vm338, %v80, 0
    %342 = vmatprep.subr.bf16.mxu0 0
    %343 = vmatpush1.bf16.msra.mxu0 0
    %344 = vmatprep.subr.bf16.mxu0 0
    %345 = vmatpush1.bf16.msra.mxu0 0
    %346 = vmatprep.subr.bf16.mxu0 0
    %347 = vmatpush1.bf16.msra.mxu0 0
    %348 = vmatprep.subr.bf16.mxu0 0
    %349 = vmatpush1.bf16.msra.mxu0 0
    %350 = vmatprep.subr.bf16.mxu0 0
    %351 = vmatpush1.bf16.msra.mxu0 0
    %352 = vmatprep.subr.bf16.mxu0 0
    %353 = vmatpush1.bf16.msra.mxu0 0
    %354 = vmatprep.subr.bf16.mxu0 0
    %355 = vmatpush1.bf16.msra.mxu0 0
    %356 = vmatprep.subr.bf16.mxu0 0
    %357 = vmatpush1.bf16.msra.mxu0 %v340
    %358 = vmatprep.subr.bf16.mxu0 0
    %359 = vmatpush2.bf16.msra.mxu0 0
    %360 = vmatprep.subr.bf16.mxu0 0
    %361 = vmatpush2.bf16.msra.mxu0 0
    %362 = vmatprep.subr.bf16.mxu0 0
    %363 = vmatpush2.bf16.msra.mxu0 0
    %364 = vmatprep.subr.bf16.mxu0 0
    %365 = vmatpush2.bf16.msra.mxu0 0
    %366 = vmatprep.subr.bf16.mxu0 0
    %367 = vmatpush2.bf16.msra.mxu0 0
    %368 = vmatprep.subr.bf16.mxu0 0
    %369 = vmatpush2.bf16.msra.mxu0 0
    %370 = vmatprep.subr.bf16.mxu0 0
    %371 = vmatpush2.bf16.msra.mxu0 0
    %372 = vmatprep.subr.bf16.mxu0 0
    %373 = vmatpush2.bf16.msra.mxu0 0
    %374 = vmatprep.mubr.bf16.mxu0 0
    %375 = vmatmul.mubr.bf16.gmra.mxu0 %v243
    %v376 = vpop.f32.mrf.mxu0
    %v377 = vadd.f32 0.0, %v376
    %v378 = vpop.f32.mrf.mxu0
    %v379 = vpop.f32.mrf.mxu0
    %v380 = vadd.f32 0.0, %v379
    %v381 = vpop.f32.mrf.mxu0
    %382 = vmatprep.mubr.bf16.mxu0 0
    %383 = vmatmul.mubr.bf16.gmra.mxu0 %v246
    %v384 = vpop.f32.mrf.mxu0
    %v385 = vadd.f32 0.0, %v384
    %v386 = vpop.f32.mrf.mxu0
    %v387 = vpop.f32.mrf.mxu0
    %v388 = vadd.f32 0.0, %v387
    %v389 = vpop.f32.mrf.mxu0
    %390 = vmatprep.mubr.bf16.mxu0 0
    %391 = vmatmul.mubr.bf16.gmra.mxu0 %v249
    %v392 = vpop.f32.mrf.mxu0
    %v393 = vadd.f32 0.0, %v392
    %v394 = vpop.f32.mrf.mxu0
    %v395 = vpop.f32.mrf.mxu0
    %v396 = vadd.f32 0.0, %v395
    %v397 = vpop.f32.mrf.mxu0
    %398 = vmatprep.mubr.bf16.mxu0 0
    %399 = vmatmul.mubr.bf16.gmra.mxu0 %v252
    %v400 = vpop.f32.mrf.mxu0
    %v401 = vadd.f32 0.0, %v400
    %v402 = vpop.f32.mrf.mxu0
    %v403 = vpop.f32.mrf.mxu0
    %v404 = vadd.f32 0.0, %v403
    %v405 = vpop.f32.mrf.mxu0
    %406 = vmatprep.mubr.bf16.mxu0 0
    %407 = vmatmul.mubr.bf16.gmra.mxu0 %v255
    %v408 = vpop.f32.mrf.mxu0
    %v409 = vadd.f32 0.0, %v408
    %v410 = vpop.f32.mrf.mxu0
    %v411 = vpop.f32.mrf.mxu0
    %v412 = vadd.f32 0.0, %v411
    %v413 = vpop.f32.mrf.mxu0
    %414 = vmatprep.mubr.bf16.mxu0 0
    %415 = vmatmul.mubr.bf16.gmra.mxu0 %v258
    %v416 = vpop.f32.mrf.mxu0
    %v417 = vadd.f32 0.0, %v416
    %v418 = vpop.f32.mrf.mxu0
    %v419 = vpop.f32.mrf.mxu0
    %v420 = vadd.f32 0.0, %v419
    %v421 = vpop.f32.mrf.mxu0
    %422 = vmatprep.mubr.bf16.mxu0 0
    %423 = vmatmul.mubr.bf16.gmra.mxu0 %v261
    %v424 = vpop.f32.mrf.mxu0
    %v425 = vadd.f32 0.0, %v424
    %v426 = vpop.f32.mrf.mxu0
    %v427 = vpop.f32.mrf.mxu0
    %v428 = vadd.f32 0.0, %v427
    %v429 = vpop.f32.mrf.mxu0
    %430 = vmatprep.mubr.bf16.mxu0 0
    %431 = vmatmul.mubr.bf16.gmra.mxu0 %v264
    %v432 = vpop.f32.mrf.mxu0
    %v433 = vadd.f32 0.0, %v432
    %v434 = vpop.f32.mrf.mxu0
    %v435 = vpop.f32.mrf.mxu0
    %v436 = vadd.f32 0.0, %v435
    %v437 = vpop.f32.mrf.mxu0
    %438 = vmatprep.mubr.bf16.mxu0 0
    %439 = vmatmul.mubr.bf16.gmra.mxu0 %v267
    %v440 = vpop.f32.mrf.mxu0
    %v441 = vadd.f32 0.0, %v440
    %v442 = vpop.f32.mrf.mxu0
    %v443 = vpop.f32.mrf.mxu0
    %v444 = vadd.f32 0.0, %v443
    %v445 = vpop.f32.mrf.mxu0
    %446 = vmatprep.mubr.bf16.mxu0 0
    %447 = vmatmul.mubr.bf16.gmra.mxu0 %v270
    %v448 = vpop.f32.mrf.mxu0
    %v449 = vadd.f32 0.0, %v448
    %v450 = vpop.f32.mrf.mxu0
    %v451 = vpop.f32.mrf.mxu0
    %v452 = vadd.f32 0.0, %v451
    %v453 = vpop.f32.mrf.mxu0
    %454 = vmatprep.mubr.bf16.mxu0 0
    %455 = vmatmul.mubr.bf16.gmra.mxu0 %v273
    %v456 = vpop.f32.mrf.mxu0
    %v457 = vadd.f32 0.0, %v456
    %v458 = vpop.f32.mrf.mxu0
    %v459 = vpop.f32.mrf.mxu0
    %v460 = vadd.f32 0.0, %v459
    %v461 = vpop.f32.mrf.mxu0
    %462 = vmatprep.mubr.bf16.mxu0 0
    %463 = vmatmul.mubr.bf16.gmra.mxu0 %v276
    %v464 = vpop.f32.mrf.mxu0
    %v465 = vadd.f32 0.0, %v464
    %v466 = vpop.f32.mrf.mxu0
    %v467 = vpop.f32.mrf.mxu0
    %v468 = vadd.f32 0.0, %v467
    %v469 = vpop.f32.mrf.mxu0
    %470 = vmatprep.mubr.bf16.mxu0 0
    %471 = vmatmul.mubr.bf16.gmra.mxu0 %v279
    %v472 = vpop.f32.mrf.mxu0
    %v473 = vadd.f32 0.0, %v472
    %v474 = vpop.f32.mrf.mxu0
    %v475 = vpop.f32.mrf.mxu0
    %v476 = vadd.f32 0.0, %v475
    %v477 = vpop.f32.mrf.mxu0
    %478 = vmatprep.mubr.bf16.mxu0 0
    %479 = vmatmul.mubr.bf16.gmra.mxu0 %v282
    %v480 = vpop.f32.mrf.mxu0
    %v481 = vadd.f32 0.0, %v480
    %v482 = vpop.f32.mrf.mxu0
    %v483 = vpop.f32.mrf.mxu0
    %v484 = vadd.f32 0.0, %v483
    %v485 = vpop.f32.mrf.mxu0
    %486 = vmatprep.mubr.bf16.mxu0 0
    %487 = vmatmul.mubr.bf16.gmra.mxu0 %v285
    %v488 = vpop.f32.mrf.mxu0
    %v489 = vadd.f32 0.0, %v488
    %v490 = vpop.f32.mrf.mxu0
    %v491 = vpop.f32.mrf.mxu0
    %v492 = vadd.f32 0.0, %v491
    %v493 = vpop.f32.mrf.mxu0
    %494 = vmatprep.mubr.bf16.mxu0 0
    %495 = vmatmul.mubr.bf16.gmra.mxu0 %v288
    %v496 = vpop.f32.mrf.mxu0
    %v497 = vadd.f32 0.0, %v496
    %v498 = vpop.f32.mrf.mxu0
    %v499 = vpop.f32.mrf.mxu0
    %v500 = vadd.f32 0.0, %v499
    %v501 = vpop.f32.mrf.mxu0
    %502 = vmatprep.mubr.bf16.mxu0 0
    %503 = vmatmul.mubr.bf16.gmra.mxu0 %v291
    %v504 = vpop.f32.mrf.mxu0
    %v505 = vadd.f32 0.0, %v504
    %v506 = vpop.f32.mrf.mxu0
    %v507 = vpop.f32.mrf.mxu0
    %v508 = vadd.f32 0.0, %v507
    %v509 = vpop.f32.mrf.mxu0
    %510 = vmatprep.mubr.bf16.mxu0 0
    %511 = vmatmul.mubr.bf16.gmra.mxu0 %v294
    %v512 = vpop.f32.mrf.mxu0
    %v513 = vadd.f32 0.0, %v512
    %v514 = vpop.f32.mrf.mxu0
    %v515 = vpop.f32.mrf.mxu0
    %v516 = vadd.f32 0.0, %v515
    %v517 = vpop.f32.mrf.mxu0
    %518 = vmatprep.mubr.bf16.mxu0 0
    %519 = vmatmul.mubr.bf16.gmra.mxu0 %v297
    %v520 = vpop.f32.mrf.mxu0
    %v521 = vadd.f32 0.0, %v520
    %v522 = vpop.f32.mrf.mxu0
    %v523 = vpop.f32.mrf.mxu0
    %v524 = vadd.f32 0.0, %v523
    %v525 = vpop.f32.mrf.mxu0
    %526 = vmatprep.mubr.bf16.mxu0 0
    %527 = vmatmul.mubr.bf16.gmra.mxu0 %v300
    %v528 = vpop.f32.mrf.mxu0
    %v529 = vadd.f32 0.0, %v528
    %v530 = vpop.f32.mrf.mxu0
    %v531 = vpop.f32.mrf.mxu0
    %v532 = vadd.f32 0.0, %v531
    %v533 = vpop.f32.mrf.mxu0
    %534 = vmatprep.mubr.bf16.mxu0 0
    %535 = vmatmul.mubr.bf16.gmra.mxu0 %v303
    %v536 = vpop.f32.mrf.mxu0
    %v537 = vadd.f32 0.0, %v536
    %v538 = vpop.f32.mrf.mxu0
    %v539 = vpop.f32.mrf.mxu0
    %v540 = vadd.f32 0.0, %v539
    %v541 = vpop.f32.mrf.mxu0
    %542 = vmatprep.mubr.bf16.mxu0 0
    %543 = vmatmul.mubr.bf16.gmra.mxu0 %v306
    %v544 = vpop.f32.mrf.mxu0
    %v545 = vadd.f32 0.0, %v544
    %v546 = vpop.f32.mrf.mxu0
    %v547 = vpop.f32.mrf.mxu0
    %v548 = vadd.f32 0.0, %v547
    %v549 = vpop.f32.mrf.mxu0
    %550 = vmatprep.mubr.bf16.mxu0 0
    %551 = vmatmul.mubr.bf16.gmra.mxu0 %v309
    %v552 = vpop.f32.mrf.mxu0
    %v553 = vadd.f32 0.0, %v552
    %v554 = vpop.f32.mrf.mxu0
    %v555 = vpop.f32.mrf.mxu0
    %v556 = vadd.f32 0.0, %v555
    %v557 = vpop.f32.mrf.mxu0
    %558 = vmatprep.mubr.bf16.mxu0 0
    %559 = vmatmul.mubr.bf16.gmra.mxu0 %v312
    %v560 = vpop.f32.mrf.mxu0
    %v561 = vadd.f32 0.0, %v560
    %v562 = vpop.f32.mrf.mxu0
    %v563 = vpop.f32.mrf.mxu0
    %v564 = vadd.f32 0.0, %v563
    %v565 = vpop.f32.mrf.mxu0
    %566 = vmatprep.mubr.bf16.mxu0 0
    %567 = vmatmul.mubr.bf16.gmra.mxu0 %v315
    %v568 = vpop.f32.mrf.mxu0
    %v569 = vadd.f32 0.0, %v568
    %v570 = vpop.f32.mrf.mxu0
    %v571 = vpop.f32.mrf.mxu0
    %v572 = vadd.f32 0.0, %v571
    %v573 = vpop.f32.mrf.mxu0
    %574 = vmatprep.mubr.bf16.mxu0 0
    %575 = vmatmul.mubr.bf16.gmra.mxu0 %v318
    %v576 = vpop.f32.mrf.mxu0
    %v577 = vadd.f32 0.0, %v576
    %v578 = vpop.f32.mrf.mxu0
    %v579 = vpop.f32.mrf.mxu0
    %v580 = vadd.f32 0.0, %v579
    %v581 = vpop.f32.mrf.mxu0
    %582 = vmatprep.mubr.bf16.mxu0 0
    %583 = vmatmul.mubr.bf16.gmra.mxu0 %v321
    %v584 = vpop.f32.mrf.mxu0
    %v585 = vadd.f32 0.0, %v584
    %v586 = vpop.f32.mrf.mxu0
    %v587 = vpop.f32.mrf.mxu0
    %v588 = vadd.f32 0.0, %v587
    %v589 = vpop.f32.mrf.mxu0
    %590 = vmatprep.mubr.bf16.mxu0 0
    %591 = vmatmul.mubr.bf16.gmra.mxu0 %v324
    %v592 = vpop.f32.mrf.mxu0
    %v593 = vadd.f32 0.0, %v592
    %v594 = vpop.f32.mrf.mxu0
    %v595 = vpop.f32.mrf.mxu0
    %v596 = vadd.f32 0.0, %v595
    %v597 = vpop.f32.mrf.mxu0
    %598 = vmatprep.mubr.bf16.mxu0 0
    %599 = vmatmul.mubr.bf16.gmra.mxu0 %v327
    %v600 = vpop.f32.mrf.mxu0
    %v601 = vadd.f32 0.0, %v600
    %v602 = vpop.f32.mrf.mxu0
    %v603 = vpop.f32.mrf.mxu0
    %v604 = vadd.f32 0.0, %v603
    %v605 = vpop.f32.mrf.mxu0
    %606 = vmatprep.mubr.bf16.mxu0 0
    %607 = vmatmul.mubr.bf16.gmra.mxu0 %v330
    %v608 = vpop.f32.mrf.mxu0
    %v609 = vadd.f32 0.0, %v608
    %v610 = vpop.f32.mrf.mxu0
    %v611 = vpop.f32.mrf.mxu0
    %v612 = vadd.f32 0.0, %v611
    %v613 = vpop.f32.mrf.mxu0
    %614 = vmatprep.mubr.bf16.mxu0 0
    %615 = vmatmul.mubr.bf16.gmra.mxu0 %v333
    %v616 = vpop.f32.mrf.mxu0
    %v617 = vadd.f32 0.0, %v616
    %v618 = vpop.f32.mrf.mxu0
    %v619 = vpop.f32.mrf.mxu0
    %v620 = vadd.f32 0.0, %v619
    %v621 = vpop.f32.mrf.mxu0
    %622 = vmatprep.mubr.bf16.mxu0 0
    %623 = vmatmul.mubr.bf16.gmra.mxu0 %v336
    %v624 = vpop.f32.mrf.mxu0
    %v625 = vadd.f32 0.0, %v624
    %v626 = vpop.f32.mrf.mxu0
    %v627 = vpop.f32.mrf.mxu0
    %v628 = vadd.f32 0.0, %v627
    %v629 = vpop.f32.mrf.mxu0
    %630 = vdwg.mxu0
    %631 = vst [vmem:[#allocation2] sm:$0xff] %v377
    %632 = vst [vmem:[#allocation2 + $0x8] sm:$0xff] %v380
    %633 = vst [vmem:[#allocation2 + $0x10] sm:$0xff] %v385
    %634 = vst [vmem:[#allocation2 + $0x18] sm:$0xff] %v388
    %635 = vst [vmem:[#allocation2 + $0x20] sm:$0xff] %v393
    %636 = vst [vmem:[#allocation2 + $0x28] sm:$0xff] %v396
    %637 = vst [vmem:[#allocation2 + $0x30] sm:$0xff] %v401
    %638 = vst [vmem:[#allocation2 + $0x38] sm:$0xff] %v404
    %639 = vst [vmem:[#allocation2 + $0x40] sm:$0xff] %v409
    %640 = vst [vmem:[#allocation2 + $0x48] sm:$0xff] %v412
    %641 = vst [vmem:[#allocation2 + $0x50] sm:$0xff] %v417
    %642 = vst [vmem:[#allocation2 + $0x58] sm:$0xff] %v420
    %643 = vst [vmem:[#allocation2 + $0x60] sm:$0xff] %v425
    %644 = vst [vmem:[#allocation2 + $0x68] sm:$0xff] %v428
    %645 = vst [vmem:[#allocation2 + $0x70] sm:$0xff] %v433
    %646 = vst [vmem:[#allocation2 + $0x78] sm:$0xff] %v436
    %647 = vst [vmem:[#allocation2 + $0x80] sm:$0xff] %v441
    %648 = vst [vmem:[#allocation2 + $0x88] sm:$0xff] %v444
    %649 = vst [vmem:[#allocation2 + $0x90] sm:$0xff] %v449
    %650 = vst [vmem:[#allocation2 + $0x98] sm:$0xff] %v452
    %651 = vst [vmem:[#allocation2 + $0xa0] sm:$0xff] %v457
    %652 = vst [vmem:[#allocation2 + $0xa8] sm:$0xff] %v460
    %653 = vst [vmem:[#allocation2 + $0xb0] sm:$0xff] %v465
    %654 = vst [vmem:[#allocation2 + $0xb8] sm:$0xff] %v468
    %655 = vst [vmem:[#allocation2 + $0xc0] sm:$0xff] %v473
    %656 = vst [vmem:[#allocation2 + $0xc8] sm:$0xff] %v476
    %657 = vst [vmem:[#allocation2 + $0xd0] sm:$0xff] %v481
    %658 = vst [vmem:[#allocation2 + $0xd8] sm:$0xff] %v484
    %659 = vst [vmem:[#allocation2 + $0xe0] sm:$0xff] %v489
    %660 = vst [vmem:[#allocation2 + $0xe8] sm:$0xff] %v492
    %661 = vst [vmem:[#allocation2 + $0xf0] sm:$0xff] %v497
    %662 = vst [vmem:[#allocation2 + $0xf8] sm:$0xff] %v500
    %663 = vst [vmem:[#allocation2 + $0x100] sm:$0xff] %v505
    %664 = vst [vmem:[#allocation2 + $0x108] sm:$0xff] %v508
    %665 = vst [vmem:[#allocation2 + $0x110] sm:$0xff] %v513
    %666 = vst [vmem:[#allocation2 + $0x118] sm:$0xff] %v516
    %667 = vst [vmem:[#allocation2 + $0x120] sm:$0xff] %v521
    %668 = vst [vmem:[#allocation2 + $0x128] sm:$0xff] %v524
    %669 = vst [vmem:[#allocation2 + $0x130] sm:$0xff] %v529
    %670 = vst [vmem:[#allocation2 + $0x138] sm:$0xff] %v532
    %671 = vst [vmem:[#allocation2 + $0x140] sm:$0xff] %v537
    %672 = vst [vmem:[#allocation2 + $0x148] sm:$0xff] %v540
    %673 = vst [vmem:[#allocation2 + $0x150] sm:$0xff] %v545
    %674 = vst [vmem:[#allocation2 + $0x158] sm:$0xff] %v548
    %675 = vst [vmem:[#allocation2 + $0x160] sm:$0xff] %v553
    %676 = vst [vmem:[#allocation2 + $0x168] sm:$0xff] %v556
    %677 = vst [vmem:[#allocation2 + $0x170] sm:$0xff] %v561
    %678 = vst [vmem:[#allocation2 + $0x178] sm:$0xff] %v564
    %679 = vst [vmem:[#allocation2 + $0x180] sm:$0xff] %v569
    %680 = vst [vmem:[#allocation2 + $0x188] sm:$0xff] %v572
    %681 = vst [vmem:[#allocation2 + $0x190] sm:$0xff] %v577
    %682 = vst [vmem:[#allocation2 + $0x198] sm:$0xff] %v580
    %683 = vst [vmem:[#allocation2 + $0x1a0] sm:$0xff] %v585
    %684 = vst [vmem:[#allocation2 + $0x1a8] sm:$0xff] %v588
    %685 = vst [vmem:[#allocation2 + $0x1b0] sm:$0xff] %v593
    %686 = vst [vmem:[#allocation2 + $0x1b8] sm:$0xff] %v596
    %687 = vst [vmem:[#allocation2 + $0x1c0] sm:$0xff] %v601
    %688 = vst [vmem:[#allocation2 + $0x1c8] sm:$0xff] %v604
    %689 = vst [vmem:[#allocation2 + $0x1d0] sm:$0xff] %v609
    %690 = vst [vmem:[#allocation2 + $0x1d8] sm:$0xff] %v612
    %691 = vst [vmem:[#allocation2 + $0x1e0] sm:$0xff] %v617
    %692 = vst [vmem:[#allocation2 + $0x1e8] sm:$0xff] %v620
    %693 = vst [vmem:[#allocation2 + $0x1f0] sm:$0xff] %v625
    %694 = vst [vmem:[#allocation2 + $0x1f8] sm:$0xff] %v628
    %v695 = vld [vmem:[%s0] sm:$0xf]
    %v696 = vld [vmem:[%s0 + $0x4] sm:$0xf]
    %v697 = vld [vmem:[%s0 + $0x8] sm:$0x1]
    %v698 = vld [vmem:[%s0 + $0xc] sm:$0xf]
    %v699 = vld [vmem:[%s0 + $0x10] sm:$0xf]
    %v700 = vld [vmem:[%s0 + $0x14] sm:$0x1]
    %v701 = vld [vmem:[%s0 + $0x18] sm:$0xf]
    %v702 = vld [vmem:[%s0 + $0x1c] sm:$0xf]
    %v703 = vld [vmem:[%s0 + $0x20] sm:$0x1]
    %v704 = vld [vmem:[%s0 + $0x24] sm:$0xf]
    %v705 = vld [vmem:[%s0 + $0x28] sm:$0xf]
    %v706 = vld [vmem:[%s0 + $0x2c] sm:$0x1]
    %v707 = vld [vmem:[%s0 + $0x30] sm:$0xf]
    %v708 = vld [vmem:[%s0 + $0x34] sm:$0xf]
    %v709 = vld [vmem:[%s0 + $0x38] sm:$0x1]
    %v710 = vld [vmem:[%s0 + $0x3c] sm:$0xf]
    %v711 = vld [vmem:[%s0 + $0x40] sm:$0xf]
    %v712 = vld [vmem:[%s0 + $0x44] sm:$0x1]
    %v713 = vld [vmem:[%s0 + $0x48] sm:$0xf]
    %v714 = vld [vmem:[%s0 + $0x4c] sm:$0xf]
    %v715 = vld [vmem:[%s0 + $0x50] sm:$0x1]
    %v716 = vld [vmem:[%s0 + $0x54] sm:$0xf]
    %v717 = vld [vmem:[%s0 + $0x58] sm:$0xf]
    %v718 = vld [vmem:[%s0 + $0x5c] sm:$0x1]
    %v719 = vld [vmem:[%s0 + $0x60] sm:$0xf]
    %v720 = vld [vmem:[%s0 + $0x64] sm:$0xf]
    %v721 = vld [vmem:[%s0 + $0x68] sm:$0x1]
    %v722 = vld [vmem:[%s0 + $0x6c] sm:$0xf]
    %v723 = vld [vmem:[%s0 + $0x70] sm:$0xf]
    %v724 = vld [vmem:[%s0 + $0x74] sm:$0x1]
    %v725 = vld [vmem:[%s0 + $0x78] sm:$0xf]
    %v726 = vld [vmem:[%s0 + $0x7c] sm:$0xf]
    %v727 = vld [vmem:[%s0 + $0x80] sm:$0x1]
    %v728 = vld [vmem:[%s0 + $0x84] sm:$0xf]
    %v729 = vld [vmem:[%s0 + $0x88] sm:$0xf]
    %v730 = vld [vmem:[%s0 + $0x8c] sm:$0x1]
    %v731 = vld [vmem:[%s0 + $0x90] sm:$0xf]
    %v732 = vld [vmem:[%s0 + $0x94] sm:$0xf]
    %v733 = vld [vmem:[%s0 + $0x98] sm:$0x1]
    %v734 = vld [vmem:[%s0 + $0x9c] sm:$0xf]
    %v735 = vld [vmem:[%s0 + $0xa0] sm:$0xf]
    %v736 = vld [vmem:[%s0 + $0xa4] sm:$0x1]
    %v737 = vld [vmem:[%s0 + $0xa8] sm:$0xf]
    %v738 = vld [vmem:[%s0 + $0xac] sm:$0xf]
    %v739 = vld [vmem:[%s0 + $0xb0] sm:$0x1]
    %v740 = vld [vmem:[%s0 + $0xb4] sm:$0xf]
    %v741 = vld [vmem:[%s0 + $0xb8] sm:$0xf]
    %v742 = vld [vmem:[%s0 + $0xbc] sm:$0x1]
    %v743 = vld [vmem:[%s0 + $0xd8] sm:$0xf]
    %v744 = vld [vmem:[%s0 + $0xdc] sm:$0xf]
    %v745 = vld [vmem:[%s0 + $0xe0] sm:$0x1]
    %v746 = vld [vmem:[%s0 + $0xe4] sm:$0xf]
    %v747 = vld [vmem:[%s0 + $0xe8] sm:$0xf]
    %v748 = vld [vmem:[%s0 + $0xec] sm:$0x1]
    %v749 = vld [vmem:[%s0 + $0xf0] sm:$0xf]
    %v750 = vld [vmem:[%s0 + $0xf4] sm:$0xf]
    %v751 = vld [vmem:[%s0 + $0xf8] sm:$0x1]
    %v752 = vld [vmem:[%s0 + $0xfc] sm:$0xf]
    %v753 = vld [vmem:[%s0 + $0x100] sm:$0xf]
    %v754 = vld [vmem:[%s0 + $0x104] sm:$0x1]
    %v755 = vld [vmem:[%s0 + $0x108] sm:$0xf]
    %v756 = vld [vmem:[%s0 + $0x10c] sm:$0xf]
    %v757 = vld [vmem:[%s0 + $0x110] sm:$0x1]
    %v758 = vld [vmem:[%s0 + $0x114] sm:$0xf]
    %v759 = vld [vmem:[%s0 + $0x118] sm:$0xf]
    %v760 = vld [vmem:[%s0 + $0x11c] sm:$0x1]
    %v761 = vld [vmem:[%s0 + $0x120] sm:$0xf]
    %v762 = vld [vmem:[%s0 + $0x124] sm:$0xf]
    %v763 = vld [vmem:[%s0 + $0x128] sm:$0x1]
    %v764 = vld [vmem:[%s0 + $0x12c] sm:$0xf]
    %v765 = vld [vmem:[%s0 + $0x130] sm:$0xf]
    %v766 = vld [vmem:[%s0 + $0x134] sm:$0x1]
    %v767 = vld [vmem:[%s0 + $0x138] sm:$0xf]
    %v768 = vld [vmem:[%s0 + $0x13c] sm:$0xf]
    %v769 = vld [vmem:[%s0 + $0x140] sm:$0x1]
    %v770 = vld [vmem:[%s0 + $0x144] sm:$0xf]
    %v771 = vld [vmem:[%s0 + $0x148] sm:$0xf]
    %v772 = vld [vmem:[%s0 + $0x14c] sm:$0x1]
    %v773 = vld [vmem:[%s0 + $0x150] sm:$0xf]
    %v774 = vld [vmem:[%s0 + $0x154] sm:$0xf]
    %v775 = vld [vmem:[%s0 + $0x158] sm:$0x1]
    %v776 = vld [vmem:[%s0 + $0x15c] sm:$0xf]
    %v777 = vld [vmem:[%s0 + $0x160] sm:$0xf]
    %v778 = vld [vmem:[%s0 + $0x164] sm:$0x1]
    %v779 = vld [vmem:[%s0 + $0x168] sm:$0xf]
    %v780 = vld [vmem:[%s0 + $0x16c] sm:$0xf]
    %v781 = vld [vmem:[%s0 + $0x170] sm:$0x1]
    %v782 = vld [vmem:[%s0 + $0x174] sm:$0xf]
    %v783 = vld [vmem:[%s0 + $0x178] sm:$0xf]
    %v784 = vld [vmem:[%s0 + $0x17c] sm:$0x1]
    %v785 = vld [vmem:[%s0 + $0x180] sm:$0xf]
    %v786 = vld [vmem:[%s0 + $0x184] sm:$0xf]
    %v787 = vld [vmem:[%s0 + $0x188] sm:$0x1]
    %v788 = vld [vmem:[%s0 + $0x18c] sm:$0xf]
    %v789 = vld [vmem:[%s0 + $0x190] sm:$0xf]
    %v790 = vld [vmem:[%s0 + $0x194] sm:$0x1]
    %vm791 = vsmask.f32 3328
    %vm792 = vsmask.f32 7440
    %vm793 = vmor %vm791, %vm792
    %v795 = vshrl.u32 %v695, 16
    %v797 = vrot.slane %v795, 4
    %v798 = vshll.u32 %v695, 16
    %v800 = vrot.slane %v798, 5
    %v801 = vor.u32 %v797, %v800
    %v802 = vrot.slane %v801, 4
    %v804 = vshll.u32 %v696, 16
    %v806 = vrot.slane %v804, 5
    %v807 = vsel %vm793, %v802, %v806
    %v808 = vshrl.u32 %v696, 16
    %v810 = vrot.slane %v808, 4
    %v811 = vor.u32 %v810, %v806
    %v812 = vrot.slane %v811, 4
    %v814 = vshll.u32 %v697, 16
    %v816 = vrot.slane %v814, 5
    %v817 = vsel %vm793, %v812, %v816
    %v819 = vshrl.u32 %v698, 16
    %v821 = vrot.slane %v819, 4
    %v822 = vshll.u32 %v698, 16
    %v824 = vrot.slane %v822, 5
    %v825 = vor.u32 %v821, %v824
    %v826 = vrot.slane %v825, 4
    %v828 = vshll.u32 %v699, 16
    %v830 = vrot.slane %v828, 5
    %v831 = vsel %vm793, %v826, %v830
    %v832 = vshrl.u32 %v699, 16
    %v834 = vrot.slane %v832, 4
    %v835 = vor.u32 %v834, %v830
    %v836 = vrot.slane %v835, 4
    %v838 = vshll.u32 %v700, 16
    %v840 = vrot.slane %v838, 5
    %v841 = vsel %vm793, %v836, %v840
    %v843 = vshrl.u32 %v701, 16
    %v845 = vrot.slane %v843, 4
    %v846 = vshll.u32 %v701, 16
    %v848 = vrot.slane %v846, 5
    %v849 = vor.u32 %v845, %v848
    %v850 = vrot.slane %v849, 4
    %v852 = vshll.u32 %v702, 16
    %v854 = vrot.slane %v852, 5
    %v855 = vsel %vm793, %v850, %v854
    %v856 = vshrl.u32 %v702, 16
    %v858 = vrot.slane %v856, 4
    %v859 = vor.u32 %v858, %v854
    %v860 = vrot.slane %v859, 4
    %v862 = vshll.u32 %v703, 16
    %v864 = vrot.slane %v862, 5
    %v865 = vsel %vm793, %v860, %v864
    %v867 = vshrl.u32 %v704, 16
    %v869 = vrot.slane %v867, 4
    %v870 = vshll.u32 %v704, 16
    %v872 = vrot.slane %v870, 5
    %v873 = vor.u32 %v869, %v872
    %v874 = vrot.slane %v873, 4
    %v876 = vshll.u32 %v705, 16
    %v878 = vrot.slane %v876, 5
    %v879 = vsel %vm793, %v874, %v878
    %v880 = vshrl.u32 %v705, 16
    %v882 = vrot.slane %v880, 4
    %v883 = vor.u32 %v882, %v878
    %v884 = vrot.slane %v883, 4
    %v886 = vshll.u32 %v706, 16
    %v888 = vrot.slane %v886, 5
    %v889 = vsel %vm793, %v884, %v888
    %v891 = vshrl.u32 %v707, 16
    %v893 = vrot.slane %v891, 4
    %v894 = vshll.u32 %v707, 16
    %v896 = vrot.slane %v894, 5
    %v897 = vor.u32 %v893, %v896
    %v898 = vrot.slane %v897, 4
    %v900 = vshll.u32 %v708, 16
    %v902 = vrot.slane %v900, 5
    %v903 = vsel %vm793, %v898, %v902
    %v904 = vshrl.u32 %v708, 16
    %v906 = vrot.slane %v904, 4
    %v907 = vor.u32 %v906, %v902
    %v908 = vrot.slane %v907, 4
    %v910 = vshll.u32 %v709, 16
    %v912 = vrot.slane %v910, 5
    %v913 = vsel %vm793, %v908, %v912
    %v915 = vshrl.u32 %v710, 16
    %v917 = vrot.slane %v915, 4
    %v918 = vshll.u32 %v710, 16
    %v920 = vrot.slane %v918, 5
    %v921 = vor.u32 %v917, %v920
    %v922 = vrot.slane %v921, 4
    %v924 = vshll.u32 %v711, 16
    %v926 = vrot.slane %v924, 5
    %v927 = vsel %vm793, %v922, %v926
    %v928 = vshrl.u32 %v711, 16
    %v930 = vrot.slane %v928, 4
    %v931 = vor.u32 %v930, %v926
    %v932 = vrot.slane %v931, 4
    %v934 = vshll.u32 %v712, 16
    %v936 = vrot.slane %v934, 5
    %v937 = vsel %vm793, %v932, %v936
    %v939 = vshrl.u32 %v713, 16
    %v941 = vrot.slane %v939, 4
    %v942 = vshll.u32 %v713, 16
    %v944 = vrot.slane %v942, 5
    %v945 = vor.u32 %v941, %v944
    %v946 = vrot.slane %v945, 4
    %v948 = vshll.u32 %v714, 16
    %v950 = vrot.slane %v948, 5
    %v951 = vsel %vm793, %v946, %v950
    %v952 = vshrl.u32 %v714, 16
    %v954 = vrot.slane %v952, 4
    %v955 = vor.u32 %v954, %v950
    %v956 = vrot.slane %v955, 4
    %v958 = vshll.u32 %v715, 16
    %v960 = vrot.slane %v958, 5
    %v961 = vsel %vm793, %v956, %v960
    %v963 = vshrl.u32 %v716, 16
    %v965 = vrot.slane %v963, 4
    %v966 = vshll.u32 %v716, 16
    %v968 = vrot.slane %v966, 5
    %v969 = vor.u32 %v965, %v968
    %v970 = vrot.slane %v969, 4
    %v972 = vshll.u32 %v717, 16
    %v974 = vrot.slane %v972, 5
    %v975 = vsel %vm793, %v970, %v974
    %v976 = vshrl.u32 %v717, 16
    %v978 = vrot.slane %v976, 4
    %v979 = vor.u32 %v978, %v974
    %v980 = vrot.slane %v979, 4
    %v982 = vshll.u32 %v718, 16
    %v984 = vrot.slane %v982, 5
    %v985 = vsel %vm793, %v980, %v984
    %v987 = vshrl.u32 %v719, 16
    %v989 = vrot.slane %v987, 4
    %v990 = vshll.u32 %v719, 16
    %v992 = vrot.slane %v990, 5
    %v993 = vor.u32 %v989, %v992
    %v994 = vrot.slane %v993, 4
    %v996 = vshll.u32 %v720, 16
    %v998 = vrot.slane %v996, 5
    %v999 = vsel %vm793, %v994, %v998
    %v1000 = vshrl.u32 %v720, 16
    %v1002 = vrot.slane %v1000, 4
    %v1003 = vor.u32 %v1002, %v998
    %v1004 = vrot.slane %v1003, 4
    %v1006 = vshll.u32 %v721, 16
    %v1008 = vrot.slane %v1006, 5
    %v1009 = vsel %vm793, %v1004, %v1008
    %v1011 = vshrl.u32 %v722, 16
    %v1013 = vrot.slane %v1011, 4
    %v1014 = vshll.u32 %v722, 16
    %v1016 = vrot.slane %v1014, 5
    %v1017 = vor.u32 %v1013, %v1016
    %v1018 = vrot.slane %v1017, 4
    %v1020 = vshll.u32 %v723, 16
    %v1022 = vrot.slane %v1020, 5
    %v1023 = vsel %vm793, %v1018, %v1022
    %v1024 = vshrl.u32 %v723, 16
    %v1026 = vrot.slane %v1024, 4
    %v1027 = vor.u32 %v1026, %v1022
    %v1028 = vrot.slane %v1027, 4
    %v1030 = vshll.u32 %v724, 16
    %v1032 = vrot.slane %v1030, 5
    %v1033 = vsel %vm793, %v1028, %v1032
    %v1035 = vshrl.u32 %v725, 16
    %v1037 = vrot.slane %v1035, 4
    %v1038 = vshll.u32 %v725, 16
    %v1040 = vrot.slane %v1038, 5
    %v1041 = vor.u32 %v1037, %v1040
    %v1042 = vrot.slane %v1041, 4
    %v1044 = vshll.u32 %v726, 16
    %v1046 = vrot.slane %v1044, 5
    %v1047 = vsel %vm793, %v1042, %v1046
    %v1048 = vshrl.u32 %v726, 16
    %v1050 = vrot.slane %v1048, 4
    %v1051 = vor.u32 %v1050, %v1046
    %v1052 = vrot.slane %v1051, 4
    %v1054 = vshll.u32 %v727, 16
    %v1056 = vrot.slane %v1054, 5
    %v1057 = vsel %vm793, %v1052, %v1056
    %v1059 = vshrl.u32 %v728, 16
    %v1061 = vrot.slane %v1059, 4
    %v1062 = vshll.u32 %v728, 16
    %v1064 = vrot.slane %v1062, 5
    %v1065 = vor.u32 %v1061, %v1064
    %v1066 = vrot.slane %v1065, 4
    %v1068 = vshll.u32 %v729, 16
    %v1070 = vrot.slane %v1068, 5
    %v1071 = vsel %vm793, %v1066, %v1070
    %v1072 = vshrl.u32 %v729, 16
    %v1074 = vrot.slane %v1072, 4
    %v1075 = vor.u32 %v1074, %v1070
    %v1076 = vrot.slane %v1075, 4
    %v1078 = vshll.u32 %v730, 16
    %v1080 = vrot.slane %v1078, 5
    %v1081 = vsel %vm793, %v1076, %v1080
    %v1083 = vshrl.u32 %v731, 16
    %v1085 = vrot.slane %v1083, 4
    %v1086 = vshll.u32 %v731, 16
    %v1088 = vrot.slane %v1086, 5
    %v1089 = vor.u32 %v1085, %v1088
    %v1090 = vrot.slane %v1089, 4
    %v1092 = vshll.u32 %v732, 16
    %v1094 = vrot.slane %v1092, 5
    %v1095 = vsel %vm793, %v1090, %v1094
    %v1096 = vshrl.u32 %v732, 16
    %v1098 = vrot.slane %v1096, 4
    %v1099 = vor.u32 %v1098, %v1094
    %v1100 = vrot.slane %v1099, 4
    %v1102 = vshll.u32 %v733, 16
    %v1104 = vrot.slane %v1102, 5
    %v1105 = vsel %vm793, %v1100, %v1104
    %v1107 = vshrl.u32 %v734, 16
    %v1109 = vrot.slane %v1107, 4
    %v1110 = vshll.u32 %v734, 16
    %v1112 = vrot.slane %v1110, 5
    %v1113 = vor.u32 %v1109, %v1112
    %v1114 = vrot.slane %v1113, 4
    %v1116 = vshll.u32 %v735, 16
    %v1118 = vrot.slane %v1116, 5
    %v1119 = vsel %vm793, %v1114, %v1118
    %v1120 = vshrl.u32 %v735, 16
    %v1122 = vrot.slane %v1120, 4
    %v1123 = vor.u32 %v1122, %v1118
    %v1124 = vrot.slane %v1123, 4
    %v1126 = vshll.u32 %v736, 16
    %v1128 = vrot.slane %v1126, 5
    %v1129 = vsel %vm793, %v1124, %v1128
    %v1131 = vshrl.u32 %v737, 16
    %v1133 = vrot.slane %v1131, 4
    %v1134 = vshll.u32 %v737, 16
    %v1136 = vrot.slane %v1134, 5
    %v1137 = vor.u32 %v1133, %v1136
    %v1138 = vrot.slane %v1137, 4
    %v1140 = vshll.u32 %v738, 16
    %v1142 = vrot.slane %v1140, 5
    %v1143 = vsel %vm793, %v1138, %v1142
    %v1144 = vshrl.u32 %v738, 16
    %v1146 = vrot.slane %v1144, 4
    %v1147 = vor.u32 %v1146, %v1142
    %v1148 = vrot.slane %v1147, 4
    %v1150 = vshll.u32 %v739, 16
    %v1152 = vrot.slane %v1150, 5
    %v1153 = vsel %vm793, %v1148, %v1152
    %v1155 = vshrl.u32 %v740, 16
    %v1157 = vrot.slane %v1155, 4
    %v1158 = vshll.u32 %v740, 16
    %v1160 = vrot.slane %v1158, 5
    %v1161 = vor.u32 %v1157, %v1160
    %v1162 = vrot.slane %v1161, 4
    %v1164 = vshll.u32 %v741, 16
    %v1166 = vrot.slane %v1164, 5
    %v1167 = vsel %vm793, %v1162, %v1166
    %v1168 = vshrl.u32 %v741, 16
    %v1170 = vrot.slane %v1168, 4
    %v1171 = vor.u32 %v1170, %v1166
    %v1172 = vrot.slane %v1171, 4
    %v1174 = vshll.u32 %v742, 16
    %v1176 = vrot.slane %v1174, 5
    %v1177 = vsel %vm793, %v1172, %v1176
    %v1179 = vshrl.u32 %v743, 16
    %v1181 = vrot.slane %v1179, 4
    %v1182 = vshll.u32 %v743, 16
    %v1184 = vrot.slane %v1182, 5
    %v1185 = vor.u32 %v1181, %v1184
    %v1186 = vrot.slane %v1185, 4
    %v1188 = vshll.u32 %v744, 16
    %v1190 = vrot.slane %v1188, 5
    %v1191 = vsel %vm793, %v1186, %v1190
    %v1192 = vshrl.u32 %v744, 16
    %v1194 = vrot.slane %v1192, 4
    %v1195 = vor.u32 %v1194, %v1190
    %v1196 = vrot.slane %v1195, 4
    %v1198 = vshll.u32 %v745, 16
    %v1200 = vrot.slane %v1198, 5
    %v1201 = vsel %vm793, %v1196, %v1200
    %v1203 = vshrl.u32 %v746, 16
    %v1205 = vrot.slane %v1203, 4
    %v1206 = vshll.u32 %v746, 16
    %v1208 = vrot.slane %v1206, 5
    %v1209 = vor.u32 %v1205, %v1208
    %v1210 = vrot.slane %v1209, 4
    %v1212 = vshll.u32 %v747, 16
    %v1214 = vrot.slane %v1212, 5
    %v1215 = vsel %vm793, %v1210, %v1214
    %v1216 = vshrl.u32 %v747, 16
    %v1218 = vrot.slane %v1216, 4
    %v1219 = vor.u32 %v1218, %v1214
    %v1220 = vrot.slane %v1219, 4
    %v1222 = vshll.u32 %v748, 16
    %v1224 = vrot.slane %v1222, 5
    %v1225 = vsel %vm793, %v1220, %v1224
    %v1227 = vshrl.u32 %v749, 16
    %v1229 = vrot.slane %v1227, 4
    %v1230 = vshll.u32 %v749, 16
    %v1232 = vrot.slane %v1230, 5
    %v1233 = vor.u32 %v1229, %v1232
    %v1234 = vrot.slane %v1233, 4
    %v1236 = vshll.u32 %v750, 16
    %v1238 = vrot.slane %v1236, 5
    %v1239 = vsel %vm793, %v1234, %v1238
    %v1240 = vshrl.u32 %v750, 16
    %v1242 = vrot.slane %v1240, 4
    %v1243 = vor.u32 %v1242, %v1238
    %v1244 = vrot.slane %v1243, 4
    %v1246 = vshll.u32 %v751, 16
    %v1248 = vrot.slane %v1246, 5
    %v1249 = vsel %vm793, %v1244, %v1248
    %v1251 = vshrl.u32 %v752, 16
    %v1253 = vrot.slane %v1251, 4
    %v1254 = vshll.u32 %v752, 16
    %v1256 = vrot.slane %v1254, 5
    %v1257 = vor.u32 %v1253, %v1256
    %v1258 = vrot.slane %v1257, 4
    %v1260 = vshll.u32 %v753, 16
    %v1262 = vrot.slane %v1260, 5
    %v1263 = vsel %vm793, %v1258, %v1262
    %v1264 = vshrl.u32 %v753, 16
    %v1266 = vrot.slane %v1264, 4
    %v1267 = vor.u32 %v1266, %v1262
    %v1268 = vrot.slane %v1267, 4
    %v1270 = vshll.u32 %v754, 16
    %v1272 = vrot.slane %v1270, 5
    %v1273 = vsel %vm793, %v1268, %v1272
    %v1275 = vshrl.u32 %v755, 16
    %v1277 = vrot.slane %v1275, 4
    %v1278 = vshll.u32 %v755, 16
    %v1280 = vrot.slane %v1278, 5
    %v1281 = vor.u32 %v1277, %v1280
    %v1282 = vrot.slane %v1281, 4
    %v1284 = vshll.u32 %v756, 16
    %v1286 = vrot.slane %v1284, 5
    %v1287 = vsel %vm793, %v1282, %v1286
    %v1288 = vshrl.u32 %v756, 16
    %v1290 = vrot.slane %v1288, 4
    %v1291 = vor.u32 %v1290, %v1286
    %v1292 = vrot.slane %v1291, 4
    %v1294 = vshll.u32 %v757, 16
    %v1296 = vrot.slane %v1294, 5
    %v1297 = vsel %vm793, %v1292, %v1296
    %v1299 = vshrl.u32 %v758, 16
    %v1301 = vrot.slane %v1299, 4
    %v1302 = vshll.u32 %v758, 16
    %v1304 = vrot.slane %v1302, 5
    %v1305 = vor.u32 %v1301, %v1304
    %v1306 = vrot.slane %v1305, 4
    %v1308 = vshll.u32 %v759, 16
    %v1310 = vrot.slane %v1308, 5
    %v1311 = vsel %vm793, %v1306, %v1310
    %v1312 = vshrl.u32 %v759, 16
    %v1314 = vrot.slane %v1312, 4
    %v1315 = vor.u32 %v1314, %v1310
    %v1316 = vrot.slane %v1315, 4
    %v1318 = vshll.u32 %v760, 16
    %v1320 = vrot.slane %v1318, 5
    %v1321 = vsel %vm793, %v1316, %v1320
    %v1323 = vshrl.u32 %v761, 16
    %v1325 = vrot.slane %v1323, 4
    %v1326 = vshll.u32 %v761, 16
    %v1328 = vrot.slane %v1326, 5
    %v1329 = vor.u32 %v1325, %v1328
    %v1330 = vrot.slane %v1329, 4
    %v1332 = vshll.u32 %v762, 16
    %v1334 = vrot.slane %v1332, 5
    %v1335 = vsel %vm793, %v1330, %v1334
    %v1336 = vshrl.u32 %v762, 16
    %v1338 = vrot.slane %v1336, 4
    %v1339 = vor.u32 %v1338, %v1334
    %v1340 = vrot.slane %v1339, 4
    %v1342 = vshll.u32 %v763, 16
    %v1344 = vrot.slane %v1342, 5
    %v1345 = vsel %vm793, %v1340, %v1344
    %v1347 = vshrl.u32 %v764, 16
    %v1349 = vrot.slane %v1347, 4
    %v1350 = vshll.u32 %v764, 16
    %v1352 = vrot.slane %v1350, 5
    %v1353 = vor.u32 %v1349, %v1352
    %v1354 = vrot.slane %v1353, 4
    %v1356 = vshll.u32 %v765, 16
    %v1358 = vrot.slane %v1356, 5
    %v1359 = vsel %vm793, %v1354, %v1358
    %v1360 = vshrl.u32 %v765, 16
    %v1362 = vrot.slane %v1360, 4
    %v1363 = vor.u32 %v1362, %v1358
    %v1364 = vrot.slane %v1363, 4
    %v1366 = vshll.u32 %v766, 16
    %v1368 = vrot.slane %v1366, 5
    %v1369 = vsel %vm793, %v1364, %v1368
    %v1371 = vshrl.u32 %v767, 16
    %v1373 = vrot.slane %v1371, 4
    %v1374 = vshll.u32 %v767, 16
    %v1376 = vrot.slane %v1374, 5
    %v1377 = vor.u32 %v1373, %v1376
    %v1378 = vrot.slane %v1377, 4
    %v1380 = vshll.u32 %v768, 16
    %v1382 = vrot.slane %v1380, 5
    %v1383 = vsel %vm793, %v1378, %v1382
    %v1384 = vshrl.u32 %v768, 16
    %v1386 = vrot.slane %v1384, 4
    %v1387 = vor.u32 %v1386, %v1382
    %v1388 = vrot.slane %v1387, 4
    %v1390 = vshll.u32 %v769, 16
    %v1392 = vrot.slane %v1390, 5
    %v1393 = vsel %vm793, %v1388, %v1392
    %v1395 = vshrl.u32 %v770, 16
    %v1397 = vrot.slane %v1395, 4
    %v1398 = vshll.u32 %v770, 16
    %v1400 = vrot.slane %v1398, 5
    %v1401 = vor.u32 %v1397, %v1400
    %v1402 = vrot.slane %v1401, 4
    %v1404 = vshll.u32 %v771, 16
    %v1406 = vrot.slane %v1404, 5
    %v1407 = vsel %vm793, %v1402, %v1406
    %v1408 = vshrl.u32 %v771, 16
    %v1410 = vrot.slane %v1408, 4
    %v1411 = vor.u32 %v1410, %v1406
    %v1412 = vrot.slane %v1411, 4
    %v1414 = vshll.u32 %v772, 16
    %v1416 = vrot.slane %v1414, 5
    %v1417 = vsel %vm793, %v1412, %v1416
    %v1419 = vshrl.u32 %v773, 16
    %v1421 = vrot.slane %v1419, 4
    %v1422 = vshll.u32 %v773, 16
    %v1424 = vrot.slane %v1422, 5
    %v1425 = vor.u32 %v1421, %v1424
    %v1426 = vrot.slane %v1425, 4
    %v1428 = vshll.u32 %v774, 16
    %v1430 = vrot.slane %v1428, 5
    %v1431 = vsel %vm793, %v1426, %v1430
    %v1432 = vshrl.u32 %v774, 16
    %v1434 = vrot.slane %v1432, 4
    %v1435 = vor.u32 %v1434, %v1430
    %v1436 = vrot.slane %v1435, 4
    %v1438 = vshll.u32 %v775, 16
    %v1440 = vrot.slane %v1438, 5
    %v1441 = vsel %vm793, %v1436, %v1440
    %v1443 = vshrl.u32 %v776, 16
    %v1445 = vrot.slane %v1443, 4
    %v1446 = vshll.u32 %v776, 16
    %v1448 = vrot.slane %v1446, 5
    %v1449 = vor.u32 %v1445, %v1448
    %v1450 = vrot.slane %v1449, 4
    %v1452 = vshll.u32 %v777, 16
    %v1454 = vrot.slane %v1452, 5
    %v1455 = vsel %vm793, %v1450, %v1454
    %v1456 = vshrl.u32 %v777, 16
    %v1458 = vrot.slane %v1456, 4
    %v1459 = vor.u32 %v1458, %v1454
    %v1460 = vrot.slane %v1459, 4
    %v1462 = vshll.u32 %v778, 16
    %v1464 = vrot.slane %v1462, 5
    %v1465 = vsel %vm793, %v1460, %v1464
    %v1467 = vshrl.u32 %v779, 16
    %v1469 = vrot.slane %v1467, 4
    %v1470 = vshll.u32 %v779, 16
    %v1472 = vrot.slane %v1470, 5
    %v1473 = vor.u32 %v1469, %v1472
    %v1474 = vrot.slane %v1473, 4
    %v1476 = vshll.u32 %v780, 16
    %v1478 = vrot.slane %v1476, 5
    %v1479 = vsel %vm793, %v1474, %v1478
    %v1480 = vshrl.u32 %v780, 16
    %v1482 = vrot.slane %v1480, 4
    %v1483 = vor.u32 %v1482, %v1478
    %v1484 = vrot.slane %v1483, 4
    %v1486 = vshll.u32 %v781, 16
    %v1488 = vrot.slane %v1486, 5
    %v1489 = vsel %vm793, %v1484, %v1488
    %v1491 = vshrl.u32 %v782, 16
    %v1493 = vrot.slane %v1491, 4
    %v1494 = vshll.u32 %v782, 16
    %v1496 = vrot.slane %v1494, 5
    %v1497 = vor.u32 %v1493, %v1496
    %v1498 = vrot.slane %v1497, 4
    %v1500 = vshll.u32 %v783, 16
    %v1502 = vrot.slane %v1500, 5
    %v1503 = vsel %vm793, %v1498, %v1502
    %v1504 = vshrl.u32 %v783, 16
    %v1506 = vrot.slane %v1504, 4
    %v1507 = vor.u32 %v1506, %v1502
    %v1508 = vrot.slane %v1507, 4
    %v1510 = vshll.u32 %v784, 16
    %v1512 = vrot.slane %v1510, 5
    %v1513 = vsel %vm793, %v1508, %v1512
    %v1515 = vshrl.u32 %v785, 16
    %v1517 = vrot.slane %v1515, 4
    %v1518 = vshll.u32 %v785, 16
    %v1520 = vrot.slane %v1518, 5
    %v1521 = vor.u32 %v1517, %v1520
    %v1522 = vrot.slane %v1521, 4
    %v1524 = vshll.u32 %v786, 16
    %v1526 = vrot.slane %v1524, 5
    %v1527 = vsel %vm793, %v1522, %v1526
    %v1528 = vshrl.u32 %v786, 16
    %v1530 = vrot.slane %v1528, 4
    %v1531 = vor.u32 %v1530, %v1526
    %v1532 = vrot.slane %v1531, 4
    %v1534 = vshll.u32 %v787, 16
    %v1536 = vrot.slane %v1534, 5
    %v1537 = vsel %vm793, %v1532, %v1536
    %v1539 = vshrl.u32 %v788, 16
    %v1541 = vrot.slane %v1539, 4
    %v1542 = vshll.u32 %v788, 16
    %v1544 = vrot.slane %v1542, 5
    %v1545 = vor.u32 %v1541, %v1544
    %v1546 = vrot.slane %v1545, 4
    %v1548 = vshll.u32 %v789, 16
    %v1550 = vrot.slane %v1548, 5
    %v1551 = vsel %vm793, %v1546, %v1550
    %v1552 = vshrl.u32 %v789, 16
    %v1554 = vrot.slane %v1552, 4
    %v1555 = vor.u32 %v1554, %v1550
    %v1556 = vrot.slane %v1555, 4
    %v1558 = vshll.u32 %v790, 16
    %v1560 = vrot.slane %v1558, 5
    %v1561 = vsel %vm793, %v1556, %v1560
    %s1562 = scalar_lea.vmem %s1, 2
    %v1563 = vld [vmem:[%s1562] sm:$0x3]
    %v1564 = vunpack.c.l.b16 %v807
    %v1565 = vunpack.c.l.b16 %v817
    %v1566 = vunpack.c.l.b16 %v831
    %v1567 = vunpack.c.l.b16 %v841
    %v1568 = vunpack.c.l.b16 %v855
    %v1569 = vunpack.c.l.b16 %v865
    %v1570 = vunpack.c.l.b16 %v879
    %v1571 = vunpack.c.l.b16 %v889
    %v1572 = vunpack.c.l.b16 %v903
    %v1573 = vunpack.c.l.b16 %v913
    %v1574 = vunpack.c.l.b16 %v927
    %v1575 = vunpack.c.l.b16 %v937
    %v1576 = vunpack.c.l.b16 %v951
    %v1577 = vunpack.c.l.b16 %v961
    %v1578 = vunpack.c.l.b16 %v975
    %v1579 = vunpack.c.l.b16 %v985
    %v1580 = vunpack.c.l.b16 %v999
    %v1581 = vunpack.c.l.b16 %v1009
    %v1582 = vunpack.c.l.b16 %v1023
    %v1583 = vunpack.c.l.b16 %v1033
    %v1584 = vunpack.c.l.b16 %v1047
    %v1585 = vunpack.c.l.b16 %v1057
    %v1586 = vunpack.c.l.b16 %v1071
    %v1587 = vunpack.c.l.b16 %v1081
    %v1588 = vunpack.c.l.b16 %v1095
    %v1589 = vunpack.c.l.b16 %v1105
    %v1590 = vunpack.c.l.b16 %v1119
    %v1591 = vunpack.c.l.b16 %v1129
    %v1592 = vunpack.c.l.b16 %v1143
    %v1593 = vunpack.c.l.b16 %v1153
    %v1594 = vunpack.c.l.b16 %v1167
    %v1595 = vunpack.c.l.b16 %v1177
    %v1596 = vunpack.c.l.b16 %v1191
    %v1597 = vunpack.c.l.b16 %v1201
    %v1598 = vunpack.c.l.b16 %v1215
    %v1599 = vunpack.c.l.b16 %v1225
    %v1600 = vunpack.c.l.b16 %v1239
    %v1601 = vunpack.c.l.b16 %v1249
    %v1602 = vunpack.c.l.b16 %v1263
    %v1603 = vunpack.c.l.b16 %v1273
    %v1604 = vunpack.c.l.b16 %v1287
    %v1605 = vunpack.c.l.b16 %v1297
    %v1606 = vunpack.c.l.b16 %v1311
    %v1607 = vunpack.c.l.b16 %v1321
    %v1608 = vunpack.c.l.b16 %v1335
    %v1609 = vunpack.c.l.b16 %v1345
    %v1610 = vunpack.c.l.b16 %v1359
    %v1611 = vunpack.c.l.b16 %v1369
    %v1612 = vunpack.c.l.b16 %v1383
    %v1613 = vunpack.c.l.b16 %v1393
    %v1614 = vunpack.c.l.b16 %v1407
    %v1615 = vunpack.c.l.b16 %v1417
    %v1616 = vunpack.c.l.b16 %v1431
    %v1617 = vunpack.c.l.b16 %v1441
    %v1618 = vunpack.c.l.b16 %v1455
    %v1619 = vunpack.c.l.b16 %v1465
    %v1620 = vunpack.c.l.b16 %v1479
    %v1621 = vunpack.c.l.b16 %v1489
    %v1622 = vunpack.c.l.b16 %v1503
    %v1623 = vunpack.c.l.b16 %v1513
    %v1624 = vunpack.c.l.b16 %v1527
    %v1625 = vunpack.c.l.b16 %v1537
    %v1626 = vunpack.c.l.b16 %v1551
    %v1627 = vunpack.c.l.b16 %v1561
    %v1628 = vpack.c.b16 %v1565, %v1564
    %v1629 = vpack.c.b16 %v1567, %v1566
    %v1630 = vpack.c.b16 %v1569, %v1568
    %v1631 = vpack.c.b16 %v1571, %v1570
    %v1632 = vpack.c.b16 %v1573, %v1572
    %v1633 = vpack.c.b16 %v1575, %v1574
    %v1634 = vpack.c.b16 %v1577, %v1576
    %v1635 = vpack.c.b16 %v1579, %v1578
    %v1636 = vpack.c.b16 %v1581, %v1580
    %v1637 = vpack.c.b16 %v1583, %v1582
    %v1638 = vpack.c.b16 %v1585, %v1584
    %v1639 = vpack.c.b16 %v1587, %v1586
    %v1640 = vpack.c.b16 %v1589, %v1588
    %v1641 = vpack.c.b16 %v1591, %v1590
    %v1642 = vpack.c.b16 %v1593, %v1592
    %v1643 = vpack.c.b16 %v1595, %v1594
    %v1644 = vpack.c.b16 %v1597, %v1596
    %v1645 = vpack.c.b16 %v1599, %v1598
    %v1646 = vpack.c.b16 %v1601, %v1600
    %v1647 = vpack.c.b16 %v1603, %v1602
    %v1648 = vpack.c.b16 %v1605, %v1604
    %v1649 = vpack.c.b16 %v1607, %v1606
    %v1650 = vpack.c.b16 %v1609, %v1608
    %v1651 = vpack.c.b16 %v1611, %v1610
    %v1652 = vpack.c.b16 %v1613, %v1612
    %v1653 = vpack.c.b16 %v1615, %v1614
    %v1654 = vpack.c.b16 %v1617, %v1616
    %v1655 = vpack.c.b16 %v1619, %v1618
    %v1656 = vpack.c.b16 %v1621, %v1620
    %v1657 = vpack.c.b16 %v1623, %v1622
    %v1658 = vpack.c.b16 %v1625, %v1624
    %v1659 = vpack.c.b16 %v1627, %v1626
    %v1661 = vsel %vm241, %v1628, 0
    %v1664 = vsel %vm241, %v1629, 0
    %v1667 = vsel %vm241, %v1630, 0
    %v1670 = vsel %vm241, %v1631, 0
    %v1673 = vsel %vm241, %v1632, 0
    %v1676 = vsel %vm241, %v1633, 0
    %v1679 = vsel %vm241, %v1634, 0
    %v1682 = vsel %vm241, %v1635, 0
    %v1685 = vsel %vm241, %v1636, 0
    %v1688 = vsel %vm241, %v1637, 0
    %v1691 = vsel %vm241, %v1638, 0
    %v1694 = vsel %vm241, %v1639, 0
    %v1697 = vsel %vm241, %v1640, 0
    %v1700 = vsel %vm241, %v1641, 0
    %v1703 = vsel %vm241, %v1642, 0
    %v1706 = vsel %vm241, %v1643, 0
    %v1709 = vsel %vm241, %v1644, 0
    %v1712 = vsel %vm241, %v1645, 0
    %v1715 = vsel %vm241, %v1646, 0
    %v1718 = vsel %vm241, %v1647, 0
    %v1721 = vsel %vm241, %v1648, 0
    %v1724 = vsel %vm241, %v1649, 0
    %v1727 = vsel %vm241, %v1650, 0
    %v1730 = vsel %vm241, %v1651, 0
    %v1733 = vsel %vm241, %v1652, 0
    %v1736 = vsel %vm241, %v1653, 0
    %v1739 = vsel %vm241, %v1654, 0
    %v1742 = vsel %vm241, %v1655, 0
    %v1745 = vsel %vm241, %v1656, 0
    %v1748 = vsel %vm241, %v1657, 0
    %v1751 = vsel %vm241, %v1658, 0
    %v1754 = vsel %vm241, %v1659, 0
    %v1757 = vsel %vm338, %v1563, 0
    %1759 = vmatprep.subr.bf16.mxu0 0
    %1760 = vmatpush1.bf16.msra.mxu0 0
    %1761 = vmatprep.subr.bf16.mxu0 0
    %1762 = vmatpush1.bf16.msra.mxu0 0
    %1763 = vmatprep.subr.bf16.mxu0 0
    %1764 = vmatpush1.bf16.msra.mxu0 0
    %1765 = vmatprep.subr.bf16.mxu0 0
    %1766 = vmatpush1.bf16.msra.mxu0 0
    %1767 = vmatprep.subr.bf16.mxu0 0
    %1768 = vmatpush1.bf16.msra.mxu0 0
    %1769 = vmatprep.subr.bf16.mxu0 0
    %1770 = vmatpush1.bf16.msra.mxu0 0
    %1771 = vmatprep.subr.bf16.mxu0 0
    %1772 = vmatpush1.bf16.msra.mxu0 0
    %1773 = vmatprep.subr.bf16.mxu0 0
    %1774 = vmatpush1.bf16.msra.mxu0 %v1757
    %1775 = vmatprep.subr.bf16.mxu0 0
    %1776 = vmatpush2.bf16.msra.mxu0 0
    %1777 = vmatprep.subr.bf16.mxu0 0
    %1778 = vmatpush2.bf16.msra.mxu0 0
    %1779 = vmatprep.subr.bf16.mxu0 0
    %1780 = vmatpush2.bf16.msra.mxu0 0
    %1781 = vmatprep.subr.bf16.mxu0 0
    %1782 = vmatpush2.bf16.msra.mxu0 0
    %1783 = vmatprep.subr.bf16.mxu0 0
    %1784 = vmatpush2.bf16.msra.mxu0 0
    %1785 = vmatprep.subr.bf16.mxu0 0
    %1786 = vmatpush2.bf16.msra.mxu0 0
    %1787 = vmatprep.subr.bf16.mxu0 0
    %1788 = vmatpush2.bf16.msra.mxu0 0
    %1789 = vmatprep.subr.bf16.mxu0 0
    %1790 = vmatpush2.bf16.msra.mxu0 0
    %1791 = vmatprep.mubr.bf16.mxu0 0
    %1792 = vmatmul.mubr.bf16.gmra.mxu0 %v1661
    %v1793 = vpop.f32.mrf.mxu0
    %v1794 = vadd.f32 0.0, %v1793
    %v1795 = vpop.f32.mrf.mxu0
    %v1796 = vpop.f32.mrf.mxu0
    %v1797 = vadd.f32 0.0, %v1796
    %v1798 = vpop.f32.mrf.mxu0
    %1799 = vmatprep.mubr.bf16.mxu0 0
    %1800 = vmatmul.mubr.bf16.gmra.mxu0 %v1664
    %v1801 = vpop.f32.mrf.mxu0
    %v1802 = vadd.f32 0.0, %v1801
    %v1803 = vpop.f32.mrf.mxu0
    %v1804 = vpop.f32.mrf.mxu0
    %v1805 = vadd.f32 0.0, %v1804
    %v1806 = vpop.f32.mrf.mxu0
    %1807 = vmatprep.mubr.bf16.mxu0 0
    %1808 = vmatmul.mubr.bf16.gmra.mxu0 %v1667
    %v1809 = vpop.f32.mrf.mxu0
    %v1810 = vadd.f32 0.0, %v1809
    %v1811 = vpop.f32.mrf.mxu0
    %v1812 = vpop.f32.mrf.mxu0
    %v1813 = vadd.f32 0.0, %v1812
    %v1814 = vpop.f32.mrf.mxu0
    %1815 = vmatprep.mubr.bf16.mxu0 0
    %1816 = vmatmul.mubr.bf16.gmra.mxu0 %v1670
    %v1817 = vpop.f32.mrf.mxu0
    %v1818 = vadd.f32 0.0, %v1817
    %v1819 = vpop.f32.mrf.mxu0
    %v1820 = vpop.f32.mrf.mxu0
    %v1821 = vadd.f32 0.0, %v1820
    %v1822 = vpop.f32.mrf.mxu0
    %1823 = vmatprep.mubr.bf16.mxu0 0
    %1824 = vmatmul.mubr.bf16.gmra.mxu0 %v1673
    %v1825 = vpop.f32.mrf.mxu0
    %v1826 = vadd.f32 0.0, %v1825
    %v1827 = vpop.f32.mrf.mxu0
    %v1828 = vpop.f32.mrf.mxu0
    %v1829 = vadd.f32 0.0, %v1828
    %v1830 = vpop.f32.mrf.mxu0
    %1831 = vmatprep.mubr.bf16.mxu0 0
    %1832 = vmatmul.mubr.bf16.gmra.mxu0 %v1676
    %v1833 = vpop.f32.mrf.mxu0
    %v1834 = vadd.f32 0.0, %v1833
    %v1835 = vpop.f32.mrf.mxu0
    %v1836 = vpop.f32.mrf.mxu0
    %v1837 = vadd.f32 0.0, %v1836
    %v1838 = vpop.f32.mrf.mxu0
    %1839 = vmatprep.mubr.bf16.mxu0 0
    %1840 = vmatmul.mubr.bf16.gmra.mxu0 %v1679
    %v1841 = vpop.f32.mrf.mxu0
    %v1842 = vadd.f32 0.0, %v1841
    %v1843 = vpop.f32.mrf.mxu0
    %v1844 = vpop.f32.mrf.mxu0
    %v1845 = vadd.f32 0.0, %v1844
    %v1846 = vpop.f32.mrf.mxu0
    %1847 = vmatprep.mubr.bf16.mxu0 0
    %1848 = vmatmul.mubr.bf16.gmra.mxu0 %v1682
    %v1849 = vpop.f32.mrf.mxu0
    %v1850 = vadd.f32 0.0, %v1849
    %v1851 = vpop.f32.mrf.mxu0
    %v1852 = vpop.f32.mrf.mxu0
    %v1853 = vadd.f32 0.0, %v1852
    %v1854 = vpop.f32.mrf.mxu0
    %1855 = vmatprep.mubr.bf16.mxu0 0
    %1856 = vmatmul.mubr.bf16.gmra.mxu0 %v1685
    %v1857 = vpop.f32.mrf.mxu0
    %v1858 = vadd.f32 0.0, %v1857
    %v1859 = vpop.f32.mrf.mxu0
    %v1860 = vpop.f32.mrf.mxu0
    %v1861 = vadd.f32 0.0, %v1860
    %v1862 = vpop.f32.mrf.mxu0
    %1863 = vmatprep.mubr.bf16.mxu0 0
    %1864 = vmatmul.mubr.bf16.gmra.mxu0 %v1688
    %v1865 = vpop.f32.mrf.mxu0
    %v1866 = vadd.f32 0.0, %v1865
    %v1867 = vpop.f32.mrf.mxu0
    %v1868 = vpop.f32.mrf.mxu0
    %v1869 = vadd.f32 0.0, %v1868
    %v1870 = vpop.f32.mrf.mxu0
    %1871 = vmatprep.mubr.bf16.mxu0 0
    %1872 = vmatmul.mubr.bf16.gmra.mxu0 %v1691
    %v1873 = vpop.f32.mrf.mxu0
    %v1874 = vadd.f32 0.0, %v1873
    %v1875 = vpop.f32.mrf.mxu0
    %v1876 = vpop.f32.mrf.mxu0
    %v1877 = vadd.f32 0.0, %v1876
    %v1878 = vpop.f32.mrf.mxu0
    %1879 = vmatprep.mubr.bf16.mxu0 0
    %1880 = vmatmul.mubr.bf16.gmra.mxu0 %v1694
    %v1881 = vpop.f32.mrf.mxu0
    %v1882 = vadd.f32 0.0, %v1881
    %v1883 = vpop.f32.mrf.mxu0
    %v1884 = vpop.f32.mrf.mxu0
    %v1885 = vadd.f32 0.0, %v1884
    %v1886 = vpop.f32.mrf.mxu0
    %1887 = vmatprep.mubr.bf16.mxu0 0
    %1888 = vmatmul.mubr.bf16.gmra.mxu0 %v1697
    %v1889 = vpop.f32.mrf.mxu0
    %v1890 = vadd.f32 0.0, %v1889
    %v1891 = vpop.f32.mrf.mxu0
    %v1892 = vpop.f32.mrf.mxu0
    %v1893 = vadd.f32 0.0, %v1892
    %v1894 = vpop.f32.mrf.mxu0
    %1895 = vmatprep.mubr.bf16.mxu0 0
    %1896 = vmatmul.mubr.bf16.gmra.mxu0 %v1700
    %v1897 = vpop.f32.mrf.mxu0
    %v1898 = vadd.f32 0.0, %v1897
    %v1899 = vpop.f32.mrf.mxu0
    %v1900 = vpop.f32.mrf.mxu0
    %v1901 = vadd.f32 0.0, %v1900
    %v1902 = vpop.f32.mrf.mxu0
    %1903 = vmatprep.mubr.bf16.mxu0 0
    %1904 = vmatmul.mubr.bf16.gmra.mxu0 %v1703
    %v1905 = vpop.f32.mrf.mxu0
    %v1906 = vadd.f32 0.0, %v1905
    %v1907 = vpop.f32.mrf.mxu0
    %v1908 = vpop.f32.mrf.mxu0
    %v1909 = vadd.f32 0.0, %v1908
    %v1910 = vpop.f32.mrf.mxu0
    %1911 = vmatprep.mubr.bf16.mxu0 0
    %1912 = vmatmul.mubr.bf16.gmra.mxu0 %v1706
    %v1913 = vpop.f32.mrf.mxu0
    %v1914 = vadd.f32 0.0, %v1913
    %v1915 = vpop.f32.mrf.mxu0
    %v1916 = vpop.f32.mrf.mxu0
    %v1917 = vadd.f32 0.0, %v1916
    %v1918 = vpop.f32.mrf.mxu0
    %1919 = vmatprep.mubr.bf16.mxu0 0
    %1920 = vmatmul.mubr.bf16.gmra.mxu0 %v1709
    %v1921 = vpop.f32.mrf.mxu0
    %v1922 = vadd.f32 0.0, %v1921
    %v1923 = vpop.f32.mrf.mxu0
    %v1924 = vpop.f32.mrf.mxu0
    %v1925 = vadd.f32 0.0, %v1924
    %v1926 = vpop.f32.mrf.mxu0
    %1927 = vmatprep.mubr.bf16.mxu0 0
    %1928 = vmatmul.mubr.bf16.gmra.mxu0 %v1712
    %v1929 = vpop.f32.mrf.mxu0
    %v1930 = vadd.f32 0.0, %v1929
    %v1931 = vpop.f32.mrf.mxu0
    %v1932 = vpop.f32.mrf.mxu0
    %v1933 = vadd.f32 0.0, %v1932
    %v1934 = vpop.f32.mrf.mxu0
    %1935 = vmatprep.mubr.bf16.mxu0 0
    %1936 = vmatmul.mubr.bf16.gmra.mxu0 %v1715
    %v1937 = vpop.f32.mrf.mxu0
    %v1938 = vadd.f32 0.0, %v1937
    %v1939 = vpop.f32.mrf.mxu0
    %v1940 = vpop.f32.mrf.mxu0
    %v1941 = vadd.f32 0.0, %v1940
    %v1942 = vpop.f32.mrf.mxu0
    %1943 = vmatprep.mubr.bf16.mxu0 0
    %1944 = vmatmul.mubr.bf16.gmra.mxu0 %v1718
    %v1945 = vpop.f32.mrf.mxu0
    %v1946 = vadd.f32 0.0, %v1945
    %v1947 = vpop.f32.mrf.mxu0
    %v1948 = vpop.f32.mrf.mxu0
    %v1949 = vadd.f32 0.0, %v1948
    %v1950 = vpop.f32.mrf.mxu0
    %1951 = vmatprep.mubr.bf16.mxu0 0
    %1952 = vmatmul.mubr.bf16.gmra.mxu0 %v1721
    %v1953 = vpop.f32.mrf.mxu0
    %v1954 = vadd.f32 0.0, %v1953
    %v1955 = vpop.f32.mrf.mxu0
    %v1956 = vpop.f32.mrf.mxu0
    %v1957 = vadd.f32 0.0, %v1956
    %v1958 = vpop.f32.mrf.mxu0
    %1959 = vmatprep.mubr.bf16.mxu0 0
    %1960 = vmatmul.mubr.bf16.gmra.mxu0 %v1724
    %v1961 = vpop.f32.mrf.mxu0
    %v1962 = vadd.f32 0.0, %v1961
    %v1963 = vpop.f32.mrf.mxu0
    %v1964 = vpop.f32.mrf.mxu0
    %v1965 = vadd.f32 0.0, %v1964
    %v1966 = vpop.f32.mrf.mxu0
    %1967 = vmatprep.mubr.bf16.mxu0 0
    %1968 = vmatmul.mubr.bf16.gmra.mxu0 %v1727
    %v1969 = vpop.f32.mrf.mxu0
    %v1970 = vadd.f32 0.0, %v1969
    %v1971 = vpop.f32.mrf.mxu0
    %v1972 = vpop.f32.mrf.mxu0
    %v1973 = vadd.f32 0.0, %v1972
    %v1974 = vpop.f32.mrf.mxu0
    %1975 = vmatprep.mubr.bf16.mxu0 0
    %1976 = vmatmul.mubr.bf16.gmra.mxu0 %v1730
    %v1977 = vpop.f32.mrf.mxu0
    %v1978 = vadd.f32 0.0, %v1977
    %v1979 = vpop.f32.mrf.mxu0
    %v1980 = vpop.f32.mrf.mxu0
    %v1981 = vadd.f32 0.0, %v1980
    %v1982 = vpop.f32.mrf.mxu0
    %1983 = vmatprep.mubr.bf16.mxu0 0
    %1984 = vmatmul.mubr.bf16.gmra.mxu0 %v1733
    %v1985 = vpop.f32.mrf.mxu0
    %v1986 = vadd.f32 0.0, %v1985
    %v1987 = vpop.f32.mrf.mxu0
    %v1988 = vpop.f32.mrf.mxu0
    %v1989 = vadd.f32 0.0, %v1988
    %v1990 = vpop.f32.mrf.mxu0
    %1991 = vmatprep.mubr.bf16.mxu0 0
    %1992 = vmatmul.mubr.bf16.gmra.mxu0 %v1736
    %v1993 = vpop.f32.mrf.mxu0
    %v1994 = vadd.f32 0.0, %v1993
    %v1995 = vpop.f32.mrf.mxu0
    %v1996 = vpop.f32.mrf.mxu0
    %v1997 = vadd.f32 0.0, %v1996
    %v1998 = vpop.f32.mrf.mxu0
    %1999 = vmatprep.mubr.bf16.mxu0 0
    %2000 = vmatmul.mubr.bf16.gmra.mxu0 %v1739
    %v2001 = vpop.f32.mrf.mxu0
    %v2002 = vadd.f32 0.0, %v2001
    %v2003 = vpop.f32.mrf.mxu0
    %v2004 = vpop.f32.mrf.mxu0
    %v2005 = vadd.f32 0.0, %v2004
    %v2006 = vpop.f32.mrf.mxu0
    %2007 = vmatprep.mubr.bf16.mxu0 0
    %2008 = vmatmul.mubr.bf16.gmra.mxu0 %v1742
    %v2009 = vpop.f32.mrf.mxu0
    %v2010 = vadd.f32 0.0, %v2009
    %v2011 = vpop.f32.mrf.mxu0
    %v2012 = vpop.f32.mrf.mxu0
    %v2013 = vadd.f32 0.0, %v2012
    %v2014 = vpop.f32.mrf.mxu0
    %2015 = vmatprep.mubr.bf16.mxu0 0
    %2016 = vmatmul.mubr.bf16.gmra.mxu0 %v1745
    %v2017 = vpop.f32.mrf.mxu0
    %v2018 = vadd.f32 0.0, %v2017
    %v2019 = vpop.f32.mrf.mxu0
    %v2020 = vpop.f32.mrf.mxu0
    %v2021 = vadd.f32 0.0, %v2020
    %v2022 = vpop.f32.mrf.mxu0
    %2023 = vmatprep.mubr.bf16.mxu0 0
    %2024 = vmatmul.mubr.bf16.gmra.mxu0 %v1748
    %v2025 = vpop.f32.mrf.mxu0
    %v2026 = vadd.f32 0.0, %v2025
    %v2027 = vpop.f32.mrf.mxu0
    %v2028 = vpop.f32.mrf.mxu0
    %v2029 = vadd.f32 0.0, %v2028
    %v2030 = vpop.f32.mrf.mxu0
    %2031 = vmatprep.mubr.bf16.mxu0 0
    %2032 = vmatmul.mubr.bf16.gmra.mxu0 %v1751
    %v2033 = vpop.f32.mrf.mxu0
    %v2034 = vadd.f32 0.0, %v2033
    %v2035 = vpop.f32.mrf.mxu0
    %v2036 = vpop.f32.mrf.mxu0
    %v2037 = vadd.f32 0.0, %v2036
    %v2038 = vpop.f32.mrf.mxu0
    %2039 = vmatprep.mubr.bf16.mxu0 0
    %2040 = vmatmul.mubr.bf16.gmra.mxu0 %v1754
    %v2041 = vpop.f32.mrf.mxu0
    %v2042 = vadd.f32 0.0, %v2041
    %v2043 = vpop.f32.mrf.mxu0
    %v2044 = vpop.f32.mrf.mxu0
    %v2045 = vadd.f32 0.0, %v2044
    %v2046 = vpop.f32.mrf.mxu0
    %2047 = vdwg.mxu0
    %v2048 = vld [vmem:[#allocation2] sm:$0xff]
    %v2049 = vld [vmem:[#allocation2 + $0x8] sm:$0xff]
    %v2050 = vld [vmem:[#allocation2 + $0x10] sm:$0xff]
    %v2051 = vld [vmem:[#allocation2 + $0x18] sm:$0xff]
    %v2052 = vld [vmem:[#allocation2 + $0x20] sm:$0xff]
    %v2053 = vld [vmem:[#allocation2 + $0x28] sm:$0xff]
    %v2054 = vld [vmem:[#allocation2 + $0x30] sm:$0xff]
    %v2055 = vld [vmem:[#allocation2 + $0x38] sm:$0xff]
    %v2056 = vld [vmem:[#allocation2 + $0x40] sm:$0xff]
    %v2057 = vld [vmem:[#allocation2 + $0x48] sm:$0xff]
    %v2058 = vld [vmem:[#allocation2 + $0x50] sm:$0xff]
    %v2059 = vld [vmem:[#allocation2 + $0x58] sm:$0xff]
    %v2060 = vld [vmem:[#allocation2 + $0x60] sm:$0xff]
    %v2061 = vld [vmem:[#allocation2 + $0x68] sm:$0xff]
    %v2062 = vld [vmem:[#allocation2 + $0x70] sm:$0xff]
    %v2063 = vld [vmem:[#allocation2 + $0x78] sm:$0xff]
    %v2064 = vld [vmem:[#allocation2 + $0x80] sm:$0xff]
    %v2065 = vld [vmem:[#allocation2 + $0x88] sm:$0xff]
    %v2066 = vld [vmem:[#allocation2 + $0x90] sm:$0xff]
    %v2067 = vld [vmem:[#allocation2 + $0x98] sm:$0xff]
    %v2068 = vld [vmem:[#allocation2 + $0xa0] sm:$0xff]
    %v2069 = vld [vmem:[#allocation2 + $0xa8] sm:$0xff]
    %v2070 = vld [vmem:[#allocation2 + $0xb0] sm:$0xff]
    %v2071 = vld [vmem:[#allocation2 + $0xb8] sm:$0xff]
    %v2072 = vld [vmem:[#allocation2 + $0xc0] sm:$0xff]
    %v2073 = vld [vmem:[#allocation2 + $0xc8] sm:$0xff]
    %v2074 = vld [vmem:[#allocation2 + $0xd0] sm:$0xff]
    %v2075 = vld [vmem:[#allocation2 + $0xd8] sm:$0xff]
    %v2076 = vld [vmem:[#allocation2 + $0xe0] sm:$0xff]
    %v2077 = vld [vmem:[#allocation2 + $0xe8] sm:$0xff]
    %v2078 = vld [vmem:[#allocation2 + $0xf0] sm:$0xff]
    %v2079 = vld [vmem:[#allocation2 + $0xf8] sm:$0xff]
    %v2080 = vld [vmem:[#allocation2 + $0x100] sm:$0xff]
    %v2081 = vld [vmem:[#allocation2 + $0x108] sm:$0xff]
    %v2082 = vld [vmem:[#allocation2 + $0x110] sm:$0xff]
    %v2083 = vld [vmem:[#allocation2 + $0x118] sm:$0xff]
    %v2084 = vld [vmem:[#allocation2 + $0x120] sm:$0xff]
    %v2085 = vld [vmem:[#allocation2 + $0x128] sm:$0xff]
    %v2086 = vld [vmem:[#allocation2 + $0x130] sm:$0xff]
    %v2087 = vld [vmem:[#allocation2 + $0x138] sm:$0xff]
    %v2088 = vld [vmem:[#allocation2 + $0x140] sm:$0xff]
    %v2089 = vld [vmem:[#allocation2 + $0x148] sm:$0xff]
    %v2090 = vld [vmem:[#allocation2 + $0x150] sm:$0xff]
    %v2091 = vld [vmem:[#allocation2 + $0x158] sm:$0xff]
    %v2092 = vld [vmem:[#allocation2 + $0x160] sm:$0xff]
    %v2093 = vld [vmem:[#allocation2 + $0x168] sm:$0xff]
    %v2094 = vld [vmem:[#allocation2 + $0x170] sm:$0xff]
    %v2095 = vld [vmem:[#allocation2 + $0x178] sm:$0xff]
    %v2096 = vld [vmem:[#allocation2 + $0x180] sm:$0xff]
    %v2097 = vld [vmem:[#allocation2 + $0x188] sm:$0xff]
    %v2098 = vld [vmem:[#allocation2 + $0x190] sm:$0xff]
    %v2099 = vld [vmem:[#allocation2 + $0x198] sm:$0xff]
    %v2100 = vld [vmem:[#allocation2 + $0x1a0] sm:$0xff]
    %v2101 = vld [vmem:[#allocation2 + $0x1a8] sm:$0xff]
    %v2102 = vld [vmem:[#allocation2 + $0x1b0] sm:$0xff]
    %v2103 = vld [vmem:[#allocation2 + $0x1b8] sm:$0xff]
    %v2104 = vld [vmem:[#allocation2 + $0x1c0] sm:$0xff]
    %v2105 = vld [vmem:[#allocation2 + $0x1c8] sm:$0xff]
    %v2106 = vld [vmem:[#allocation2 + $0x1d0] sm:$0xff]
    %v2107 = vld [vmem:[#allocation2 + $0x1d8] sm:$0xff]
    %v2108 = vld [vmem:[#allocation2 + $0x1e0] sm:$0xff]
    %v2109 = vld [vmem:[#allocation2 + $0x1e8] sm:$0xff]
    %v2110 = vld [vmem:[#allocation2 + $0x1f0] sm:$0xff]
    %v2111 = vld [vmem:[#allocation2 + $0x1f8] sm:$0xff]
    %v2112 = vadd.f32 %v2048, %v1794
    %v2113 = vadd.f32 %v2049, %v1797
    %v2114 = vadd.f32 %v2050, %v1802
    %v2115 = vadd.f32 %v2051, %v1805
    %v2116 = vadd.f32 %v2052, %v1810
    %v2117 = vadd.f32 %v2053, %v1813
    %v2118 = vadd.f32 %v2054, %v1818
    %v2119 = vadd.f32 %v2055, %v1821
    %v2120 = vadd.f32 %v2056, %v1826
    %v2121 = vadd.f32 %v2057, %v1829
    %v2122 = vadd.f32 %v2058, %v1834
    %v2123 = vadd.f32 %v2059, %v1837
    %v2124 = vadd.f32 %v2060, %v1842
    %v2125 = vadd.f32 %v2061, %v1845
    %v2126 = vadd.f32 %v2062, %v1850
    %v2127 = vadd.f32 %v2063, %v1853
    %v2128 = vadd.f32 %v2064, %v1858
    %v2129 = vadd.f32 %v2065, %v1861
    %v2130 = vadd.f32 %v2066, %v1866
    %v2131 = vadd.f32 %v2067, %v1869
    %v2132 = vadd.f32 %v2068, %v1874
    %v2133 = vadd.f32 %v2069, %v1877
    %v2134 = vadd.f32 %v2070, %v1882
    %v2135 = vadd.f32 %v2071, %v1885
    %v2136 = vadd.f32 %v2072, %v1890
    %v2137 = vadd.f32 %v2073, %v1893
    %v2138 = vadd.f32 %v2074, %v1898
    %v2139 = vadd.f32 %v2075, %v1901
    %v2140 = vadd.f32 %v2076, %v1906
    %v2141 = vadd.f32 %v2077, %v1909
    %v2142 = vadd.f32 %v2078, %v1914
    %v2143 = vadd.f32 %v2079, %v1917
    %v2144 = vadd.f32 %v2080, %v1922
    %v2145 = vadd.f32 %v2081, %v1925
    %v2146 = vadd.f32 %v2082, %v1930
    %v2147 = vadd.f32 %v2083, %v1933
    %v2148 = vadd.f32 %v2084, %v1938
    %v2149 = vadd.f32 %v2085, %v1941
    %v2150 = vadd.f32 %v2086, %v1946
    %v2151 = vadd.f32 %v2087, %v1949
    %v2152 = vadd.f32 %v2088, %v1954
    %v2153 = vadd.f32 %v2089, %v1957
    %v2154 = vadd.f32 %v2090, %v1962
    %v2155 = vadd.f32 %v2091, %v1965
    %v2156 = vadd.f32 %v2092, %v1970
    %v2157 = vadd.f32 %v2093, %v1973
    %v2158 = vadd.f32 %v2094, %v1978
    %v2159 = vadd.f32 %v2095, %v1981
    %v2160 = vadd.f32 %v2096, %v1986
    %v2161 = vadd.f32 %v2097, %v1989
    %v2162 = vadd.f32 %v2098, %v1994
    %v2163 = vadd.f32 %v2099, %v1997
    %v2164 = vadd.f32 %v2100, %v2002
    %v2165 = vadd.f32 %v2101, %v2005
    %v2166 = vadd.f32 %v2102, %v2010
    %v2167 = vadd.f32 %v2103, %v2013
    %v2168 = vadd.f32 %v2104, %v2018
    %v2169 = vadd.f32 %v2105, %v2021
    %v2170 = vadd.f32 %v2106, %v2026
    %v2171 = vadd.f32 %v2107, %v2029
    %v2172 = vadd.f32 %v2108, %v2034
    %v2173 = vadd.f32 %v2109, %v2037
    %v2174 = vadd.f32 %v2110, %v2042
    %v2175 = vadd.f32 %v2111, %v2045
    %2176 = vst [vmem:[#allocation2] sm:$0xff] %v2112
    %2177 = vst [vmem:[#allocation2 + $0x8] sm:$0xff] %v2113
    %2178 = vst [vmem:[#allocation2 + $0x10] sm:$0xff] %v2114
    %2179 = vst [vmem:[#allocation2 + $0x18] sm:$0xff] %v2115
    %2180 = vst [vmem:[#allocation2 + $0x20] sm:$0xff] %v2116
    %2181 = vst [vmem:[#allocation2 + $0x28] sm:$0xff] %v2117
    %2182 = vst [vmem:[#allocation2 + $0x30] sm:$0xff] %v2118
    %2183 = vst [vmem:[#allocation2 + $0x38] sm:$0xff] %v2119
    %2184 = vst [vmem:[#allocation2 + $0x40] sm:$0xff] %v2120
    %2185 = vst [vmem:[#allocation2 + $0x48] sm:$0xff] %v2121
    %2186 = vst [vmem:[#allocation2 + $0x50] sm:$0xff] %v2122
    %2187 = vst [vmem:[#allocation2 + $0x58] sm:$0xff] %v2123
    %2188 = vst [vmem:[#allocation2 + $0x60] sm:$0xff] %v2124
    %2189 = vst [vmem:[#allocation2 + $0x68] sm:$0xff] %v2125
    %2190 = vst [vmem:[#allocation2 + $0x70] sm:$0xff] %v2126
    %2191 = vst [vmem:[#allocation2 + $0x78] sm:$0xff] %v2127
    %2192 = vst [vmem:[#allocation2 + $0x80] sm:$0xff] %v2128
    %2193 = vst [vmem:[#allocation2 + $0x88] sm:$0xff] %v2129
    %2194 = vst [vmem:[#allocation2 + $0x90] sm:$0xff] %v2130
    %2195 = vst [vmem:[#allocation2 + $0x98] sm:$0xff] %v2131
    %2196 = vst [vmem:[#allocation2 + $0xa0] sm:$0xff] %v2132
    %2197 = vst [vmem:[#allocation2 + $0xa8] sm:$0xff] %v2133
    %2198 = vst [vmem:[#allocation2 + $0xb0] sm:$0xff] %v2134
    %2199 = vst [vmem:[#allocation2 + $0xb8] sm:$0xff] %v2135
    %2200 = vst [vmem:[#allocation2 + $0xc0] sm:$0xff] %v2136
    %2201 = vst [vmem:[#allocation2 + $0xc8] sm:$0xff] %v2137
    %2202 = vst [vmem:[#allocation2 + $0xd0] sm:$0xff] %v2138
    %2203 = vst [vmem:[#allocation2 + $0xd8] sm:$0xff] %v2139
    %2204 = vst [vmem:[#allocation2 + $0xe0] sm:$0xff] %v2140
    %2205 = vst [vmem:[#allocation2 + $0xe8] sm:$0xff] %v2141
    %2206 = vst [vmem:[#allocation2 + $0xf0] sm:$0xff] %v2142
    %2207 = vst [vmem:[#allocation2 + $0xf8] sm:$0xff] %v2143
    %2208 = vst [vmem:[#allocation2 + $0x100] sm:$0xff] %v2144
    %2209 = vst [vmem:[#allocation2 + $0x108] sm:$0xff] %v2145
    %2210 = vst [vmem:[#allocation2 + $0x110] sm:$0xff] %v2146
    %2211 = vst [vmem:[#allocation2 + $0x118] sm:$0xff] %v2147
    %2212 = vst [vmem:[#allocation2 + $0x120] sm:$0xff] %v2148
    %2213 = vst [vmem:[#allocation2 + $0x128] sm:$0xff] %v2149
    %2214 = vst [vmem:[#allocation2 + $0x130] sm:$0xff] %v2150
    %2215 = vst [vmem:[#allocation2 + $0x138] sm:$0xff] %v2151
    %2216 = vst [vmem:[#allocation2 + $0x140] sm:$0xff] %v2152
    %2217 = vst [vmem:[#allocation2 + $0x148] sm:$0xff] %v2153
    %2218 = vst [vmem:[#allocation2 + $0x150] sm:$0xff] %v2154
    %2219 = vst [vmem:[#allocation2 + $0x158] sm:$0xff] %v2155
    %2220 = vst [vmem:[#allocation2 + $0x160] sm:$0xff] %v2156
    %2221 = vst [vmem:[#allocation2 + $0x168] sm:$0xff] %v2157
    %2222 = vst [vmem:[#allocation2 + $0x170] sm:$0xff] %v2158
    %2223 = vst [vmem:[#allocation2 + $0x178] sm:$0xff] %v2159
    %2224 = vst [vmem:[#allocation2 + $0x180] sm:$0xff] %v2160
    %2225 = vst [vmem:[#allocation2 + $0x188] sm:$0xff] %v2161
    %2226 = vst [vmem:[#allocation2 + $0x190] sm:$0xff] %v2162
    %2227 = vst [vmem:[#allocation2 + $0x198] sm:$0xff] %v2163
    %2228 = vst [vmem:[#allocation2 + $0x1a0] sm:$0xff] %v2164
    %2229 = vst [vmem:[#allocation2 + $0x1a8] sm:$0xff] %v2165
    %2230 = vst [vmem:[#allocation2 + $0x1b0] sm:$0xff] %v2166
    %2231 = vst [vmem:[#allocation2 + $0x1b8] sm:$0xff] %v2167
    %2232 = vst [vmem:[#allocation2 + $0x1c0] sm:$0xff] %v2168
    %2233 = vst [vmem:[#allocation2 + $0x1c8] sm:$0xff] %v2169
    %2234 = vst [vmem:[#allocation2 + $0x1d0] sm:$0xff] %v2170
    %2235 = vst [vmem:[#allocation2 + $0x1d8] sm:$0xff] %v2171
    %2236 = vst [vmem:[#allocation2 + $0x1e0] sm:$0xff] %v2172
    %2237 = vst [vmem:[#allocation2 + $0x1e8] sm:$0xff] %v2173
    %2238 = vst [vmem:[#allocation2 + $0x1f0] sm:$0xff] %v2174
    %2239 = vst [vmem:[#allocation2 + $0x1f8] sm:$0xff] %v2175
    %v2240 = vld [vmem:[%s0] sm:$0xe]
    %v2241 = vld [vmem:[%s0 + $0x4] sm:$0xf]
    %v2242 = vld [vmem:[%s0 + $0x8] sm:$0x1]
    %v2243 = vld [vmem:[%s0 + $0xc] sm:$0xe]
    %v2244 = vld [vmem:[%s0 + $0x10] sm:$0xf]
    %v2245 = vld [vmem:[%s0 + $0x14] sm:$0x1]
    %v2246 = vld [vmem:[%s0 + $0x18] sm:$0xe]
    %v2247 = vld [vmem:[%s0 + $0x1c] sm:$0xf]
    %v2248 = vld [vmem:[%s0 + $0x20] sm:$0x1]
    %v2249 = vld [vmem:[%s0 + $0x24] sm:$0xe]
    %v2250 = vld [vmem:[%s0 + $0x28] sm:$0xf]
    %v2251 = vld [vmem:[%s0 + $0x2c] sm:$0x1]
    %v2252 = vld [vmem:[%s0 + $0x30] sm:$0xe]
    %v2253 = vld [vmem:[%s0 + $0x34] sm:$0xf]
    %v2254 = vld [vmem:[%s0 + $0x38] sm:$0x1]
    %v2255 = vld [vmem:[%s0 + $0x3c] sm:$0xe]
    %v2256 = vld [vmem:[%s0 + $0x40] sm:$0xf]
    %v2257 = vld [vmem:[%s0 + $0x44] sm:$0x1]
    %v2258 = vld [vmem:[%s0 + $0x48] sm:$0xe]
    %v2259 = vld [vmem:[%s0 + $0x4c] sm:$0xf]
    %v2260 = vld [vmem:[%s0 + $0x50] sm:$0x1]
    %v2261 = vld [vmem:[%s0 + $0x54] sm:$0xe]
    %v2262 = vld [vmem:[%s0 + $0x58] sm:$0xf]
    %v2263 = vld [vmem:[%s0 + $0x5c] sm:$0x1]
    %v2264 = vld [vmem:[%s0 + $0x60] sm:$0xe]
    %v2265 = vld [vmem:[%s0 + $0x64] sm:$0xf]
    %v2266 = vld [vmem:[%s0 + $0x68] sm:$0x1]
    %v2267 = vld [vmem:[%s0 + $0x6c] sm:$0xe]
    %v2268 = vld [vmem:[%s0 + $0x70] sm:$0xf]
    %v2269 = vld [vmem:[%s0 + $0x74] sm:$0x1]
    %v2270 = vld [vmem:[%s0 + $0x78] sm:$0xe]
    %v2271 = vld [vmem:[%s0 + $0x7c] sm:$0xf]
    %v2272 = vld [vmem:[%s0 + $0x80] sm:$0x1]
    %v2273 = vld [vmem:[%s0 + $0x84] sm:$0xe]
    %v2274 = vld [vmem:[%s0 + $0x88] sm:$0xf]
    %v2275 = vld [vmem:[%s0 + $0x8c] sm:$0x1]
    %v2276 = vld [vmem:[%s0 + $0x90] sm:$0xe]
    %v2277 = vld [vmem:[%s0 + $0x94] sm:$0xf]
    %v2278 = vld [vmem:[%s0 + $0x98] sm:$0x1]
    %v2279 = vld [vmem:[%s0 + $0x9c] sm:$0xe]
    %v2280 = vld [vmem:[%s0 + $0xa0] sm:$0xf]
    %v2281 = vld [vmem:[%s0 + $0xa4] sm:$0x1]
    %v2282 = vld [vmem:[%s0 + $0xa8] sm:$0xe]
    %v2283 = vld [vmem:[%s0 + $0xac] sm:$0xf]
    %v2284 = vld [vmem:[%s0 + $0xb0] sm:$0x1]
    %v2285 = vld [vmem:[%s0 + $0xb4] sm:$0xe]
    %v2286 = vld [vmem:[%s0 + $0xb8] sm:$0xf]
    %v2287 = vld [vmem:[%s0 + $0xbc] sm:$0x1]
    %v2288 = vld [vmem:[%s0 + $0xd8] sm:$0xe]
    %v2289 = vld [vmem:[%s0 + $0xdc] sm:$0xf]
    %v2290 = vld [vmem:[%s0 + $0xe0] sm:$0x1]
    %v2291 = vld [vmem:[%s0 + $0xe4] sm:$0xe]
    %v2292 = vld [vmem:[%s0 + $0xe8] sm:$0xf]
    %v2293 = vld [vmem:[%s0 + $0xec] sm:$0x1]
    %v2294 = vld [vmem:[%s0 + $0xf0] sm:$0xe]
    %v2295 = vld [vmem:[%s0 + $0xf4] sm:$0xf]
    %v2296 = vld [vmem:[%s0 + $0xf8] sm:$0x1]
    %v2297 = vld [vmem:[%s0 + $0xfc] sm:$0xe]
    %v2298 = vld [vmem:[%s0 + $0x100] sm:$0xf]
    %v2299 = vld [vmem:[%s0 + $0x104] sm:$0x1]
    %v2300 = vld [vmem:[%s0 + $0x108] sm:$0xe]
    %v2301 = vld [vmem:[%s0 + $0x10c] sm:$0xf]
    %v2302 = vld [vmem:[%s0 + $0x110] sm:$0x1]
    %v2303 = vld [vmem:[%s0 + $0x114] sm:$0xe]
    %v2304 = vld [vmem:[%s0 + $0x118] sm:$0xf]
    %v2305 = vld [vmem:[%s0 + $0x11c] sm:$0x1]
    %v2306 = vld [vmem:[%s0 + $0x120] sm:$0xe]
    %v2307 = vld [vmem:[%s0 + $0x124] sm:$0xf]
    %v2308 = vld [vmem:[%s0 + $0x128] sm:$0x1]
    %v2309 = vld [vmem:[%s0 + $0x12c] sm:$0xe]
    %v2310 = vld [vmem:[%s0 + $0x130] sm:$0xf]
    %v2311 = vld [vmem:[%s0 + $0x134] sm:$0x1]
    %v2312 = vld [vmem:[%s0 + $0x138] sm:$0xe]
    %v2313 = vld [vmem:[%s0 + $0x13c] sm:$0xf]
    %v2314 = vld [vmem:[%s0 + $0x140] sm:$0x1]
    %v2315 = vld [vmem:[%s0 + $0x144] sm:$0xe]
    %v2316 = vld [vmem:[%s0 + $0x148] sm:$0xf]
    %v2317 = vld [vmem:[%s0 + $0x14c] sm:$0x1]
    %v2318 = vld [vmem:[%s0 + $0x150] sm:$0xe]
    %v2319 = vld [vmem:[%s0 + $0x154] sm:$0xf]
    %v2320 = vld [vmem:[%s0 + $0x158] sm:$0x1]
    %v2321 = vld [vmem:[%s0 + $0x15c] sm:$0xe]
    %v2322 = vld [vmem:[%s0 + $0x160] sm:$0xf]
    %v2323 = vld [vmem:[%s0 + $0x164] sm:$0x1]
    %v2324 = vld [vmem:[%s0 + $0x168] sm:$0xe]
    %v2325 = vld [vmem:[%s0 + $0x16c] sm:$0xf]
    %v2326 = vld [vmem:[%s0 + $0x170] sm:$0x1]
    %v2327 = vld [vmem:[%s0 + $0x174] sm:$0xe]
    %v2328 = vld [vmem:[%s0 + $0x178] sm:$0xf]
    %v2329 = vld [vmem:[%s0 + $0x17c] sm:$0x1]
    %v2330 = vld [vmem:[%s0 + $0x180] sm:$0xe]
    %v2331 = vld [vmem:[%s0 + $0x184] sm:$0xf]
    %v2332 = vld [vmem:[%s0 + $0x188] sm:$0x1]
    %v2333 = vld [vmem:[%s0 + $0x18c] sm:$0xe]
    %v2334 = vld [vmem:[%s0 + $0x190] sm:$0xf]
    %v2335 = vld [vmem:[%s0 + $0x194] sm:$0x1]
    %vm2432 = vcmask 1042432
    %vm2433 = vcmask 1046532
    %vm2434 = vmor %vm2432, %vm2433
    %v2435 = vrot.slane %v2240, 5
    %v2436 = vrot.slane %v2435, 4
    %v2437 = vrot.slane %v2241, 5
    %v2438 = vsel %vm2434, %v2436, %v2437
    %v2439 = vrot.slane %v2437, 4
    %v2440 = vrot.slane %v2242, 5
    %v2441 = vsel %vm2434, %v2439, %v2440
    %v2442 = vrot.slane %v2243, 5
    %v2443 = vrot.slane %v2442, 4
    %v2444 = vrot.slane %v2244, 5
    %v2445 = vsel %vm2434, %v2443, %v2444
    %v2446 = vrot.slane %v2444, 4
    %v2447 = vrot.slane %v2245, 5
    %v2448 = vsel %vm2434, %v2446, %v2447
    %v2449 = vrot.slane %v2246, 5
    %v2450 = vrot.slane %v2449, 4
    %v2451 = vrot.slane %v2247, 5
    %v2452 = vsel %vm2434, %v2450, %v2451
    %v2453 = vrot.slane %v2451, 4
    %v2454 = vrot.slane %v2248, 5
    %v2455 = vsel %vm2434, %v2453, %v2454
    %v2456 = vrot.slane %v2249, 5
    %v2457 = vrot.slane %v2456, 4
    %v2458 = vrot.slane %v2250, 5
    %v2459 = vsel %vm2434, %v2457, %v2458
    %v2460 = vrot.slane %v2458, 4
    %v2461 = vrot.slane %v2251, 5
    %v2462 = vsel %vm2434, %v2460, %v2461
    %v2463 = vrot.slane %v2252, 5
    %v2464 = vrot.slane %v2463, 4
    %v2465 = vrot.slane %v2253, 5
    %v2466 = vsel %vm2434, %v2464, %v2465
    %v2467 = vrot.slane %v2465, 4
    %v2468 = vrot.slane %v2254, 5
    %v2469 = vsel %vm2434, %v2467, %v2468
    %v2470 = vrot.slane %v2255, 5
    %v2471 = vrot.slane %v2470, 4
    %v2472 = vrot.slane %v2256, 5
    %v2473 = vsel %vm2434, %v2471, %v2472
    %v2474 = vrot.slane %v2472, 4
    %v2475 = vrot.slane %v2257, 5
    %v2476 = vsel %vm2434, %v2474, %v2475
    %v2477 = vrot.slane %v2258, 5
    %v2478 = vrot.slane %v2477, 4
    %v2479 = vrot.slane %v2259, 5
    %v2480 = vsel %vm2434, %v2478, %v2479
    %v2481 = vrot.slane %v2479, 4
    %v2482 = vrot.slane %v2260, 5
    %v2483 = vsel %vm2434, %v2481, %v2482
    %v2484 = vrot.slane %v2261, 5
    %v2485 = vrot.slane %v2484, 4
    %v2486 = vrot.slane %v2262, 5
    %v2487 = vsel %vm2434, %v2485, %v2486
    %v2488 = vrot.slane %v2486, 4
    %v2489 = vrot.slane %v2263, 5
    %v2490 = vsel %vm2434, %v2488, %v2489
    %v2491 = vrot.slane %v2264, 5
    %v2492 = vrot.slane %v2491, 4
    %v2493 = vrot.slane %v2265, 5
    %v2494 = vsel %vm2434, %v2492, %v2493
    %v2495 = vrot.slane %v2493, 4
    %v2496 = vrot.slane %v2266, 5
    %v2497 = vsel %vm2434, %v2495, %v2496
    %v2498 = vrot.slane %v2267, 5
    %v2499 = vrot.slane %v2498, 4
    %v2500 = vrot.slane %v2268, 5
    %v2501 = vsel %vm2434, %v2499, %v2500
    %v2502 = vrot.slane %v2500, 4
    %v2503 = vrot.slane %v2269, 5
    %v2504 = vsel %vm2434, %v2502, %v2503
    %v2505 = vrot.slane %v2270, 5
    %v2506 = vrot.slane %v2505, 4
    %v2507 = vrot.slane %v2271, 5
    %v2508 = vsel %vm2434, %v2506, %v2507
    %v2509 = vrot.slane %v2507, 4
    %v2510 = vrot.slane %v2272, 5
    %v2511 = vsel %vm2434, %v2509, %v2510
    %v2512 = vrot.slane %v2273, 5
    %v2513 = vrot.slane %v2512, 4
    %v2514 = vrot.slane %v2274, 5
    %v2515 = vsel %vm2434, %v2513, %v2514
    %v2516 = vrot.slane %v2514, 4
    %v2517 = vrot.slane %v2275, 5
    %v2518 = vsel %vm2434, %v2516, %v2517
    %v2519 = vrot.slane %v2276, 5
    %v2520 = vrot.slane %v2519, 4
    %v2521 = vrot.slane %v2277, 5
    %v2522 = vsel %vm2434, %v2520, %v2521
    %v2523 = vrot.slane %v2521, 4
    %v2524 = vrot.slane %v2278, 5
    %v2525 = vsel %vm2434, %v2523, %v2524
    %v2526 = vrot.slane %v2279, 5
    %v2527 = vrot.slane %v2526, 4
    %v2528 = vrot.slane %v2280, 5
    %v2529 = vsel %vm2434, %v2527, %v2528
    %v2530 = vrot.slane %v2528, 4
    %v2531 = vrot.slane %v2281, 5
    %v2532 = vsel %vm2434, %v2530, %v2531
    %v2533 = vrot.slane %v2282, 5
    %v2534 = vrot.slane %v2533, 4
    %v2535 = vrot.slane %v2283, 5
    %v2536 = vsel %vm2434, %v2534, %v2535
    %v2537 = vrot.slane %v2535, 4
    %v2538 = vrot.slane %v2284, 5
    %v2539 = vsel %vm2434, %v2537, %v2538
    %v2540 = vrot.slane %v2285, 5
    %v2541 = vrot.slane %v2540, 4
    %v2542 = vrot.slane %v2286, 5
    %v2543 = vsel %vm2434, %v2541, %v2542
    %v2544 = vrot.slane %v2542, 4
    %v2545 = vrot.slane %v2287, 5
    %v2546 = vsel %vm2434, %v2544, %v2545
    %v2547 = vrot.slane %v2288, 5
    %v2548 = vrot.slane %v2547, 4
    %v2549 = vrot.slane %v2289, 5
    %v2550 = vsel %vm2434, %v2548, %v2549
    %v2551 = vrot.slane %v2549, 4
    %v2552 = vrot.slane %v2290, 5
    %v2553 = vsel %vm2434, %v2551, %v2552
    %v2554 = vrot.slane %v2291, 5
    %v2555 = vrot.slane %v2554, 4
    %v2556 = vrot.slane %v2292, 5
    %v2557 = vsel %vm2434, %v2555, %v2556
    %v2558 = vrot.slane %v2556, 4
    %v2559 = vrot.slane %v2293, 5
    %v2560 = vsel %vm2434, %v2558, %v2559
    %v2561 = vrot.slane %v2294, 5
    %v2562 = vrot.slane %v2561, 4
    %v2563 = vrot.slane %v2295, 5
    %v2564 = vsel %vm2434, %v2562, %v2563
    %v2565 = vrot.slane %v2563, 4
    %v2566 = vrot.slane %v2296, 5
    %v2567 = vsel %vm2434, %v2565, %v2566
    %v2568 = vrot.slane %v2297, 5
    %v2569 = vrot.slane %v2568, 4
    %v2570 = vrot.slane %v2298, 5
    %v2571 = vsel %vm2434, %v2569, %v2570
    %v2572 = vrot.slane %v2570, 4
    %v2573 = vrot.slane %v2299, 5
    %v2574 = vsel %vm2434, %v2572, %v2573
    %v2575 = vrot.slane %v2300, 5
    %v2576 = vrot.slane %v2575, 4
    %v2577 = vrot.slane %v2301, 5
    %v2578 = vsel %vm2434, %v2576, %v2577
    %v2579 = vrot.slane %v2577, 4
    %v2580 = vrot.slane %v2302, 5
    %v2581 = vsel %vm2434, %v2579, %v2580
    %v2582 = vrot.slane %v2303, 5
    %v2583 = vrot.slane %v2582, 4
    %v2584 = vrot.slane %v2304, 5
    %v2585 = vsel %vm2434, %v2583, %v2584
    %v2586 = vrot.slane %v2584, 4
    %v2587 = vrot.slane %v2305, 5
    %v2588 = vsel %vm2434, %v2586, %v2587
    %v2589 = vrot.slane %v2306, 5
    %v2590 = vrot.slane %v2589, 4
    %v2591 = vrot.slane %v2307, 5
    %v2592 = vsel %vm2434, %v2590, %v2591
    %v2593 = vrot.slane %v2591, 4
    %v2594 = vrot.slane %v2308, 5
    %v2595 = vsel %vm2434, %v2593, %v2594
    %v2596 = vrot.slane %v2309, 5
    %v2597 = vrot.slane %v2596, 4
    %v2598 = vrot.slane %v2310, 5
    %v2599 = vsel %vm2434, %v2597, %v2598
    %v2600 = vrot.slane %v2598, 4
    %v2601 = vrot.slane %v2311, 5
    %v2602 = vsel %vm2434, %v2600, %v2601
    %v2603 = vrot.slane %v2312, 5
    %v2604 = vrot.slane %v2603, 4
    %v2605 = vrot.slane %v2313, 5
    %v2606 = vsel %vm2434, %v2604, %v2605
    %v2607 = vrot.slane %v2605, 4
    %v2608 = vrot.slane %v2314, 5
    %v2609 = vsel %vm2434, %v2607, %v2608
    %v2610 = vrot.slane %v2315, 5
    %v2611 = vrot.slane %v2610, 4
    %v2612 = vrot.slane %v2316, 5
    %v2613 = vsel %vm2434, %v2611, %v2612
    %v2614 = vrot.slane %v2612, 4
    %v2615 = vrot.slane %v2317, 5
    %v2616 = vsel %vm2434, %v2614, %v2615
    %v2617 = vrot.slane %v2318, 5
    %v2618 = vrot.slane %v2617, 4
    %v2619 = vrot.slane %v2319, 5
    %v2620 = vsel %vm2434, %v2618, %v2619
    %v2621 = vrot.slane %v2619, 4
    %v2622 = vrot.slane %v2320, 5
    %v2623 = vsel %vm2434, %v2621, %v2622
    %v2624 = vrot.slane %v2321, 5
    %v2625 = vrot.slane %v2624, 4
    %v2626 = vrot.slane %v2322, 5
    %v2627 = vsel %vm2434, %v2625, %v2626
    %v2628 = vrot.slane %v2626, 4
    %v2629 = vrot.slane %v2323, 5
    %v2630 = vsel %vm2434, %v2628, %v2629
    %v2631 = vrot.slane %v2324, 5
    %v2632 = vrot.slane %v2631, 4
    %v2633 = vrot.slane %v2325, 5
    %v2634 = vsel %vm2434, %v2632, %v2633
    %v2635 = vrot.slane %v2633, 4
    %v2636 = vrot.slane %v2326, 5
    %v2637 = vsel %vm2434, %v2635, %v2636
    %v2638 = vrot.slane %v2327, 5
    %v2639 = vrot.slane %v2638, 4
    %v2640 = vrot.slane %v2328, 5
    %v2641 = vsel %vm2434, %v2639, %v2640
    %v2642 = vrot.slane %v2640, 4
    %v2643 = vrot.slane %v2329, 5
    %v2644 = vsel %vm2434, %v2642, %v2643
    %v2645 = vrot.slane %v2330, 5
    %v2646 = vrot.slane %v2645, 4
    %v2647 = vrot.slane %v2331, 5
    %v2648 = vsel %vm2434, %v2646, %v2647
    %v2649 = vrot.slane %v2647, 4
    %v2650 = vrot.slane %v2332, 5
    %v2651 = vsel %vm2434, %v2649, %v2650
    %v2652 = vrot.slane %v2333, 5
    %v2653 = vrot.slane %v2652, 4
    %v2654 = vrot.slane %v2334, 5
    %v2655 = vsel %vm2434, %v2653, %v2654
    %v2656 = vrot.slane %v2654, 4
    %v2657 = vrot.slane %v2335, 5
    %v2658 = vsel %vm2434, %v2656, %v2657
    %s2659 = scalar_lea.vmem %s1, 4
    %v2660 = vld [vmem:[%s2659] sm:$0x3]
    %v2661 = vunpack.c.l.b16 %v2438
    %v2662 = vunpack.c.l.b16 %v2441
    %v2663 = vunpack.c.l.b16 %v2445
    %v2664 = vunpack.c.l.b16 %v2448
    %v2665 = vunpack.c.l.b16 %v2452
    %v2666 = vunpack.c.l.b16 %v2455
    %v2667 = vunpack.c.l.b16 %v2459
    %v2668 = vunpack.c.l.b16 %v2462
    %v2669 = vunpack.c.l.b16 %v2466
    %v2670 = vunpack.c.l.b16 %v2469
    %v2671 = vunpack.c.l.b16 %v2473
    %v2672 = vunpack.c.l.b16 %v2476
    %v2673 = vunpack.c.l.b16 %v2480
    %v2674 = vunpack.c.l.b16 %v2483
    %v2675 = vunpack.c.l.b16 %v2487
    %v2676 = vunpack.c.l.b16 %v2490
    %v2677 = vunpack.c.l.b16 %v2494
    %v2678 = vunpack.c.l.b16 %v2497
    %v2679 = vunpack.c.l.b16 %v2501
    %v2680 = vunpack.c.l.b16 %v2504
    %v2681 = vunpack.c.l.b16 %v2508
    %v2682 = vunpack.c.l.b16 %v2511
    %v2683 = vunpack.c.l.b16 %v2515
    %v2684 = vunpack.c.l.b16 %v2518
    %v2685 = vunpack.c.l.b16 %v2522
    %v2686 = vunpack.c.l.b16 %v2525
    %v2687 = vunpack.c.l.b16 %v2529
    %v2688 = vunpack.c.l.b16 %v2532
    %v2689 = vunpack.c.l.b16 %v2536
    %v2690 = vunpack.c.l.b16 %v2539
    %v2691 = vunpack.c.l.b16 %v2543
    %v2692 = vunpack.c.l.b16 %v2546
    %v2693 = vunpack.c.l.b16 %v2550
    %v2694 = vunpack.c.l.b16 %v2553
    %v2695 = vunpack.c.l.b16 %v2557
    %v2696 = vunpack.c.l.b16 %v2560
    %v2697 = vunpack.c.l.b16 %v2564
    %v2698 = vunpack.c.l.b16 %v2567
    %v2699 = vunpack.c.l.b16 %v2571
    %v2700 = vunpack.c.l.b16 %v2574
    %v2701 = vunpack.c.l.b16 %v2578
    %v2702 = vunpack.c.l.b16 %v2581
    %v2703 = vunpack.c.l.b16 %v2585
    %v2704 = vunpack.c.l.b16 %v2588
    %v2705 = vunpack.c.l.b16 %v2592
    %v2706 = vunpack.c.l.b16 %v2595
    %v2707 = vunpack.c.l.b16 %v2599
    %v2708 = vunpack.c.l.b16 %v2602
    %v2709 = vunpack.c.l.b16 %v2606
    %v2710 = vunpack.c.l.b16 %v2609
    %v2711 = vunpack.c.l.b16 %v2613
    %v2712 = vunpack.c.l.b16 %v2616
    %v2713 = vunpack.c.l.b16 %v2620
    %v2714 = vunpack.c.l.b16 %v2623
    %v2715 = vunpack.c.l.b16 %v2627
    %v2716 = vunpack.c.l.b16 %v2630
    %v2717 = vunpack.c.l.b16 %v2634
    %v2718 = vunpack.c.l.b16 %v2637
    %v2719 = vunpack.c.l.b16 %v2641
    %v2720 = vunpack.c.l.b16 %v2644
    %v2721 = vunpack.c.l.b16 %v2648
    %v2722 = vunpack.c.l.b16 %v2651
    %v2723 = vunpack.c.l.b16 %v2655
    %v2724 = vunpack.c.l.b16 %v2658
    %v2725 = vpack.c.b16 %v2662, %v2661
    %v2726 = vpack.c.b16 %v2664, %v2663
    %v2727 = vpack.c.b16 %v2666, %v2665
    %v2728 = vpack.c.b16 %v2668, %v2667
    %v2729 = vpack.c.b16 %v2670, %v2669
    %v2730 = vpack.c.b16 %v2672, %v2671
    %v2731 = vpack.c.b16 %v2674, %v2673
    %v2732 = vpack.c.b16 %v2676, %v2675
    %v2733 = vpack.c.b16 %v2678, %v2677
    %v2734 = vpack.c.b16 %v2680, %v2679
    %v2735 = vpack.c.b16 %v2682, %v2681
    %v2736 = vpack.c.b16 %v2684, %v2683
    %v2737 = vpack.c.b16 %v2686, %v2685
    %v2738 = vpack.c.b16 %v2688, %v2687
    %v2739 = vpack.c.b16 %v2690, %v2689
    %v2740 = vpack.c.b16 %v2692, %v2691
    %v2741 = vpack.c.b16 %v2694, %v2693
    %v2742 = vpack.c.b16 %v2696, %v2695
    %v2743 = vpack.c.b16 %v2698, %v2697
    %v2744 = vpack.c.b16 %v2700, %v2699
    %v2745 = vpack.c.b16 %v2702, %v2701
    %v2746 = vpack.c.b16 %v2704, %v2703
    %v2747 = vpack.c.b16 %v2706, %v2705
    %v2748 = vpack.c.b16 %v2708, %v2707
    %v2749 = vpack.c.b16 %v2710, %v2709
    %v2750 = vpack.c.b16 %v2712, %v2711
    %v2751 = vpack.c.b16 %v2714, %v2713
    %v2752 = vpack.c.b16 %v2716, %v2715
    %v2753 = vpack.c.b16 %v2718, %v2717
    %v2754 = vpack.c.b16 %v2720, %v2719
    %v2755 = vpack.c.b16 %v2722, %v2721
    %v2756 = vpack.c.b16 %v2724, %v2723
    %v2758 = vsel %vm241, %v2725, 0
    %v2761 = vsel %vm241, %v2726, 0
    %v2764 = vsel %vm241, %v2727, 0
    %v2767 = vsel %vm241, %v2728, 0
    %v2770 = vsel %vm241, %v2729, 0
    %v2773 = vsel %vm241, %v2730, 0
    %v2776 = vsel %vm241, %v2731, 0
    %v2779 = vsel %vm241, %v2732, 0
    %v2782 = vsel %vm241, %v2733, 0
    %v2785 = vsel %vm241, %v2734, 0
    %v2788 = vsel %vm241, %v2735, 0
    %v2791 = vsel %vm241, %v2736, 0
    %v2794 = vsel %vm241, %v2737, 0
    %v2797 = vsel %vm241, %v2738, 0
    %v2800 = vsel %vm241, %v2739, 0
    %v2803 = vsel %vm241, %v2740, 0
    %v2806 = vsel %vm241, %v2741, 0
    %v2809 = vsel %vm241, %v2742, 0
    %v2812 = vsel %vm241, %v2743, 0
    %v2815 = vsel %vm241, %v2744, 0
    %v2818 = vsel %vm241, %v2745, 0
    %v2821 = vsel %vm241, %v2746, 0
    %v2824 = vsel %vm241, %v2747, 0
    %v2827 = vsel %vm241, %v2748, 0
    %v2830 = vsel %vm241, %v2749, 0
    %v2833 = vsel %vm241, %v2750, 0
    %v2836 = vsel %vm241, %v2751, 0
    %v2839 = vsel %vm241, %v2752, 0
    %v2842 = vsel %vm241, %v2753, 0
    %v2845 = vsel %vm241, %v2754, 0
    %v2848 = vsel %vm241, %v2755, 0
    %v2851 = vsel %vm241, %v2756, 0
    %v2854 = vsel %vm338, %v2660, 0
    %2856 = vmatprep.subr.bf16.mxu0 0
    %2857 = vmatpush1.bf16.msra.mxu0 0
    %2858 = vmatprep.subr.bf16.mxu0 0
    %2859 = vmatpush1.bf16.msra.mxu0 0
    %2860 = vmatprep.subr.bf16.mxu0 0
    %2861 = vmatpush1.bf16.msra.mxu0 0
    %2862 = vmatprep.subr.bf16.mxu0 0
    %2863 = vmatpush1.bf16.msra.mxu0 0
    %2864 = vmatprep.subr.bf16.mxu0 0
    %2865 = vmatpush1.bf16.msra.mxu0 0
    %2866 = vmatprep.subr.bf16.mxu0 0
    %2867 = vmatpush1.bf16.msra.mxu0 0
    %2868 = vmatprep.subr.bf16.mxu0 0
    %2869 = vmatpush1.bf16.msra.mxu0 0
    %2870 = vmatprep.subr.bf16.mxu0 0
    %2871 = vmatpush1.bf16.msra.mxu0 %v2854
    %2872 = vmatprep.subr.bf16.mxu0 0
    %2873 = vmatpush2.bf16.msra.mxu0 0
    %2874 = vmatprep.subr.bf16.mxu0 0
    %2875 = vmatpush2.bf16.msra.mxu0 0
    %2876 = vmatprep.subr.bf16.mxu0 0
    %2877 = vmatpush2.bf16.msra.mxu0 0
    %2878 = vmatprep.subr.bf16.mxu0 0
    %2879 = vmatpush2.bf16.msra.mxu0 0
    %2880 = vmatprep.subr.bf16.mxu0 0
    %2881 = vmatpush2.bf16.msra.mxu0 0
    %2882 = vmatprep.subr.bf16.mxu0 0
    %2883 = vmatpush2.bf16.msra.mxu0 0
    %2884 = vmatprep.subr.bf16.mxu0 0
    %2885 = vmatpush2.bf16.msra.mxu0 0
    %2886 = vmatprep.subr.bf16.mxu0 0
    %2887 = vmatpush2.bf16.msra.mxu0 0
    %2888 = vmatprep.mubr.bf16.mxu0 0
    %2889 = vmatmul.mubr.bf16.gmra.mxu0 %v2758
    %v2890 = vpop.f32.mrf.mxu0
    %v2891 = vadd.f32 0.0, %v2890
    %v2892 = vpop.f32.mrf.mxu0
    %v2893 = vpop.f32.mrf.mxu0
    %v2894 = vadd.f32 0.0, %v2893
    %v2895 = vpop.f32.mrf.mxu0
    %2896 = vmatprep.mubr.bf16.mxu0 0
    %2897 = vmatmul.mubr.bf16.gmra.mxu0 %v2761
    %v2898 = vpop.f32.mrf.mxu0
    %v2899 = vadd.f32 0.0, %v2898
    %v2900 = vpop.f32.mrf.mxu0
    %v2901 = vpop.f32.mrf.mxu0
    %v2902 = vadd.f32 0.0, %v2901
    %v2903 = vpop.f32.mrf.mxu0
    %2904 = vmatprep.mubr.bf16.mxu0 0
    %2905 = vmatmul.mubr.bf16.gmra.mxu0 %v2764
    %v2906 = vpop.f32.mrf.mxu0
    %v2907 = vadd.f32 0.0, %v2906
    %v2908 = vpop.f32.mrf.mxu0
    %v2909 = vpop.f32.mrf.mxu0
    %v2910 = vadd.f32 0.0, %v2909
    %v2911 = vpop.f32.mrf.mxu0
    %2912 = vmatprep.mubr.bf16.mxu0 0
    %2913 = vmatmul.mubr.bf16.gmra.mxu0 %v2767
    %v2914 = vpop.f32.mrf.mxu0
    %v2915 = vadd.f32 0.0, %v2914
    %v2916 = vpop.f32.mrf.mxu0
    %v2917 = vpop.f32.mrf.mxu0
    %v2918 = vadd.f32 0.0, %v2917
    %v2919 = vpop.f32.mrf.mxu0
    %2920 = vmatprep.mubr.bf16.mxu0 0
    %2921 = vmatmul.mubr.bf16.gmra.mxu0 %v2770
    %v2922 = vpop.f32.mrf.mxu0
    %v2923 = vadd.f32 0.0, %v2922
    %v2924 = vpop.f32.mrf.mxu0
    %v2925 = vpop.f32.mrf.mxu0
    %v2926 = vadd.f32 0.0, %v2925
    %v2927 = vpop.f32.mrf.mxu0
    %2928 = vmatprep.mubr.bf16.mxu0 0
    %2929 = vmatmul.mubr.bf16.gmra.mxu0 %v2773
    %v2930 = vpop.f32.mrf.mxu0
    %v2931 = vadd.f32 0.0, %v2930
    %v2932 = vpop.f32.mrf.mxu0
    %v2933 = vpop.f32.mrf.mxu0
    %v2934 = vadd.f32 0.0, %v2933
    %v2935 = vpop.f32.mrf.mxu0
    %2936 = vmatprep.mubr.bf16.mxu0 0
    %2937 = vmatmul.mubr.bf16.gmra.mxu0 %v2776
    %v2938 = vpop.f32.mrf.mxu0
    %v2939 = vadd.f32 0.0, %v2938
    %v2940 = vpop.f32.mrf.mxu0
    %v2941 = vpop.f32.mrf.mxu0
    %v2942 = vadd.f32 0.0, %v2941
    %v2943 = vpop.f32.mrf.mxu0
    %2944 = vmatprep.mubr.bf16.mxu0 0
    %2945 = vmatmul.mubr.bf16.gmra.mxu0 %v2779
    %v2946 = vpop.f32.mrf.mxu0
    %v2947 = vadd.f32 0.0, %v2946
    %v2948 = vpop.f32.mrf.mxu0
    %v2949 = vpop.f32.mrf.mxu0
    %v2950 = vadd.f32 0.0, %v2949
    %v2951 = vpop.f32.mrf.mxu0
    %2952 = vmatprep.mubr.bf16.mxu0 0
    %2953 = vmatmul.mubr.bf16.gmra.mxu0 %v2782
    %v2954 = vpop.f32.mrf.mxu0
    %v2955 = vadd.f32 0.0, %v2954
    %v2956 = vpop.f32.mrf.mxu0
    %v2957 = vpop.f32.mrf.mxu0
    %v2958 = vadd.f32 0.0, %v2957
    %v2959 = vpop.f32.mrf.mxu0
    %2960 = vmatprep.mubr.bf16.mxu0 0
    %2961 = vmatmul.mubr.bf16.gmra.mxu0 %v2785
    %v2962 = vpop.f32.mrf.mxu0
    %v2963 = vadd.f32 0.0, %v2962
    %v2964 = vpop.f32.mrf.mxu0
    %v2965 = vpop.f32.mrf.mxu0
    %v2966 = vadd.f32 0.0, %v2965
    %v2967 = vpop.f32.mrf.mxu0
    %2968 = vmatprep.mubr.bf16.mxu0 0
    %2969 = vmatmul.mubr.bf16.gmra.mxu0 %v2788
    %v2970 = vpop.f32.mrf.mxu0
    %v2971 = vadd.f32 0.0, %v2970
    %v2972 = vpop.f32.mrf.mxu0
    %v2973 = vpop.f32.mrf.mxu0
    %v2974 = vadd.f32 0.0, %v2973
    %v2975 = vpop.f32.mrf.mxu0
    %2976 = vmatprep.mubr.bf16.mxu0 0
    %2977 = vmatmul.mubr.bf16.gmra.mxu0 %v2791
    %v2978 = vpop.f32.mrf.mxu0
    %v2979 = vadd.f32 0.0, %v2978
    %v2980 = vpop.f32.mrf.mxu0
    %v2981 = vpop.f32.mrf.mxu0
    %v2982 = vadd.f32 0.0, %v2981
    %v2983 = vpop.f32.mrf.mxu0
    %2984 = vmatprep.mubr.bf16.mxu0 0
    %2985 = vmatmul.mubr.bf16.gmra.mxu0 %v2794
    %v2986 = vpop.f32.mrf.mxu0
    %v2987 = vadd.f32 0.0, %v2986
    %v2988 = vpop.f32.mrf.mxu0
    %v2989 = vpop.f32.mrf.mxu0
    %v2990 = vadd.f32 0.0, %v2989
    %v2991 = vpop.f32.mrf.mxu0
    %2992 = vmatprep.mubr.bf16.mxu0 0
    %2993 = vmatmul.mubr.bf16.gmra.mxu0 %v2797
    %v2994 = vpop.f32.mrf.mxu0
    %v2995 = vadd.f32 0.0, %v2994
    %v2996 = vpop.f32.mrf.mxu0
    %v2997 = vpop.f32.mrf.mxu0
    %v2998 = vadd.f32 0.0, %v2997
    %v2999 = vpop.f32.mrf.mxu0
    %3000 = vmatprep.mubr.bf16.mxu0 0
    %3001 = vmatmul.mubr.bf16.gmra.mxu0 %v2800
    %v3002 = vpop.f32.mrf.mxu0
    %v3003 = vadd.f32 0.0, %v3002
    %v3004 = vpop.f32.mrf.mxu0
    %v3005 = vpop.f32.mrf.mxu0
    %v3006 = vadd.f32 0.0, %v3005
    %v3007 = vpop.f32.mrf.mxu0
    %3008 = vmatprep.mubr.bf16.mxu0 0
    %3009 = vmatmul.mubr.bf16.gmra.mxu0 %v2803
    %v3010 = vpop.f32.mrf.mxu0
    %v3011 = vadd.f32 0.0, %v3010
    %v3012 = vpop.f32.mrf.mxu0
    %v3013 = vpop.f32.mrf.mxu0
    %v3014 = vadd.f32 0.0, %v3013
    %v3015 = vpop.f32.mrf.mxu0
    %3016 = vmatprep.mubr.bf16.mxu0 0
    %3017 = vmatmul.mubr.bf16.gmra.mxu0 %v2806
    %v3018 = vpop.f32.mrf.mxu0
    %v3019 = vadd.f32 0.0, %v3018
    %v3020 = vpop.f32.mrf.mxu0
    %v3021 = vpop.f32.mrf.mxu0
    %v3022 = vadd.f32 0.0, %v3021
    %v3023 = vpop.f32.mrf.mxu0
    %3024 = vmatprep.mubr.bf16.mxu0 0
    %3025 = vmatmul.mubr.bf16.gmra.mxu0 %v2809
    %v3026 = vpop.f32.mrf.mxu0
    %v3027 = vadd.f32 0.0, %v3026
    %v3028 = vpop.f32.mrf.mxu0
    %v3029 = vpop.f32.mrf.mxu0
    %v3030 = vadd.f32 0.0, %v3029
    %v3031 = vpop.f32.mrf.mxu0
    %3032 = vmatprep.mubr.bf16.mxu0 0
    %3033 = vmatmul.mubr.bf16.gmra.mxu0 %v2812
    %v3034 = vpop.f32.mrf.mxu0
    %v3035 = vadd.f32 0.0, %v3034
    %v3036 = vpop.f32.mrf.mxu0
    %v3037 = vpop.f32.mrf.mxu0
    %v3038 = vadd.f32 0.0, %v3037
    %v3039 = vpop.f32.mrf.mxu0
    %3040 = vmatprep.mubr.bf16.mxu0 0
    %3041 = vmatmul.mubr.bf16.gmra.mxu0 %v2815
    %v3042 = vpop.f32.mrf.mxu0
    %v3043 = vadd.f32 0.0, %v3042
    %v3044 = vpop.f32.mrf.mxu0
    %v3045 = vpop.f32.mrf.mxu0
    %v3046 = vadd.f32 0.0, %v3045
    %v3047 = vpop.f32.mrf.mxu0
    %3048 = vmatprep.mubr.bf16.mxu0 0
    %3049 = vmatmul.mubr.bf16.gmra.mxu0 %v2818
    %v3050 = vpop.f32.mrf.mxu0
    %v3051 = vadd.f32 0.0, %v3050
    %v3052 = vpop.f32.mrf.mxu0
    %v3053 = vpop.f32.mrf.mxu0
    %v3054 = vadd.f32 0.0, %v3053
    %v3055 = vpop.f32.mrf.mxu0
    %3056 = vmatprep.mubr.bf16.mxu0 0
    %3057 = vmatmul.mubr.bf16.gmra.mxu0 %v2821
    %v3058 = vpop.f32.mrf.mxu0
    %v3059 = vadd.f32 0.0, %v3058
    %v3060 = vpop.f32.mrf.mxu0
    %v3061 = vpop.f32.mrf.mxu0
    %v3062 = vadd.f32 0.0, %v3061
    %v3063 = vpop.f32.mrf.mxu0
    %3064 = vmatprep.mubr.bf16.mxu0 0
    %3065 = vmatmul.mubr.bf16.gmra.mxu0 %v2824
    %v3066 = vpop.f32.mrf.mxu0
    %v3067 = vadd.f32 0.0, %v3066
    %v3068 = vpop.f32.mrf.mxu0
    %v3069 = vpop.f32.mrf.mxu0
    %v3070 = vadd.f32 0.0, %v3069
    %v3071 = vpop.f32.mrf.mxu0
    %3072 = vmatprep.mubr.bf16.mxu0 0
    %3073 = vmatmul.mubr.bf16.gmra.mxu0 %v2827
    %v3074 = vpop.f32.mrf.mxu0
    %v3075 = vadd.f32 0.0, %v3074
    %v3076 = vpop.f32.mrf.mxu0
    %v3077 = vpop.f32.mrf.mxu0
    %v3078 = vadd.f32 0.0, %v3077
    %v3079 = vpop.f32.mrf.mxu0
    %3080 = vmatprep.mubr.bf16.mxu0 0
    %3081 = vmatmul.mubr.bf16.gmra.mxu0 %v2830
    %v3082 = vpop.f32.mrf.mxu0
    %v3083 = vadd.f32 0.0, %v3082
    %v3084 = vpop.f32.mrf.mxu0
    %v3085 = vpop.f32.mrf.mxu0
    %v3086 = vadd.f32 0.0, %v3085
    %v3087 = vpop.f32.mrf.mxu0
    %3088 = vmatprep.mubr.bf16.mxu0 0
    %3089 = vmatmul.mubr.bf16.gmra.mxu0 %v2833
    %v3090 = vpop.f32.mrf.mxu0
    %v3091 = vadd.f32 0.0, %v3090
    %v3092 = vpop.f32.mrf.mxu0
    %v3093 = vpop.f32.mrf.mxu0
    %v3094 = vadd.f32 0.0, %v3093
    %v3095 = vpop.f32.mrf.mxu0
    %3096 = vmatprep.mubr.bf16.mxu0 0
    %3097 = vmatmul.mubr.bf16.gmra.mxu0 %v2836
    %v3098 = vpop.f32.mrf.mxu0
    %v3099 = vadd.f32 0.0, %v3098
    %v3100 = vpop.f32.mrf.mxu0
    %v3101 = vpop.f32.mrf.mxu0
    %v3102 = vadd.f32 0.0, %v3101
    %v3103 = vpop.f32.mrf.mxu0
    %3104 = vmatprep.mubr.bf16.mxu0 0
    %3105 = vmatmul.mubr.bf16.gmra.mxu0 %v2839
    %v3106 = vpop.f32.mrf.mxu0
    %v3107 = vadd.f32 0.0, %v3106
    %v3108 = vpop.f32.mrf.mxu0
    %v3109 = vpop.f32.mrf.mxu0
    %v3110 = vadd.f32 0.0, %v3109
    %v3111 = vpop.f32.mrf.mxu0
    %3112 = vmatprep.mubr.bf16.mxu0 0
    %3113 = vmatmul.mubr.bf16.gmra.mxu0 %v2842
    %v3114 = vpop.f32.mrf.mxu0
    %v3115 = vadd.f32 0.0, %v3114
    %v3116 = vpop.f32.mrf.mxu0
    %v3117 = vpop.f32.mrf.mxu0
    %v3118 = vadd.f32 0.0, %v3117
    %v3119 = vpop.f32.mrf.mxu0
    %3120 = vmatprep.mubr.bf16.mxu0 0
    %3121 = vmatmul.mubr.bf16.gmra.mxu0 %v2845
    %v3122 = vpop.f32.mrf.mxu0
    %v3123 = vadd.f32 0.0, %v3122
    %v3124 = vpop.f32.mrf.mxu0
    %v3125 = vpop.f32.mrf.mxu0
    %v3126 = vadd.f32 0.0, %v3125
    %v3127 = vpop.f32.mrf.mxu0
    %3128 = vmatprep.mubr.bf16.mxu0 0
    %3129 = vmatmul.mubr.bf16.gmra.mxu0 %v2848
    %v3130 = vpop.f32.mrf.mxu0
    %v3131 = vadd.f32 0.0, %v3130
    %v3132 = vpop.f32.mrf.mxu0
    %v3133 = vpop.f32.mrf.mxu0
    %v3134 = vadd.f32 0.0, %v3133
    %v3135 = vpop.f32.mrf.mxu0
    %3136 = vmatprep.mubr.bf16.mxu0 0
    %3137 = vmatmul.mubr.bf16.gmra.mxu0 %v2851
    %v3138 = vpop.f32.mrf.mxu0
    %v3139 = vadd.f32 0.0, %v3138
    %v3140 = vpop.f32.mrf.mxu0
    %v3141 = vpop.f32.mrf.mxu0
    %v3142 = vadd.f32 0.0, %v3141
    %v3143 = vpop.f32.mrf.mxu0
    %3144 = vdwg.mxu0
    %v3145 = vld [vmem:[#allocation2] sm:$0xff]
    %v3146 = vld [vmem:[#allocation2 + $0x8] sm:$0xff]
    %v3147 = vld [vmem:[#allocation2 + $0x10] sm:$0xff]
    %v3148 = vld [vmem:[#allocation2 + $0x18] sm:$0xff]
    %v3149 = vld [vmem:[#allocation2 + $0x20] sm:$0xff]
    %v3150 = vld [vmem:[#allocation2 + $0x28] sm:$0xff]
    %v3151 = vld [vmem:[#allocation2 + $0x30] sm:$0xff]
    %v3152 = vld [vmem:[#allocation2 + $0x38] sm:$0xff]
    %v3153 = vld [vmem:[#allocation2 + $0x40] sm:$0xff]
    %v3154 = vld [vmem:[#allocation2 + $0x48] sm:$0xff]
    %v3155 = vld [vmem:[#allocation2 + $0x50] sm:$0xff]
    %v3156 = vld [vmem:[#allocation2 + $0x58] sm:$0xff]
    %v3157 = vld [vmem:[#allocation2 + $0x60] sm:$0xff]
    %v3158 = vld [vmem:[#allocation2 + $0x68] sm:$0xff]
    %v3159 = vld [vmem:[#allocation2 + $0x70] sm:$0xff]
    %v3160 = vld [vmem:[#allocation2 + $0x78] sm:$0xff]
    %v3161 = vld [vmem:[#allocation2 + $0x80] sm:$0xff]
    %v3162 = vld [vmem:[#allocation2 + $0x88] sm:$0xff]
    %v3163 = vld [vmem:[#allocation2 + $0x90] sm:$0xff]
    %v3164 = vld [vmem:[#allocation2 + $0x98] sm:$0xff]
    %v3165 = vld [vmem:[#allocation2 + $0xa0] sm:$0xff]
    %v3166 = vld [vmem:[#allocation2 + $0xa8] sm:$0xff]
    %v3167 = vld [vmem:[#allocation2 + $0xb0] sm:$0xff]
    %v3168 = vld [vmem:[#allocation2 + $0xb8] sm:$0xff]
    %v3169 = vld [vmem:[#allocation2 + $0xc0] sm:$0xff]
    %v3170 = vld [vmem:[#allocation2 + $0xc8] sm:$0xff]
    %v3171 = vld [vmem:[#allocation2 + $0xd0] sm:$0xff]
    %v3172 = vld [vmem:[#allocation2 + $0xd8] sm:$0xff]
    %v3173 = vld [vmem:[#allocation2 + $0xe0] sm:$0xff]
    %v3174 = vld [vmem:[#allocation2 + $0xe8] sm:$0xff]
    %v3175 = vld [vmem:[#allocation2 + $0xf0] sm:$0xff]
    %v3176 = vld [vmem:[#allocation2 + $0xf8] sm:$0xff]
    %v3177 = vld [vmem:[#allocation2 + $0x100] sm:$0xff]
    %v3178 = vld [vmem:[#allocation2 + $0x108] sm:$0xff]
    %v3179 = vld [vmem:[#allocation2 + $0x110] sm:$0xff]
    %v3180 = vld [vmem:[#allocation2 + $0x118] sm:$0xff]
    %v3181 = vld [vmem:[#allocation2 + $0x120] sm:$0xff]
    %v3182 = vld [vmem:[#allocation2 + $0x128] sm:$0xff]
    %v3183 = vld [vmem:[#allocation2 + $0x130] sm:$0xff]
    %v3184 = vld [vmem:[#allocation2 + $0x138] sm:$0xff]
    %v3185 = vld [vmem:[#allocation2 + $0x140] sm:$0xff]
    %v3186 = vld [vmem:[#allocation2 + $0x148] sm:$0xff]
    %v3187 = vld [vmem:[#allocation2 + $0x150] sm:$0xff]
    %v3188 = vld [vmem:[#allocation2 + $0x158] sm:$0xff]
    %v3189 = vld [vmem:[#allocation2 + $0x160] sm:$0xff]
    %v3190 = vld [vmem:[#allocation2 + $0x168] sm:$0xff]
    %v3191 = vld [vmem:[#allocation2 + $0x170] sm:$0xff]
    %v3192 = vld [vmem:[#allocation2 + $0x178] sm:$0xff]
    %v3193 = vld [vmem:[#allocation2 + $0x180] sm:$0xff]
    %v3194 = vld [vmem:[#allocation2 + $0x188] sm:$0xff]
    %v3195 = vld [vmem:[#allocation2 + $0x190] sm:$0xff]
    %v3196 = vld [vmem:[#allocation2 + $0x198] sm:$0xff]
    %v3197 = vld [vmem:[#allocation2 + $0x1a0] sm:$0xff]
    %v3198 = vld [vmem:[#allocation2 + $0x1a8] sm:$0xff]
    %v3199 = vld [vmem:[#allocation2 + $0x1b0] sm:$0xff]
    %v3200 = vld [vmem:[#allocation2 + $0x1b8] sm:$0xff]
    %v3201 = vld [vmem:[#allocation2 + $0x1c0] sm:$0xff]
    %v3202 = vld [vmem:[#allocation2 + $0x1c8] sm:$0xff]
    %v3203 = vld [vmem:[#allocation2 + $0x1d0] sm:$0xff]
    %v3204 = vld [vmem:[#allocation2 + $0x1d8] sm:$0xff]
    %v3205 = vld [vmem:[#allocation2 + $0x1e0] sm:$0xff]
    %v3206 = vld [vmem:[#allocation2 + $0x1e8] sm:$0xff]
    %v3207 = vld [vmem:[#allocation2 + $0x1f0] sm:$0xff]
    %v3208 = vld [vmem:[#allocation2 + $0x1f8] sm:$0xff]
    %v3209 = vadd.f32 %v3145, %v2891
    %v3210 = vadd.f32 %v3146, %v2894
    %v3211 = vadd.f32 %v3147, %v2899
    %v3212 = vadd.f32 %v3148, %v2902
    %v3213 = vadd.f32 %v3149, %v2907
    %v3214 = vadd.f32 %v3150, %v2910
    %v3215 = vadd.f32 %v3151, %v2915
    %v3216 = vadd.f32 %v3152, %v2918
    %v3217 = vadd.f32 %v3153, %v2923
    %v3218 = vadd.f32 %v3154, %v2926
    %v3219 = vadd.f32 %v3155, %v2931
    %v3220 = vadd.f32 %v3156, %v2934
    %v3221 = vadd.f32 %v3157, %v2939
    %v3222 = vadd.f32 %v3158, %v2942
    %v3223 = vadd.f32 %v3159, %v2947
    %v3224 = vadd.f32 %v3160, %v2950
    %v3225 = vadd.f32 %v3161, %v2955
    %v3226 = vadd.f32 %v3162, %v2958
    %v3227 = vadd.f32 %v3163, %v2963
    %v3228 = vadd.f32 %v3164, %v2966
    %v3229 = vadd.f32 %v3165, %v2971
    %v3230 = vadd.f32 %v3166, %v2974
    %v3231 = vadd.f32 %v3167, %v2979
    %v3232 = vadd.f32 %v3168, %v2982
    %v3233 = vadd.f32 %v3169, %v2987
    %v3234 = vadd.f32 %v3170, %v2990
    %v3235 = vadd.f32 %v3171, %v2995
    %v3236 = vadd.f32 %v3172, %v2998
    %v3237 = vadd.f32 %v3173, %v3003
    %v3238 = vadd.f32 %v3174, %v3006
    %v3239 = vadd.f32 %v3175, %v3011
    %v3240 = vadd.f32 %v3176, %v3014
    %v3241 = vadd.f32 %v3177, %v3019
    %v3242 = vadd.f32 %v3178, %v3022
    %v3243 = vadd.f32 %v3179, %v3027
    %v3244 = vadd.f32 %v3180, %v3030
    %v3245 = vadd.f32 %v3181, %v3035
    %v3246 = vadd.f32 %v3182, %v3038
    %v3247 = vadd.f32 %v3183, %v3043
    %v3248 = vadd.f32 %v3184, %v3046
    %v3249 = vadd.f32 %v3185, %v3051
    %v3250 = vadd.f32 %v3186, %v3054
    %v3251 = vadd.f32 %v3187, %v3059
    %v3252 = vadd.f32 %v3188, %v3062
    %v3253 = vadd.f32 %v3189, %v3067
    %v3254 = vadd.f32 %v3190, %v3070
    %v3255 = vadd.f32 %v3191, %v3075
    %v3256 = vadd.f32 %v3192, %v3078
    %v3257 = vadd.f32 %v3193, %v3083
    %v3258 = vadd.f32 %v3194, %v3086
    %v3259 = vadd.f32 %v3195, %v3091
    %v3260 = vadd.f32 %v3196, %v3094
    %v3261 = vadd.f32 %v3197, %v3099
    %v3262 = vadd.f32 %v3198, %v3102
    %v3263 = vadd.f32 %v3199, %v3107
    %v3264 = vadd.f32 %v3200, %v3110
    %v3265 = vadd.f32 %v3201, %v3115
    %v3266 = vadd.f32 %v3202, %v3118
    %v3267 = vadd.f32 %v3203, %v3123
    %v3268 = vadd.f32 %v3204, %v3126
    %v3269 = vadd.f32 %v3205, %v3131
    %v3270 = vadd.f32 %v3206, %v3134
    %v3271 = vadd.f32 %v3207, %v3139
    %v3272 = vadd.f32 %v3208, %v3142
    %3273 = vst [vmem:[#allocation2] sm:$0xff] %v3209
    %3274 = vst [vmem:[#allocation2 + $0x8] sm:$0xff] %v3210
    %3275 = vst [vmem:[#allocation2 + $0x10] sm:$0xff] %v3211
    %3276 = vst [vmem:[#allocation2 + $0x18] sm:$0xff] %v3212
    %3277 = vst [vmem:[#allocation2 + $0x20] sm:$0xff] %v3213
    %3278 = vst [vmem:[#allocation2 + $0x28] sm:$0xff] %v3214
    %3279 = vst [vmem:[#allocation2 + $0x30] sm:$0xff] %v3215
    %3280 = vst [vmem:[#allocation2 + $0x38] sm:$0xff] %v3216
    %3281 = vst [vmem:[#allocation2 + $0x40] sm:$0xff] %v3217
    %3282 = vst [vmem:[#allocation2 + $0x48] sm:$0xff] %v3218
    %3283 = vst [vmem:[#allocation2 + $0x50] sm:$0xff] %v3219
    %3284 = vst [vmem:[#allocation2 + $0x58] sm:$0xff] %v3220
    %3285 = vst [vmem:[#allocation2 + $0x60] sm:$0xff] %v3221
    %3286 = vst [vmem:[#allocation2 + $0x68] sm:$0xff] %v3222
    %3287 = vst [vmem:[#allocation2 + $0x70] sm:$0xff] %v3223
    %3288 = vst [vmem:[#allocation2 + $0x78] sm:$0xff] %v3224
    %3289 = vst [vmem:[#allocation2 + $0x80] sm:$0xff] %v3225
    %3290 = vst [vmem:[#allocation2 + $0x88] sm:$0xff] %v3226
    %3291 = vst [vmem:[#allocation2 + $0x90] sm:$0xff] %v3227
    %3292 = vst [vmem:[#allocation2 + $0x98] sm:$0xff] %v3228
    %3293 = vst [vmem:[#allocation2 + $0xa0] sm:$0xff] %v3229
    %3294 = vst [vmem:[#allocation2 + $0xa8] sm:$0xff] %v3230
    %3295 = vst [vmem:[#allocation2 + $0xb0] sm:$0xff] %v3231
    %3296 = vst [vmem:[#allocation2 + $0xb8] sm:$0xff] %v3232
    %3297 = vst [vmem:[#allocation2 + $0xc0] sm:$0xff] %v3233
    %3298 = vst [vmem:[#allocation2 + $0xc8] sm:$0xff] %v3234
    %3299 = vst [vmem:[#allocation2 + $0xd0] sm:$0xff] %v3235
    %3300 = vst [vmem:[#allocation2 + $0xd8] sm:$0xff] %v3236
    %3301 = vst [vmem:[#allocation2 + $0xe0] sm:$0xff] %v3237
    %3302 = vst [vmem:[#allocation2 + $0xe8] sm:$0xff] %v3238
    %3303 = vst [vmem:[#allocation2 + $0xf0] sm:$0xff] %v3239
    %3304 = vst [vmem:[#allocation2 + $0xf8] sm:$0xff] %v3240
    %3305 = vst [vmem:[#allocation2 + $0x100] sm:$0xff] %v3241
    %3306 = vst [vmem:[#allocation2 + $0x108] sm:$0xff] %v3242
    %3307 = vst [vmem:[#allocation2 + $0x110] sm:$0xff] %v3243
    %3308 = vst [vmem:[#allocation2 + $0x118] sm:$0xff] %v3244
    %3309 = vst [vmem:[#allocation2 + $0x120] sm:$0xff] %v3245
    %3310 = vst [vmem:[#allocation2 + $0x128] sm:$0xff] %v3246
    %3311 = vst [vmem:[#allocation2 + $0x130] sm:$0xff] %v3247
    %3312 = vst [vmem:[#allocation2 + $0x138] sm:$0xff] %v3248
    %3313 = vst [vmem:[#allocation2 + $0x140] sm:$0xff] %v3249
    %3314 = vst [vmem:[#allocation2 + $0x148] sm:$0xff] %v3250
    %3315 = vst [vmem:[#allocation2 + $0x150] sm:$0xff] %v3251
    %3316 = vst [vmem:[#allocation2 + $0x158] sm:$0xff] %v3252
    %3317 = vst [vmem:[#allocation2 + $0x160] sm:$0xff] %v3253
    %3318 = vst [vmem:[#allocation2 + $0x168] sm:$0xff] %v3254
    %3319 = vst [vmem:[#allocation2 + $0x170] sm:$0xff] %v3255
    %3320 = vst [vmem:[#allocation2 + $0x178] sm:$0xff] %v3256
    %3321 = vst [vmem:[#allocation2 + $0x180] sm:$0xff] %v3257
    %3322 = vst [vmem:[#allocation2 + $0x188] sm:$0xff] %v3258
    %3323 = vst [vmem:[#allocation2 + $0x190] sm:$0xff] %v3259
    %3324 = vst [vmem:[#allocation2 + $0x198] sm:$0xff] %v3260
    %3325 = vst [vmem:[#allocation2 + $0x1a0] sm:$0xff] %v3261
    %3326 = vst [vmem:[#allocation2 + $0x1a8] sm:$0xff] %v3262
    %3327 = vst [vmem:[#allocation2 + $0x1b0] sm:$0xff] %v3263
    %3328 = vst [vmem:[#allocation2 + $0x1b8] sm:$0xff] %v3264
    %3329 = vst [vmem:[#allocation2 + $0x1c0] sm:$0xff] %v3265
    %3330 = vst [vmem:[#allocation2 + $0x1c8] sm:$0xff] %v3266
    %3331 = vst [vmem:[#allocation2 + $0x1d0] sm:$0xff] %v3267
    %3332 = vst [vmem:[#allocation2 + $0x1d8] sm:$0xff] %v3268
    %3333 = vst [vmem:[#allocation2 + $0x1e0] sm:$0xff] %v3269
    %3334 = vst [vmem:[#allocation2 + $0x1e8] sm:$0xff] %v3270
    %3335 = vst [vmem:[#allocation2 + $0x1f0] sm:$0xff] %v3271
    %3336 = vst [vmem:[#allocation2 + $0x1f8] sm:$0xff] %v3272
    %s3337 = scalar_lea.vmem %s0, 12
    %v3338 = vld [vmem:[%s3337] sm:$0xf]
    %v3339 = vld [vmem:[%s3337 + $0x4] sm:$0xf]
    %v3340 = vld [vmem:[%s3337 + $0xc] sm:$0xf]
    %v3341 = vld [vmem:[%s3337 + $0x10] sm:$0xf]
    %v3342 = vld [vmem:[%s3337 + $0x18] sm:$0xf]
    %v3343 = vld [vmem:[%s3337 + $0x1c] sm:$0xf]
    %v3344 = vld [vmem:[%s3337 + $0x24] sm:$0xf]
    %v3345 = vld [vmem:[%s3337 + $0x28] sm:$0xf]
    %v3346 = vld [vmem:[%s3337 + $0x30] sm:$0xf]
    %v3347 = vld [vmem:[%s3337 + $0x34] sm:$0xf]
    %v3348 = vld [vmem:[%s3337 + $0x3c] sm:$0xf]
    %v3349 = vld [vmem:[%s3337 + $0x40] sm:$0xf]
    %v3350 = vld [vmem:[%s3337 + $0x48] sm:$0xf]
    %v3351 = vld [vmem:[%s3337 + $0x4c] sm:$0xf]
    %v3352 = vld [vmem:[%s3337 + $0x54] sm:$0xf]
    %v3353 = vld [vmem:[%s3337 + $0x58] sm:$0xf]
    %v3354 = vld [vmem:[%s3337 + $0x60] sm:$0xf]
    %v3355 = vld [vmem:[%s3337 + $0x64] sm:$0xf]
    %v3356 = vld [vmem:[%s3337 + $0x6c] sm:$0xf]
    %v3357 = vld [vmem:[%s3337 + $0x70] sm:$0xf]
    %v3358 = vld [vmem:[%s3337 + $0x78] sm:$0xf]
    %v3359 = vld [vmem:[%s3337 + $0x7c] sm:$0xf]
    %v3360 = vld [vmem:[%s3337 + $0x84] sm:$0xf]
    %v3361 = vld [vmem:[%s3337 + $0x88] sm:$0xf]
    %v3362 = vld [vmem:[%s3337 + $0x90] sm:$0xf]
    %v3363 = vld [vmem:[%s3337 + $0x94] sm:$0xf]
    %v3364 = vld [vmem:[%s3337 + $0x9c] sm:$0xf]
    %v3365 = vld [vmem:[%s3337 + $0xa0] sm:$0xf]
    %v3366 = vld [vmem:[%s3337 + $0xa8] sm:$0xf]
    %v3367 = vld [vmem:[%s3337 + $0xac] sm:$0xf]
    %v3368 = vld [vmem:[%s3337 + $0xb4] sm:$0xf]
    %v3369 = vld [vmem:[%s3337 + $0xb8] sm:$0xf]
    %v3370 = vld [vmem:[%s3337 + $0xd8] sm:$0xf]
    %v3371 = vld [vmem:[%s3337 + $0xdc] sm:$0xf]
    %v3372 = vld [vmem:[%s3337 + $0xe4] sm:$0xf]
    %v3373 = vld [vmem:[%s3337 + $0xe8] sm:$0xf]
    %v3374 = vld [vmem:[%s3337 + $0xf0] sm:$0xf]
    %v3375 = vld [vmem:[%s3337 + $0xf4] sm:$0xf]
    %v3376 = vld [vmem:[%s3337 + $0xfc] sm:$0xf]
    %v3377 = vld [vmem:[%s3337 + $0x100] sm:$0xf]
    %v3378 = vld [vmem:[%s3337 + $0x108] sm:$0xf]
    %v3379 = vld [vmem:[%s3337 + $0x10c] sm:$0xf]
    %v3380 = vld [vmem:[%s3337 + $0x114] sm:$0xf]
    %v3381 = vld [vmem:[%s3337 + $0x118] sm:$0xf]
    %v3382 = vld [vmem:[%s3337 + $0x120] sm:$0xf]
    %v3383 = vld [vmem:[%s3337 + $0x124] sm:$0xf]
    %v3384 = vld [vmem:[%s3337 + $0x12c] sm:$0xf]
    %v3385 = vld [vmem:[%s3337 + $0x130] sm:$0xf]
    %v3386 = vld [vmem:[%s3337 + $0x138] sm:$0xf]
    %v3387 = vld [vmem:[%s3337 + $0x13c] sm:$0xf]
    %v3388 = vld [vmem:[%s3337 + $0x144] sm:$0xf]
    %v3389 = vld [vmem:[%s3337 + $0x148] sm:$0xf]
    %v3390 = vld [vmem:[%s3337 + $0x150] sm:$0xf]
    %v3391 = vld [vmem:[%s3337 + $0x154] sm:$0xf]
    %v3392 = vld [vmem:[%s3337 + $0x15c] sm:$0xf]
    %v3393 = vld [vmem:[%s3337 + $0x160] sm:$0xf]
    %v3394 = vld [vmem:[%s3337 + $0x168] sm:$0xf]
    %v3395 = vld [vmem:[%s3337 + $0x16c] sm:$0xf]
    %v3396 = vld [vmem:[%s3337 + $0x174] sm:$0xf]
    %v3397 = vld [vmem:[%s3337 + $0x178] sm:$0xf]
    %v3398 = vld [vmem:[%s3337 + $0x180] sm:$0xf]
    %v3399 = vld [vmem:[%s3337 + $0x184] sm:$0xf]
    %v3400 = vld [vmem:[%s3337 + $0x18c] sm:$0xf]
    %v3401 = vld [vmem:[%s3337 + $0x190] sm:$0xf]
    %s3402 = scalar_lea.vmem %s1, 6
    %v3403 = vld [vmem:[%s3402] sm:$0x3]
    %v3468 = vunpack.c.l.b16 %v3338
    %v3469 = vunpack.c.l.b16 %v3339
    %v3470 = vunpack.c.l.b16 %v3340
    %v3471 = vunpack.c.l.b16 %v3341
    %v3472 = vunpack.c.l.b16 %v3342
    %v3473 = vunpack.c.l.b16 %v3343
    %v3474 = vunpack.c.l.b16 %v3344
    %v3475 = vunpack.c.l.b16 %v3345
    %v3476 = vunpack.c.l.b16 %v3346
    %v3477 = vunpack.c.l.b16 %v3347
    %v3478 = vunpack.c.l.b16 %v3348
    %v3479 = vunpack.c.l.b16 %v3349
    %v3480 = vunpack.c.l.b16 %v3350
    %v3481 = vunpack.c.l.b16 %v3351
    %v3482 = vunpack.c.l.b16 %v3352
    %v3483 = vunpack.c.l.b16 %v3353
    %v3484 = vunpack.c.l.b16 %v3354
    %v3485 = vunpack.c.l.b16 %v3355
    %v3486 = vunpack.c.l.b16 %v3356
    %v3487 = vunpack.c.l.b16 %v3357
    %v3488 = vunpack.c.l.b16 %v3358
    %v3489 = vunpack.c.l.b16 %v3359
    %v3490 = vunpack.c.l.b16 %v3360
    %v3491 = vunpack.c.l.b16 %v3361
    %v3492 = vunpack.c.l.b16 %v3362
    %v3493 = vunpack.c.l.b16 %v3363
    %v3494 = vunpack.c.l.b16 %v3364
    %v3495 = vunpack.c.l.b16 %v3365
    %v3496 = vunpack.c.l.b16 %v3366
    %v3497 = vunpack.c.l.b16 %v3367
    %v3498 = vunpack.c.l.b16 %v3368
    %v3499 = vunpack.c.l.b16 %v3369
    %v3500 = vunpack.c.l.b16 %v3370
    %v3501 = vunpack.c.l.b16 %v3371
    %v3502 = vunpack.c.l.b16 %v3372
    %v3503 = vunpack.c.l.b16 %v3373
    %v3504 = vunpack.c.l.b16 %v3374
    %v3505 = vunpack.c.l.b16 %v3375
    %v3506 = vunpack.c.l.b16 %v3376
    %v3507 = vunpack.c.l.b16 %v3377
    %v3508 = vunpack.c.l.b16 %v3378
    %v3509 = vunpack.c.l.b16 %v3379
    %v3510 = vunpack.c.l.b16 %v3380
    %v3511 = vunpack.c.l.b16 %v3381
    %v3512 = vunpack.c.l.b16 %v3382
    %v3513 = vunpack.c.l.b16 %v3383
    %v3514 = vunpack.c.l.b16 %v3384
    %v3515 = vunpack.c.l.b16 %v3385
    %v3516 = vunpack.c.l.b16 %v3386
    %v3517 = vunpack.c.l.b16 %v3387
    %v3518 = vunpack.c.l.b16 %v3388
    %v3519 = vunpack.c.l.b16 %v3389
    %v3520 = vunpack.c.l.b16 %v3390
    %v3521 = vunpack.c.l.b16 %v3391
    %v3522 = vunpack.c.l.b16 %v3392
    %v3523 = vunpack.c.l.b16 %v3393
    %v3524 = vunpack.c.l.b16 %v3394
    %v3525 = vunpack.c.l.b16 %v3395
    %v3526 = vunpack.c.l.b16 %v3396
    %v3527 = vunpack.c.l.b16 %v3397
    %v3528 = vunpack.c.l.b16 %v3398
    %v3529 = vunpack.c.l.b16 %v3399
    %v3530 = vunpack.c.l.b16 %v3400
    %v3531 = vunpack.c.l.b16 %v3401
    %v3532 = vpack.c.b16 %v3469, %v3468
    %v3533 = vpack.c.b16 %v3471, %v3470
    %v3534 = vpack.c.b16 %v3473, %v3472
    %v3535 = vpack.c.b16 %v3475, %v3474
    %v3536 = vpack.c.b16 %v3477, %v3476
    %v3537 = vpack.c.b16 %v3479, %v3478
    %v3538 = vpack.c.b16 %v3481, %v3480
    %v3539 = vpack.c.b16 %v3483, %v3482
    %v3540 = vpack.c.b16 %v3485, %v3484
    %v3541 = vpack.c.b16 %v3487, %v3486
    %v3542 = vpack.c.b16 %v3489, %v3488
    %v3543 = vpack.c.b16 %v3491, %v3490
    %v3544 = vpack.c.b16 %v3493, %v3492
    %v3545 = vpack.c.b16 %v3495, %v3494
    %v3546 = vpack.c.b16 %v3497, %v3496
    %v3547 = vpack.c.b16 %v3499, %v3498
    %v3548 = vpack.c.b16 %v3501, %v3500
    %v3549 = vpack.c.b16 %v3503, %v3502
    %v3550 = vpack.c.b16 %v3505, %v3504
    %v3551 = vpack.c.b16 %v3507, %v3506
    %v3552 = vpack.c.b16 %v3509, %v3508
    %v3553 = vpack.c.b16 %v3511, %v3510
    %v3554 = vpack.c.b16 %v3513, %v3512
    %v3555 = vpack.c.b16 %v3515, %v3514
    %v3556 = vpack.c.b16 %v3517, %v3516
    %v3557 = vpack.c.b16 %v3519, %v3518
    %v3558 = vpack.c.b16 %v3521, %v3520
    %v3559 = vpack.c.b16 %v3523, %v3522
    %v3560 = vpack.c.b16 %v3525, %v3524
    %v3561 = vpack.c.b16 %v3527, %v3526
    %v3562 = vpack.c.b16 %v3529, %v3528
    %v3563 = vpack.c.b16 %v3531, %v3530
    %v3565 = vsel %vm241, %v3532, 0
    %v3568 = vsel %vm241, %v3533, 0
    %v3571 = vsel %vm241, %v3534, 0
    %v3574 = vsel %vm241, %v3535, 0
    %v3577 = vsel %vm241, %v3536, 0
    %v3580 = vsel %vm241, %v3537, 0
    %v3583 = vsel %vm241, %v3538, 0
    %v3586 = vsel %vm241, %v3539, 0
    %v3589 = vsel %vm241, %v3540, 0
    %v3592 = vsel %vm241, %v3541, 0
    %v3595 = vsel %vm241, %v3542, 0
    %v3598 = vsel %vm241, %v3543, 0
    %v3601 = vsel %vm241, %v3544, 0
    %v3604 = vsel %vm241, %v3545, 0
    %v3607 = vsel %vm241, %v3546, 0
    %v3610 = vsel %vm241, %v3547, 0
    %v3613 = vsel %vm241, %v3548, 0
    %v3616 = vsel %vm241, %v3549, 0
    %v3619 = vsel %vm241, %v3550, 0
    %v3622 = vsel %vm241, %v3551, 0
    %v3625 = vsel %vm241, %v3552, 0
    %v3628 = vsel %vm241, %v3553, 0
    %v3631 = vsel %vm241, %v3554, 0
    %v3634 = vsel %vm241, %v3555, 0
    %v3637 = vsel %vm241, %v3556, 0
    %v3640 = vsel %vm241, %v3557, 0
    %v3643 = vsel %vm241, %v3558, 0
    %v3646 = vsel %vm241, %v3559, 0
    %v3649 = vsel %vm241, %v3560, 0
    %v3652 = vsel %vm241, %v3561, 0
    %v3655 = vsel %vm241, %v3562, 0
    %v3658 = vsel %vm241, %v3563, 0
    %v3661 = vsel %vm338, %v3403, 0
    %3663 = vmatprep.subr.bf16.mxu0 0
    %3664 = vmatpush1.bf16.msra.mxu0 0
    %3665 = vmatprep.subr.bf16.mxu0 0
    %3666 = vmatpush1.bf16.msra.mxu0 0
    %3667 = vmatprep.subr.bf16.mxu0 0
    %3668 = vmatpush1.bf16.msra.mxu0 0
    %3669 = vmatprep.subr.bf16.mxu0 0
    %3670 = vmatpush1.bf16.msra.mxu0 0
    %3671 = vmatprep.subr.bf16.mxu0 0
    %3672 = vmatpush1.bf16.msra.mxu0 0
    %3673 = vmatprep.subr.bf16.mxu0 0
    %3674 = vmatpush1.bf16.msra.mxu0 0
    %3675 = vmatprep.subr.bf16.mxu0 0
    %3676 = vmatpush1.bf16.msra.mxu0 0
    %3677 = vmatprep.subr.bf16.mxu0 0
    %3678 = vmatpush1.bf16.msra.mxu0 %v3661
    %3679 = vmatprep.subr.bf16.mxu0 0
    %3680 = vmatpush2.bf16.msra.mxu0 0
    %3681 = vmatprep.subr.bf16.mxu0 0
    %3682 = vmatpush2.bf16.msra.mxu0 0
    %3683 = vmatprep.subr.bf16.mxu0 0
    %3684 = vmatpush2.bf16.msra.mxu0 0
    %3685 = vmatprep.subr.bf16.mxu0 0
    %3686 = vmatpush2.bf16.msra.mxu0 0
    %3687 = vmatprep.subr.bf16.mxu0 0
    %3688 = vmatpush2.bf16.msra.mxu0 0
    %3689 = vmatprep.subr.bf16.mxu0 0
    %3690 = vmatpush2.bf16.msra.mxu0 0
    %3691 = vmatprep.subr.bf16.mxu0 0
    %3692 = vmatpush2.bf16.msra.mxu0 0
    %3693 = vmatprep.subr.bf16.mxu0 0
    %3694 = vmatpush2.bf16.msra.mxu0 0
    %3695 = vmatprep.mubr.bf16.mxu0 0
    %3696 = vmatmul.mubr.bf16.gmra.mxu0 %v3565
    %v3697 = vpop.f32.mrf.mxu0
    %v3698 = vadd.f32 0.0, %v3697
    %v3699 = vpop.f32.mrf.mxu0
    %v3700 = vpop.f32.mrf.mxu0
    %v3701 = vadd.f32 0.0, %v3700
    %v3702 = vpop.f32.mrf.mxu0
    %3703 = vmatprep.mubr.bf16.mxu0 0
    %3704 = vmatmul.mubr.bf16.gmra.mxu0 %v3568
    %v3705 = vpop.f32.mrf.mxu0
    %v3706 = vadd.f32 0.0, %v3705
    %v3707 = vpop.f32.mrf.mxu0
    %v3708 = vpop.f32.mrf.mxu0
    %v3709 = vadd.f32 0.0, %v3708
    %v3710 = vpop.f32.mrf.mxu0
    %3711 = vmatprep.mubr.bf16.mxu0 0
    %3712 = vmatmul.mubr.bf16.gmra.mxu0 %v3571
    %v3713 = vpop.f32.mrf.mxu0
    %v3714 = vadd.f32 0.0, %v3713
    %v3715 = vpop.f32.mrf.mxu0
    %v3716 = vpop.f32.mrf.mxu0
    %v3717 = vadd.f32 0.0, %v3716
    %v3718 = vpop.f32.mrf.mxu0
    %3719 = vmatprep.mubr.bf16.mxu0 0
    %3720 = vmatmul.mubr.bf16.gmra.mxu0 %v3574
    %v3721 = vpop.f32.mrf.mxu0
    %v3722 = vadd.f32 0.0, %v3721
    %v3723 = vpop.f32.mrf.mxu0
    %v3724 = vpop.f32.mrf.mxu0
    %v3725 = vadd.f32 0.0, %v3724
    %v3726 = vpop.f32.mrf.mxu0
    %3727 = vmatprep.mubr.bf16.mxu0 0
    %3728 = vmatmul.mubr.bf16.gmra.mxu0 %v3577
    %v3729 = vpop.f32.mrf.mxu0
    %v3730 = vadd.f32 0.0, %v3729
    %v3731 = vpop.f32.mrf.mxu0
    %v3732 = vpop.f32.mrf.mxu0
    %v3733 = vadd.f32 0.0, %v3732
    %v3734 = vpop.f32.mrf.mxu0
    %3735 = vmatprep.mubr.bf16.mxu0 0
    %3736 = vmatmul.mubr.bf16.gmra.mxu0 %v3580
    %v3737 = vpop.f32.mrf.mxu0
    %v3738 = vadd.f32 0.0, %v3737
    %v3739 = vpop.f32.mrf.mxu0
    %v3740 = vpop.f32.mrf.mxu0
    %v3741 = vadd.f32 0.0, %v3740
    %v3742 = vpop.f32.mrf.mxu0
    %3743 = vmatprep.mubr.bf16.mxu0 0
    %3744 = vmatmul.mubr.bf16.gmra.mxu0 %v3583
    %v3745 = vpop.f32.mrf.mxu0
    %v3746 = vadd.f32 0.0, %v3745
    %v3747 = vpop.f32.mrf.mxu0
    %v3748 = vpop.f32.mrf.mxu0
    %v3749 = vadd.f32 0.0, %v3748
    %v3750 = vpop.f32.mrf.mxu0
    %3751 = vmatprep.mubr.bf16.mxu0 0
    %3752 = vmatmul.mubr.bf16.gmra.mxu0 %v3586
    %v3753 = vpop.f32.mrf.mxu0
    %v3754 = vadd.f32 0.0, %v3753
    %v3755 = vpop.f32.mrf.mxu0
    %v3756 = vpop.f32.mrf.mxu0
    %v3757 = vadd.f32 0.0, %v3756
    %v3758 = vpop.f32.mrf.mxu0
    %3759 = vmatprep.mubr.bf16.mxu0 0
    %3760 = vmatmul.mubr.bf16.gmra.mxu0 %v3589
    %v3761 = vpop.f32.mrf.mxu0
    %v3762 = vadd.f32 0.0, %v3761
    %v3763 = vpop.f32.mrf.mxu0
    %v3764 = vpop.f32.mrf.mxu0
    %v3765 = vadd.f32 0.0, %v3764
    %v3766 = vpop.f32.mrf.mxu0
    %3767 = vmatprep.mubr.bf16.mxu0 0
    %3768 = vmatmul.mubr.bf16.gmra.mxu0 %v3592
    %v3769 = vpop.f32.mrf.mxu0
    %v3770 = vadd.f32 0.0, %v3769
    %v3771 = vpop.f32.mrf.mxu0
    %v3772 = vpop.f32.mrf.mxu0
    %v3773 = vadd.f32 0.0, %v3772
    %v3774 = vpop.f32.mrf.mxu0
    %3775 = vmatprep.mubr.bf16.mxu0 0
    %3776 = vmatmul.mubr.bf16.gmra.mxu0 %v3595
    %v3777 = vpop.f32.mrf.mxu0
    %v3778 = vadd.f32 0.0, %v3777
    %v3779 = vpop.f32.mrf.mxu0
    %v3780 = vpop.f32.mrf.mxu0
    %v3781 = vadd.f32 0.0, %v3780
    %v3782 = vpop.f32.mrf.mxu0
    %3783 = vmatprep.mubr.bf16.mxu0 0
    %3784 = vmatmul.mubr.bf16.gmra.mxu0 %v3598
    %v3785 = vpop.f32.mrf.mxu0
    %v3786 = vadd.f32 0.0, %v3785
    %v3787 = vpop.f32.mrf.mxu0
    %v3788 = vpop.f32.mrf.mxu0
    %v3789 = vadd.f32 0.0, %v3788
    %v3790 = vpop.f32.mrf.mxu0
    %3791 = vmatprep.mubr.bf16.mxu0 0
    %3792 = vmatmul.mubr.bf16.gmra.mxu0 %v3601
    %v3793 = vpop.f32.mrf.mxu0
    %v3794 = vadd.f32 0.0, %v3793
    %v3795 = vpop.f32.mrf.mxu0
    %v3796 = vpop.f32.mrf.mxu0
    %v3797 = vadd.f32 0.0, %v3796
    %v3798 = vpop.f32.mrf.mxu0
    %3799 = vmatprep.mubr.bf16.mxu0 0
    %3800 = vmatmul.mubr.bf16.gmra.mxu0 %v3604
    %v3801 = vpop.f32.mrf.mxu0
    %v3802 = vadd.f32 0.0, %v3801
    %v3803 = vpop.f32.mrf.mxu0
    %v3804 = vpop.f32.mrf.mxu0
    %v3805 = vadd.f32 0.0, %v3804
    %v3806 = vpop.f32.mrf.mxu0
    %3807 = vmatprep.mubr.bf16.mxu0 0
    %3808 = vmatmul.mubr.bf16.gmra.mxu0 %v3607
    %v3809 = vpop.f32.mrf.mxu0
    %v3810 = vadd.f32 0.0, %v3809
    %v3811 = vpop.f32.mrf.mxu0
    %v3812 = vpop.f32.mrf.mxu0
    %v3813 = vadd.f32 0.0, %v3812
    %v3814 = vpop.f32.mrf.mxu0
    %3815 = vmatprep.mubr.bf16.mxu0 0
    %3816 = vmatmul.mubr.bf16.gmra.mxu0 %v3610
    %v3817 = vpop.f32.mrf.mxu0
    %v3818 = vadd.f32 0.0, %v3817
    %v3819 = vpop.f32.mrf.mxu0
    %v3820 = vpop.f32.mrf.mxu0
    %v3821 = vadd.f32 0.0, %v3820
    %v3822 = vpop.f32.mrf.mxu0
    %3823 = vmatprep.mubr.bf16.mxu0 0
    %3824 = vmatmul.mubr.bf16.gmra.mxu0 %v3613
    %v3825 = vpop.f32.mrf.mxu0
    %v3826 = vadd.f32 0.0, %v3825
    %v3827 = vpop.f32.mrf.mxu0
    %v3828 = vpop.f32.mrf.mxu0
    %v3829 = vadd.f32 0.0, %v3828
    %v3830 = vpop.f32.mrf.mxu0
    %3831 = vmatprep.mubr.bf16.mxu0 0
    %3832 = vmatmul.mubr.bf16.gmra.mxu0 %v3616
    %v3833 = vpop.f32.mrf.mxu0
    %v3834 = vadd.f32 0.0, %v3833
    %v3835 = vpop.f32.mrf.mxu0
    %v3836 = vpop.f32.mrf.mxu0
    %v3837 = vadd.f32 0.0, %v3836
    %v3838 = vpop.f32.mrf.mxu0
    %3839 = vmatprep.mubr.bf16.mxu0 0
    %3840 = vmatmul.mubr.bf16.gmra.mxu0 %v3619
    %v3841 = vpop.f32.mrf.mxu0
    %v3842 = vadd.f32 0.0, %v3841
    %v3843 = vpop.f32.mrf.mxu0
    %v3844 = vpop.f32.mrf.mxu0
    %v3845 = vadd.f32 0.0, %v3844
    %v3846 = vpop.f32.mrf.mxu0
    %3847 = vmatprep.mubr.bf16.mxu0 0
    %3848 = vmatmul.mubr.bf16.gmra.mxu0 %v3622
    %v3849 = vpop.f32.mrf.mxu0
    %v3850 = vadd.f32 0.0, %v3849
    %v3851 = vpop.f32.mrf.mxu0
    %v3852 = vpop.f32.mrf.mxu0
    %v3853 = vadd.f32 0.0, %v3852
    %v3854 = vpop.f32.mrf.mxu0
    %3855 = vmatprep.mubr.bf16.mxu0 0
    %3856 = vmatmul.mubr.bf16.gmra.mxu0 %v3625
    %v3857 = vpop.f32.mrf.mxu0
    %v3858 = vadd.f32 0.0, %v3857
    %v3859 = vpop.f32.mrf.mxu0
    %v3860 = vpop.f32.mrf.mxu0
    %v3861 = vadd.f32 0.0, %v3860
    %v3862 = vpop.f32.mrf.mxu0
    %3863 = vmatprep.mubr.bf16.mxu0 0
    %3864 = vmatmul.mubr.bf16.gmra.mxu0 %v3628
    %v3865 = vpop.f32.mrf.mxu0
    %v3866 = vadd.f32 0.0, %v3865
    %v3867 = vpop.f32.mrf.mxu0
    %v3868 = vpop.f32.mrf.mxu0
    %v3869 = vadd.f32 0.0, %v3868
    %v3870 = vpop.f32.mrf.mxu0
    %3871 = vmatprep.mubr.bf16.mxu0 0
    %3872 = vmatmul.mubr.bf16.gmra.mxu0 %v3631
    %v3873 = vpop.f32.mrf.mxu0
    %v3874 = vadd.f32 0.0, %v3873
    %v3875 = vpop.f32.mrf.mxu0
    %v3876 = vpop.f32.mrf.mxu0
    %v3877 = vadd.f32 0.0, %v3876
    %v3878 = vpop.f32.mrf.mxu0
    %3879 = vmatprep.mubr.bf16.mxu0 0
    %3880 = vmatmul.mubr.bf16.gmra.mxu0 %v3634
    %v3881 = vpop.f32.mrf.mxu0
    %v3882 = vadd.f32 0.0, %v3881
    %v3883 = vpop.f32.mrf.mxu0
    %v3884 = vpop.f32.mrf.mxu0
    %v3885 = vadd.f32 0.0, %v3884
    %v3886 = vpop.f32.mrf.mxu0
    %3887 = vmatprep.mubr.bf16.mxu0 0
    %3888 = vmatmul.mubr.bf16.gmra.mxu0 %v3637
    %v3889 = vpop.f32.mrf.mxu0
    %v3890 = vadd.f32 0.0, %v3889
    %v3891 = vpop.f32.mrf.mxu0
    %v3892 = vpop.f32.mrf.mxu0
    %v3893 = vadd.f32 0.0, %v3892
    %v3894 = vpop.f32.mrf.mxu0
    %3895 = vmatprep.mubr.bf16.mxu0 0
    %3896 = vmatmul.mubr.bf16.gmra.mxu0 %v3640
    %v3897 = vpop.f32.mrf.mxu0
    %v3898 = vadd.f32 0.0, %v3897
    %v3899 = vpop.f32.mrf.mxu0
    %v3900 = vpop.f32.mrf.mxu0
    %v3901 = vadd.f32 0.0, %v3900
    %v3902 = vpop.f32.mrf.mxu0
    %3903 = vmatprep.mubr.bf16.mxu0 0
    %3904 = vmatmul.mubr.bf16.gmra.mxu0 %v3643
    %v3905 = vpop.f32.mrf.mxu0
    %v3906 = vadd.f32 0.0, %v3905
    %v3907 = vpop.f32.mrf.mxu0
    %v3908 = vpop.f32.mrf.mxu0
    %v3909 = vadd.f32 0.0, %v3908
    %v3910 = vpop.f32.mrf.mxu0
    %3911 = vmatprep.mubr.bf16.mxu0 0
    %3912 = vmatmul.mubr.bf16.gmra.mxu0 %v3646
    %v3913 = vpop.f32.mrf.mxu0
    %v3914 = vadd.f32 0.0, %v3913
    %v3915 = vpop.f32.mrf.mxu0
    %v3916 = vpop.f32.mrf.mxu0
    %v3917 = vadd.f32 0.0, %v3916
    %v3918 = vpop.f32.mrf.mxu0
    %3919 = vmatprep.mubr.bf16.mxu0 0
    %3920 = vmatmul.mubr.bf16.gmra.mxu0 %v3649
    %v3921 = vpop.f32.mrf.mxu0
    %v3922 = vadd.f32 0.0, %v3921
    %v3923 = vpop.f32.mrf.mxu0
    %v3924 = vpop.f32.mrf.mxu0
    %v3925 = vadd.f32 0.0, %v3924
    %v3926 = vpop.f32.mrf.mxu0
    %3927 = vmatprep.mubr.bf16.mxu0 0
    %3928 = vmatmul.mubr.bf16.gmra.mxu0 %v3652
    %v3929 = vpop.f32.mrf.mxu0
    %v3930 = vadd.f32 0.0, %v3929
    %v3931 = vpop.f32.mrf.mxu0
    %v3932 = vpop.f32.mrf.mxu0
    %v3933 = vadd.f32 0.0, %v3932
    %v3934 = vpop.f32.mrf.mxu0
    %3935 = vmatprep.mubr.bf16.mxu0 0
    %3936 = vmatmul.mubr.bf16.gmra.mxu0 %v3655
    %v3937 = vpop.f32.mrf.mxu0
    %v3938 = vadd.f32 0.0, %v3937
    %v3939 = vpop.f32.mrf.mxu0
    %v3940 = vpop.f32.mrf.mxu0
    %v3941 = vadd.f32 0.0, %v3940
    %v3942 = vpop.f32.mrf.mxu0
    %3943 = vmatprep.mubr.bf16.mxu0 0
    %3944 = vmatmul.mubr.bf16.gmra.mxu0 %v3658
    %v3945 = vpop.f32.mrf.mxu0
    %v3946 = vadd.f32 0.0, %v3945
    %v3947 = vpop.f32.mrf.mxu0
    %v3948 = vpop.f32.mrf.mxu0
    %v3949 = vadd.f32 0.0, %v3948
    %v3950 = vpop.f32.mrf.mxu0
    %3951 = vdwg.mxu0
    %v3952 = vld [vmem:[#allocation2] sm:$0xff]
    %v3953 = vld [vmem:[#allocation2 + $0x8] sm:$0xff]
    %v3954 = vld [vmem:[#allocation2 + $0x10] sm:$0xff]
    %v3955 = vld [vmem:[#allocation2 + $0x18] sm:$0xff]
    %v3956 = vld [vmem:[#allocation2 + $0x20] sm:$0xff]
    %v3957 = vld [vmem:[#allocation2 + $0x28] sm:$0xff]
    %v3958 = vld [vmem:[#allocation2 + $0x30] sm:$0xff]
    %v3959 = vld [vmem:[#allocation2 + $0x38] sm:$0xff]
    %v3960 = vld [vmem:[#allocation2 + $0x40] sm:$0xff]
    %v3961 = vld [vmem:[#allocation2 + $0x48] sm:$0xff]
    %v3962 = vld [vmem:[#allocation2 + $0x50] sm:$0xff]
    %v3963 = vld [vmem:[#allocation2 + $0x58] sm:$0xff]
    %v3964 = vld [vmem:[#allocation2 + $0x60] sm:$0xff]
    %v3965 = vld [vmem:[#allocation2 + $0x68] sm:$0xff]
    %v3966 = vld [vmem:[#allocation2 + $0x70] sm:$0xff]
    %v3967 = vld [vmem:[#allocation2 + $0x78] sm:$0xff]
    %v3968 = vld [vmem:[#allocation2 + $0x80] sm:$0xff]
    %v3969 = vld [vmem:[#allocation2 + $0x88] sm:$0xff]
    %v3970 = vld [vmem:[#allocation2 + $0x90] sm:$0xff]
    %v3971 = vld [vmem:[#allocation2 + $0x98] sm:$0xff]
    %v3972 = vld [vmem:[#allocation2 + $0xa0] sm:$0xff]
    %v3973 = vld [vmem:[#allocation2 + $0xa8] sm:$0xff]
    %v3974 = vld [vmem:[#allocation2 + $0xb0] sm:$0xff]
    %v3975 = vld [vmem:[#allocation2 + $0xb8] sm:$0xff]
    %v3976 = vld [vmem:[#allocation2 + $0xc0] sm:$0xff]
    %v3977 = vld [vmem:[#allocation2 + $0xc8] sm:$0xff]
    %v3978 = vld [vmem:[#allocation2 + $0xd0] sm:$0xff]
    %v3979 = vld [vmem:[#allocation2 + $0xd8] sm:$0xff]
    %v3980 = vld [vmem:[#allocation2 + $0xe0] sm:$0xff]
    %v3981 = vld [vmem:[#allocation2 + $0xe8] sm:$0xff]
    %v3982 = vld [vmem:[#allocation2 + $0xf0] sm:$0xff]
    %v3983 = vld [vmem:[#allocation2 + $0xf8] sm:$0xff]
    %v3984 = vld [vmem:[#allocation2 + $0x100] sm:$0xff]
    %v3985 = vld [vmem:[#allocation2 + $0x108] sm:$0xff]
    %v3986 = vld [vmem:[#allocation2 + $0x110] sm:$0xff]
    %v3987 = vld [vmem:[#allocation2 + $0x118] sm:$0xff]
    %v3988 = vld [vmem:[#allocation2 + $0x120] sm:$0xff]
    %v3989 = vld [vmem:[#allocation2 + $0x128] sm:$0xff]
    %v3990 = vld [vmem:[#allocation2 + $0x130] sm:$0xff]
    %v3991 = vld [vmem:[#allocation2 + $0x138] sm:$0xff]
    %v3992 = vld [vmem:[#allocation2 + $0x140] sm:$0xff]
    %v3993 = vld [vmem:[#allocation2 + $0x148] sm:$0xff]
    %v3994 = vld [vmem:[#allocation2 + $0x150] sm:$0xff]
    %v3995 = vld [vmem:[#allocation2 + $0x158] sm:$0xff]
    %v3996 = vld [vmem:[#allocation2 + $0x160] sm:$0xff]
    %v3997 = vld [vmem:[#allocation2 + $0x168] sm:$0xff]
    %v3998 = vld [vmem:[#allocation2 + $0x170] sm:$0xff]
    %v3999 = vld [vmem:[#allocation2 + $0x178] sm:$0xff]
    %v4000 = vld [vmem:[#allocation2 + $0x180] sm:$0xff]
    %v4001 = vld [vmem:[#allocation2 + $0x188] sm:$0xff]
    %v4002 = vld [vmem:[#allocation2 + $0x190] sm:$0xff]
    %v4003 = vld [vmem:[#allocation2 + $0x198] sm:$0xff]
    %v4004 = vld [vmem:[#allocation2 + $0x1a0] sm:$0xff]
    %v4005 = vld [vmem:[#allocation2 + $0x1a8] sm:$0xff]
    %v4006 = vld [vmem:[#allocation2 + $0x1b0] sm:$0xff]
    %v4007 = vld [vmem:[#allocation2 + $0x1b8] sm:$0xff]
    %v4008 = vld [vmem:[#allocation2 + $0x1c0] sm:$0xff]
    %v4009 = vld [vmem:[#allocation2 + $0x1c8] sm:$0xff]
    %v4010 = vld [vmem:[#allocation2 + $0x1d0] sm:$0xff]
    %v4011 = vld [vmem:[#allocation2 + $0x1d8] sm:$0xff]
    %v4012 = vld [vmem:[#allocation2 + $0x1e0] sm:$0xff]
    %v4013 = vld [vmem:[#allocation2 + $0x1e8] sm:$0xff]
    %v4014 = vld [vmem:[#allocation2 + $0x1f0] sm:$0xff]
    %v4015 = vld [vmem:[#allocation2 + $0x1f8] sm:$0xff]
    %v4016 = vadd.f32 %v3952, %v3698
    %v4017 = vadd.f32 %v3953, %v3701
    %v4018 = vadd.f32 %v3954, %v3706
    %v4019 = vadd.f32 %v3955, %v3709
    %v4020 = vadd.f32 %v3956, %v3714
    %v4021 = vadd.f32 %v3957, %v3717
    %v4022 = vadd.f32 %v3958, %v3722
    %v4023 = vadd.f32 %v3959, %v3725
    %v4024 = vadd.f32 %v3960, %v3730
    %v4025 = vadd.f32 %v3961, %v3733
    %v4026 = vadd.f32 %v3962, %v3738
    %v4027 = vadd.f32 %v3963, %v3741
    %v4028 = vadd.f32 %v3964, %v3746
    %v4029 = vadd.f32 %v3965, %v3749
    %v4030 = vadd.f32 %v3966, %v3754
    %v4031 = vadd.f32 %v3967, %v3757
    %v4032 = vadd.f32 %v3968, %v3762
    %v4033 = vadd.f32 %v3969, %v3765
    %v4034 = vadd.f32 %v3970, %v3770
    %v4035 = vadd.f32 %v3971, %v3773
    %v4036 = vadd.f32 %v3972, %v3778
    %v4037 = vadd.f32 %v3973, %v3781
    %v4038 = vadd.f32 %v3974, %v3786
    %v4039 = vadd.f32 %v3975, %v3789
    %v4040 = vadd.f32 %v3976, %v3794
    %v4041 = vadd.f32 %v3977, %v3797
    %v4042 = vadd.f32 %v3978, %v3802
    %v4043 = vadd.f32 %v3979, %v3805
    %v4044 = vadd.f32 %v3980, %v3810
    %v4045 = vadd.f32 %v3981, %v3813
    %v4046 = vadd.f32 %v3982, %v3818
    %v4047 = vadd.f32 %v3983, %v3821
    %v4048 = vadd.f32 %v3984, %v3826
    %v4049 = vadd.f32 %v3985, %v3829
    %v4050 = vadd.f32 %v3986, %v3834
    %v4051 = vadd.f32 %v3987, %v3837
    %v4052 = vadd.f32 %v3988, %v3842
    %v4053 = vadd.f32 %v3989, %v3845
    %v4054 = vadd.f32 %v3990, %v3850
    %v4055 = vadd.f32 %v3991, %v3853
    %v4056 = vadd.f32 %v3992, %v3858
    %v4057 = vadd.f32 %v3993, %v3861
    %v4058 = vadd.f32 %v3994, %v3866
    %v4059 = vadd.f32 %v3995, %v3869
    %v4060 = vadd.f32 %v3996, %v3874
    %v4061 = vadd.f32 %v3997, %v3877
    %v4062 = vadd.f32 %v3998, %v3882
    %v4063 = vadd.f32 %v3999, %v3885
    %v4064 = vadd.f32 %v4000, %v3890
    %v4065 = vadd.f32 %v4001, %v3893
    %v4066 = vadd.f32 %v4002, %v3898
    %v4067 = vadd.f32 %v4003, %v3901
    %v4068 = vadd.f32 %v4004, %v3906
    %v4069 = vadd.f32 %v4005, %v3909
    %v4070 = vadd.f32 %v4006, %v3914
    %v4071 = vadd.f32 %v4007, %v3917
    %v4072 = vadd.f32 %v4008, %v3922
    %v4073 = vadd.f32 %v4009, %v3925
    %v4074 = vadd.f32 %v4010, %v3930
    %v4075 = vadd.f32 %v4011, %v3933
    %v4076 = vadd.f32 %v4012, %v3938
    %v4077 = vadd.f32 %v4013, %v3941
    %v4078 = vadd.f32 %v4014, %v3946
    %v4079 = vadd.f32 %v4015, %v3949
    %4080 = vst [vmem:[#allocation2] sm:$0xff] %v4016
    %4081 = vst [vmem:[#allocation2 + $0x8] sm:$0xff] %v4017
    %4082 = vst [vmem:[#allocation2 + $0x10] sm:$0xff] %v4018
    %4083 = vst [vmem:[#allocation2 + $0x18] sm:$0xff] %v4019
    %4084 = vst [vmem:[#allocation2 + $0x20] sm:$0xff] %v4020
    %4085 = vst [vmem:[#allocation2 + $0x28] sm:$0xff] %v4021
    %4086 = vst [vmem:[#allocation2 + $0x30] sm:$0xff] %v4022
    %4087 = vst [vmem:[#allocation2 + $0x38] sm:$0xff] %v4023
    %4088 = vst [vmem:[#allocation2 + $0x40] sm:$0xff] %v4024
    %4089 = vst [vmem:[#allocation2 + $0x48] sm:$0xff] %v4025
    %4090 = vst [vmem:[#allocation2 + $0x50] sm:$0xff] %v4026
    %4091 = vst [vmem:[#allocation2 + $0x58] sm:$0xff] %v4027
    %4092 = vst [vmem:[#allocation2 + $0x60] sm:$0xff] %v4028
    %4093 = vst [vmem:[#allocation2 + $0x68] sm:$0xff] %v4029
    %4094 = vst [vmem:[#allocation2 + $0x70] sm:$0xff] %v4030
    %4095 = vst [vmem:[#allocation2 + $0x78] sm:$0xff] %v4031
    %4096 = vst [vmem:[#allocation2 + $0x80] sm:$0xff] %v4032
    %4097 = vst [vmem:[#allocation2 + $0x88] sm:$0xff] %v4033
    %4098 = vst [vmem:[#allocation2 + $0x90] sm:$0xff] %v4034
    %4099 = vst [vmem:[#allocation2 + $0x98] sm:$0xff] %v4035
    %4100 = vst [vmem:[#allocation2 + $0xa0] sm:$0xff] %v4036
    %4101 = vst [vmem:[#allocation2 + $0xa8] sm:$0xff] %v4037
    %4102 = vst [vmem:[#allocation2 + $0xb0] sm:$0xff] %v4038
    %4103 = vst [vmem:[#allocation2 + $0xb8] sm:$0xff] %v4039
    %4104 = vst [vmem:[#allocation2 + $0xc0] sm:$0xff] %v4040
    %4105 = vst [vmem:[#allocation2 + $0xc8] sm:$0xff] %v4041
    %4106 = vst [vmem:[#allocation2 + $0xd0] sm:$0xff] %v4042
    %4107 = vst [vmem:[#allocation2 + $0xd8] sm:$0xff] %v4043
    %4108 = vst [vmem:[#allocation2 + $0xe0] sm:$0xff] %v4044
    %4109 = vst [vmem:[#allocation2 + $0xe8] sm:$0xff] %v4045
    %4110 = vst [vmem:[#allocation2 + $0xf0] sm:$0xff] %v4046
    %4111 = vst [vmem:[#allocation2 + $0xf8] sm:$0xff] %v4047
    %4112 = vst [vmem:[#allocation2 + $0x100] sm:$0xff] %v4048
    %4113 = vst [vmem:[#allocation2 + $0x108] sm:$0xff] %v4049
    %4114 = vst [vmem:[#allocation2 + $0x110] sm:$0xff] %v4050
    %4115 = vst [vmem:[#allocation2 + $0x118] sm:$0xff] %v4051
    %4116 = vst [vmem:[#allocation2 + $0x120] sm:$0xff] %v4052
    %4117 = vst [vmem:[#allocation2 + $0x128] sm:$0xff] %v4053
    %4118 = vst [vmem:[#allocation2 + $0x130] sm:$0xff] %v4054
    %4119 = vst [vmem:[#allocation2 + $0x138] sm:$0xff] %v4055
    %4120 = vst [vmem:[#allocation2 + $0x140] sm:$0xff] %v4056
    %4121 = vst [vmem:[#allocation2 + $0x148] sm:$0xff] %v4057
    %4122 = vst [vmem:[#allocation2 + $0x150] sm:$0xff] %v4058
    %4123 = vst [vmem:[#allocation2 + $0x158] sm:$0xff] %v4059
    %4124 = vst [vmem:[#allocation2 + $0x160] sm:$0xff] %v4060
    %4125 = vst [vmem:[#allocation2 + $0x168] sm:$0xff] %v4061
    %4126 = vst [vmem:[#allocation2 + $0x170] sm:$0xff] %v4062
    %4127 = vst [vmem:[#allocation2 + $0x178] sm:$0xff] %v4063
    %4128 = vst [vmem:[#allocation2 + $0x180] sm:$0xff] %v4064
    %4129 = vst [vmem:[#allocation2 + $0x188] sm:$0xff] %v4065
    %4130 = vst [vmem:[#allocation2 + $0x190] sm:$0xff] %v4066
    %4131 = vst [vmem:[#allocation2 + $0x198] sm:$0xff] %v4067
    %4132 = vst [vmem:[#allocation2 + $0x1a0] sm:$0xff] %v4068
    %4133 = vst [vmem:[#allocation2 + $0x1a8] sm:$0xff] %v4069
    %4134 = vst [vmem:[#allocation2 + $0x1b0] sm:$0xff] %v4070
    %4135 = vst [vmem:[#allocation2 + $0x1b8] sm:$0xff] %v4071
    %4136 = vst [vmem:[#allocation2 + $0x1c0] sm:$0xff] %v4072
    %4137 = vst [vmem:[#allocation2 + $0x1c8] sm:$0xff] %v4073
    %4138 = vst [vmem:[#allocation2 + $0x1d0] sm:$0xff] %v4074
    %4139 = vst [vmem:[#allocation2 + $0x1d8] sm:$0xff] %v4075
    %4140 = vst [vmem:[#allocation2 + $0x1e0] sm:$0xff] %v4076
    %4141 = vst [vmem:[#allocation2 + $0x1e8] sm:$0xff] %v4077
    %4142 = vst [vmem:[#allocation2 + $0x1f0] sm:$0xff] %v4078
    %4143 = vst [vmem:[#allocation2 + $0x1f8] sm:$0xff] %v4079
    %v4144 = vld [vmem:[%s3337] sm:$0xf]
    %v4145 = vld [vmem:[%s3337 + $0x4] sm:$0xf]
    %v4146 = vld [vmem:[%s3337 + $0x8] sm:$0x1]
    %v4147 = vld [vmem:[%s3337 + $0xc] sm:$0xf]
    %v4148 = vld [vmem:[%s3337 + $0x10] sm:$0xf]
    %v4149 = vld [vmem:[%s3337 + $0x14] sm:$0x1]
    %v4150 = vld [vmem:[%s3337 + $0x18] sm:$0xf]
    %v4151 = vld [vmem:[%s3337 + $0x1c] sm:$0xf]
    %v4152 = vld [vmem:[%s3337 + $0x20] sm:$0x1]
    %v4153 = vld [vmem:[%s3337 + $0x24] sm:$0xf]
    %v4154 = vld [vmem:[%s3337 + $0x28] sm:$0xf]
    %v4155 = vld [vmem:[%s3337 + $0x2c] sm:$0x1]
    %v4156 = vld [vmem:[%s3337 + $0x30] sm:$0xf]
    %v4157 = vld [vmem:[%s3337 + $0x34] sm:$0xf]
    %v4158 = vld [vmem:[%s3337 + $0x38] sm:$0x1]
    %v4159 = vld [vmem:[%s3337 + $0x3c] sm:$0xf]
    %v4160 = vld [vmem:[%s3337 + $0x40] sm:$0xf]
    %v4161 = vld [vmem:[%s3337 + $0x44] sm:$0x1]
    %v4162 = vld [vmem:[%s3337 + $0x48] sm:$0xf]
    %v4163 = vld [vmem:[%s3337 + $0x4c] sm:$0xf]
    %v4164 = vld [vmem:[%s3337 + $0x50] sm:$0x1]
    %v4165 = vld [vmem:[%s3337 + $0x54] sm:$0xf]
    %v4166 = vld [vmem:[%s3337 + $0x58] sm:$0xf]
    %v4167 = vld [vmem:[%s3337 + $0x5c] sm:$0x1]
    %v4168 = vld [vmem:[%s3337 + $0x60] sm:$0xf]
    %v4169 = vld [vmem:[%s3337 + $0x64] sm:$0xf]
    %v4170 = vld [vmem:[%s3337 + $0x68] sm:$0x1]
    %v4171 = vld [vmem:[%s3337 + $0x6c] sm:$0xf]
    %v4172 = vld [vmem:[%s3337 + $0x70] sm:$0xf]
    %v4173 = vld [vmem:[%s3337 + $0x74] sm:$0x1]
    %v4174 = vld [vmem:[%s3337 + $0x78] sm:$0xf]
    %v4175 = vld [vmem:[%s3337 + $0x7c] sm:$0xf]
    %v4176 = vld [vmem:[%s3337 + $0x80] sm:$0x1]
    %v4177 = vld [vmem:[%s3337 + $0x84] sm:$0xf]
    %v4178 = vld [vmem:[%s3337 + $0x88] sm:$0xf]
    %v4179 = vld [vmem:[%s3337 + $0x8c] sm:$0x1]
    %v4180 = vld [vmem:[%s3337 + $0x90] sm:$0xf]
    %v4181 = vld [vmem:[%s3337 + $0x94] sm:$0xf]
    %v4182 = vld [vmem:[%s3337 + $0x98] sm:$0x1]
    %v4183 = vld [vmem:[%s3337 + $0x9c] sm:$0xf]
    %v4184 = vld [vmem:[%s3337 + $0xa0] sm:$0xf]
    %v4185 = vld [vmem:[%s3337 + $0xa4] sm:$0x1]
    %v4186 = vld [vmem:[%s3337 + $0xa8] sm:$0xf]
    %v4187 = vld [vmem:[%s3337 + $0xac] sm:$0xf]
    %v4188 = vld [vmem:[%s3337 + $0xb0] sm:$0x1]
    %v4189 = vld [vmem:[%s3337 + $0xb4] sm:$0xf]
    %v4190 = vld [vmem:[%s3337 + $0xb8] sm:$0xf]
    %v4191 = vld [vmem:[%s3337 + $0xbc] sm:$0x1]
    %v4192 = vld [vmem:[%s3337 + $0xd8] sm:$0xf]
    %v4193 = vld [vmem:[%s3337 + $0xdc] sm:$0xf]
    %v4194 = vld [vmem:[%s3337 + $0xe0] sm:$0x1]
    %v4195 = vld [vmem:[%s3337 + $0xe4] sm:$0xf]
    %v4196 = vld [vmem:[%s3337 + $0xe8] sm:$0xf]
    %v4197 = vld [vmem:[%s3337 + $0xec] sm:$0x1]
    %v4198 = vld [vmem:[%s3337 + $0xf0] sm:$0xf]
    %v4199 = vld [vmem:[%s3337 + $0xf4] sm:$0xf]
    %v4200 = vld [vmem:[%s3337 + $0xf8] sm:$0x1]
    %v4201 = vld [vmem:[%s3337 + $0xfc] sm:$0xf]
    %v4202 = vld [vmem:[%s3337 + $0x100] sm:$0xf]
    %v4203 = vld [vmem:[%s3337 + $0x104] sm:$0x1]
    %v4204 = vld [vmem:[%s3337 + $0x108] sm:$0xf]
    %v4205 = vld [vmem:[%s3337 + $0x10c] sm:$0xf]
    %v4206 = vld [vmem:[%s3337 + $0x110] sm:$0x1]
    %v4207 = vld [vmem:[%s3337 + $0x114] sm:$0xf]
    %v4208 = vld [vmem:[%s3337 + $0x118] sm:$0xf]
    %v4209 = vld [vmem:[%s3337 + $0x11c] sm:$0x1]
    %v4210 = vld [vmem:[%s3337 + $0x120] sm:$0xf]
    %v4211 = vld [vmem:[%s3337 + $0x124] sm:$0xf]
    %v4212 = vld [vmem:[%s3337 + $0x128] sm:$0x1]
    %v4213 = vld [vmem:[%s3337 + $0x12c] sm:$0xf]
    %v4214 = vld [vmem:[%s3337 + $0x130] sm:$0xf]
    %v4215 = vld [vmem:[%s3337 + $0x134] sm:$0x1]
    %v4216 = vld [vmem:[%s3337 + $0x138] sm:$0xf]
    %v4217 = vld [vmem:[%s3337 + $0x13c] sm:$0xf]
    %v4218 = vld [vmem:[%s3337 + $0x140] sm:$0x1]
    %v4219 = vld [vmem:[%s3337 + $0x144] sm:$0xf]
    %v4220 = vld [vmem:[%s3337 + $0x148] sm:$0xf]
    %v4221 = vld [vmem:[%s3337 + $0x14c] sm:$0x1]
    %v4222 = vld [vmem:[%s3337 + $0x150] sm:$0xf]
    %v4223 = vld [vmem:[%s3337 + $0x154] sm:$0xf]
    %v4224 = vld [vmem:[%s3337 + $0x158] sm:$0x1]
    %v4225 = vld [vmem:[%s3337 + $0x15c] sm:$0xf]
    %v4226 = vld [vmem:[%s3337 + $0x160] sm:$0xf]
    %v4227 = vld [vmem:[%s3337 + $0x164] sm:$0x1]
    %v4228 = vld [vmem:[%s3337 + $0x168] sm:$0xf]
    %v4229 = vld [vmem:[%s3337 + $0x16c] sm:$0xf]
    %v4230 = vld [vmem:[%s3337 + $0x170] sm:$0x1]
    %v4231 = vld [vmem:[%s3337 + $0x174] sm:$0xf]
    %v4232 = vld [vmem:[%s3337 + $0x178] sm:$0xf]
    %v4233 = vld [vmem:[%s3337 + $0x17c] sm:$0x1]
    %v4234 = vld [vmem:[%s3337 + $0x180] sm:$0xf]
    %v4235 = vld [vmem:[%s3337 + $0x184] sm:$0xf]
    %v4236 = vld [vmem:[%s3337 + $0x188] sm:$0x1]
    %v4237 = vld [vmem:[%s3337 + $0x18c] sm:$0xf]
    %v4238 = vld [vmem:[%s3337 + $0x190] sm:$0xf]
    %v4239 = vld [vmem:[%s3337 + $0x194] sm:$0x1]
    %v4241 = vshrl.u32 %v4144, 16
    %v4243 = vrot.slane %v4241, 4
    %v4244 = vshll.u32 %v4144, 16
    %v4246 = vrot.slane %v4244, 5
    %v4247 = vor.u32 %v4243, %v4246
    %v4248 = vrot.slane %v4247, 4
    %v4250 = vshll.u32 %v4145, 16
    %v4252 = vrot.slane %v4250, 5
    %v4253 = vsel %vm793, %v4248, %v4252
    %v4254 = vshrl.u32 %v4145, 16
    %v4256 = vrot.slane %v4254, 4
    %v4257 = vor.u32 %v4256, %v4252
    %v4258 = vrot.slane %v4257, 4
    %v4260 = vshll.u32 %v4146, 16
    %v4262 = vrot.slane %v4260, 5
    %v4263 = vsel %vm793, %v4258, %v4262
    %v4265 = vshrl.u32 %v4147, 16
    %v4267 = vrot.slane %v4265, 4
    %v4268 = vshll.u32 %v4147, 16
    %v4270 = vrot.slane %v4268, 5
    %v4271 = vor.u32 %v4267, %v4270
    %v4272 = vrot.slane %v4271, 4
    %v4274 = vshll.u32 %v4148, 16
    %v4276 = vrot.slane %v4274, 5
    %v4277 = vsel %vm793, %v4272, %v4276
    %v4278 = vshrl.u32 %v4148, 16
    %v4280 = vrot.slane %v4278, 4
    %v4281 = vor.u32 %v4280, %v4276
    %v4282 = vrot.slane %v4281, 4
    %v4284 = vshll.u32 %v4149, 16
    %v4286 = vrot.slane %v4284, 5
    %v4287 = vsel %vm793, %v4282, %v4286
    %v4289 = vshrl.u32 %v4150, 16
    %v4291 = vrot.slane %v4289, 4
    %v4292 = vshll.u32 %v4150, 16
    %v4294 = vrot.slane %v4292, 5
    %v4295 = vor.u32 %v4291, %v4294
    %v4296 = vrot.slane %v4295, 4
    %v4298 = vshll.u32 %v4151, 16
    %v4300 = vrot.slane %v4298, 5
    %v4301 = vsel %vm793, %v4296, %v4300
    %v4302 = vshrl.u32 %v4151, 16
    %v4304 = vrot.slane %v4302, 4
    %v4305 = vor.u32 %v4304, %v4300
    %v4306 = vrot.slane %v4305, 4
    %v4308 = vshll.u32 %v4152, 16
    %v4310 = vrot.slane %v4308, 5
    %v4311 = vsel %vm793, %v4306, %v4310
    %v4313 = vshrl.u32 %v4153, 16
    %v4315 = vrot.slane %v4313, 4
    %v4316 = vshll.u32 %v4153, 16
    %v4318 = vrot.slane %v4316, 5
    %v4319 = vor.u32 %v4315, %v4318
    %v4320 = vrot.slane %v4319, 4
    %v4322 = vshll.u32 %v4154, 16
    %v4324 = vrot.slane %v4322, 5
    %v4325 = vsel %vm793, %v4320, %v4324
    %v4326 = vshrl.u32 %v4154, 16
    %v4328 = vrot.slane %v4326, 4
    %v4329 = vor.u32 %v4328, %v4324
    %v4330 = vrot.slane %v4329, 4
    %v4332 = vshll.u32 %v4155, 16
    %v4334 = vrot.slane %v4332, 5
    %v4335 = vsel %vm793, %v4330, %v4334
    %v4337 = vshrl.u32 %v4156, 16
    %v4339 = vrot.slane %v4337, 4
    %v4340 = vshll.u32 %v4156, 16
    %v4342 = vrot.slane %v4340, 5
    %v4343 = vor.u32 %v4339, %v4342
    %v4344 = vrot.slane %v4343, 4
    %v4346 = vshll.u32 %v4157, 16
    %v4348 = vrot.slane %v4346, 5
    %v4349 = vsel %vm793, %v4344, %v4348
    %v4350 = vshrl.u32 %v4157, 16
    %v4352 = vrot.slane %v4350, 4
    %v4353 = vor.u32 %v4352, %v4348
    %v4354 = vrot.slane %v4353, 4
    %v4356 = vshll.u32 %v4158, 16
    %v4358 = vrot.slane %v4356, 5
    %v4359 = vsel %vm793, %v4354, %v4358
    %v4361 = vshrl.u32 %v4159, 16
    %v4363 = vrot.slane %v4361, 4
    %v4364 = vshll.u32 %v4159, 16
    %v4366 = vrot.slane %v4364, 5
    %v4367 = vor.u32 %v4363, %v4366
    %v4368 = vrot.slane %v4367, 4
    %v4370 = vshll.u32 %v4160, 16
    %v4372 = vrot.slane %v4370, 5
    %v4373 = vsel %vm793, %v4368, %v4372
    %v4374 = vshrl.u32 %v4160, 16
    %v4376 = vrot.slane %v4374, 4
    %v4377 = vor.u32 %v4376, %v4372
    %v4378 = vrot.slane %v4377, 4
    %v4380 = vshll.u32 %v4161, 16
    %v4382 = vrot.slane %v4380, 5
    %v4383 = vsel %vm793, %v4378, %v4382
    %v4385 = vshrl.u32 %v4162, 16
    %v4387 = vrot.slane %v4385, 4
    %v4388 = vshll.u32 %v4162, 16
    %v4390 = vrot.slane %v4388, 5
    %v4391 = vor.u32 %v4387, %v4390
    %v4392 = vrot.slane %v4391, 4
    %v4394 = vshll.u32 %v4163, 16
    %v4396 = vrot.slane %v4394, 5
    %v4397 = vsel %vm793, %v4392, %v4396
    %v4398 = vshrl.u32 %v4163, 16
    %v4400 = vrot.slane %v4398, 4
    %v4401 = vor.u32 %v4400, %v4396
    %v4402 = vrot.slane %v4401, 4
    %v4404 = vshll.u32 %v4164, 16
    %v4406 = vrot.slane %v4404, 5
    %v4407 = vsel %vm793, %v4402, %v4406
    %v4409 = vshrl.u32 %v4165, 16
    %v4411 = vrot.slane %v4409, 4
    %v4412 = vshll.u32 %v4165, 16
    %v4414 = vrot.slane %v4412, 5
    %v4415 = vor.u32 %v4411, %v4414
    %v4416 = vrot.slane %v4415, 4
    %v4418 = vshll.u32 %v4166, 16
    %v4420 = vrot.slane %v4418, 5
    %v4421 = vsel %vm793, %v4416, %v4420
    %v4422 = vshrl.u32 %v4166, 16
    %v4424 = vrot.slane %v4422, 4
    %v4425 = vor.u32 %v4424, %v4420
    %v4426 = vrot.slane %v4425, 4
    %v4428 = vshll.u32 %v4167, 16
    %v4430 = vrot.slane %v4428, 5
    %v4431 = vsel %vm793, %v4426, %v4430
    %v4433 = vshrl.u32 %v4168, 16
    %v4435 = vrot.slane %v4433, 4
    %v4436 = vshll.u32 %v4168, 16
    %v4438 = vrot.slane %v4436, 5
    %v4439 = vor.u32 %v4435, %v4438
    %v4440 = vrot.slane %v4439, 4
    %v4442 = vshll.u32 %v4169, 16
    %v4444 = vrot.slane %v4442, 5
    %v4445 = vsel %vm793, %v4440, %v4444
    %v4446 = vshrl.u32 %v4169, 16
    %v4448 = vrot.slane %v4446, 4
    %v4449 = vor.u32 %v4448, %v4444
    %v4450 = vrot.slane %v4449, 4
    %v4452 = vshll.u32 %v4170, 16
    %v4454 = vrot.slane %v4452, 5
    %v4455 = vsel %vm793, %v4450, %v4454
    %v4457 = vshrl.u32 %v4171, 16
    %v4459 = vrot.slane %v4457, 4
    %v4460 = vshll.u32 %v4171, 16
    %v4462 = vrot.slane %v4460, 5
    %v4463 = vor.u32 %v4459, %v4462
    %v4464 = vrot.slane %v4463, 4
    %v4466 = vshll.u32 %v4172, 16
    %v4468 = vrot.slane %v4466, 5
    %v4469 = vsel %vm793, %v4464, %v4468
    %v4470 = vshrl.u32 %v4172, 16
    %v4472 = vrot.slane %v4470, 4
    %v4473 = vor.u32 %v4472, %v4468
    %v4474 = vrot.slane %v4473, 4
    %v4476 = vshll.u32 %v4173, 16
    %v4478 = vrot.slane %v4476, 5
    %v4479 = vsel %vm793, %v4474, %v4478
    %v4481 = vshrl.u32 %v4174, 16
    %v4483 = vrot.slane %v4481, 4
    %v4484 = vshll.u32 %v4174, 16
    %v4486 = vrot.slane %v4484, 5
    %v4487 = vor.u32 %v4483, %v4486
    %v4488 = vrot.slane %v4487, 4
    %v4490 = vshll.u32 %v4175, 16
    %v4492 = vrot.slane %v4490, 5
    %v4493 = vsel %vm793, %v4488, %v4492
    %v4494 = vshrl.u32 %v4175, 16
    %v4496 = vrot.slane %v4494, 4
    %v4497 = vor.u32 %v4496, %v4492
    %v4498 = vrot.slane %v4497, 4
    %v4500 = vshll.u32 %v4176, 16
    %v4502 = vrot.slane %v4500, 5
    %v4503 = vsel %vm793, %v4498, %v4502
    %v4505 = vshrl.u32 %v4177, 16
    %v4507 = vrot.slane %v4505, 4
    %v4508 = vshll.u32 %v4177, 16
    %v4510 = vrot.slane %v4508, 5
    %v4511 = vor.u32 %v4507, %v4510
    %v4512 = vrot.slane %v4511, 4
    %v4514 = vshll.u32 %v4178, 16
    %v4516 = vrot.slane %v4514, 5
    %v4517 = vsel %vm793, %v4512, %v4516
    %v4518 = vshrl.u32 %v4178, 16
    %v4520 = vrot.slane %v4518, 4
    %v4521 = vor.u32 %v4520, %v4516
    %v4522 = vrot.slane %v4521, 4
    %v4524 = vshll.u32 %v4179, 16
    %v4526 = vrot.slane %v4524, 5
    %v4527 = vsel %vm793, %v4522, %v4526
    %v4529 = vshrl.u32 %v4180, 16
    %v4531 = vrot.slane %v4529, 4
    %v4532 = vshll.u32 %v4180, 16
    %v4534 = vrot.slane %v4532, 5
    %v4535 = vor.u32 %v4531, %v4534
    %v4536 = vrot.slane %v4535, 4
    %v4538 = vshll.u32 %v4181, 16
    %v4540 = vrot.slane %v4538, 5
    %v4541 = vsel %vm793, %v4536, %v4540
    %v4542 = vshrl.u32 %v4181, 16
    %v4544 = vrot.slane %v4542, 4
    %v4545 = vor.u32 %v4544, %v4540
    %v4546 = vrot.slane %v4545, 4
    %v4548 = vshll.u32 %v4182, 16
    %v4550 = vrot.slane %v4548, 5
    %v4551 = vsel %vm793, %v4546, %v4550
    %v4553 = vshrl.u32 %v4183, 16
    %v4555 = vrot.slane %v4553, 4
    %v4556 = vshll.u32 %v4183, 16
    %v4558 = vrot.slane %v4556, 5
    %v4559 = vor.u32 %v4555, %v4558
    %v4560 = vrot.slane %v4559, 4
    %v4562 = vshll.u32 %v4184, 16
    %v4564 = vrot.slane %v4562, 5
    %v4565 = vsel %vm793, %v4560, %v4564
    %v4566 = vshrl.u32 %v4184, 16
    %v4568 = vrot.slane %v4566, 4
    %v4569 = vor.u32 %v4568, %v4564
    %v4570 = vrot.slane %v4569, 4
    %v4572 = vshll.u32 %v4185, 16
    %v4574 = vrot.slane %v4572, 5
    %v4575 = vsel %vm793, %v4570, %v4574
    %v4577 = vshrl.u32 %v4186, 16
    %v4579 = vrot.slane %v4577, 4
    %v4580 = vshll.u32 %v4186, 16
    %v4582 = vrot.slane %v4580, 5
    %v4583 = vor.u32 %v4579, %v4582
    %v4584 = vrot.slane %v4583, 4
    %v4586 = vshll.u32 %v4187, 16
    %v4588 = vrot.slane %v4586, 5
    %v4589 = vsel %vm793, %v4584, %v4588
    %v4590 = vshrl.u32 %v4187, 16
    %v4592 = vrot.slane %v4590, 4
    %v4593 = vor.u32 %v4592, %v4588
    %v4594 = vrot.slane %v4593, 4
    %v4596 = vshll.u32 %v4188, 16
    %v4598 = vrot.slane %v4596, 5
    %v4599 = vsel %vm793, %v4594, %v4598
    %v4601 = vshrl.u32 %v4189, 16
    %v4603 = vrot.slane %v4601, 4
    %v4604 = vshll.u32 %v4189, 16
    %v4606 = vrot.slane %v4604, 5
    %v4607 = vor.u32 %v4603, %v4606
    %v4608 = vrot.slane %v4607, 4
    %v4610 = vshll.u32 %v4190, 16
    %v4612 = vrot.slane %v4610, 5
    %v4613 = vsel %vm793, %v4608, %v4612
    %v4614 = vshrl.u32 %v4190, 16
    %v4616 = vrot.slane %v4614, 4
    %v4617 = vor.u32 %v4616, %v4612
    %v4618 = vrot.slane %v4617, 4
    %v4620 = vshll.u32 %v4191, 16
    %v4622 = vrot.slane %v4620, 5
    %v4623 = vsel %vm793, %v4618, %v4622
    %v4625 = vshrl.u32 %v4192, 16
    %v4627 = vrot.slane %v4625, 4
    %v4628 = vshll.u32 %v4192, 16
    %v4630 = vrot.slane %v4628, 5
    %v4631 = vor.u32 %v4627, %v4630
    %v4632 = vrot.slane %v4631, 4
    %v4634 = vshll.u32 %v4193, 16
    %v4636 = vrot.slane %v4634, 5
    %v4637 = vsel %vm793, %v4632, %v4636
    %v4638 = vshrl.u32 %v4193, 16
    %v4640 = vrot.slane %v4638, 4
    %v4641 = vor.u32 %v4640, %v4636
    %v4642 = vrot.slane %v4641, 4
    %v4644 = vshll.u32 %v4194, 16
    %v4646 = vrot.slane %v4644, 5
    %v4647 = vsel %vm793, %v4642, %v4646
    %v4649 = vshrl.u32 %v4195, 16
    %v4651 = vrot.slane %v4649, 4
    %v4652 = vshll.u32 %v4195, 16
    %v4654 = vrot.slane %v4652, 5
    %v4655 = vor.u32 %v4651, %v4654
    %v4656 = vrot.slane %v4655, 4
    %v4658 = vshll.u32 %v4196, 16
    %v4660 = vrot.slane %v4658, 5
    %v4661 = vsel %vm793, %v4656, %v4660
    %v4662 = vshrl.u32 %v4196, 16
    %v4664 = vrot.slane %v4662, 4
    %v4665 = vor.u32 %v4664, %v4660
    %v4666 = vrot.slane %v4665, 4
    %v4668 = vshll.u32 %v4197, 16
    %v4670 = vrot.slane %v4668, 5
    %v4671 = vsel %vm793, %v4666, %v4670
    %v4673 = vshrl.u32 %v4198, 16
    %v4675 = vrot.slane %v4673, 4
    %v4676 = vshll.u32 %v4198, 16
    %v4678 = vrot.slane %v4676, 5
    %v4679 = vor.u32 %v4675, %v4678
    %v4680 = vrot.slane %v4679, 4
    %v4682 = vshll.u32 %v4199, 16
    %v4684 = vrot.slane %v4682, 5
    %v4685 = vsel %vm793, %v4680, %v4684
    %v4686 = vshrl.u32 %v4199, 16
    %v4688 = vrot.slane %v4686, 4
    %v4689 = vor.u32 %v4688, %v4684
    %v4690 = vrot.slane %v4689, 4
    %v4692 = vshll.u32 %v4200, 16
    %v4694 = vrot.slane %v4692, 5
    %v4695 = vsel %vm793, %v4690, %v4694
    %v4697 = vshrl.u32 %v4201, 16
    %v4699 = vrot.slane %v4697, 4
    %v4700 = vshll.u32 %v4201, 16
    %v4702 = vrot.slane %v4700, 5
    %v4703 = vor.u32 %v4699, %v4702
    %v4704 = vrot.slane %v4703, 4
    %v4706 = vshll.u32 %v4202, 16
    %v4708 = vrot.slane %v4706, 5
    %v4709 = vsel %vm793, %v4704, %v4708
    %v4710 = vshrl.u32 %v4202, 16
    %v4712 = vrot.slane %v4710, 4
    %v4713 = vor.u32 %v4712, %v4708
    %v4714 = vrot.slane %v4713, 4
    %v4716 = vshll.u32 %v4203, 16
    %v4718 = vrot.slane %v4716, 5
    %v4719 = vsel %vm793, %v4714, %v4718
    %v4721 = vshrl.u32 %v4204, 16
    %v4723 = vrot.slane %v4721, 4
    %v4724 = vshll.u32 %v4204, 16
    %v4726 = vrot.slane %v4724, 5
    %v4727 = vor.u32 %v4723, %v4726
    %v4728 = vrot.slane %v4727, 4
    %v4730 = vshll.u32 %v4205, 16
    %v4732 = vrot.slane %v4730, 5
    %v4733 = vsel %vm793, %v4728, %v4732
    %v4734 = vshrl.u32 %v4205, 16
    %v4736 = vrot.slane %v4734, 4
    %v4737 = vor.u32 %v4736, %v4732
    %v4738 = vrot.slane %v4737, 4
    %v4740 = vshll.u32 %v4206, 16
    %v4742 = vrot.slane %v4740, 5
    %v4743 = vsel %vm793, %v4738, %v4742
    %v4745 = vshrl.u32 %v4207, 16
    %v4747 = vrot.slane %v4745, 4
    %v4748 = vshll.u32 %v4207, 16
    %v4750 = vrot.slane %v4748, 5
    %v4751 = vor.u32 %v4747, %v4750
    %v4752 = vrot.slane %v4751, 4
    %v4754 = vshll.u32 %v4208, 16
    %v4756 = vrot.slane %v4754, 5
    %v4757 = vsel %vm793, %v4752, %v4756
    %v4758 = vshrl.u32 %v4208, 16
    %v4760 = vrot.slane %v4758, 4
    %v4761 = vor.u32 %v4760, %v4756
    %v4762 = vrot.slane %v4761, 4
    %v4764 = vshll.u32 %v4209, 16
    %v4766 = vrot.slane %v4764, 5
    %v4767 = vsel %vm793, %v4762, %v4766
    %v4769 = vshrl.u32 %v4210, 16
    %v4771 = vrot.slane %v4769, 4
    %v4772 = vshll.u32 %v4210, 16
    %v4774 = vrot.slane %v4772, 5
    %v4775 = vor.u32 %v4771, %v4774
    %v4776 = vrot.slane %v4775, 4
    %v4778 = vshll.u32 %v4211, 16
    %v4780 = vrot.slane %v4778, 5
    %v4781 = vsel %vm793, %v4776, %v4780
    %v4782 = vshrl.u32 %v4211, 16
    %v4784 = vrot.slane %v4782, 4
    %v4785 = vor.u32 %v4784, %v4780
    %v4786 = vrot.slane %v4785, 4
    %v4788 = vshll.u32 %v4212, 16
    %v4790 = vrot.slane %v4788, 5
    %v4791 = vsel %vm793, %v4786, %v4790
    %v4793 = vshrl.u32 %v4213, 16
    %v4795 = vrot.slane %v4793, 4
    %v4796 = vshll.u32 %v4213, 16
    %v4798 = vrot.slane %v4796, 5
    %v4799 = vor.u32 %v4795, %v4798
    %v4800 = vrot.slane %v4799, 4
    %v4802 = vshll.u32 %v4214, 16
    %v4804 = vrot.slane %v4802, 5
    %v4805 = vsel %vm793, %v4800, %v4804
    %v4806 = vshrl.u32 %v4214, 16
    %v4808 = vrot.slane %v4806, 4
    %v4809 = vor.u32 %v4808, %v4804
    %v4810 = vrot.slane %v4809, 4
    %v4812 = vshll.u32 %v4215, 16
    %v4814 = vrot.slane %v4812, 5
    %v4815 = vsel %vm793, %v4810, %v4814
    %v4817 = vshrl.u32 %v4216, 16
    %v4819 = vrot.slane %v4817, 4
    %v4820 = vshll.u32 %v4216, 16
    %v4822 = vrot.slane %v4820, 5
    %v4823 = vor.u32 %v4819, %v4822
    %v4824 = vrot.slane %v4823, 4
    %v4826 = vshll.u32 %v4217, 16
    %v4828 = vrot.slane %v4826, 5
    %v4829 = vsel %vm793, %v4824, %v4828
    %v4830 = vshrl.u32 %v4217, 16
    %v4832 = vrot.slane %v4830, 4
    %v4833 = vor.u32 %v4832, %v4828
    %v4834 = vrot.slane %v4833, 4
    %v4836 = vshll.u32 %v4218, 16
    %v4838 = vrot.slane %v4836, 5
    %v4839 = vsel %vm793, %v4834, %v4838
    %v4841 = vshrl.u32 %v4219, 16
    %v4843 = vrot.slane %v4841, 4
    %v4844 = vshll.u32 %v4219, 16
    %v4846 = vrot.slane %v4844, 5
    %v4847 = vor.u32 %v4843, %v4846
    %v4848 = vrot.slane %v4847, 4
    %v4850 = vshll.u32 %v4220, 16
    %v4852 = vrot.slane %v4850, 5
    %v4853 = vsel %vm793, %v4848, %v4852
    %v4854 = vshrl.u32 %v4220, 16
    %v4856 = vrot.slane %v4854, 4
    %v4857 = vor.u32 %v4856, %v4852
    %v4858 = vrot.slane %v4857, 4
    %v4860 = vshll.u32 %v4221, 16
    %v4862 = vrot.slane %v4860, 5
    %v4863 = vsel %vm793, %v4858, %v4862
    %v4865 = vshrl.u32 %v4222, 16
    %v4867 = vrot.slane %v4865, 4
    %v4868 = vshll.u32 %v4222, 16
    %v4870 = vrot.slane %v4868, 5
    %v4871 = vor.u32 %v4867, %v4870
    %v4872 = vrot.slane %v4871, 4
    %v4874 = vshll.u32 %v4223, 16
    %v4876 = vrot.slane %v4874, 5
    %v4877 = vsel %vm793, %v4872, %v4876
    %v4878 = vshrl.u32 %v4223, 16
    %v4880 = vrot.slane %v4878, 4
    %v4881 = vor.u32 %v4880, %v4876
    %v4882 = vrot.slane %v4881, 4
    %v4884 = vshll.u32 %v4224, 16
    %v4886 = vrot.slane %v4884, 5
    %v4887 = vsel %vm793, %v4882, %v4886
    %v4889 = vshrl.u32 %v4225, 16
    %v4891 = vrot.slane %v4889, 4
    %v4892 = vshll.u32 %v4225, 16
    %v4894 = vrot.slane %v4892, 5
    %v4895 = vor.u32 %v4891, %v4894
    %v4896 = vrot.slane %v4895, 4
    %v4898 = vshll.u32 %v4226, 16
    %v4900 = vrot.slane %v4898, 5
    %v4901 = vsel %vm793, %v4896, %v4900
    %v4902 = vshrl.u32 %v4226, 16
    %v4904 = vrot.slane %v4902, 4
    %v4905 = vor.u32 %v4904, %v4900
    %v4906 = vrot.slane %v4905, 4
    %v4908 = vshll.u32 %v4227, 16
    %v4910 = vrot.slane %v4908, 5
    %v4911 = vsel %vm793, %v4906, %v4910
    %v4913 = vshrl.u32 %v4228, 16
    %v4915 = vrot.slane %v4913, 4
    %v4916 = vshll.u32 %v4228, 16
    %v4918 = vrot.slane %v4916, 5
    %v4919 = vor.u32 %v4915, %v4918
    %v4920 = vrot.slane %v4919, 4
    %v4922 = vshll.u32 %v4229, 16
    %v4924 = vrot.slane %v4922, 5
    %v4925 = vsel %vm793, %v4920, %v4924
    %v4926 = vshrl.u32 %v4229, 16
    %v4928 = vrot.slane %v4926, 4
    %v4929 = vor.u32 %v4928, %v4924
    %v4930 = vrot.slane %v4929, 4
    %v4932 = vshll.u32 %v4230, 16
    %v4934 = vrot.slane %v4932, 5
    %v4935 = vsel %vm793, %v4930, %v4934
    %v4937 = vshrl.u32 %v4231, 16
    %v4939 = vrot.slane %v4937, 4
    %v4940 = vshll.u32 %v4231, 16
    %v4942 = vrot.slane %v4940, 5
    %v4943 = vor.u32 %v4939, %v4942
    %v4944 = vrot.slane %v4943, 4
    %v4946 = vshll.u32 %v4232, 16
    %v4948 = vrot.slane %v4946, 5
    %v4949 = vsel %vm793, %v4944, %v4948
    %v4950 = vshrl.u32 %v4232, 16
    %v4952 = vrot.slane %v4950, 4
    %v4953 = vor.u32 %v4952, %v4948
    %v4954 = vrot.slane %v4953, 4
    %v4956 = vshll.u32 %v4233, 16
    %v4958 = vrot.slane %v4956, 5
    %v4959 = vsel %vm793, %v4954, %v4958
    %v4961 = vshrl.u32 %v4234, 16
    %v4963 = vrot.slane %v4961, 4
    %v4964 = vshll.u32 %v4234, 16
    %v4966 = vrot.slane %v4964, 5
    %v4967 = vor.u32 %v4963, %v4966
    %v4968 = vrot.slane %v4967, 4
    %v4970 = vshll.u32 %v4235, 16
    %v4972 = vrot.slane %v4970, 5
    %v4973 = vsel %vm793, %v4968, %v4972
    %v4974 = vshrl.u32 %v4235, 16
    %v4976 = vrot.slane %v4974, 4
    %v4977 = vor.u32 %v4976, %v4972
    %v4978 = vrot.slane %v4977, 4
    %v4980 = vshll.u32 %v4236, 16
    %v4982 = vrot.slane %v4980, 5
    %v4983 = vsel %vm793, %v4978, %v4982
    %v4985 = vshrl.u32 %v4237, 16
    %v4987 = vrot.slane %v4985, 4
    %v4988 = vshll.u32 %v4237, 16
    %v4990 = vrot.slane %v4988, 5
    %v4991 = vor.u32 %v4987, %v4990
    %v4992 = vrot.slane %v4991, 4
    %v4994 = vshll.u32 %v4238, 16
    %v4996 = vrot.slane %v4994, 5
    %v4997 = vsel %vm793, %v4992, %v4996
    %v4998 = vshrl.u32 %v4238, 16
    %v5000 = vrot.slane %v4998, 4
    %v5001 = vor.u32 %v5000, %v4996
    %v5002 = vrot.slane %v5001, 4
    %v5004 = vshll.u32 %v4239, 16
    %v5006 = vrot.slane %v5004, 5
    %v5007 = vsel %vm793, %v5002, %v5006
    %s5008 = scalar_lea.vmem %s1, 8
    %v5009 = vld [vmem:[%s5008] sm:$0x3]
    %v5010 = vunpack.c.l.b16 %v4253
    %v5011 = vunpack.c.l.b16 %v4263
    %v5012 = vunpack.c.l.b16 %v4277
    %v5013 = vunpack.c.l.b16 %v4287
    %v5014 = vunpack.c.l.b16 %v4301
    %v5015 = vunpack.c.l.b16 %v4311
    %v5016 = vunpack.c.l.b16 %v4325
    %v5017 = vunpack.c.l.b16 %v4335
    %v5018 = vunpack.c.l.b16 %v4349
    %v5019 = vunpack.c.l.b16 %v4359
    %v5020 = vunpack.c.l.b16 %v4373
    %v5021 = vunpack.c.l.b16 %v4383
    %v5022 = vunpack.c.l.b16 %v4397
    %v5023 = vunpack.c.l.b16 %v4407
    %v5024 = vunpack.c.l.b16 %v4421
    %v5025 = vunpack.c.l.b16 %v4431
    %v5026 = vunpack.c.l.b16 %v4445
    %v5027 = vunpack.c.l.b16 %v4455
    %v5028 = vunpack.c.l.b16 %v4469
    %v5029 = vunpack.c.l.b16 %v4479
    %v5030 = vunpack.c.l.b16 %v4493
    %v5031 = vunpack.c.l.b16 %v4503
    %v5032 = vunpack.c.l.b16 %v4517
    %v5033 = vunpack.c.l.b16 %v4527
    %v5034 = vunpack.c.l.b16 %v4541
    %v5035 = vunpack.c.l.b16 %v4551
    %v5036 = vunpack.c.l.b16 %v4565
    %v5037 = vunpack.c.l.b16 %v4575
    %v5038 = vunpack.c.l.b16 %v4589
    %v5039 = vunpack.c.l.b16 %v4599
    %v5040 = vunpack.c.l.b16 %v4613
    %v5041 = vunpack.c.l.b16 %v4623
    %v5042 = vunpack.c.l.b16 %v4637
    %v5043 = vunpack.c.l.b16 %v4647
    %v5044 = vunpack.c.l.b16 %v4661
    %v5045 = vunpack.c.l.b16 %v4671
    %v5046 = vunpack.c.l.b16 %v4685
    %v5047 = vunpack.c.l.b16 %v4695
    %v5048 = vunpack.c.l.b16 %v4709
    %v5049 = vunpack.c.l.b16 %v4719
    %v5050 = vunpack.c.l.b16 %v4733
    %v5051 = vunpack.c.l.b16 %v4743
    %v5052 = vunpack.c.l.b16 %v4757
    %v5053 = vunpack.c.l.b16 %v4767
    %v5054 = vunpack.c.l.b16 %v4781
    %v5055 = vunpack.c.l.b16 %v4791
    %v5056 = vunpack.c.l.b16 %v4805
    %v5057 = vunpack.c.l.b16 %v4815
    %v5058 = vunpack.c.l.b16 %v4829
    %v5059 = vunpack.c.l.b16 %v4839
    %v5060 = vunpack.c.l.b16 %v4853
    %v5061 = vunpack.c.l.b16 %v4863
    %v5062 = vunpack.c.l.b16 %v4877
    %v5063 = vunpack.c.l.b16 %v4887
    %v5064 = vunpack.c.l.b16 %v4901
    %v5065 = vunpack.c.l.b16 %v4911
    %v5066 = vunpack.c.l.b16 %v4925
    %v5067 = vunpack.c.l.b16 %v4935
    %v5068 = vunpack.c.l.b16 %v4949
    %v5069 = vunpack.c.l.b16 %v4959
    %v5070 = vunpack.c.l.b16 %v4973
    %v5071 = vunpack.c.l.b16 %v4983
    %v5072 = vunpack.c.l.b16 %v4997
    %v5073 = vunpack.c.l.b16 %v5007
    %v5074 = vpack.c.b16 %v5011, %v5010
    %v5075 = vpack.c.b16 %v5013, %v5012
    %v5076 = vpack.c.b16 %v5015, %v5014
    %v5077 = vpack.c.b16 %v5017, %v5016
    %v5078 = vpack.c.b16 %v5019, %v5018
    %v5079 = vpack.c.b16 %v5021, %v5020
    %v5080 = vpack.c.b16 %v5023, %v5022
    %v5081 = vpack.c.b16 %v5025, %v5024
    %v5082 = vpack.c.b16 %v5027, %v5026
    %v5083 = vpack.c.b16 %v5029, %v5028
    %v5084 = vpack.c.b16 %v5031, %v5030
    %v5085 = vpack.c.b16 %v5033, %v5032
    %v5086 = vpack.c.b16 %v5035, %v5034
    %v5087 = vpack.c.b16 %v5037, %v5036
    %v5088 = vpack.c.b16 %v5039, %v5038
    %v5089 = vpack.c.b16 %v5041, %v5040
    %v5090 = vpack.c.b16 %v5043, %v5042
    %v5091 = vpack.c.b16 %v5045, %v5044
    %v5092 = vpack.c.b16 %v5047, %v5046
    %v5093 = vpack.c.b16 %v5049, %v5048
    %v5094 = vpack.c.b16 %v5051, %v5050
    %v5095 = vpack.c.b16 %v5053, %v5052
    %v5096 = vpack.c.b16 %v5055, %v5054
    %v5097 = vpack.c.b16 %v5057, %v5056
    %v5098 = vpack.c.b16 %v5059, %v5058
    %v5099 = vpack.c.b16 %v5061, %v5060
    %v5100 = vpack.c.b16 %v5063, %v5062
    %v5101 = vpack.c.b16 %v5065, %v5064
    %v5102 = vpack.c.b16 %v5067, %v5066
    %v5103 = vpack.c.b16 %v5069, %v5068
    %v5104 = vpack.c.b16 %v5071, %v5070
    %v5105 = vpack.c.b16 %v5073, %v5072
    %v5107 = vsel %vm241, %v5074, 0
    %v5110 = vsel %vm241, %v5075, 0
    %v5113 = vsel %vm241, %v5076, 0
    %v5116 = vsel %vm241, %v5077, 0
    %v5119 = vsel %vm241, %v5078, 0
    %v5122 = vsel %vm241, %v5079, 0
    %v5125 = vsel %vm241, %v5080, 0
    %v5128 = vsel %vm241, %v5081, 0
    %v5131 = vsel %vm241, %v5082, 0
    %v5134 = vsel %vm241, %v5083, 0
    %v5137 = vsel %vm241, %v5084, 0
    %v5140 = vsel %vm241, %v5085, 0
    %v5143 = vsel %vm241, %v5086, 0
    %v5146 = vsel %vm241, %v5087, 0
    %v5149 = vsel %vm241, %v5088, 0
    %v5152 = vsel %vm241, %v5089, 0
    %v5155 = vsel %vm241, %v5090, 0
    %v5158 = vsel %vm241, %v5091, 0
    %v5161 = vsel %vm241, %v5092, 0
    %v5164 = vsel %vm241, %v5093, 0
    %v5167 = vsel %vm241, %v5094, 0
    %v5170 = vsel %vm241, %v5095, 0
    %v5173 = vsel %vm241, %v5096, 0
    %v5176 = vsel %vm241, %v5097, 0
    %v5179 = vsel %vm241, %v5098, 0
    %v5182 = vsel %vm241, %v5099, 0
    %v5185 = vsel %vm241, %v5100, 0
    %v5188 = vsel %vm241, %v5101, 0
    %v5191 = vsel %vm241, %v5102, 0
    %v5194 = vsel %vm241, %v5103, 0
    %v5197 = vsel %vm241, %v5104, 0
    %v5200 = vsel %vm241, %v5105, 0
    %v5203 = vsel %vm338, %v5009, 0
    %5205 = vmatprep.subr.bf16.mxu0 0
    %5206 = vmatpush1.bf16.msra.mxu0 0
    %5207 = vmatprep.subr.bf16.mxu0 0
    %5208 = vmatpush1.bf16.msra.mxu0 0
    %5209 = vmatprep.subr.bf16.mxu0 0
    %5210 = vmatpush1.bf16.msra.mxu0 0
    %5211 = vmatprep.subr.bf16.mxu0 0
    %5212 = vmatpush1.bf16.msra.mxu0 0
    %5213 = vmatprep.subr.bf16.mxu0 0
    %5214 = vmatpush1.bf16.msra.mxu0 0
    %5215 = vmatprep.subr.bf16.mxu0 0
    %5216 = vmatpush1.bf16.msra.mxu0 0
    %5217 = vmatprep.subr.bf16.mxu0 0
    %5218 = vmatpush1.bf16.msra.mxu0 0
    %5219 = vmatprep.subr.bf16.mxu0 0
    %5220 = vmatpush1.bf16.msra.mxu0 %v5203
    %5221 = vmatprep.subr.bf16.mxu0 0
    %5222 = vmatpush2.bf16.msra.mxu0 0
    %5223 = vmatprep.subr.bf16.mxu0 0
    %5224 = vmatpush2.bf16.msra.mxu0 0
    %5225 = vmatprep.subr.bf16.mxu0 0
    %5226 = vmatpush2.bf16.msra.mxu0 0
    %5227 = vmatprep.subr.bf16.mxu0 0
    %5228 = vmatpush2.bf16.msra.mxu0 0
    %5229 = vmatprep.subr.bf16.mxu0 0
    %5230 = vmatpush2.bf16.msra.mxu0 0
    %5231 = vmatprep.subr.bf16.mxu0 0
    %5232 = vmatpush2.bf16.msra.mxu0 0
    %5233 = vmatprep.subr.bf16.mxu0 0
    %5234 = vmatpush2.bf16.msra.mxu0 0
    %5235 = vmatprep.subr.bf16.mxu0 0
    %5236 = vmatpush2.bf16.msra.mxu0 0
    %5237 = vmatprep.mubr.bf16.mxu0 0
    %5238 = vmatmul.mubr.bf16.gmra.mxu0 %v5107
    %v5239 = vpop.f32.mrf.mxu0
    %v5240 = vadd.f32 0.0, %v5239
    %v5241 = vpop.f32.mrf.mxu0
    %v5242 = vpop.f32.mrf.mxu0
    %v5243 = vadd.f32 0.0, %v5242
    %v5244 = vpop.f32.mrf.mxu0
    %5245 = vmatprep.mubr.bf16.mxu0 0
    %5246 = vmatmul.mubr.bf16.gmra.mxu0 %v5110
    %v5247 = vpop.f32.mrf.mxu0
    %v5248 = vadd.f32 0.0, %v5247
    %v5249 = vpop.f32.mrf.mxu0
    %v5250 = vpop.f32.mrf.mxu0
    %v5251 = vadd.f32 0.0, %v5250
    %v5252 = vpop.f32.mrf.mxu0
    %5253 = vmatprep.mubr.bf16.mxu0 0
    %5254 = vmatmul.mubr.bf16.gmra.mxu0 %v5113
    %v5255 = vpop.f32.mrf.mxu0
    %v5256 = vadd.f32 0.0, %v5255
    %v5257 = vpop.f32.mrf.mxu0
    %v5258 = vpop.f32.mrf.mxu0
    %v5259 = vadd.f32 0.0, %v5258
    %v5260 = vpop.f32.mrf.mxu0
    %5261 = vmatprep.mubr.bf16.mxu0 0
    %5262 = vmatmul.mubr.bf16.gmra.mxu0 %v5116
    %v5263 = vpop.f32.mrf.mxu0
    %v5264 = vadd.f32 0.0, %v5263
    %v5265 = vpop.f32.mrf.mxu0
    %v5266 = vpop.f32.mrf.mxu0
    %v5267 = vadd.f32 0.0, %v5266
    %v5268 = vpop.f32.mrf.mxu0
    %5269 = vmatprep.mubr.bf16.mxu0 0
    %5270 = vmatmul.mubr.bf16.gmra.mxu0 %v5119
    %v5271 = vpop.f32.mrf.mxu0
    %v5272 = vadd.f32 0.0, %v5271
    %v5273 = vpop.f32.mrf.mxu0
    %v5274 = vpop.f32.mrf.mxu0
    %v5275 = vadd.f32 0.0, %v5274
    %v5276 = vpop.f32.mrf.mxu0
    %5277 = vmatprep.mubr.bf16.mxu0 0
    %5278 = vmatmul.mubr.bf16.gmra.mxu0 %v5122
    %v5279 = vpop.f32.mrf.mxu0
    %v5280 = vadd.f32 0.0, %v5279
    %v5281 = vpop.f32.mrf.mxu0
    %v5282 = vpop.f32.mrf.mxu0
    %v5283 = vadd.f32 0.0, %v5282
    %v5284 = vpop.f32.mrf.mxu0
    %5285 = vmatprep.mubr.bf16.mxu0 0
    %5286 = vmatmul.mubr.bf16.gmra.mxu0 %v5125
    %v5287 = vpop.f32.mrf.mxu0
    %v5288 = vadd.f32 0.0, %v5287
    %v5289 = vpop.f32.mrf.mxu0
    %v5290 = vpop.f32.mrf.mxu0
    %v5291 = vadd.f32 0.0, %v5290
    %v5292 = vpop.f32.mrf.mxu0
    %5293 = vmatprep.mubr.bf16.mxu0 0
    %5294 = vmatmul.mubr.bf16.gmra.mxu0 %v5128
    %v5295 = vpop.f32.mrf.mxu0
    %v5296 = vadd.f32 0.0, %v5295
    %v5297 = vpop.f32.mrf.mxu0
    %v5298 = vpop.f32.mrf.mxu0
    %v5299 = vadd.f32 0.0, %v5298
    %v5300 = vpop.f32.mrf.mxu0
    %5301 = vmatprep.mubr.bf16.mxu0 0
    %5302 = vmatmul.mubr.bf16.gmra.mxu0 %v5131
    %v5303 = vpop.f32.mrf.mxu0
    %v5304 = vadd.f32 0.0, %v5303
    %v5305 = vpop.f32.mrf.mxu0
    %v5306 = vpop.f32.mrf.mxu0
    %v5307 = vadd.f32 0.0, %v5306
    %v5308 = vpop.f32.mrf.mxu0
    %5309 = vmatprep.mubr.bf16.mxu0 0
    %5310 = vmatmul.mubr.bf16.gmra.mxu0 %v5134
    %v5311 = vpop.f32.mrf.mxu0
    %v5312 = vadd.f32 0.0, %v5311
    %v5313 = vpop.f32.mrf.mxu0
    %v5314 = vpop.f32.mrf.mxu0
    %v5315 = vadd.f32 0.0, %v5314
    %v5316 = vpop.f32.mrf.mxu0
    %5317 = vmatprep.mubr.bf16.mxu0 0
    %5318 = vmatmul.mubr.bf16.gmra.mxu0 %v5137
    %v5319 = vpop.f32.mrf.mxu0
    %v5320 = vadd.f32 0.0, %v5319
    %v5321 = vpop.f32.mrf.mxu0
    %v5322 = vpop.f32.mrf.mxu0
    %v5323 = vadd.f32 0.0, %v5322
    %v5324 = vpop.f32.mrf.mxu0
    %5325 = vmatprep.mubr.bf16.mxu0 0
    %5326 = vmatmul.mubr.bf16.gmra.mxu0 %v5140
    %v5327 = vpop.f32.mrf.mxu0
    %v5328 = vadd.f32 0.0, %v5327
    %v5329 = vpop.f32.mrf.mxu0
    %v5330 = vpop.f32.mrf.mxu0
    %v5331 = vadd.f32 0.0, %v5330
    %v5332 = vpop.f32.mrf.mxu0
    %5333 = vmatprep.mubr.bf16.mxu0 0
    %5334 = vmatmul.mubr.bf16.gmra.mxu0 %v5143
    %v5335 = vpop.f32.mrf.mxu0
    %v5336 = vadd.f32 0.0, %v5335
    %v5337 = vpop.f32.mrf.mxu0
    %v5338 = vpop.f32.mrf.mxu0
    %v5339 = vadd.f32 0.0, %v5338
    %v5340 = vpop.f32.mrf.mxu0
    %5341 = vmatprep.mubr.bf16.mxu0 0
    %5342 = vmatmul.mubr.bf16.gmra.mxu0 %v5146
    %v5343 = vpop.f32.mrf.mxu0
    %v5344 = vadd.f32 0.0, %v5343
    %v5345 = vpop.f32.mrf.mxu0
    %v5346 = vpop.f32.mrf.mxu0
    %v5347 = vadd.f32 0.0, %v5346
    %v5348 = vpop.f32.mrf.mxu0
    %5349 = vmatprep.mubr.bf16.mxu0 0
    %5350 = vmatmul.mubr.bf16.gmra.mxu0 %v5149
    %v5351 = vpop.f32.mrf.mxu0
    %v5352 = vadd.f32 0.0, %v5351
    %v5353 = vpop.f32.mrf.mxu0
    %v5354 = vpop.f32.mrf.mxu0
    %v5355 = vadd.f32 0.0, %v5354
    %v5356 = vpop.f32.mrf.mxu0
    %5357 = vmatprep.mubr.bf16.mxu0 0
    %5358 = vmatmul.mubr.bf16.gmra.mxu0 %v5152
    %v5359 = vpop.f32.mrf.mxu0
    %v5360 = vadd.f32 0.0, %v5359
    %v5361 = vpop.f32.mrf.mxu0
    %v5362 = vpop.f32.mrf.mxu0
    %v5363 = vadd.f32 0.0, %v5362
    %v5364 = vpop.f32.mrf.mxu0
    %5365 = vmatprep.mubr.bf16.mxu0 0
    %5366 = vmatmul.mubr.bf16.gmra.mxu0 %v5155
    %v5367 = vpop.f32.mrf.mxu0
    %v5368 = vadd.f32 0.0, %v5367
    %v5369 = vpop.f32.mrf.mxu0
    %v5370 = vpop.f32.mrf.mxu0
    %v5371 = vadd.f32 0.0, %v5370
    %v5372 = vpop.f32.mrf.mxu0
    %5373 = vmatprep.mubr.bf16.mxu0 0
    %5374 = vmatmul.mubr.bf16.gmra.mxu0 %v5158
    %v5375 = vpop.f32.mrf.mxu0
    %v5376 = vadd.f32 0.0, %v5375
    %v5377 = vpop.f32.mrf.mxu0
    %v5378 = vpop.f32.mrf.mxu0
    %v5379 = vadd.f32 0.0, %v5378
    %v5380 = vpop.f32.mrf.mxu0
    %5381 = vmatprep.mubr.bf16.mxu0 0
    %5382 = vmatmul.mubr.bf16.gmra.mxu0 %v5161
    %v5383 = vpop.f32.mrf.mxu0
    %v5384 = vadd.f32 0.0, %v5383
    %v5385 = vpop.f32.mrf.mxu0
    %v5386 = vpop.f32.mrf.mxu0
    %v5387 = vadd.f32 0.0, %v5386
    %v5388 = vpop.f32.mrf.mxu0
    %5389 = vmatprep.mubr.bf16.mxu0 0
    %5390 = vmatmul.mubr.bf16.gmra.mxu0 %v5164
    %v5391 = vpop.f32.mrf.mxu0
    %v5392 = vadd.f32 0.0, %v5391
    %v5393 = vpop.f32.mrf.mxu0
    %v5394 = vpop.f32.mrf.mxu0
    %v5395 = vadd.f32 0.0, %v5394
    %v5396 = vpop.f32.mrf.mxu0
    %5397 = vmatprep.mubr.bf16.mxu0 0
    %5398 = vmatmul.mubr.bf16.gmra.mxu0 %v5167
    %v5399 = vpop.f32.mrf.mxu0
    %v5400 = vadd.f32 0.0, %v5399
    %v5401 = vpop.f32.mrf.mxu0
    %v5402 = vpop.f32.mrf.mxu0
    %v5403 = vadd.f32 0.0, %v5402
    %v5404 = vpop.f32.mrf.mxu0
    %5405 = vmatprep.mubr.bf16.mxu0 0
    %5406 = vmatmul.mubr.bf16.gmra.mxu0 %v5170
    %v5407 = vpop.f32.mrf.mxu0
    %v5408 = vadd.f32 0.0, %v5407
    %v5409 = vpop.f32.mrf.mxu0
    %v5410 = vpop.f32.mrf.mxu0
    %v5411 = vadd.f32 0.0, %v5410
    %v5412 = vpop.f32.mrf.mxu0
    %5413 = vmatprep.mubr.bf16.mxu0 0
    %5414 = vmatmul.mubr.bf16.gmra.mxu0 %v5173
    %v5415 = vpop.f32.mrf.mxu0
    %v5416 = vadd.f32 0.0, %v5415
    %v5417 = vpop.f32.mrf.mxu0
    %v5418 = vpop.f32.mrf.mxu0
    %v5419 = vadd.f32 0.0, %v5418
    %v5420 = vpop.f32.mrf.mxu0
    %5421 = vmatprep.mubr.bf16.mxu0 0
    %5422 = vmatmul.mubr.bf16.gmra.mxu0 %v5176
    %v5423 = vpop.f32.mrf.mxu0
    %v5424 = vadd.f32 0.0, %v5423
    %v5425 = vpop.f32.mrf.mxu0
    %v5426 = vpop.f32.mrf.mxu0
    %v5427 = vadd.f32 0.0, %v5426
    %v5428 = vpop.f32.mrf.mxu0
    %5429 = vmatprep.mubr.bf16.mxu0 0
    %5430 = vmatmul.mubr.bf16.gmra.mxu0 %v5179
    %v5431 = vpop.f32.mrf.mxu0
    %v5432 = vadd.f32 0.0, %v5431
    %v5433 = vpop.f32.mrf.mxu0
    %v5434 = vpop.f32.mrf.mxu0
    %v5435 = vadd.f32 0.0, %v5434
    %v5436 = vpop.f32.mrf.mxu0
    %5437 = vmatprep.mubr.bf16.mxu0 0
    %5438 = vmatmul.mubr.bf16.gmra.mxu0 %v5182
    %v5439 = vpop.f32.mrf.mxu0
    %v5440 = vadd.f32 0.0, %v5439
    %v5441 = vpop.f32.mrf.mxu0
    %v5442 = vpop.f32.mrf.mxu0
    %v5443 = vadd.f32 0.0, %v5442
    %v5444 = vpop.f32.mrf.mxu0
    %5445 = vmatprep.mubr.bf16.mxu0 0
    %5446 = vmatmul.mubr.bf16.gmra.mxu0 %v5185
    %v5447 = vpop.f32.mrf.mxu0
    %v5448 = vadd.f32 0.0, %v5447
    %v5449 = vpop.f32.mrf.mxu0
    %v5450 = vpop.f32.mrf.mxu0
    %v5451 = vadd.f32 0.0, %v5450
    %v5452 = vpop.f32.mrf.mxu0
    %5453 = vmatprep.mubr.bf16.mxu0 0
    %5454 = vmatmul.mubr.bf16.gmra.mxu0 %v5188
    %v5455 = vpop.f32.mrf.mxu0
    %v5456 = vadd.f32 0.0, %v5455
    %v5457 = vpop.f32.mrf.mxu0
    %v5458 = vpop.f32.mrf.mxu0
    %v5459 = vadd.f32 0.0, %v5458
    %v5460 = vpop.f32.mrf.mxu0
    %5461 = vmatprep.mubr.bf16.mxu0 0
    %5462 = vmatmul.mubr.bf16.gmra.mxu0 %v5191
    %v5463 = vpop.f32.mrf.mxu0
    %v5464 = vadd.f32 0.0, %v5463
    %v5465 = vpop.f32.mrf.mxu0
    %v5466 = vpop.f32.mrf.mxu0
    %v5467 = vadd.f32 0.0, %v5466
    %v5468 = vpop.f32.mrf.mxu0
    %5469 = vmatprep.mubr.bf16.mxu0 0
    %5470 = vmatmul.mubr.bf16.gmra.mxu0 %v5194
    %v5471 = vpop.f32.mrf.mxu0
    %v5472 = vadd.f32 0.0, %v5471
    %v5473 = vpop.f32.mrf.mxu0
    %v5474 = vpop.f32.mrf.mxu0
    %v5475 = vadd.f32 0.0, %v5474
    %v5476 = vpop.f32.mrf.mxu0
    %5477 = vmatprep.mubr.bf16.mxu0 0
    %5478 = vmatmul.mubr.bf16.gmra.mxu0 %v5197
    %v5479 = vpop.f32.mrf.mxu0
    %v5480 = vadd.f32 0.0, %v5479
    %v5481 = vpop.f32.mrf.mxu0
    %v5482 = vpop.f32.mrf.mxu0
    %v5483 = vadd.f32 0.0, %v5482
    %v5484 = vpop.f32.mrf.mxu0
    %5485 = vmatprep.mubr.bf16.mxu0 0
    %5486 = vmatmul.mubr.bf16.gmra.mxu0 %v5200
    %v5487 = vpop.f32.mrf.mxu0
    %v5488 = vadd.f32 0.0, %v5487
    %v5489 = vpop.f32.mrf.mxu0
    %v5490 = vpop.f32.mrf.mxu0
    %v5491 = vadd.f32 0.0, %v5490
    %v5492 = vpop.f32.mrf.mxu0
    %5493 = vdwg.mxu0
    %v5494 = vld [vmem:[#allocation2] sm:$0xff]
    %v5495 = vld [vmem:[#allocation2 + $0x8] sm:$0xff]
    %v5496 = vld [vmem:[#allocation2 + $0x10] sm:$0xff]
    %v5497 = vld [vmem:[#allocation2 + $0x18] sm:$0xff]
    %v5498 = vld [vmem:[#allocation2 + $0x20] sm:$0xff]
    %v5499 = vld [vmem:[#allocation2 + $0x28] sm:$0xff]
    %v5500 = vld [vmem:[#allocation2 + $0x30] sm:$0xff]
    %v5501 = vld [vmem:[#allocation2 + $0x38] sm:$0xff]
    %v5502 = vld [vmem:[#allocation2 + $0x40] sm:$0xff]
    %v5503 = vld [vmem:[#allocation2 + $0x48] sm:$0xff]
    %v5504 = vld [vmem:[#allocation2 + $0x50] sm:$0xff]
    %v5505 = vld [vmem:[#allocation2 + $0x58] sm:$0xff]
    %v5506 = vld [vmem:[#allocation2 + $0x60] sm:$0xff]
    %v5507 = vld [vmem:[#allocation2 + $0x68] sm:$0xff]
    %v5508 = vld [vmem:[#allocation2 + $0x70] sm:$0xff]
    %v5509 = vld [vmem:[#allocation2 + $0x78] sm:$0xff]
    %v5510 = vld [vmem:[#allocation2 + $0x80] sm:$0xff]
    %v5511 = vld [vmem:[#allocation2 + $0x88] sm:$0xff]
    %v5512 = vld [vmem:[#allocation2 + $0x90] sm:$0xff]
    %v5513 = vld [vmem:[#allocation2 + $0x98] sm:$0xff]
    %v5514 = vld [vmem:[#allocation2 + $0xa0] sm:$0xff]
    %v5515 = vld [vmem:[#allocation2 + $0xa8] sm:$0xff]
    %v5516 = vld [vmem:[#allocation2 + $0xb0] sm:$0xff]
    %v5517 = vld [vmem:[#allocation2 + $0xb8] sm:$0xff]
    %v5518 = vld [vmem:[#allocation2 + $0xc0] sm:$0xff]
    %v5519 = vld [vmem:[#allocation2 + $0xc8] sm:$0xff]
    %v5520 = vld [vmem:[#allocation2 + $0xd0] sm:$0xff]
    %v5521 = vld [vmem:[#allocation2 + $0xd8] sm:$0xff]
    %v5522 = vld [vmem:[#allocation2 + $0xe0] sm:$0xff]
    %v5523 = vld [vmem:[#allocation2 + $0xe8] sm:$0xff]
    %v5524 = vld [vmem:[#allocation2 + $0xf0] sm:$0xff]
    %v5525 = vld [vmem:[#allocation2 + $0xf8] sm:$0xff]
    %v5526 = vld [vmem:[#allocation2 + $0x100] sm:$0xff]
    %v5527 = vld [vmem:[#allocation2 + $0x108] sm:$0xff]
    %v5528 = vld [vmem:[#allocation2 + $0x110] sm:$0xff]
    %v5529 = vld [vmem:[#allocation2 + $0x118] sm:$0xff]
    %v5530 = vld [vmem:[#allocation2 + $0x120] sm:$0xff]
    %v5531 = vld [vmem:[#allocation2 + $0x128] sm:$0xff]
    %v5532 = vld [vmem:[#allocation2 + $0x130] sm:$0xff]
    %v5533 = vld [vmem:[#allocation2 + $0x138] sm:$0xff]
    %v5534 = vld [vmem:[#allocation2 + $0x140] sm:$0xff]
    %v5535 = vld [vmem:[#allocation2 + $0x148] sm:$0xff]
    %v5536 = vld [vmem:[#allocation2 + $0x150] sm:$0xff]
    %v5537 = vld [vmem:[#allocation2 + $0x158] sm:$0xff]
    %v5538 = vld [vmem:[#allocation2 + $0x160] sm:$0xff]
    %v5539 = vld [vmem:[#allocation2 + $0x168] sm:$0xff]
    %v5540 = vld [vmem:[#allocation2 + $0x170] sm:$0xff]
    %v5541 = vld [vmem:[#allocation2 + $0x178] sm:$0xff]
    %v5542 = vld [vmem:[#allocation2 + $0x180] sm:$0xff]
    %v5543 = vld [vmem:[#allocation2 + $0x188] sm:$0xff]
    %v5544 = vld [vmem:[#allocation2 + $0x190] sm:$0xff]
    %v5545 = vld [vmem:[#allocation2 + $0x198] sm:$0xff]
    %v5546 = vld [vmem:[#allocation2 + $0x1a0] sm:$0xff]
    %v5547 = vld [vmem:[#allocation2 + $0x1a8] sm:$0xff]
    %v5548 = vld [vmem:[#allocation2 + $0x1b0] sm:$0xff]
    %v5549 = vld [vmem:[#allocation2 + $0x1b8] sm:$0xff]
    %v5550 = vld [vmem:[#allocation2 + $0x1c0] sm:$0xff]
    %v5551 = vld [vmem:[#allocation2 + $0x1c8] sm:$0xff]
    %v5552 = vld [vmem:[#allocation2 + $0x1d0] sm:$0xff]
    %v5553 = vld [vmem:[#allocation2 + $0x1d8] sm:$0xff]
    %v5554 = vld [vmem:[#allocation2 + $0x1e0] sm:$0xff]
    %v5555 = vld [vmem:[#allocation2 + $0x1e8] sm:$0xff]
    %v5556 = vld [vmem:[#allocation2 + $0x1f0] sm:$0xff]
    %v5557 = vld [vmem:[#allocation2 + $0x1f8] sm:$0xff]
    %v5558 = vadd.f32 %v5494, %v5240
    %v5559 = vadd.f32 %v5495, %v5243
    %v5560 = vadd.f32 %v5496, %v5248
    %v5561 = vadd.f32 %v5497, %v5251
    %v5562 = vadd.f32 %v5498, %v5256
    %v5563 = vadd.f32 %v5499, %v5259
    %v5564 = vadd.f32 %v5500, %v5264
    %v5565 = vadd.f32 %v5501, %v5267
    %v5566 = vadd.f32 %v5502, %v5272
    %v5567 = vadd.f32 %v5503, %v5275
    %v5568 = vadd.f32 %v5504, %v5280
    %v5569 = vadd.f32 %v5505, %v5283
    %v5570 = vadd.f32 %v5506, %v5288
    %v5571 = vadd.f32 %v5507, %v5291
    %v5572 = vadd.f32 %v5508, %v5296
    %v5573 = vadd.f32 %v5509, %v5299
    %v5574 = vadd.f32 %v5510, %v5304
    %v5575 = vadd.f32 %v5511, %v5307
    %v5576 = vadd.f32 %v5512, %v5312
    %v5577 = vadd.f32 %v5513, %v5315
    %v5578 = vadd.f32 %v5514, %v5320
    %v5579 = vadd.f32 %v5515, %v5323
    %v5580 = vadd.f32 %v5516, %v5328
    %v5581 = vadd.f32 %v5517, %v5331
    %v5582 = vadd.f32 %v5518, %v5336
    %v5583 = vadd.f32 %v5519, %v5339
    %v5584 = vadd.f32 %v5520, %v5344
    %v5585 = vadd.f32 %v5521, %v5347
    %v5586 = vadd.f32 %v5522, %v5352
    %v5587 = vadd.f32 %v5523, %v5355
    %v5588 = vadd.f32 %v5524, %v5360
    %v5589 = vadd.f32 %v5525, %v5363
    %v5590 = vadd.f32 %v5526, %v5368
    %v5591 = vadd.f32 %v5527, %v5371
    %v5592 = vadd.f32 %v5528, %v5376
    %v5593 = vadd.f32 %v5529, %v5379
    %v5594 = vadd.f32 %v5530, %v5384
    %v5595 = vadd.f32 %v5531, %v5387
    %v5596 = vadd.f32 %v5532, %v5392
    %v5597 = vadd.f32 %v5533, %v5395
    %v5598 = vadd.f32 %v5534, %v5400
    %v5599 = vadd.f32 %v5535, %v5403
    %v5600 = vadd.f32 %v5536, %v5408
    %v5601 = vadd.f32 %v5537, %v5411
    %v5602 = vadd.f32 %v5538, %v5416
    %v5603 = vadd.f32 %v5539, %v5419
    %v5604 = vadd.f32 %v5540, %v5424
    %v5605 = vadd.f32 %v5541, %v5427
    %v5606 = vadd.f32 %v5542, %v5432
    %v5607 = vadd.f32 %v5543, %v5435
    %v5608 = vadd.f32 %v5544, %v5440
    %v5609 = vadd.f32 %v5545, %v5443
    %v5610 = vadd.f32 %v5546, %v5448
    %v5611 = vadd.f32 %v5547, %v5451
    %v5612 = vadd.f32 %v5548, %v5456
    %v5613 = vadd.f32 %v5549, %v5459
    %v5614 = vadd.f32 %v5550, %v5464
    %v5615 = vadd.f32 %v5551, %v5467
    %v5616 = vadd.f32 %v5552, %v5472
    %v5617 = vadd.f32 %v5553, %v5475
    %v5618 = vadd.f32 %v5554, %v5480
    %v5619 = vadd.f32 %v5555, %v5483
    %v5620 = vadd.f32 %v5556, %v5488
    %v5621 = vadd.f32 %v5557, %v5491
    %5622 = vst [vmem:[#allocation2] sm:$0xff] %v5558
    %5623 = vst [vmem:[#allocation2 + $0x8] sm:$0xff] %v5559
    %5624 = vst [vmem:[#allocation2 + $0x10] sm:$0xff] %v5560
    %5625 = vst [vmem:[#allocation2 + $0x18] sm:$0xff] %v5561
    %5626 = vst [vmem:[#allocation2 + $0x20] sm:$0xff] %v5562
    %5627 = vst [vmem:[#allocation2 + $0x28] sm:$0xff] %v5563
    %5628 = vst [vmem:[#allocation2 + $0x30] sm:$0xff] %v5564
    %5629 = vst [vmem:[#allocation2 + $0x38] sm:$0xff] %v5565
    %5630 = vst [vmem:[#allocation2 + $0x40] sm:$0xff] %v5566
    %5631 = vst [vmem:[#allocation2 + $0x48] sm:$0xff] %v5567
    %5632 = vst [vmem:[#allocation2 + $0x50] sm:$0xff] %v5568
    %5633 = vst [vmem:[#allocation2 + $0x58] sm:$0xff] %v5569
    %5634 = vst [vmem:[#allocation2 + $0x60] sm:$0xff] %v5570
    %5635 = vst [vmem:[#allocation2 + $0x68] sm:$0xff] %v5571
    %5636 = vst [vmem:[#allocation2 + $0x70] sm:$0xff] %v5572
    %5637 = vst [vmem:[#allocation2 + $0x78] sm:$0xff] %v5573
    %5638 = vst [vmem:[#allocation2 + $0x80] sm:$0xff] %v5574
    %5639 = vst [vmem:[#allocation2 + $0x88] sm:$0xff] %v5575
    %5640 = vst [vmem:[#allocation2 + $0x90] sm:$0xff] %v5576
    %5641 = vst [vmem:[#allocation2 + $0x98] sm:$0xff] %v5577
    %5642 = vst [vmem:[#allocation2 + $0xa0] sm:$0xff] %v5578
    %5643 = vst [vmem:[#allocation2 + $0xa8] sm:$0xff] %v5579
    %5644 = vst [vmem:[#allocation2 + $0xb0] sm:$0xff] %v5580
    %5645 = vst [vmem:[#allocation2 + $0xb8] sm:$0xff] %v5581
    %5646 = vst [vmem:[#allocation2 + $0xc0] sm:$0xff] %v5582
    %5647 = vst [vmem:[#allocation2 + $0xc8] sm:$0xff] %v5583
    %5648 = vst [vmem:[#allocation2 + $0xd0] sm:$0xff] %v5584
    %5649 = vst [vmem:[#allocation2 + $0xd8] sm:$0xff] %v5585
    %5650 = vst [vmem:[#allocation2 + $0xe0] sm:$0xff] %v5586
    %5651 = vst [vmem:[#allocation2 + $0xe8] sm:$0xff] %v5587
    %5652 = vst [vmem:[#allocation2 + $0xf0] sm:$0xff] %v5588
    %5653 = vst [vmem:[#allocation2 + $0xf8] sm:$0xff] %v5589
    %5654 = vst [vmem:[#allocation2 + $0x100] sm:$0xff] %v5590
    %5655 = vst [vmem:[#allocation2 + $0x108] sm:$0xff] %v5591
    %5656 = vst [vmem:[#allocation2 + $0x110] sm:$0xff] %v5592
    %5657 = vst [vmem:[#allocation2 + $0x118] sm:$0xff] %v5593
    %5658 = vst [vmem:[#allocation2 + $0x120] sm:$0xff] %v5594
    %5659 = vst [vmem:[#allocation2 + $0x128] sm:$0xff] %v5595
    %5660 = vst [vmem:[#allocation2 + $0x130] sm:$0xff] %v5596
    %5661 = vst [vmem:[#allocation2 + $0x138] sm:$0xff] %v5597
    %5662 = vst [vmem:[#allocation2 + $0x140] sm:$0xff] %v5598
    %5663 = vst [vmem:[#allocation2 + $0x148] sm:$0xff] %v5599
    %5664 = vst [vmem:[#allocation2 + $0x150] sm:$0xff] %v5600
    %5665 = vst [vmem:[#allocation2 + $0x158] sm:$0xff] %v5601
    %5666 = vst [vmem:[#allocation2 + $0x160] sm:$0xff] %v5602
    %5667 = vst [vmem:[#allocation2 + $0x168] sm:$0xff] %v5603
    %5668 = vst [vmem:[#allocation2 + $0x170] sm:$0xff] %v5604
    %5669 = vst [vmem:[#allocation2 + $0x178] sm:$0xff] %v5605
    %5670 = vst [vmem:[#allocation2 + $0x180] sm:$0xff] %v5606
    %5671 = vst [vmem:[#allocation2 + $0x188] sm:$0xff] %v5607
    %5672 = vst [vmem:[#allocation2 + $0x190] sm:$0xff] %v5608
    %5673 = vst [vmem:[#allocation2 + $0x198] sm:$0xff] %v5609
    %5674 = vst [vmem:[#allocation2 + $0x1a0] sm:$0xff] %v5610
    %5675 = vst [vmem:[#allocation2 + $0x1a8] sm:$0xff] %v5611
    %5676 = vst [vmem:[#allocation2 + $0x1b0] sm:$0xff] %v5612
    %5677 = vst [vmem:[#allocation2 + $0x1b8] sm:$0xff] %v5613
    %5678 = vst [vmem:[#allocation2 + $0x1c0] sm:$0xff] %v5614
    %5679 = vst [vmem:[#allocation2 + $0x1c8] sm:$0xff] %v5615
    %5680 = vst [vmem:[#allocation2 + $0x1d0] sm:$0xff] %v5616
    %5681 = vst [vmem:[#allocation2 + $0x1d8] sm:$0xff] %v5617
    %5682 = vst [vmem:[#allocation2 + $0x1e0] sm:$0xff] %v5618
    %5683 = vst [vmem:[#allocation2 + $0x1e8] sm:$0xff] %v5619
    %5684 = vst [vmem:[#allocation2 + $0x1f0] sm:$0xff] %v5620
    %5685 = vst [vmem:[#allocation2 + $0x1f8] sm:$0xff] %v5621
    %v5686 = vld [vmem:[%s3337] sm:$0xe]
    %v5687 = vld [vmem:[%s3337 + $0x4] sm:$0xf]
    %v5688 = vld [vmem:[%s3337 + $0x8] sm:$0x1]
    %v5689 = vld [vmem:[%s3337 + $0xc] sm:$0xe]
    %v5690 = vld [vmem:[%s3337 + $0x10] sm:$0xf]
    %v5691 = vld [vmem:[%s3337 + $0x14] sm:$0x1]
    %v5692 = vld [vmem:[%s3337 + $0x18] sm:$0xe]
    %v5693 = vld [vmem:[%s3337 + $0x1c] sm:$0xf]
    %v5694 = vld [vmem:[%s3337 + $0x20] sm:$0x1]
    %v5695 = vld [vmem:[%s3337 + $0x24] sm:$0xe]
    %v5696 = vld [vmem:[%s3337 + $0x28] sm:$0xf]
    %v5697 = vld [vmem:[%s3337 + $0x2c] sm:$0x1]
    %v5698 = vld [vmem:[%s3337 + $0x30] sm:$0xe]
    %v5699 = vld [vmem:[%s3337 + $0x34] sm:$0xf]
    %v5700 = vld [vmem:[%s3337 + $0x38] sm:$0x1]
    %v5701 = vld [vmem:[%s3337 + $0x3c] sm:$0xe]
    %v5702 = vld [vmem:[%s3337 + $0x40] sm:$0xf]
    %v5703 = vld [vmem:[%s3337 + $0x44] sm:$0x1]
    %v5704 = vld [vmem:[%s3337 + $0x48] sm:$0xe]
    %v5705 = vld [vmem:[%s3337 + $0x4c] sm:$0xf]
    %v5706 = vld [vmem:[%s3337 + $0x50] sm:$0x1]
    %v5707 = vld [vmem:[%s3337 + $0x54] sm:$0xe]
    %v5708 = vld [vmem:[%s3337 + $0x58] sm:$0xf]
    %v5709 = vld [vmem:[%s3337 + $0x5c] sm:$0x1]
    %v5710 = vld [vmem:[%s3337 + $0x60] sm:$0xe]
    %v5711 = vld [vmem:[%s3337 + $0x64] sm:$0xf]
    %v5712 = vld [vmem:[%s3337 + $0x68] sm:$0x1]
    %v5713 = vld [vmem:[%s3337 + $0x6c] sm:$0xe]
    %v5714 = vld [vmem:[%s3337 + $0x70] sm:$0xf]
    %v5715 = vld [vmem:[%s3337 + $0x74] sm:$0x1]
    %v5716 = vld [vmem:[%s3337 + $0x78] sm:$0xe]
    %v5717 = vld [vmem:[%s3337 + $0x7c] sm:$0xf]
    %v5718 = vld [vmem:[%s3337 + $0x80] sm:$0x1]
    %v5719 = vld [vmem:[%s3337 + $0x84] sm:$0xe]
    %v5720 = vld [vmem:[%s3337 + $0x88] sm:$0xf]
    %v5721 = vld [vmem:[%s3337 + $0x8c] sm:$0x1]
    %v5722 = vld [vmem:[%s3337 + $0x90] sm:$0xe]
    %v5723 = vld [vmem:[%s3337 + $0x94] sm:$0xf]
    %v5724 = vld [vmem:[%s3337 + $0x98] sm:$0x1]
    %v5725 = vld [vmem:[%s3337 + $0x9c] sm:$0xe]
    %v5726 = vld [vmem:[%s3337 + $0xa0] sm:$0xf]
    %v5727 = vld [vmem:[%s3337 + $0xa4] sm:$0x1]
    %v5728 = vld [vmem:[%s3337 + $0xa8] sm:$0xe]
    %v5729 = vld [vmem:[%s3337 + $0xac] sm:$0xf]
    %v5730 = vld [vmem:[%s3337 + $0xb0] sm:$0x1]
    %v5731 = vld [vmem:[%s3337 + $0xb4] sm:$0xe]
    %v5732 = vld [vmem:[%s3337 + $0xb8] sm:$0xf]
    %v5733 = vld [vmem:[%s3337 + $0xbc] sm:$0x1]
    %v5734 = vld [vmem:[%s3337 + $0xd8] sm:$0xe]
    %v5735 = vld [vmem:[%s3337 + $0xdc] sm:$0xf]
    %v5736 = vld [vmem:[%s3337 + $0xe0] sm:$0x1]
    %v5737 = vld [vmem:[%s3337 + $0xe4] sm:$0xe]
    %v5738 = vld [vmem:[%s3337 + $0xe8] sm:$0xf]
    %v5739 = vld [vmem:[%s3337 + $0xec] sm:$0x1]
    %v5740 = vld [vmem:[%s3337 + $0xf0] sm:$0xe]
    %v5741 = vld [vmem:[%s3337 + $0xf4] sm:$0xf]
    %v5742 = vld [vmem:[%s3337 + $0xf8] sm:$0x1]
    %v5743 = vld [vmem:[%s3337 + $0xfc] sm:$0xe]
    %v5744 = vld [vmem:[%s3337 + $0x100] sm:$0xf]
    %v5745 = vld [vmem:[%s3337 + $0x104] sm:$0x1]
    %v5746 = vld [vmem:[%s3337 + $0x108] sm:$0xe]
    %v5747 = vld [vmem:[%s3337 + $0x10c] sm:$0xf]
    %v5748 = vld [vmem:[%s3337 + $0x110] sm:$0x1]
    %v5749 = vld [vmem:[%s3337 + $0x114] sm:$0xe]
    %v5750 = vld [vmem:[%s3337 + $0x118] sm:$0xf]
    %v5751 = vld [vmem:[%s3337 + $0x11c] sm:$0x1]
    %v5752 = vld [vmem:[%s3337 + $0x120] sm:$0xe]
    %v5753 = vld [vmem:[%s3337 + $0x124] sm:$0xf]
    %v5754 = vld [vmem:[%s3337 + $0x128] sm:$0x1]
    %v5755 = vld [vmem:[%s3337 + $0x12c] sm:$0xe]
    %v5756 = vld [vmem:[%s3337 + $0x130] sm:$0xf]
    %v5757 = vld [vmem:[%s3337 + $0x134] sm:$0x1]
    %v5758 = vld [vmem:[%s3337 + $0x138] sm:$0xe]
    %v5759 = vld [vmem:[%s3337 + $0x13c] sm:$0xf]
    %v5760 = vld [vmem:[%s3337 + $0x140] sm:$0x1]
    %v5761 = vld [vmem:[%s3337 + $0x144] sm:$0xe]
    %v5762 = vld [vmem:[%s3337 + $0x148] sm:$0xf]
    %v5763 = vld [vmem:[%s3337 + $0x14c] sm:$0x1]
    %v5764 = vld [vmem:[%s3337 + $0x150] sm:$0xe]
    %v5765 = vld [vmem:[%s3337 + $0x154] sm:$0xf]
    %v5766 = vld [vmem:[%s3337 + $0x158] sm:$0x1]
    %v5767 = vld [vmem:[%s3337 + $0x15c] sm:$0xe]
    %v5768 = vld [vmem:[%s3337 + $0x160] sm:$0xf]
    %v5769 = vld [vmem:[%s3337 + $0x164] sm:$0x1]
    %v5770 = vld [vmem:[%s3337 + $0x168] sm:$0xe]
    %v5771 = vld [vmem:[%s3337 + $0x16c] sm:$0xf]
    %v5772 = vld [vmem:[%s3337 + $0x170] sm:$0x1]
    %v5773 = vld [vmem:[%s3337 + $0x174] sm:$0xe]
    %v5774 = vld [vmem:[%s3337 + $0x178] sm:$0xf]
    %v5775 = vld [vmem:[%s3337 + $0x17c] sm:$0x1]
    %v5776 = vld [vmem:[%s3337 + $0x180] sm:$0xe]
    %v5777 = vld [vmem:[%s3337 + $0x184] sm:$0xf]
    %v5778 = vld [vmem:[%s3337 + $0x188] sm:$0x1]
    %v5779 = vld [vmem:[%s3337 + $0x18c] sm:$0xe]
    %v5780 = vld [vmem:[%s3337 + $0x190] sm:$0xf]
    %v5781 = vld [vmem:[%s3337 + $0x194] sm:$0x1]
    %v5878 = vrot.slane %v5686, 5
    %v5879 = vrot.slane %v5878, 4
    %v5880 = vrot.slane %v5687, 5
    %v5881 = vsel %vm2434, %v5879, %v5880
    %v5882 = vrot.slane %v5880, 4
    %v5883 = vrot.slane %v5688, 5
    %v5884 = vsel %vm2434, %v5882, %v5883
    %v5885 = vrot.slane %v5689, 5
    %v5886 = vrot.slane %v5885, 4
    %v5887 = vrot.slane %v5690, 5
    %v5888 = vsel %vm2434, %v5886, %v5887
    %v5889 = vrot.slane %v5887, 4
    %v5890 = vrot.slane %v5691, 5
    %v5891 = vsel %vm2434, %v5889, %v5890
    %v5892 = vrot.slane %v5692, 5
    %v5893 = vrot.slane %v5892, 4
    %v5894 = vrot.slane %v5693, 5
    %v5895 = vsel %vm2434, %v5893, %v5894
    %v5896 = vrot.slane %v5894, 4
    %v5897 = vrot.slane %v5694, 5
    %v5898 = vsel %vm2434, %v5896, %v5897
    %v5899 = vrot.slane %v5695, 5
    %v5900 = vrot.slane %v5899, 4
    %v5901 = vrot.slane %v5696, 5
    %v5902 = vsel %vm2434, %v5900, %v5901
    %v5903 = vrot.slane %v5901, 4
    %v5904 = vrot.slane %v5697, 5
    %v5905 = vsel %vm2434, %v5903, %v5904
    %v5906 = vrot.slane %v5698, 5
    %v5907 = vrot.slane %v5906, 4
    %v5908 = vrot.slane %v5699, 5
    %v5909 = vsel %vm2434, %v5907, %v5908
    %v5910 = vrot.slane %v5908, 4
    %v5911 = vrot.slane %v5700, 5
    %v5912 = vsel %vm2434, %v5910, %v5911
    %v5913 = vrot.slane %v5701, 5
    %v5914 = vrot.slane %v5913, 4
    %v5915 = vrot.slane %v5702, 5
    %v5916 = vsel %vm2434, %v5914, %v5915
    %v5917 = vrot.slane %v5915, 4
    %v5918 = vrot.slane %v5703, 5
    %v5919 = vsel %vm2434, %v5917, %v5918
    %v5920 = vrot.slane %v5704, 5
    %v5921 = vrot.slane %v5920, 4
    %v5922 = vrot.slane %v5705, 5
    %v5923 = vsel %vm2434, %v5921, %v5922
    %v5924 = vrot.slane %v5922, 4
    %v5925 = vrot.slane %v5706, 5
    %v5926 = vsel %vm2434, %v5924, %v5925
    %v5927 = vrot.slane %v5707, 5
    %v5928 = vrot.slane %v5927, 4
    %v5929 = vrot.slane %v5708, 5
    %v5930 = vsel %vm2434, %v5928, %v5929
    %v5931 = vrot.slane %v5929, 4
    %v5932 = vrot.slane %v5709, 5
    %v5933 = vsel %vm2434, %v5931, %v5932
    %v5934 = vrot.slane %v5710, 5
    %v5935 = vrot.slane %v5934, 4
    %v5936 = vrot.slane %v5711, 5
    %v5937 = vsel %vm2434, %v5935, %v5936
    %v5938 = vrot.slane %v5936, 4
    %v5939 = vrot.slane %v5712, 5
    %v5940 = vsel %vm2434, %v5938, %v5939
    %v5941 = vrot.slane %v5713, 5
    %v5942 = vrot.slane %v5941, 4
    %v5943 = vrot.slane %v5714, 5
    %v5944 = vsel %vm2434, %v5942, %v5943
    %v5945 = vrot.slane %v5943, 4
    %v5946 = vrot.slane %v5715, 5
    %v5947 = vsel %vm2434, %v5945, %v5946
    %v5948 = vrot.slane %v5716, 5
    %v5949 = vrot.slane %v5948, 4
    %v5950 = vrot.slane %v5717, 5
    %v5951 = vsel %vm2434, %v5949, %v5950
    %v5952 = vrot.slane %v5950, 4
    %v5953 = vrot.slane %v5718, 5
    %v5954 = vsel %vm2434, %v5952, %v5953
    %v5955 = vrot.slane %v5719, 5
    %v5956 = vrot.slane %v5955, 4
    %v5957 = vrot.slane %v5720, 5
    %v5958 = vsel %vm2434, %v5956, %v5957
    %v5959 = vrot.slane %v5957, 4
    %v5960 = vrot.slane %v5721, 5
    %v5961 = vsel %vm2434, %v5959, %v5960
    %v5962 = vrot.slane %v5722, 5
    %v5963 = vrot.slane %v5962, 4
    %v5964 = vrot.slane %v5723, 5
    %v5965 = vsel %vm2434, %v5963, %v5964
    %v5966 = vrot.slane %v5964, 4
    %v5967 = vrot.slane %v5724, 5
    %v5968 = vsel %vm2434, %v5966, %v5967
    %v5969 = vrot.slane %v5725, 5
    %v5970 = vrot.slane %v5969, 4
    %v5971 = vrot.slane %v5726, 5
    %v5972 = vsel %vm2434, %v5970, %v5971
    %v5973 = vrot.slane %v5971, 4
    %v5974 = vrot.slane %v5727, 5
    %v5975 = vsel %vm2434, %v5973, %v5974
    %v5976 = vrot.slane %v5728, 5
    %v5977 = vrot.slane %v5976, 4
    %v5978 = vrot.slane %v5729, 5
    %v5979 = vsel %vm2434, %v5977, %v5978
    %v5980 = vrot.slane %v5978, 4
    %v5981 = vrot.slane %v5730, 5
    %v5982 = vsel %vm2434, %v5980, %v5981
    %v5983 = vrot.slane %v5731, 5
    %v5984 = vrot.slane %v5983, 4
    %v5985 = vrot.slane %v5732, 5
    %v5986 = vsel %vm2434, %v5984, %v5985
    %v5987 = vrot.slane %v5985, 4
    %v5988 = vrot.slane %v5733, 5
    %v5989 = vsel %vm2434, %v5987, %v5988
    %v5990 = vrot.slane %v5734, 5
    %v5991 = vrot.slane %v5990, 4
    %v5992 = vrot.slane %v5735, 5
    %v5993 = vsel %vm2434, %v5991, %v5992
    %v5994 = vrot.slane %v5992, 4
    %v5995 = vrot.slane %v5736, 5
    %v5996 = vsel %vm2434, %v5994, %v5995
    %v5997 = vrot.slane %v5737, 5
    %v5998 = vrot.slane %v5997, 4
    %v5999 = vrot.slane %v5738, 5
    %v6000 = vsel %vm2434, %v5998, %v5999
    %v6001 = vrot.slane %v5999, 4
    %v6002 = vrot.slane %v5739, 5
    %v6003 = vsel %vm2434, %v6001, %v6002
    %v6004 = vrot.slane %v5740, 5
    %v6005 = vrot.slane %v6004, 4
    %v6006 = vrot.slane %v5741, 5
    %v6007 = vsel %vm2434, %v6005, %v6006
    %v6008 = vrot.slane %v6006, 4
    %v6009 = vrot.slane %v5742, 5
    %v6010 = vsel %vm2434, %v6008, %v6009
    %v6011 = vrot.slane %v5743, 5
    %v6012 = vrot.slane %v6011, 4
    %v6013 = vrot.slane %v5744, 5
    %v6014 = vsel %vm2434, %v6012, %v6013
    %v6015 = vrot.slane %v6013, 4
    %v6016 = vrot.slane %v5745, 5
    %v6017 = vsel %vm2434, %v6015, %v6016
    %v6018 = vrot.slane %v5746, 5
    %v6019 = vrot.slane %v6018, 4
    %v6020 = vrot.slane %v5747, 5
    %v6021 = vsel %vm2434, %v6019, %v6020
    %v6022 = vrot.slane %v6020, 4
    %v6023 = vrot.slane %v5748, 5
    %v6024 = vsel %vm2434, %v6022, %v6023
    %v6025 = vrot.slane %v5749, 5
    %v6026 = vrot.slane %v6025, 4
    %v6027 = vrot.slane %v5750, 5
    %v6028 = vsel %vm2434, %v6026, %v6027
    %v6029 = vrot.slane %v6027, 4
    %v6030 = vrot.slane %v5751, 5
    %v6031 = vsel %vm2434, %v6029, %v6030
    %v6032 = vrot.slane %v5752, 5
    %v6033 = vrot.slane %v6032, 4
    %v6034 = vrot.slane %v5753, 5
    %v6035 = vsel %vm2434, %v6033, %v6034
    %v6036 = vrot.slane %v6034, 4
    %v6037 = vrot.slane %v5754, 5
    %v6038 = vsel %vm2434, %v6036, %v6037
    %v6039 = vrot.slane %v5755, 5
    %v6040 = vrot.slane %v6039, 4
    %v6041 = vrot.slane %v5756, 5
    %v6042 = vsel %vm2434, %v6040, %v6041
    %v6043 = vrot.slane %v6041, 4
    %v6044 = vrot.slane %v5757, 5
    %v6045 = vsel %vm2434, %v6043, %v6044
    %v6046 = vrot.slane %v5758, 5
    %v6047 = vrot.slane %v6046, 4
    %v6048 = vrot.slane %v5759, 5
    %v6049 = vsel %vm2434, %v6047, %v6048
    %v6050 = vrot.slane %v6048, 4
    %v6051 = vrot.slane %v5760, 5
    %v6052 = vsel %vm2434, %v6050, %v6051
    %v6053 = vrot.slane %v5761, 5
    %v6054 = vrot.slane %v6053, 4
    %v6055 = vrot.slane %v5762, 5
    %v6056 = vsel %vm2434, %v6054, %v6055
    %v6057 = vrot.slane %v6055, 4
    %v6058 = vrot.slane %v5763, 5
    %v6059 = vsel %vm2434, %v6057, %v6058
    %v6060 = vrot.slane %v5764, 5
    %v6061 = vrot.slane %v6060, 4
    %v6062 = vrot.slane %v5765, 5
    %v6063 = vsel %vm2434, %v6061, %v6062
    %v6064 = vrot.slane %v6062, 4
    %v6065 = vrot.slane %v5766, 5
    %v6066 = vsel %vm2434, %v6064, %v6065
    %v6067 = vrot.slane %v5767, 5
    %v6068 = vrot.slane %v6067, 4
    %v6069 = vrot.slane %v5768, 5
    %v6070 = vsel %vm2434, %v6068, %v6069
    %v6071 = vrot.slane %v6069, 4
    %v6072 = vrot.slane %v5769, 5
    %v6073 = vsel %vm2434, %v6071, %v6072
    %v6074 = vrot.slane %v5770, 5
    %v6075 = vrot.slane %v6074, 4
    %v6076 = vrot.slane %v5771, 5
    %v6077 = vsel %vm2434, %v6075, %v6076
    %v6078 = vrot.slane %v6076, 4
    %v6079 = vrot.slane %v5772, 5
    %v6080 = vsel %vm2434, %v6078, %v6079
    %v6081 = vrot.slane %v5773, 5
    %v6082 = vrot.slane %v6081, 4
    %v6083 = vrot.slane %v5774, 5
    %v6084 = vsel %vm2434, %v6082, %v6083
    %v6085 = vrot.slane %v6083, 4
    %v6086 = vrot.slane %v5775, 5
    %v6087 = vsel %vm2434, %v6085, %v6086
    %v6088 = vrot.slane %v5776, 5
    %v6089 = vrot.slane %v6088, 4
    %v6090 = vrot.slane %v5777, 5
    %v6091 = vsel %vm2434, %v6089, %v6090
    %v6092 = vrot.slane %v6090, 4
    %v6093 = vrot.slane %v5778, 5
    %v6094 = vsel %vm2434, %v6092, %v6093
    %v6095 = vrot.slane %v5779, 5
    %v6096 = vrot.slane %v6095, 4
    %v6097 = vrot.slane %v5780, 5
    %v6098 = vsel %vm2434, %v6096, %v6097
    %v6099 = vrot.slane %v6097, 4
    %v6100 = vrot.slane %v5781, 5
    %v6101 = vsel %vm2434, %v6099, %v6100
    %s6102 = scalar_lea.vmem %s1, 10
    %v6103 = vld [vmem:[%s6102] sm:$0x3]
    %v6104 = vunpack.c.l.b16 %v5881
    %v6105 = vunpack.c.l.b16 %v5884
    %v6106 = vunpack.c.l.b16 %v5888
    %v6107 = vunpack.c.l.b16 %v5891
    %v6108 = vunpack.c.l.b16 %v5895
    %v6109 = vunpack.c.l.b16 %v5898
    %v6110 = vunpack.c.l.b16 %v5902
    %v6111 = vunpack.c.l.b16 %v5905
    %v6112 = vunpack.c.l.b16 %v5909
    %v6113 = vunpack.c.l.b16 %v5912
    %v6114 = vunpack.c.l.b16 %v5916
    %v6115 = vunpack.c.l.b16 %v5919
    %v6116 = vunpack.c.l.b16 %v5923
    %v6117 = vunpack.c.l.b16 %v5926
    %v6118 = vunpack.c.l.b16 %v5930
    %v6119 = vunpack.c.l.b16 %v5933
    %v6120 = vunpack.c.l.b16 %v5937
    %v6121 = vunpack.c.l.b16 %v5940
    %v6122 = vunpack.c.l.b16 %v5944
    %v6123 = vunpack.c.l.b16 %v5947
    %v6124 = vunpack.c.l.b16 %v5951
    %v6125 = vunpack.c.l.b16 %v5954
    %v6126 = vunpack.c.l.b16 %v5958
    %v6127 = vunpack.c.l.b16 %v5961
    %v6128 = vunpack.c.l.b16 %v5965
    %v6129 = vunpack.c.l.b16 %v5968
    %v6130 = vunpack.c.l.b16 %v5972
    %v6131 = vunpack.c.l.b16 %v5975
    %v6132 = vunpack.c.l.b16 %v5979
    %v6133 = vunpack.c.l.b16 %v5982
    %v6134 = vunpack.c.l.b16 %v5986
    %v6135 = vunpack.c.l.b16 %v5989
    %v6136 = vunpack.c.l.b16 %v5993
    %v6137 = vunpack.c.l.b16 %v5996
    %v6138 = vunpack.c.l.b16 %v6000
    %v6139 = vunpack.c.l.b16 %v6003
    %v6140 = vunpack.c.l.b16 %v6007
    %v6141 = vunpack.c.l.b16 %v6010
    %v6142 = vunpack.c.l.b16 %v6014
    %v6143 = vunpack.c.l.b16 %v6017
    %v6144 = vunpack.c.l.b16 %v6021
    %v6145 = vunpack.c.l.b16 %v6024
    %v6146 = vunpack.c.l.b16 %v6028
    %v6147 = vunpack.c.l.b16 %v6031
    %v6148 = vunpack.c.l.b16 %v6035
    %v6149 = vunpack.c.l.b16 %v6038
    %v6150 = vunpack.c.l.b16 %v6042
    %v6151 = vunpack.c.l.b16 %v6045
    %v6152 = vunpack.c.l.b16 %v6049
    %v6153 = vunpack.c.l.b16 %v6052
    %v6154 = vunpack.c.l.b16 %v6056
    %v6155 = vunpack.c.l.b16 %v6059
    %v6156 = vunpack.c.l.b16 %v6063
    %v6157 = vunpack.c.l.b16 %v6066
    %v6158 = vunpack.c.l.b16 %v6070
    %v6159 = vunpack.c.l.b16 %v6073
    %v6160 = vunpack.c.l.b16 %v6077
    %v6161 = vunpack.c.l.b16 %v6080
    %v6162 = vunpack.c.l.b16 %v6084
    %v6163 = vunpack.c.l.b16 %v6087
    %v6164 = vunpack.c.l.b16 %v6091
    %v6165 = vunpack.c.l.b16 %v6094
    %v6166 = vunpack.c.l.b16 %v6098
    %v6167 = vunpack.c.l.b16 %v6101
    %v6168 = vpack.c.b16 %v6105, %v6104
    %v6169 = vpack.c.b16 %v6107, %v6106
    %v6170 = vpack.c.b16 %v6109, %v6108
    %v6171 = vpack.c.b16 %v6111, %v6110
    %v6172 = vpack.c.b16 %v6113, %v6112
    %v6173 = vpack.c.b16 %v6115, %v6114
    %v6174 = vpack.c.b16 %v6117, %v6116
    %v6175 = vpack.c.b16 %v6119, %v6118
    %v6176 = vpack.c.b16 %v6121, %v6120
    %v6177 = vpack.c.b16 %v6123, %v6122
    %v6178 = vpack.c.b16 %v6125, %v6124
    %v6179 = vpack.c.b16 %v6127, %v6126
    %v6180 = vpack.c.b16 %v6129, %v6128
    %v6181 = vpack.c.b16 %v6131, %v6130
    %v6182 = vpack.c.b16 %v6133, %v6132
    %v6183 = vpack.c.b16 %v6135, %v6134
    %v6184 = vpack.c.b16 %v6137, %v6136
    %v6185 = vpack.c.b16 %v6139, %v6138
    %v6186 = vpack.c.b16 %v6141, %v6140
    %v6187 = vpack.c.b16 %v6143, %v6142
    %v6188 = vpack.c.b16 %v6145, %v6144
    %v6189 = vpack.c.b16 %v6147, %v6146
    %v6190 = vpack.c.b16 %v6149, %v6148
    %v6191 = vpack.c.b16 %v6151, %v6150
    %v6192 = vpack.c.b16 %v6153, %v6152
    %v6193 = vpack.c.b16 %v6155, %v6154
    %v6194 = vpack.c.b16 %v6157, %v6156
    %v6195 = vpack.c.b16 %v6159, %v6158
    %v6196 = vpack.c.b16 %v6161, %v6160
    %v6197 = vpack.c.b16 %v6163, %v6162
    %v6198 = vpack.c.b16 %v6165, %v6164
    %v6199 = vpack.c.b16 %v6167, %v6166
    %v6201 = vsel %vm241, %v6168, 0
    %v6204 = vsel %vm241, %v6169, 0
    %v6207 = vsel %vm241, %v6170, 0
    %v6210 = vsel %vm241, %v6171, 0
    %v6213 = vsel %vm241, %v6172, 0
    %v6216 = vsel %vm241, %v6173, 0
    %v6219 = vsel %vm241, %v6174, 0
    %v6222 = vsel %vm241, %v6175, 0
    %v6225 = vsel %vm241, %v6176, 0
    %v6228 = vsel %vm241, %v6177, 0
    %v6231 = vsel %vm241, %v6178, 0
    %v6234 = vsel %vm241, %v6179, 0
    %v6237 = vsel %vm241, %v6180, 0
    %v6240 = vsel %vm241, %v6181, 0
    %v6243 = vsel %vm241, %v6182, 0
    %v6246 = vsel %vm241, %v6183, 0
    %v6249 = vsel %vm241, %v6184, 0
    %v6252 = vsel %vm241, %v6185, 0
    %v6255 = vsel %vm241, %v6186, 0
    %v6258 = vsel %vm241, %v6187, 0
    %v6261 = vsel %vm241, %v6188, 0
    %v6264 = vsel %vm241, %v6189, 0
    %v6267 = vsel %vm241, %v6190, 0
    %v6270 = vsel %vm241, %v6191, 0
    %v6273 = vsel %vm241, %v6192, 0
    %v6276 = vsel %vm241, %v6193, 0
    %v6279 = vsel %vm241, %v6194, 0
    %v6282 = vsel %vm241, %v6195, 0
    %v6285 = vsel %vm241, %v6196, 0
    %v6288 = vsel %vm241, %v6197, 0
    %v6291 = vsel %vm241, %v6198, 0
    %v6294 = vsel %vm241, %v6199, 0
    %v6297 = vsel %vm338, %v6103, 0
    %6299 = vmatprep.subr.bf16.mxu0 0
    %6300 = vmatpush1.bf16.msra.mxu0 0
    %6301 = vmatprep.subr.bf16.mxu0 0
    %6302 = vmatpush1.bf16.msra.mxu0 0
    %6303 = vmatprep.subr.bf16.mxu0 0
    %6304 = vmatpush1.bf16.msra.mxu0 0
    %6305 = vmatprep.subr.bf16.mxu0 0
    %6306 = vmatpush1.bf16.msra.mxu0 0
    %6307 = vmatprep.subr.bf16.mxu0 0
    %6308 = vmatpush1.bf16.msra.mxu0 0
    %6309 = vmatprep.subr.bf16.mxu0 0
    %6310 = vmatpush1.bf16.msra.mxu0 0
    %6311 = vmatprep.subr.bf16.mxu0 0
    %6312 = vmatpush1.bf16.msra.mxu0 0
    %6313 = vmatprep.subr.bf16.mxu0 0
    %6314 = vmatpush1.bf16.msra.mxu0 %v6297
    %6315 = vmatprep.subr.bf16.mxu0 0
    %6316 = vmatpush2.bf16.msra.mxu0 0
    %6317 = vmatprep.subr.bf16.mxu0 0
    %6318 = vmatpush2.bf16.msra.mxu0 0
    %6319 = vmatprep.subr.bf16.mxu0 0
    %6320 = vmatpush2.bf16.msra.mxu0 0
    %6321 = vmatprep.subr.bf16.mxu0 0
    %6322 = vmatpush2.bf16.msra.mxu0 0
    %6323 = vmatprep.subr.bf16.mxu0 0
    %6324 = vmatpush2.bf16.msra.mxu0 0
    %6325 = vmatprep.subr.bf16.mxu0 0
    %6326 = vmatpush2.bf16.msra.mxu0 0
    %6327 = vmatprep.subr.bf16.mxu0 0
    %6328 = vmatpush2.bf16.msra.mxu0 0
    %6329 = vmatprep.subr.bf16.mxu0 0
    %6330 = vmatpush2.bf16.msra.mxu0 0
    %6331 = vmatprep.mubr.bf16.mxu0 0
    %6332 = vmatmul.mubr.bf16.gmra.mxu0 %v6201
    %v6333 = vpop.f32.mrf.mxu0
    %v6334 = vadd.f32 0.0, %v6333
    %v6335 = vpop.f32.mrf.mxu0
    %v6336 = vpop.f32.mrf.mxu0
    %v6337 = vadd.f32 0.0, %v6336
    %v6338 = vpop.f32.mrf.mxu0
    %6339 = vmatprep.mubr.bf16.mxu0 0
    %6340 = vmatmul.mubr.bf16.gmra.mxu0 %v6204
    %v6341 = vpop.f32.mrf.mxu0
    %v6342 = vadd.f32 0.0, %v6341
    %v6343 = vpop.f32.mrf.mxu0
    %v6344 = vpop.f32.mrf.mxu0
    %v6345 = vadd.f32 0.0, %v6344
    %v6346 = vpop.f32.mrf.mxu0
    %6347 = vmatprep.mubr.bf16.mxu0 0
    %6348 = vmatmul.mubr.bf16.gmra.mxu0 %v6207
    %v6349 = vpop.f32.mrf.mxu0
    %v6350 = vadd.f32 0.0, %v6349
    %v6351 = vpop.f32.mrf.mxu0
    %v6352 = vpop.f32.mrf.mxu0
    %v6353 = vadd.f32 0.0, %v6352
    %v6354 = vpop.f32.mrf.mxu0
    %6355 = vmatprep.mubr.bf16.mxu0 0
    %6356 = vmatmul.mubr.bf16.gmra.mxu0 %v6210
    %v6357 = vpop.f32.mrf.mxu0
    %v6358 = vadd.f32 0.0, %v6357
    %v6359 = vpop.f32.mrf.mxu0
    %v6360 = vpop.f32.mrf.mxu0
    %v6361 = vadd.f32 0.0, %v6360
    %v6362 = vpop.f32.mrf.mxu0
    %6363 = vmatprep.mubr.bf16.mxu0 0
    %6364 = vmatmul.mubr.bf16.gmra.mxu0 %v6213
    %v6365 = vpop.f32.mrf.mxu0
    %v6366 = vadd.f32 0.0, %v6365
    %v6367 = vpop.f32.mrf.mxu0
    %v6368 = vpop.f32.mrf.mxu0
    %v6369 = vadd.f32 0.0, %v6368
    %v6370 = vpop.f32.mrf.mxu0
    %6371 = vmatprep.mubr.bf16.mxu0 0
    %6372 = vmatmul.mubr.bf16.gmra.mxu0 %v6216
    %v6373 = vpop.f32.mrf.mxu0
    %v6374 = vadd.f32 0.0, %v6373
    %v6375 = vpop.f32.mrf.mxu0
    %v6376 = vpop.f32.mrf.mxu0
    %v6377 = vadd.f32 0.0, %v6376
    %v6378 = vpop.f32.mrf.mxu0
    %6379 = vmatprep.mubr.bf16.mxu0 0
    %6380 = vmatmul.mubr.bf16.gmra.mxu0 %v6219
    %v6381 = vpop.f32.mrf.mxu0
    %v6382 = vadd.f32 0.0, %v6381
    %v6383 = vpop.f32.mrf.mxu0
    %v6384 = vpop.f32.mrf.mxu0
    %v6385 = vadd.f32 0.0, %v6384
    %v6386 = vpop.f32.mrf.mxu0
    %6387 = vmatprep.mubr.bf16.mxu0 0
    %6388 = vmatmul.mubr.bf16.gmra.mxu0 %v6222
    %v6389 = vpop.f32.mrf.mxu0
    %v6390 = vadd.f32 0.0, %v6389
    %v6391 = vpop.f32.mrf.mxu0
    %v6392 = vpop.f32.mrf.mxu0
    %v6393 = vadd.f32 0.0, %v6392
    %v6394 = vpop.f32.mrf.mxu0
    %6395 = vmatprep.mubr.bf16.mxu0 0
    %6396 = vmatmul.mubr.bf16.gmra.mxu0 %v6225
    %v6397 = vpop.f32.mrf.mxu0
    %v6398 = vadd.f32 0.0, %v6397
    %v6399 = vpop.f32.mrf.mxu0
    %v6400 = vpop.f32.mrf.mxu0
    %v6401 = vadd.f32 0.0, %v6400
    %v6402 = vpop.f32.mrf.mxu0
    %6403 = vmatprep.mubr.bf16.mxu0 0
    %6404 = vmatmul.mubr.bf16.gmra.mxu0 %v6228
    %v6405 = vpop.f32.mrf.mxu0
    %v6406 = vadd.f32 0.0, %v6405
    %v6407 = vpop.f32.mrf.mxu0
    %v6408 = vpop.f32.mrf.mxu0
    %v6409 = vadd.f32 0.0, %v6408
    %v6410 = vpop.f32.mrf.mxu0
    %6411 = vmatprep.mubr.bf16.mxu0 0
    %6412 = vmatmul.mubr.bf16.gmra.mxu0 %v6231
    %v6413 = vpop.f32.mrf.mxu0
    %v6414 = vadd.f32 0.0, %v6413
    %v6415 = vpop.f32.mrf.mxu0
    %v6416 = vpop.f32.mrf.mxu0
    %v6417 = vadd.f32 0.0, %v6416
    %v6418 = vpop.f32.mrf.mxu0
    %6419 = vmatprep.mubr.bf16.mxu0 0
    %6420 = vmatmul.mubr.bf16.gmra.mxu0 %v6234
    %v6421 = vpop.f32.mrf.mxu0
    %v6422 = vadd.f32 0.0, %v6421
    %v6423 = vpop.f32.mrf.mxu0
    %v6424 = vpop.f32.mrf.mxu0
    %v6425 = vadd.f32 0.0, %v6424
    %v6426 = vpop.f32.mrf.mxu0
    %6427 = vmatprep.mubr.bf16.mxu0 0
    %6428 = vmatmul.mubr.bf16.gmra.mxu0 %v6237
    %v6429 = vpop.f32.mrf.mxu0
    %v6430 = vadd.f32 0.0, %v6429
    %v6431 = vpop.f32.mrf.mxu0
    %v6432 = vpop.f32.mrf.mxu0
    %v6433 = vadd.f32 0.0, %v6432
    %v6434 = vpop.f32.mrf.mxu0
    %6435 = vmatprep.mubr.bf16.mxu0 0
    %6436 = vmatmul.mubr.bf16.gmra.mxu0 %v6240
    %v6437 = vpop.f32.mrf.mxu0
    %v6438 = vadd.f32 0.0, %v6437
    %v6439 = vpop.f32.mrf.mxu0
    %v6440 = vpop.f32.mrf.mxu0
    %v6441 = vadd.f32 0.0, %v6440
    %v6442 = vpop.f32.mrf.mxu0
    %6443 = vmatprep.mubr.bf16.mxu0 0
    %6444 = vmatmul.mubr.bf16.gmra.mxu0 %v6243
    %v6445 = vpop.f32.mrf.mxu0
    %v6446 = vadd.f32 0.0, %v6445
    %v6447 = vpop.f32.mrf.mxu0
    %v6448 = vpop.f32.mrf.mxu0
    %v6449 = vadd.f32 0.0, %v6448
    %v6450 = vpop.f32.mrf.mxu0
    %6451 = vmatprep.mubr.bf16.mxu0 0
    %6452 = vmatmul.mubr.bf16.gmra.mxu0 %v6246
    %v6453 = vpop.f32.mrf.mxu0
    %v6454 = vadd.f32 0.0, %v6453
    %v6455 = vpop.f32.mrf.mxu0
    %v6456 = vpop.f32.mrf.mxu0
    %v6457 = vadd.f32 0.0, %v6456
    %v6458 = vpop.f32.mrf.mxu0
    %6459 = vmatprep.mubr.bf16.mxu0 0
    %6460 = vmatmul.mubr.bf16.gmra.mxu0 %v6249
    %v6461 = vpop.f32.mrf.mxu0
    %v6462 = vadd.f32 0.0, %v6461
    %v6463 = vpop.f32.mrf.mxu0
    %v6464 = vpop.f32.mrf.mxu0
    %v6465 = vadd.f32 0.0, %v6464
    %v6466 = vpop.f32.mrf.mxu0
    %6467 = vmatprep.mubr.bf16.mxu0 0
    %6468 = vmatmul.mubr.bf16.gmra.mxu0 %v6252
    %v6469 = vpop.f32.mrf.mxu0
    %v6470 = vadd.f32 0.0, %v6469
    %v6471 = vpop.f32.mrf.mxu0
    %v6472 = vpop.f32.mrf.mxu0
    %v6473 = vadd.f32 0.0, %v6472
    %v6474 = vpop.f32.mrf.mxu0
    %6475 = vmatprep.mubr.bf16.mxu0 0
    %6476 = vmatmul.mubr.bf16.gmra.mxu0 %v6255
    %v6477 = vpop.f32.mrf.mxu0
    %v6478 = vadd.f32 0.0, %v6477
    %v6479 = vpop.f32.mrf.mxu0
    %v6480 = vpop.f32.mrf.mxu0
    %v6481 = vadd.f32 0.0, %v6480
    %v6482 = vpop.f32.mrf.mxu0
    %6483 = vmatprep.mubr.bf16.mxu0 0
    %6484 = vmatmul.mubr.bf16.gmra.mxu0 %v6258
    %v6485 = vpop.f32.mrf.mxu0
    %v6486 = vadd.f32 0.0, %v6485
    %v6487 = vpop.f32.mrf.mxu0
    %v6488 = vpop.f32.mrf.mxu0
    %v6489 = vadd.f32 0.0, %v6488
    %v6490 = vpop.f32.mrf.mxu0
    %6491 = vmatprep.mubr.bf16.mxu0 0
    %6492 = vmatmul.mubr.bf16.gmra.mxu0 %v6261
    %v6493 = vpop.f32.mrf.mxu0
    %v6494 = vadd.f32 0.0, %v6493
    %v6495 = vpop.f32.mrf.mxu0
    %v6496 = vpop.f32.mrf.mxu0
    %v6497 = vadd.f32 0.0, %v6496
    %v6498 = vpop.f32.mrf.mxu0
    %6499 = vmatprep.mubr.bf16.mxu0 0
    %6500 = vmatmul.mubr.bf16.gmra.mxu0 %v6264
    %v6501 = vpop.f32.mrf.mxu0
    %v6502 = vadd.f32 0.0, %v6501
    %v6503 = vpop.f32.mrf.mxu0
    %v6504 = vpop.f32.mrf.mxu0
    %v6505 = vadd.f32 0.0, %v6504
    %v6506 = vpop.f32.mrf.mxu0
    %6507 = vmatprep.mubr.bf16.mxu0 0
    %6508 = vmatmul.mubr.bf16.gmra.mxu0 %v6267
    %v6509 = vpop.f32.mrf.mxu0
    %v6510 = vadd.f32 0.0, %v6509
    %v6511 = vpop.f32.mrf.mxu0
    %v6512 = vpop.f32.mrf.mxu0
    %v6513 = vadd.f32 0.0, %v6512
    %v6514 = vpop.f32.mrf.mxu0
    %6515 = vmatprep.mubr.bf16.mxu0 0
    %6516 = vmatmul.mubr.bf16.gmra.mxu0 %v6270
    %v6517 = vpop.f32.mrf.mxu0
    %v6518 = vadd.f32 0.0, %v6517
    %v6519 = vpop.f32.mrf.mxu0
    %v6520 = vpop.f32.mrf.mxu0
    %v6521 = vadd.f32 0.0, %v6520
    %v6522 = vpop.f32.mrf.mxu0
    %6523 = vmatprep.mubr.bf16.mxu0 0
    %6524 = vmatmul.mubr.bf16.gmra.mxu0 %v6273
    %v6525 = vpop.f32.mrf.mxu0
    %v6526 = vadd.f32 0.0, %v6525
    %v6527 = vpop.f32.mrf.mxu0
    %v6528 = vpop.f32.mrf.mxu0
    %v6529 = vadd.f32 0.0, %v6528
    %v6530 = vpop.f32.mrf.mxu0
    %6531 = vmatprep.mubr.bf16.mxu0 0
    %6532 = vmatmul.mubr.bf16.gmra.mxu0 %v6276
    %v6533 = vpop.f32.mrf.mxu0
    %v6534 = vadd.f32 0.0, %v6533
    %v6535 = vpop.f32.mrf.mxu0
    %v6536 = vpop.f32.mrf.mxu0
    %v6537 = vadd.f32 0.0, %v6536
    %v6538 = vpop.f32.mrf.mxu0
    %6539 = vmatprep.mubr.bf16.mxu0 0
    %6540 = vmatmul.mubr.bf16.gmra.mxu0 %v6279
    %v6541 = vpop.f32.mrf.mxu0
    %v6542 = vadd.f32 0.0, %v6541
    %v6543 = vpop.f32.mrf.mxu0
    %v6544 = vpop.f32.mrf.mxu0
    %v6545 = vadd.f32 0.0, %v6544
    %v6546 = vpop.f32.mrf.mxu0
    %6547 = vmatprep.mubr.bf16.mxu0 0
    %6548 = vmatmul.mubr.bf16.gmra.mxu0 %v6282
    %v6549 = vpop.f32.mrf.mxu0
    %v6550 = vadd.f32 0.0, %v6549
    %v6551 = vpop.f32.mrf.mxu0
    %v6552 = vpop.f32.mrf.mxu0
    %v6553 = vadd.f32 0.0, %v6552
    %v6554 = vpop.f32.mrf.mxu0
    %6555 = vmatprep.mubr.bf16.mxu0 0
    %6556 = vmatmul.mubr.bf16.gmra.mxu0 %v6285
    %v6557 = vpop.f32.mrf.mxu0
    %v6558 = vadd.f32 0.0, %v6557
    %v6559 = vpop.f32.mrf.mxu0
    %v6560 = vpop.f32.mrf.mxu0
    %v6561 = vadd.f32 0.0, %v6560
    %v6562 = vpop.f32.mrf.mxu0
    %6563 = vmatprep.mubr.bf16.mxu0 0
    %6564 = vmatmul.mubr.bf16.gmra.mxu0 %v6288
    %v6565 = vpop.f32.mrf.mxu0
    %v6566 = vadd.f32 0.0, %v6565
    %v6567 = vpop.f32.mrf.mxu0
    %v6568 = vpop.f32.mrf.mxu0
    %v6569 = vadd.f32 0.0, %v6568
    %v6570 = vpop.f32.mrf.mxu0
    %6571 = vmatprep.mubr.bf16.mxu0 0
    %6572 = vmatmul.mubr.bf16.gmra.mxu0 %v6291
    %v6573 = vpop.f32.mrf.mxu0
    %v6574 = vadd.f32 0.0, %v6573
    %v6575 = vpop.f32.mrf.mxu0
    %v6576 = vpop.f32.mrf.mxu0
    %v6577 = vadd.f32 0.0, %v6576
    %v6578 = vpop.f32.mrf.mxu0
    %6579 = vmatprep.mubr.bf16.mxu0 0
    %6580 = vmatmul.mubr.bf16.gmra.mxu0 %v6294
    %v6581 = vpop.f32.mrf.mxu0
    %v6582 = vadd.f32 0.0, %v6581
    %v6583 = vpop.f32.mrf.mxu0
    %v6584 = vpop.f32.mrf.mxu0
    %v6585 = vadd.f32 0.0, %v6584
    %v6586 = vpop.f32.mrf.mxu0
    %6587 = vdwg.mxu0
    %v6588 = vld [vmem:[#allocation2] sm:$0xff]
    %v6589 = vld [vmem:[#allocation2 + $0x8] sm:$0xff]
    %v6590 = vld [vmem:[#allocation2 + $0x10] sm:$0xff]
    %v6591 = vld [vmem:[#allocation2 + $0x18] sm:$0xff]
    %v6592 = vld [vmem:[#allocation2 + $0x20] sm:$0xff]
    %v6593 = vld [vmem:[#allocation2 + $0x28] sm:$0xff]
    %v6594 = vld [vmem:[#allocation2 + $0x30] sm:$0xff]
    %v6595 = vld [vmem:[#allocation2 + $0x38] sm:$0xff]
    %v6596 = vld [vmem:[#allocation2 + $0x40] sm:$0xff]
    %v6597 = vld [vmem:[#allocation2 + $0x48] sm:$0xff]
    %v6598 = vld [vmem:[#allocation2 + $0x50] sm:$0xff]
    %v6599 = vld [vmem:[#allocation2 + $0x58] sm:$0xff]
    %v6600 = vld [vmem:[#allocation2 + $0x60] sm:$0xff]
    %v6601 = vld [vmem:[#allocation2 + $0x68] sm:$0xff]
    %v6602 = vld [vmem:[#allocation2 + $0x70] sm:$0xff]
    %v6603 = vld [vmem:[#allocation2 + $0x78] sm:$0xff]
    %v6604 = vld [vmem:[#allocation2 + $0x80] sm:$0xff]
    %v6605 = vld [vmem:[#allocation2 + $0x88] sm:$0xff]
    %v6606 = vld [vmem:[#allocation2 + $0x90] sm:$0xff]
    %v6607 = vld [vmem:[#allocation2 + $0x98] sm:$0xff]
    %v6608 = vld [vmem:[#allocation2 + $0xa0] sm:$0xff]
    %v6609 = vld [vmem:[#allocation2 + $0xa8] sm:$0xff]
    %v6610 = vld [vmem:[#allocation2 + $0xb0] sm:$0xff]
    %v6611 = vld [vmem:[#allocation2 + $0xb8] sm:$0xff]
    %v6612 = vld [vmem:[#allocation2 + $0xc0] sm:$0xff]
    %v6613 = vld [vmem:[#allocation2 + $0xc8] sm:$0xff]
    %v6614 = vld [vmem:[#allocation2 + $0xd0] sm:$0xff]
    %v6615 = vld [vmem:[#allocation2 + $0xd8] sm:$0xff]
    %v6616 = vld [vmem:[#allocation2 + $0xe0] sm:$0xff]
    %v6617 = vld [vmem:[#allocation2 + $0xe8] sm:$0xff]
    %v6618 = vld [vmem:[#allocation2 + $0xf0] sm:$0xff]
    %v6619 = vld [vmem:[#allocation2 + $0xf8] sm:$0xff]
    %v6620 = vld [vmem:[#allocation2 + $0x100] sm:$0xff]
    %v6621 = vld [vmem:[#allocation2 + $0x108] sm:$0xff]
    %v6622 = vld [vmem:[#allocation2 + $0x110] sm:$0xff]
    %v6623 = vld [vmem:[#allocation2 + $0x118] sm:$0xff]
    %v6624 = vld [vmem:[#allocation2 + $0x120] sm:$0xff]
    %v6625 = vld [vmem:[#allocation2 + $0x128] sm:$0xff]
    %v6626 = vld [vmem:[#allocation2 + $0x130] sm:$0xff]
    %v6627 = vld [vmem:[#allocation2 + $0x138] sm:$0xff]
    %v6628 = vld [vmem:[#allocation2 + $0x140] sm:$0xff]
    %v6629 = vld [vmem:[#allocation2 + $0x148] sm:$0xff]
    %v6630 = vld [vmem:[#allocation2 + $0x150] sm:$0xff]
    %v6631 = vld [vmem:[#allocation2 + $0x158] sm:$0xff]
    %v6632 = vld [vmem:[#allocation2 + $0x160] sm:$0xff]
    %v6633 = vld [vmem:[#allocation2 + $0x168] sm:$0xff]
    %v6634 = vld [vmem:[#allocation2 + $0x170] sm:$0xff]
    %v6635 = vld [vmem:[#allocation2 + $0x178] sm:$0xff]
    %v6636 = vld [vmem:[#allocation2 + $0x180] sm:$0xff]
    %v6637 = vld [vmem:[#allocation2 + $0x188] sm:$0xff]
    %v6638 = vld [vmem:[#allocation2 + $0x190] sm:$0xff]
    %v6639 = vld [vmem:[#allocation2 + $0x198] sm:$0xff]
    %v6640 = vld [vmem:[#allocation2 + $0x1a0] sm:$0xff]
    %v6641 = vld [vmem:[#allocation2 + $0x1a8] sm:$0xff]
    %v6642 = vld [vmem:[#allocation2 + $0x1b0] sm:$0xff]
    %v6643 = vld [vmem:[#allocation2 + $0x1b8] sm:$0xff]
    %v6644 = vld [vmem:[#allocation2 + $0x1c0] sm:$0xff]
    %v6645 = vld [vmem:[#allocation2 + $0x1c8] sm:$0xff]
    %v6646 = vld [vmem:[#allocation2 + $0x1d0] sm:$0xff]
    %v6647 = vld [vmem:[#allocation2 + $0x1d8] sm:$0xff]
    %v6648 = vld [vmem:[#allocation2 + $0x1e0] sm:$0xff]
    %v6649 = vld [vmem:[#allocation2 + $0x1e8] sm:$0xff]
    %v6650 = vld [vmem:[#allocation2 + $0x1f0] sm:$0xff]
    %v6651 = vld [vmem:[#allocation2 + $0x1f8] sm:$0xff]
    %v6652 = vadd.f32 %v6588, %v6334
    %v6653 = vadd.f32 %v6589, %v6337
    %v6654 = vadd.f32 %v6590, %v6342
    %v6655 = vadd.f32 %v6591, %v6345
    %v6656 = vadd.f32 %v6592, %v6350
    %v6657 = vadd.f32 %v6593, %v6353
    %v6658 = vadd.f32 %v6594, %v6358
    %v6659 = vadd.f32 %v6595, %v6361
    %v6660 = vadd.f32 %v6596, %v6366
    %v6661 = vadd.f32 %v6597, %v6369
    %v6662 = vadd.f32 %v6598, %v6374
    %v6663 = vadd.f32 %v6599, %v6377
    %v6664 = vadd.f32 %v6600, %v6382
    %v6665 = vadd.f32 %v6601, %v6385
    %v6666 = vadd.f32 %v6602, %v6390
    %v6667 = vadd.f32 %v6603, %v6393
    %v6668 = vadd.f32 %v6604, %v6398
    %v6669 = vadd.f32 %v6605, %v6401
    %v6670 = vadd.f32 %v6606, %v6406
    %v6671 = vadd.f32 %v6607, %v6409
    %v6672 = vadd.f32 %v6608, %v6414
    %v6673 = vadd.f32 %v6609, %v6417
    %v6674 = vadd.f32 %v6610, %v6422
    %v6675 = vadd.f32 %v6611, %v6425
    %v6676 = vadd.f32 %v6612, %v6430
    %v6677 = vadd.f32 %v6613, %v6433
    %v6678 = vadd.f32 %v6614, %v6438
    %v6679 = vadd.f32 %v6615, %v6441
    %v6680 = vadd.f32 %v6616, %v6446
    %v6681 = vadd.f32 %v6617, %v6449
    %v6682 = vadd.f32 %v6618, %v6454
    %v6683 = vadd.f32 %v6619, %v6457
    %v6684 = vadd.f32 %v6620, %v6462
    %v6685 = vadd.f32 %v6621, %v6465
    %v6686 = vadd.f32 %v6622, %v6470
    %v6687 = vadd.f32 %v6623, %v6473
    %v6688 = vadd.f32 %v6624, %v6478
    %v6689 = vadd.f32 %v6625, %v6481
    %v6690 = vadd.f32 %v6626, %v6486
    %v6691 = vadd.f32 %v6627, %v6489
    %v6692 = vadd.f32 %v6628, %v6494
    %v6693 = vadd.f32 %v6629, %v6497
    %v6694 = vadd.f32 %v6630, %v6502
    %v6695 = vadd.f32 %v6631, %v6505
    %v6696 = vadd.f32 %v6632, %v6510
    %v6697 = vadd.f32 %v6633, %v6513
    %v6698 = vadd.f32 %v6634, %v6518
    %v6699 = vadd.f32 %v6635, %v6521
    %v6700 = vadd.f32 %v6636, %v6526
    %v6701 = vadd.f32 %v6637, %v6529
    %v6702 = vadd.f32 %v6638, %v6534
    %v6703 = vadd.f32 %v6639, %v6537
    %v6704 = vadd.f32 %v6640, %v6542
    %v6705 = vadd.f32 %v6641, %v6545
    %v6706 = vadd.f32 %v6642, %v6550
    %v6707 = vadd.f32 %v6643, %v6553
    %v6708 = vadd.f32 %v6644, %v6558
    %v6709 = vadd.f32 %v6645, %v6561
    %v6710 = vadd.f32 %v6646, %v6566
    %v6711 = vadd.f32 %v6647, %v6569
    %v6712 = vadd.f32 %v6648, %v6574
    %v6713 = vadd.f32 %v6649, %v6577
    %v6714 = vadd.f32 %v6650, %v6582
    %v6715 = vadd.f32 %v6651, %v6585
    %6716 = vst [vmem:[#allocation2] sm:$0xff] %v6652
    %6717 = vst [vmem:[#allocation2 + $0x8] sm:$0xff] %v6653
    %6718 = vst [vmem:[#allocation2 + $0x10] sm:$0xff] %v6654
    %6719 = vst [vmem:[#allocation2 + $0x18] sm:$0xff] %v6655
    %6720 = vst [vmem:[#allocation2 + $0x20] sm:$0xff] %v6656
    %6721 = vst [vmem:[#allocation2 + $0x28] sm:$0xff] %v6657
    %6722 = vst [vmem:[#allocation2 + $0x30] sm:$0xff] %v6658
    %6723 = vst [vmem:[#allocation2 + $0x38] sm:$0xff] %v6659
    %6724 = vst [vmem:[#allocation2 + $0x40] sm:$0xff] %v6660
    %6725 = vst [vmem:[#allocation2 + $0x48] sm:$0xff] %v6661
    %6726 = vst [vmem:[#allocation2 + $0x50] sm:$0xff] %v6662
    %6727 = vst [vmem:[#allocation2 + $0x58] sm:$0xff] %v6663
    %6728 = vst [vmem:[#allocation2 + $0x60] sm:$0xff] %v6664
    %6729 = vst [vmem:[#allocation2 + $0x68] sm:$0xff] %v6665
    %6730 = vst [vmem:[#allocation2 + $0x70] sm:$0xff] %v6666
    %6731 = vst [vmem:[#allocation2 + $0x78] sm:$0xff] %v6667
    %6732 = vst [vmem:[#allocation2 + $0x80] sm:$0xff] %v6668
    %6733 = vst [vmem:[#allocation2 + $0x88] sm:$0xff] %v6669
    %6734 = vst [vmem:[#allocation2 + $0x90] sm:$0xff] %v6670
    %6735 = vst [vmem:[#allocation2 + $0x98] sm:$0xff] %v6671
    %6736 = vst [vmem:[#allocation2 + $0xa0] sm:$0xff] %v6672
    %6737 = vst [vmem:[#allocation2 + $0xa8] sm:$0xff] %v6673
    %6738 = vst [vmem:[#allocation2 + $0xb0] sm:$0xff] %v6674
    %6739 = vst [vmem:[#allocation2 + $0xb8] sm:$0xff] %v6675
    %6740 = vst [vmem:[#allocation2 + $0xc0] sm:$0xff] %v6676
    %6741 = vst [vmem:[#allocation2 + $0xc8] sm:$0xff] %v6677
    %6742 = vst [vmem:[#allocation2 + $0xd0] sm:$0xff] %v6678
    %6743 = vst [vmem:[#allocation2 + $0xd8] sm:$0xff] %v6679
    %6744 = vst [vmem:[#allocation2 + $0xe0] sm:$0xff] %v6680
    %6745 = vst [vmem:[#allocation2 + $0xe8] sm:$0xff] %v6681
    %6746 = vst [vmem:[#allocation2 + $0xf0] sm:$0xff] %v6682
    %6747 = vst [vmem:[#allocation2 + $0xf8] sm:$0xff] %v6683
    %6748 = vst [vmem:[#allocation2 + $0x100] sm:$0xff] %v6684
    %6749 = vst [vmem:[#allocation2 + $0x108] sm:$0xff] %v6685
    %6750 = vst [vmem:[#allocation2 + $0x110] sm:$0xff] %v6686
    %6751 = vst [vmem:[#allocation2 + $0x118] sm:$0xff] %v6687
    %6752 = vst [vmem:[#allocation2 + $0x120] sm:$0xff] %v6688
    %6753 = vst [vmem:[#allocation2 + $0x128] sm:$0xff] %v6689
    %6754 = vst [vmem:[#allocation2 + $0x130] sm:$0xff] %v6690
    %6755 = vst [vmem:[#allocation2 + $0x138] sm:$0xff] %v6691
    %6756 = vst [vmem:[#allocation2 + $0x140] sm:$0xff] %v6692
    %6757 = vst [vmem:[#allocation2 + $0x148] sm:$0xff] %v6693
    %6758 = vst [vmem:[#allocation2 + $0x150] sm:$0xff] %v6694
    %6759 = vst [vmem:[#allocation2 + $0x158] sm:$0xff] %v6695
    %6760 = vst [vmem:[#allocation2 + $0x160] sm:$0xff] %v6696
    %6761 = vst [vmem:[#allocation2 + $0x168] sm:$0xff] %v6697
    %6762 = vst [vmem:[#allocation2 + $0x170] sm:$0xff] %v6698
    %6763 = vst [vmem:[#allocation2 + $0x178] sm:$0xff] %v6699
    %6764 = vst [vmem:[#allocation2 + $0x180] sm:$0xff] %v6700
    %6765 = vst [vmem:[#allocation2 + $0x188] sm:$0xff] %v6701
    %6766 = vst [vmem:[#allocation2 + $0x190] sm:$0xff] %v6702
    %6767 = vst [vmem:[#allocation2 + $0x198] sm:$0xff] %v6703
    %6768 = vst [vmem:[#allocation2 + $0x1a0] sm:$0xff] %v6704
    %6769 = vst [vmem:[#allocation2 + $0x1a8] sm:$0xff] %v6705
    %6770 = vst [vmem:[#allocation2 + $0x1b0] sm:$0xff] %v6706
    %6771 = vst [vmem:[#allocation2 + $0x1b8] sm:$0xff] %v6707
    %6772 = vst [vmem:[#allocation2 + $0x1c0] sm:$0xff] %v6708
    %6773 = vst [vmem:[#allocation2 + $0x1c8] sm:$0xff] %v6709
    %6774 = vst [vmem:[#allocation2 + $0x1d0] sm:$0xff] %v6710
    %6775 = vst [vmem:[#allocation2 + $0x1d8] sm:$0xff] %v6711
    %6776 = vst [vmem:[#allocation2 + $0x1e0] sm:$0xff] %v6712
    %6777 = vst [vmem:[#allocation2 + $0x1e8] sm:$0xff] %v6713
    %6778 = vst [vmem:[#allocation2 + $0x1f0] sm:$0xff] %v6714
    %6779 = vst [vmem:[#allocation2 + $0x1f8] sm:$0xff] %v6715
    %s6780 = scalar_lea.vmem %s0, 24
    %v6781 = vld [vmem:[%s6780] sm:$0xf]
    %v6782 = vld [vmem:[%s6780 + $0x4] sm:$0xf]
    %v6783 = vld [vmem:[%s6780 + $0xc] sm:$0xf]
    %v6784 = vld [vmem:[%s6780 + $0x10] sm:$0xf]
    %v6785 = vld [vmem:[%s6780 + $0x18] sm:$0xf]
    %v6786 = vld [vmem:[%s6780 + $0x1c] sm:$0xf]
    %v6787 = vld [vmem:[%s6780 + $0x24] sm:$0xf]
    %v6788 = vld [vmem:[%s6780 + $0x28] sm:$0xf]
    %v6789 = vld [vmem:[%s6780 + $0x30] sm:$0xf]
    %v6790 = vld [vmem:[%s6780 + $0x34] sm:$0xf]
    %v6791 = vld [vmem:[%s6780 + $0x3c] sm:$0xf]
    %v6792 = vld [vmem:[%s6780 + $0x40] sm:$0xf]
    %v6793 = vld [vmem:[%s6780 + $0x48] sm:$0xf]
    %v6794 = vld [vmem:[%s6780 + $0x4c] sm:$0xf]
    %v6795 = vld [vmem:[%s6780 + $0x54] sm:$0xf]
    %v6796 = vld [vmem:[%s6780 + $0x58] sm:$0xf]
    %v6797 = vld [vmem:[%s6780 + $0x60] sm:$0xf]
    %v6798 = vld [vmem:[%s6780 + $0x64] sm:$0xf]
    %v6799 = vld [vmem:[%s6780 + $0x6c] sm:$0xf]
    %v6800 = vld [vmem:[%s6780 + $0x70] sm:$0xf]
    %v6801 = vld [vmem:[%s6780 + $0x78] sm:$0xf]
    %v6802 = vld [vmem:[%s6780 + $0x7c] sm:$0xf]
    %v6803 = vld [vmem:[%s6780 + $0x84] sm:$0xf]
    %v6804 = vld [vmem:[%s6780 + $0x88] sm:$0xf]
    %v6805 = vld [vmem:[%s6780 + $0x90] sm:$0xf]
    %v6806 = vld [vmem:[%s6780 + $0x94] sm:$0xf]
    %v6807 = vld [vmem:[%s6780 + $0x9c] sm:$0xf]
    %v6808 = vld [vmem:[%s6780 + $0xa0] sm:$0xf]
    %v6809 = vld [vmem:[%s6780 + $0xa8] sm:$0xf]
    %v6810 = vld [vmem:[%s6780 + $0xac] sm:$0xf]
    %v6811 = vld [vmem:[%s6780 + $0xb4] sm:$0xf]
    %v6812 = vld [vmem:[%s6780 + $0xb8] sm:$0xf]
    %v6813 = vld [vmem:[%s6780 + $0xd8] sm:$0xf]
    %v6814 = vld [vmem:[%s6780 + $0xdc] sm:$0xf]
    %v6815 = vld [vmem:[%s6780 + $0xe4] sm:$0xf]
    %v6816 = vld [vmem:[%s6780 + $0xe8] sm:$0xf]
    %v6817 = vld [vmem:[%s6780 + $0xf0] sm:$0xf]
    %v6818 = vld [vmem:[%s6780 + $0xf4] sm:$0xf]
    %v6819 = vld [vmem:[%s6780 + $0xfc] sm:$0xf]
    %v6820 = vld [vmem:[%s6780 + $0x100] sm:$0xf]
    %v6821 = vld [vmem:[%s6780 + $0x108] sm:$0xf]
    %v6822 = vld [vmem:[%s6780 + $0x10c] sm:$0xf]
    %v6823 = vld [vmem:[%s6780 + $0x114] sm:$0xf]
    %v6824 = vld [vmem:[%s6780 + $0x118] sm:$0xf]
    %v6825 = vld [vmem:[%s6780 + $0x120] sm:$0xf]
    %v6826 = vld [vmem:[%s6780 + $0x124] sm:$0xf]
    %v6827 = vld [vmem:[%s6780 + $0x12c] sm:$0xf]
    %v6828 = vld [vmem:[%s6780 + $0x130] sm:$0xf]
    %v6829 = vld [vmem:[%s6780 + $0x138] sm:$0xf]
    %v6830 = vld [vmem:[%s6780 + $0x13c] sm:$0xf]
    %v6831 = vld [vmem:[%s6780 + $0x144] sm:$0xf]
    %v6832 = vld [vmem:[%s6780 + $0x148] sm:$0xf]
    %v6833 = vld [vmem:[%s6780 + $0x150] sm:$0xf]
    %v6834 = vld [vmem:[%s6780 + $0x154] sm:$0xf]
    %v6835 = vld [vmem:[%s6780 + $0x15c] sm:$0xf]
    %v6836 = vld [vmem:[%s6780 + $0x160] sm:$0xf]
    %v6837 = vld [vmem:[%s6780 + $0x168] sm:$0xf]
    %v6838 = vld [vmem:[%s6780 + $0x16c] sm:$0xf]
    %v6839 = vld [vmem:[%s6780 + $0x174] sm:$0xf]
    %v6840 = vld [vmem:[%s6780 + $0x178] sm:$0xf]
    %v6841 = vld [vmem:[%s6780 + $0x180] sm:$0xf]
    %v6842 = vld [vmem:[%s6780 + $0x184] sm:$0xf]
    %v6843 = vld [vmem:[%s6780 + $0x18c] sm:$0xf]
    %v6844 = vld [vmem:[%s6780 + $0x190] sm:$0xf]
    %s6845 = scalar_lea.vmem %s1, 12
    %v6846 = vld [vmem:[%s6845] sm:$0x3]
    %v6911 = vunpack.c.l.b16 %v6781
    %v6912 = vunpack.c.l.b16 %v6782
    %v6913 = vunpack.c.l.b16 %v6783
    %v6914 = vunpack.c.l.b16 %v6784
    %v6915 = vunpack.c.l.b16 %v6785
    %v6916 = vunpack.c.l.b16 %v6786
    %v6917 = vunpack.c.l.b16 %v6787
    %v6918 = vunpack.c.l.b16 %v6788
    %v6919 = vunpack.c.l.b16 %v6789
    %v6920 = vunpack.c.l.b16 %v6790
    %v6921 = vunpack.c.l.b16 %v6791
    %v6922 = vunpack.c.l.b16 %v6792
    %v6923 = vunpack.c.l.b16 %v6793
    %v6924 = vunpack.c.l.b16 %v6794
    %v6925 = vunpack.c.l.b16 %v6795
    %v6926 = vunpack.c.l.b16 %v6796
    %v6927 = vunpack.c.l.b16 %v6797
    %v6928 = vunpack.c.l.b16 %v6798
    %v6929 = vunpack.c.l.b16 %v6799
    %v6930 = vunpack.c.l.b16 %v6800
    %v6931 = vunpack.c.l.b16 %v6801
    %v6932 = vunpack.c.l.b16 %v6802
    %v6933 = vunpack.c.l.b16 %v6803
    %v6934 = vunpack.c.l.b16 %v6804
    %v6935 = vunpack.c.l.b16 %v6805
    %v6936 = vunpack.c.l.b16 %v6806
    %v6937 = vunpack.c.l.b16 %v6807
    %v6938 = vunpack.c.l.b16 %v6808
    %v6939 = vunpack.c.l.b16 %v6809
    %v6940 = vunpack.c.l.b16 %v6810
    %v6941 = vunpack.c.l.b16 %v6811
    %v6942 = vunpack.c.l.b16 %v6812
    %v6943 = vunpack.c.l.b16 %v6813
    %v6944 = vunpack.c.l.b16 %v6814
    %v6945 = vunpack.c.l.b16 %v6815
    %v6946 = vunpack.c.l.b16 %v6816
    %v6947 = vunpack.c.l.b16 %v6817
    %v6948 = vunpack.c.l.b16 %v6818
    %v6949 = vunpack.c.l.b16 %v6819
    %v6950 = vunpack.c.l.b16 %v6820
    %v6951 = vunpack.c.l.b16 %v6821
    %v6952 = vunpack.c.l.b16 %v6822
    %v6953 = vunpack.c.l.b16 %v6823
    %v6954 = vunpack.c.l.b16 %v6824
    %v6955 = vunpack.c.l.b16 %v6825
    %v6956 = vunpack.c.l.b16 %v6826
    %v6957 = vunpack.c.l.b16 %v6827
    %v6958 = vunpack.c.l.b16 %v6828
    %v6959 = vunpack.c.l.b16 %v6829
    %v6960 = vunpack.c.l.b16 %v6830
    %v6961 = vunpack.c.l.b16 %v6831
    %v6962 = vunpack.c.l.b16 %v6832
    %v6963 = vunpack.c.l.b16 %v6833
    %v6964 = vunpack.c.l.b16 %v6834
    %v6965 = vunpack.c.l.b16 %v6835
    %v6966 = vunpack.c.l.b16 %v6836
    %v6967 = vunpack.c.l.b16 %v6837
    %v6968 = vunpack.c.l.b16 %v6838
    %v6969 = vunpack.c.l.b16 %v6839
    %v6970 = vunpack.c.l.b16 %v6840
    %v6971 = vunpack.c.l.b16 %v6841
    %v6972 = vunpack.c.l.b16 %v6842
    %v6973 = vunpack.c.l.b16 %v6843
    %v6974 = vunpack.c.l.b16 %v6844
    %v6975 = vpack.c.b16 %v6912, %v6911
    %v6976 = vpack.c.b16 %v6914, %v6913
    %v6977 = vpack.c.b16 %v6916, %v6915
    %v6978 = vpack.c.b16 %v6918, %v6917
    %v6979 = vpack.c.b16 %v6920, %v6919
    %v6980 = vpack.c.b16 %v6922, %v6921
    %v6981 = vpack.c.b16 %v6924, %v6923
    %v6982 = vpack.c.b16 %v6926, %v6925
    %v6983 = vpack.c.b16 %v6928, %v6927
    %v6984 = vpack.c.b16 %v6930, %v6929
    %v6985 = vpack.c.b16 %v6932, %v6931
    %v6986 = vpack.c.b16 %v6934, %v6933
    %v6987 = vpack.c.b16 %v6936, %v6935
    %v6988 = vpack.c.b16 %v6938, %v6937
    %v6989 = vpack.c.b16 %v6940, %v6939
    %v6990 = vpack.c.b16 %v6942, %v6941
    %v6991 = vpack.c.b16 %v6944, %v6943
    %v6992 = vpack.c.b16 %v6946, %v6945
    %v6993 = vpack.c.b16 %v6948, %v6947
    %v6994 = vpack.c.b16 %v6950, %v6949
    %v6995 = vpack.c.b16 %v6952, %v6951
    %v6996 = vpack.c.b16 %v6954, %v6953
    %v6997 = vpack.c.b16 %v6956, %v6955
    %v6998 = vpack.c.b16 %v6958, %v6957
    %v6999 = vpack.c.b16 %v6960, %v6959
    %v7000 = vpack.c.b16 %v6962, %v6961
    %v7001 = vpack.c.b16 %v6964, %v6963
    %v7002 = vpack.c.b16 %v6966, %v6965
    %v7003 = vpack.c.b16 %v6968, %v6967
    %v7004 = vpack.c.b16 %v6970, %v6969
    %v7005 = vpack.c.b16 %v6972, %v6971
    %v7006 = vpack.c.b16 %v6974, %v6973
    %v7008 = vsel %vm241, %v6975, 0
    %v7011 = vsel %vm241, %v6976, 0
    %v7014 = vsel %vm241, %v6977, 0
    %v7017 = vsel %vm241, %v6978, 0
    %v7020 = vsel %vm241, %v6979, 0
    %v7023 = vsel %vm241, %v6980, 0
    %v7026 = vsel %vm241, %v6981, 0
    %v7029 = vsel %vm241, %v6982, 0
    %v7032 = vsel %vm241, %v6983, 0
    %v7035 = vsel %vm241, %v6984, 0
    %v7038 = vsel %vm241, %v6985, 0
    %v7041 = vsel %vm241, %v6986, 0
    %v7044 = vsel %vm241, %v6987, 0
    %v7047 = vsel %vm241, %v6988, 0
    %v7050 = vsel %vm241, %v6989, 0
    %v7053 = vsel %vm241, %v6990, 0
    %v7056 = vsel %vm241, %v6991, 0
    %v7059 = vsel %vm241, %v6992, 0
    %v7062 = vsel %vm241, %v6993, 0
    %v7065 = vsel %vm241, %v6994, 0
    %v7068 = vsel %vm241, %v6995, 0
    %v7071 = vsel %vm241, %v6996, 0
    %v7074 = vsel %vm241, %v6997, 0
    %v7077 = vsel %vm241, %v6998, 0
    %v7080 = vsel %vm241, %v6999, 0
    %v7083 = vsel %vm241, %v7000, 0
    %v7086 = vsel %vm241, %v7001, 0
    %v7089 = vsel %vm241, %v7002, 0
    %v7092 = vsel %vm241, %v7003, 0
    %v7095 = vsel %vm241, %v7004, 0
    %v7098 = vsel %vm241, %v7005, 0
    %v7101 = vsel %vm241, %v7006, 0
    %v7104 = vsel %vm338, %v6846, 0
    %7106 = vmatprep.subr.bf16.mxu0 0
    %7107 = vmatpush1.bf16.msra.mxu0 0
    %7108 = vmatprep.subr.bf16.mxu0 0
    %7109 = vmatpush1.bf16.msra.mxu0 0
    %7110 = vmatprep.subr.bf16.mxu0 0
    %7111 = vmatpush1.bf16.msra.mxu0 0
    %7112 = vmatprep.subr.bf16.mxu0 0
    %7113 = vmatpush1.bf16.msra.mxu0 0
    %7114 = vmatprep.subr.bf16.mxu0 0
    %7115 = vmatpush1.bf16.msra.mxu0 0
    %7116 = vmatprep.subr.bf16.mxu0 0
    %7117 = vmatpush1.bf16.msra.mxu0 0
    %7118 = vmatprep.subr.bf16.mxu0 0
    %7119 = vmatpush1.bf16.msra.mxu0 0
    %7120 = vmatprep.subr.bf16.mxu0 0
    %7121 = vmatpush1.bf16.msra.mxu0 %v7104
    %7122 = vmatprep.subr.bf16.mxu0 0
    %7123 = vmatpush2.bf16.msra.mxu0 0
    %7124 = vmatprep.subr.bf16.mxu0 0
    %7125 = vmatpush2.bf16.msra.mxu0 0
    %7126 = vmatprep.subr.bf16.mxu0 0
    %7127 = vmatpush2.bf16.msra.mxu0 0
    %7128 = vmatprep.subr.bf16.mxu0 0
    %7129 = vmatpush2.bf16.msra.mxu0 0
    %7130 = vmatprep.subr.bf16.mxu0 0
    %7131 = vmatpush2.bf16.msra.mxu0 0
    %7132 = vmatprep.subr.bf16.mxu0 0
    %7133 = vmatpush2.bf16.msra.mxu0 0
    %7134 = vmatprep.subr.bf16.mxu0 0
    %7135 = vmatpush2.bf16.msra.mxu0 0
    %7136 = vmatprep.subr.bf16.mxu0 0
    %7137 = vmatpush2.bf16.msra.mxu0 0
    %7138 = vmatprep.mubr.bf16.mxu0 0
    %7139 = vmatmul.mubr.bf16.gmra.mxu0 %v7008
    %v7140 = vpop.f32.mrf.mxu0
    %v7141 = vadd.f32 0.0, %v7140
    %v7142 = vpop.f32.mrf.mxu0
    %v7143 = vpop.f32.mrf.mxu0
    %v7144 = vadd.f32 0.0, %v7143
    %v7145 = vpop.f32.mrf.mxu0
    %7146 = vmatprep.mubr.bf16.mxu0 0
    %7147 = vmatmul.mubr.bf16.gmra.mxu0 %v7011
    %v7148 = vpop.f32.mrf.mxu0
    %v7149 = vadd.f32 0.0, %v7148
    %v7150 = vpop.f32.mrf.mxu0
    %v7151 = vpop.f32.mrf.mxu0
    %v7152 = vadd.f32 0.0, %v7151
    %v7153 = vpop.f32.mrf.mxu0
    %7154 = vmatprep.mubr.bf16.mxu0 0
    %7155 = vmatmul.mubr.bf16.gmra.mxu0 %v7014
    %v7156 = vpop.f32.mrf.mxu0
    %v7157 = vadd.f32 0.0, %v7156
    %v7158 = vpop.f32.mrf.mxu0
    %v7159 = vpop.f32.mrf.mxu0
    %v7160 = vadd.f32 0.0, %v7159
    %v7161 = vpop.f32.mrf.mxu0
    %7162 = vmatprep.mubr.bf16.mxu0 0
    %7163 = vmatmul.mubr.bf16.gmra.mxu0 %v7017
    %v7164 = vpop.f32.mrf.mxu0
    %v7165 = vadd.f32 0.0, %v7164
    %v7166 = vpop.f32.mrf.mxu0
    %v7167 = vpop.f32.mrf.mxu0
    %v7168 = vadd.f32 0.0, %v7167
    %v7169 = vpop.f32.mrf.mxu0
    %7170 = vmatprep.mubr.bf16.mxu0 0
    %7171 = vmatmul.mubr.bf16.gmra.mxu0 %v7020
    %v7172 = vpop.f32.mrf.mxu0
    %v7173 = vadd.f32 0.0, %v7172
    %v7174 = vpop.f32.mrf.mxu0
    %v7175 = vpop.f32.mrf.mxu0
    %v7176 = vadd.f32 0.0, %v7175
    %v7177 = vpop.f32.mrf.mxu0
    %7178 = vmatprep.mubr.bf16.mxu0 0
    %7179 = vmatmul.mubr.bf16.gmra.mxu0 %v7023
    %v7180 = vpop.f32.mrf.mxu0
    %v7181 = vadd.f32 0.0, %v7180
    %v7182 = vpop.f32.mrf.mxu0
    %v7183 = vpop.f32.mrf.mxu0
    %v7184 = vadd.f32 0.0, %v7183
    %v7185 = vpop.f32.mrf.mxu0
    %7186 = vmatprep.mubr.bf16.mxu0 0
    %7187 = vmatmul.mubr.bf16.gmra.mxu0 %v7026
    %v7188 = vpop.f32.mrf.mxu0
    %v7189 = vadd.f32 0.0, %v7188
    %v7190 = vpop.f32.mrf.mxu0
    %v7191 = vpop.f32.mrf.mxu0
    %v7192 = vadd.f32 0.0, %v7191
    %v7193 = vpop.f32.mrf.mxu0
    %7194 = vmatprep.mubr.bf16.mxu0 0
    %7195 = vmatmul.mubr.bf16.gmra.mxu0 %v7029
    %v7196 = vpop.f32.mrf.mxu0
    %v7197 = vadd.f32 0.0, %v7196
    %v7198 = vpop.f32.mrf.mxu0
    %v7199 = vpop.f32.mrf.mxu0
    %v7200 = vadd.f32 0.0, %v7199
    %v7201 = vpop.f32.mrf.mxu0
    %7202 = vmatprep.mubr.bf16.mxu0 0
    %7203 = vmatmul.mubr.bf16.gmra.mxu0 %v7032
    %v7204 = vpop.f32.mrf.mxu0
    %v7205 = vadd.f32 0.0, %v7204
    %v7206 = vpop.f32.mrf.mxu0
    %v7207 = vpop.f32.mrf.mxu0
    %v7208 = vadd.f32 0.0, %v7207
    %v7209 = vpop.f32.mrf.mxu0
    %7210 = vmatprep.mubr.bf16.mxu0 0
    %7211 = vmatmul.mubr.bf16.gmra.mxu0 %v7035
    %v7212 = vpop.f32.mrf.mxu0
    %v7213 = vadd.f32 0.0, %v7212
    %v7214 = vpop.f32.mrf.mxu0
    %v7215 = vpop.f32.mrf.mxu0
    %v7216 = vadd.f32 0.0, %v7215
    %v7217 = vpop.f32.mrf.mxu0
    %7218 = vmatprep.mubr.bf16.mxu0 0
    %7219 = vmatmul.mubr.bf16.gmra.mxu0 %v7038
    %v7220 = vpop.f32.mrf.mxu0
    %v7221 = vadd.f32 0.0, %v7220
    %v7222 = vpop.f32.mrf.mxu0
    %v7223 = vpop.f32.mrf.mxu0
    %v7224 = vadd.f32 0.0, %v7223
    %v7225 = vpop.f32.mrf.mxu0
    %7226 = vmatprep.mubr.bf16.mxu0 0
    %7227 = vmatmul.mubr.bf16.gmra.mxu0 %v7041
    %v7228 = vpop.f32.mrf.mxu0
    %v7229 = vadd.f32 0.0, %v7228
    %v7230 = vpop.f32.mrf.mxu0
    %v7231 = vpop.f32.mrf.mxu0
    %v7232 = vadd.f32 0.0, %v7231
    %v7233 = vpop.f32.mrf.mxu0
    %7234 = vmatprep.mubr.bf16.mxu0 0
    %7235 = vmatmul.mubr.bf16.gmra.mxu0 %v7044
    %v7236 = vpop.f32.mrf.mxu0
    %v7237 = vadd.f32 0.0, %v7236
    %v7238 = vpop.f32.mrf.mxu0
    %v7239 = vpop.f32.mrf.mxu0
    %v7240 = vadd.f32 0.0, %v7239
    %v7241 = vpop.f32.mrf.mxu0
    %7242 = vmatprep.mubr.bf16.mxu0 0
    %7243 = vmatmul.mubr.bf16.gmra.mxu0 %v7047
    %v7244 = vpop.f32.mrf.mxu0
    %v7245 = vadd.f32 0.0, %v7244
    %v7246 = vpop.f32.mrf.mxu0
    %v7247 = vpop.f32.mrf.mxu0
    %v7248 = vadd.f32 0.0, %v7247
    %v7249 = vpop.f32.mrf.mxu0
    %7250 = vmatprep.mubr.bf16.mxu0 0
    %7251 = vmatmul.mubr.bf16.gmra.mxu0 %v7050
    %v7252 = vpop.f32.mrf.mxu0
    %v7253 = vadd.f32 0.0, %v7252
    %v7254 = vpop.f32.mrf.mxu0
    %v7255 = vpop.f32.mrf.mxu0
    %v7256 = vadd.f32 0.0, %v7255
    %v7257 = vpop.f32.mrf.mxu0
    %7258 = vmatprep.mubr.bf16.mxu0 0
    %7259 = vmatmul.mubr.bf16.gmra.mxu0 %v7053
    %v7260 = vpop.f32.mrf.mxu0
    %v7261 = vadd.f32 0.0, %v7260
    %v7262 = vpop.f32.mrf.mxu0
    %v7263 = vpop.f32.mrf.mxu0
    %v7264 = vadd.f32 0.0, %v7263
    %v7265 = vpop.f32.mrf.mxu0
    %7266 = vmatprep.mubr.bf16.mxu0 0
    %7267 = vmatmul.mubr.bf16.gmra.mxu0 %v7056
    %v7268 = vpop.f32.mrf.mxu0
    %v7269 = vadd.f32 0.0, %v7268
    %v7270 = vpop.f32.mrf.mxu0
    %v7271 = vpop.f32.mrf.mxu0
    %v7272 = vadd.f32 0.0, %v7271
    %v7273 = vpop.f32.mrf.mxu0
    %7274 = vmatprep.mubr.bf16.mxu0 0
    %7275 = vmatmul.mubr.bf16.gmra.mxu0 %v7059
    %v7276 = vpop.f32.mrf.mxu0
    %v7277 = vadd.f32 0.0, %v7276
    %v7278 = vpop.f32.mrf.mxu0
    %v7279 = vpop.f32.mrf.mxu0
    %v7280 = vadd.f32 0.0, %v7279
    %v7281 = vpop.f32.mrf.mxu0
    %7282 = vmatprep.mubr.bf16.mxu0 0
    %7283 = vmatmul.mubr.bf16.gmra.mxu0 %v7062
    %v7284 = vpop.f32.mrf.mxu0
    %v7285 = vadd.f32 0.0, %v7284
    %v7286 = vpop.f32.mrf.mxu0
    %v7287 = vpop.f32.mrf.mxu0
    %v7288 = vadd.f32 0.0, %v7287
    %v7289 = vpop.f32.mrf.mxu0
    %7290 = vmatprep.mubr.bf16.mxu0 0
    %7291 = vmatmul.mubr.bf16.gmra.mxu0 %v7065
    %v7292 = vpop.f32.mrf.mxu0
    %v7293 = vadd.f32 0.0, %v7292
    %v7294 = vpop.f32.mrf.mxu0
    %v7295 = vpop.f32.mrf.mxu0
    %v7296 = vadd.f32 0.0, %v7295
    %v7297 = vpop.f32.mrf.mxu0
    %7298 = vmatprep.mubr.bf16.mxu0 0
    %7299 = vmatmul.mubr.bf16.gmra.mxu0 %v7068
    %v7300 = vpop.f32.mrf.mxu0
    %v7301 = vadd.f32 0.0, %v7300
    %v7302 = vpop.f32.mrf.mxu0
    %v7303 = vpop.f32.mrf.mxu0
    %v7304 = vadd.f32 0.0, %v7303
    %v7305 = vpop.f32.mrf.mxu0
    %7306 = vmatprep.mubr.bf16.mxu0 0
    %7307 = vmatmul.mubr.bf16.gmra.mxu0 %v7071
    %v7308 = vpop.f32.mrf.mxu0
    %v7309 = vadd.f32 0.0, %v7308
    %v7310 = vpop.f32.mrf.mxu0
    %v7311 = vpop.f32.mrf.mxu0
    %v7312 = vadd.f32 0.0, %v7311
    %v7313 = vpop.f32.mrf.mxu0
    %7314 = vmatprep.mubr.bf16.mxu0 0
    %7315 = vmatmul.mubr.bf16.gmra.mxu0 %v7074
    %v7316 = vpop.f32.mrf.mxu0
    %v7317 = vadd.f32 0.0, %v7316
    %v7318 = vpop.f32.mrf.mxu0
    %v7319 = vpop.f32.mrf.mxu0
    %v7320 = vadd.f32 0.0, %v7319
    %v7321 = vpop.f32.mrf.mxu0
    %7322 = vmatprep.mubr.bf16.mxu0 0
    %7323 = vmatmul.mubr.bf16.gmra.mxu0 %v7077
    %v7324 = vpop.f32.mrf.mxu0
    %v7325 = vadd.f32 0.0, %v7324
    %v7326 = vpop.f32.mrf.mxu0
    %v7327 = vpop.f32.mrf.mxu0
    %v7328 = vadd.f32 0.0, %v7327
    %v7329 = vpop.f32.mrf.mxu0
    %7330 = vmatprep.mubr.bf16.mxu0 0
    %7331 = vmatmul.mubr.bf16.gmra.mxu0 %v7080
    %v7332 = vpop.f32.mrf.mxu0
    %v7333 = vadd.f32 0.0, %v7332
    %v7334 = vpop.f32.mrf.mxu0
    %v7335 = vpop.f32.mrf.mxu0
    %v7336 = vadd.f32 0.0, %v7335
    %v7337 = vpop.f32.mrf.mxu0
    %7338 = vmatprep.mubr.bf16.mxu0 0
    %7339 = vmatmul.mubr.bf16.gmra.mxu0 %v7083
    %v7340 = vpop.f32.mrf.mxu0
    %v7341 = vadd.f32 0.0, %v7340
    %v7342 = vpop.f32.mrf.mxu0
    %v7343 = vpop.f32.mrf.mxu0
    %v7344 = vadd.f32 0.0, %v7343
    %v7345 = vpop.f32.mrf.mxu0
    %7346 = vmatprep.mubr.bf16.mxu0 0
    %7347 = vmatmul.mubr.bf16.gmra.mxu0 %v7086
    %v7348 = vpop.f32.mrf.mxu0
    %v7349 = vadd.f32 0.0, %v7348
    %v7350 = vpop.f32.mrf.mxu0
    %v7351 = vpop.f32.mrf.mxu0
    %v7352 = vadd.f32 0.0, %v7351
    %v7353 = vpop.f32.mrf.mxu0
    %7354 = vmatprep.mubr.bf16.mxu0 0
    %7355 = vmatmul.mubr.bf16.gmra.mxu0 %v7089
    %v7356 = vpop.f32.mrf.mxu0
    %v7357 = vadd.f32 0.0, %v7356
    %v7358 = vpop.f32.mrf.mxu0
    %v7359 = vpop.f32.mrf.mxu0
    %v7360 = vadd.f32 0.0, %v7359
    %v7361 = vpop.f32.mrf.mxu0
    %7362 = vmatprep.mubr.bf16.mxu0 0
    %7363 = vmatmul.mubr.bf16.gmra.mxu0 %v7092
    %v7364 = vpop.f32.mrf.mxu0
    %v7365 = vadd.f32 0.0, %v7364
    %v7366 = vpop.f32.mrf.mxu0
    %v7367 = vpop.f32.mrf.mxu0
    %v7368 = vadd.f32 0.0, %v7367
    %v7369 = vpop.f32.mrf.mxu0
    %7370 = vmatprep.mubr.bf16.mxu0 0
    %7371 = vmatmul.mubr.bf16.gmra.mxu0 %v7095
    %v7372 = vpop.f32.mrf.mxu0
    %v7373 = vadd.f32 0.0, %v7372
    %v7374 = vpop.f32.mrf.mxu0
    %v7375 = vpop.f32.mrf.mxu0
    %v7376 = vadd.f32 0.0, %v7375
    %v7377 = vpop.f32.mrf.mxu0
    %7378 = vmatprep.mubr.bf16.mxu0 0
    %7379 = vmatmul.mubr.bf16.gmra.mxu0 %v7098
    %v7380 = vpop.f32.mrf.mxu0
    %v7381 = vadd.f32 0.0, %v7380
    %v7382 = vpop.f32.mrf.mxu0
    %v7383 = vpop.f32.mrf.mxu0
    %v7384 = vadd.f32 0.0, %v7383
    %v7385 = vpop.f32.mrf.mxu0
    %7386 = vmatprep.mubr.bf16.mxu0 0
    %7387 = vmatmul.mubr.bf16.gmra.mxu0 %v7101
    %v7388 = vpop.f32.mrf.mxu0
    %v7389 = vadd.f32 0.0, %v7388
    %v7390 = vpop.f32.mrf.mxu0
    %v7391 = vpop.f32.mrf.mxu0
    %v7392 = vadd.f32 0.0, %v7391
    %v7393 = vpop.f32.mrf.mxu0
    %7394 = vdwg.mxu0
    %v7395 = vld [vmem:[#allocation2] sm:$0xff]
    %v7396 = vld [vmem:[#allocation2 + $0x8] sm:$0xff]
    %v7397 = vld [vmem:[#allocation2 + $0x10] sm:$0xff]
    %v7398 = vld [vmem:[#allocation2 + $0x18] sm:$0xff]
    %v7399 = vld [vmem:[#allocation2 + $0x20] sm:$0xff]
    %v7400 = vld [vmem:[#allocation2 + $0x28] sm:$0xff]
    %v7401 = vld [vmem:[#allocation2 + $0x30] sm:$0xff]
    %v7402 = vld [vmem:[#allocation2 + $0x38] sm:$0xff]
    %v7403 = vld [vmem:[#allocation2 + $0x40] sm:$0xff]
    %v7404 = vld [vmem:[#allocation2 + $0x48] sm:$0xff]
    %v7405 = vld [vmem:[#allocation2 + $0x50] sm:$0xff]
    %v7406 = vld [vmem:[#allocation2 + $0x58] sm:$0xff]
    %v7407 = vld [vmem:[#allocation2 + $0x60] sm:$0xff]
    %v7408 = vld [vmem:[#allocation2 + $0x68] sm:$0xff]
    %v7409 = vld [vmem:[#allocation2 + $0x70] sm:$0xff]
    %v7410 = vld [vmem:[#allocation2 + $0x78] sm:$0xff]
    %v7411 = vld [vmem:[#allocation2 + $0x80] sm:$0xff]
    %v7412 = vld [vmem:[#allocation2 + $0x88] sm:$0xff]
    %v7413 = vld [vmem:[#allocation2 + $0x90] sm:$0xff]
    %v7414 = vld [vmem:[#allocation2 + $0x98] sm:$0xff]
    %v7415 = vld [vmem:[#allocation2 + $0xa0] sm:$0xff]
    %v7416 = vld [vmem:[#allocation2 + $0xa8] sm:$0xff]
    %v7417 = vld [vmem:[#allocation2 + $0xb0] sm:$0xff]
    %v7418 = vld [vmem:[#allocation2 + $0xb8] sm:$0xff]
    %v7419 = vld [vmem:[#allocation2 + $0xc0] sm:$0xff]
    %v7420 = vld [vmem:[#allocation2 + $0xc8] sm:$0xff]
    %v7421 = vld [vmem:[#allocation2 + $0xd0] sm:$0xff]
    %v7422 = vld [vmem:[#allocation2 + $0xd8] sm:$0xff]
    %v7423 = vld [vmem:[#allocation2 + $0xe0] sm:$0xff]
    %v7424 = vld [vmem:[#allocation2 + $0xe8] sm:$0xff]
    %v7425 = vld [vmem:[#allocation2 + $0xf0] sm:$0xff]
    %v7426 = vld [vmem:[#allocation2 + $0xf8] sm:$0xff]
    %v7427 = vld [vmem:[#allocation2 + $0x100] sm:$0xff]
    %v7428 = vld [vmem:[#allocation2 + $0x108] sm:$0xff]
    %v7429 = vld [vmem:[#allocation2 + $0x110] sm:$0xff]
    %v7430 = vld [vmem:[#allocation2 + $0x118] sm:$0xff]
    %v7431 = vld [vmem:[#allocation2 + $0x120] sm:$0xff]
    %v7432 = vld [vmem:[#allocation2 + $0x128] sm:$0xff]
    %v7433 = vld [vmem:[#allocation2 + $0x130] sm:$0xff]
    %v7434 = vld [vmem:[#allocation2 + $0x138] sm:$0xff]
    %v7435 = vld [vmem:[#allocation2 + $0x140] sm:$0xff]
    %v7436 = vld [vmem:[#allocation2 + $0x148] sm:$0xff]
    %v7437 = vld [vmem:[#allocation2 + $0x150] sm:$0xff]
    %v7438 = vld [vmem:[#allocation2 + $0x158] sm:$0xff]
    %v7439 = vld [vmem:[#allocation2 + $0x160] sm:$0xff]
    %v7440 = vld [vmem:[#allocation2 + $0x168] sm:$0xff]
    %v7441 = vld [vmem:[#allocation2 + $0x170] sm:$0xff]
    %v7442 = vld [vmem:[#allocation2 + $0x178] sm:$0xff]
    %v7443 = vld [vmem:[#allocation2 + $0x180] sm:$0xff]
    %v7444 = vld [vmem:[#allocation2 + $0x188] sm:$0xff]
    %v7445 = vld [vmem:[#allocation2 + $0x190] sm:$0xff]
    %v7446 = vld [vmem:[#allocation2 + $0x198] sm:$0xff]
    %v7447 = vld [vmem:[#allocation2 + $0x1a0] sm:$0xff]
    %v7448 = vld [vmem:[#allocation2 + $0x1a8] sm:$0xff]
    %v7449 = vld [vmem:[#allocation2 + $0x1b0] sm:$0xff]
    %v7450 = vld [vmem:[#allocation2 + $0x1b8] sm:$0xff]
    %v7451 = vld [vmem:[#allocation2 + $0x1c0] sm:$0xff]
    %v7452 = vld [vmem:[#allocation2 + $0x1c8] sm:$0xff]
    %v7453 = vld [vmem:[#allocation2 + $0x1d0] sm:$0xff]
    %v7454 = vld [vmem:[#allocation2 + $0x1d8] sm:$0xff]
    %v7455 = vld [vmem:[#allocation2 + $0x1e0] sm:$0xff]
    %v7456 = vld [vmem:[#allocation2 + $0x1e8] sm:$0xff]
    %v7457 = vld [vmem:[#allocation2 + $0x1f0] sm:$0xff]
    %v7458 = vld [vmem:[#allocation2 + $0x1f8] sm:$0xff]
    %v7459 = vadd.f32 %v7395, %v7141
    %v7460 = vadd.f32 %v7396, %v7144
    %v7461 = vadd.f32 %v7397, %v7149
    %v7462 = vadd.f32 %v7398, %v7152
    %v7463 = vadd.f32 %v7399, %v7157
    %v7464 = vadd.f32 %v7400, %v7160
    %v7465 = vadd.f32 %v7401, %v7165
    %v7466 = vadd.f32 %v7402, %v7168
    %v7467 = vadd.f32 %v7403, %v7173
    %v7468 = vadd.f32 %v7404, %v7176
    %v7469 = vadd.f32 %v7405, %v7181
    %v7470 = vadd.f32 %v7406, %v7184
    %v7471 = vadd.f32 %v7407, %v7189
    %v7472 = vadd.f32 %v7408, %v7192
    %v7473 = vadd.f32 %v7409, %v7197
    %v7474 = vadd.f32 %v7410, %v7200
    %v7475 = vadd.f32 %v7411, %v7205
    %v7476 = vadd.f32 %v7412, %v7208
    %v7477 = vadd.f32 %v7413, %v7213
    %v7478 = vadd.f32 %v7414, %v7216
    %v7479 = vadd.f32 %v7415, %v7221
    %v7480 = vadd.f32 %v7416, %v7224
    %v7481 = vadd.f32 %v7417, %v7229
    %v7482 = vadd.f32 %v7418, %v7232
    %v7483 = vadd.f32 %v7419, %v7237
    %v7484 = vadd.f32 %v7420, %v7240
    %v7485 = vadd.f32 %v7421, %v7245
    %v7486 = vadd.f32 %v7422, %v7248
    %v7487 = vadd.f32 %v7423, %v7253
    %v7488 = vadd.f32 %v7424, %v7256
    %v7489 = vadd.f32 %v7425, %v7261
    %v7490 = vadd.f32 %v7426, %v7264
    %v7491 = vadd.f32 %v7427, %v7269
    %v7492 = vadd.f32 %v7428, %v7272
    %v7493 = vadd.f32 %v7429, %v7277
    %v7494 = vadd.f32 %v7430, %v7280
    %v7495 = vadd.f32 %v7431, %v7285
    %v7496 = vadd.f32 %v7432, %v7288
    %v7497 = vadd.f32 %v7433, %v7293
    %v7498 = vadd.f32 %v7434, %v7296
    %v7499 = vadd.f32 %v7435, %v7301
    %v7500 = vadd.f32 %v7436, %v7304
    %v7501 = vadd.f32 %v7437, %v7309
    %v7502 = vadd.f32 %v7438, %v7312
    %v7503 = vadd.f32 %v7439, %v7317
    %v7504 = vadd.f32 %v7440, %v7320
    %v7505 = vadd.f32 %v7441, %v7325
    %v7506 = vadd.f32 %v7442, %v7328
    %v7507 = vadd.f32 %v7443, %v7333
    %v7508 = vadd.f32 %v7444, %v7336
    %v7509 = vadd.f32 %v7445, %v7341
    %v7510 = vadd.f32 %v7446, %v7344
    %v7511 = vadd.f32 %v7447, %v7349
    %v7512 = vadd.f32 %v7448, %v7352
    %v7513 = vadd.f32 %v7449, %v7357
    %v7514 = vadd.f32 %v7450, %v7360
    %v7515 = vadd.f32 %v7451, %v7365
    %v7516 = vadd.f32 %v7452, %v7368
    %v7517 = vadd.f32 %v7453, %v7373
    %v7518 = vadd.f32 %v7454, %v7376
    %v7519 = vadd.f32 %v7455, %v7381
    %v7520 = vadd.f32 %v7456, %v7384
    %v7521 = vadd.f32 %v7457, %v7389
    %v7522 = vadd.f32 %v7458, %v7392
    %7523 = vst [vmem:[#allocation2] sm:$0xff] %v7459
    %7524 = vst [vmem:[#allocation2 + $0x8] sm:$0xff] %v7460
    %7525 = vst [vmem:[#allocation2 + $0x10] sm:$0xff] %v7461
    %7526 = vst [vmem:[#allocation2 + $0x18] sm:$0xff] %v7462
    %7527 = vst [vmem:[#allocation2 + $0x20] sm:$0xff] %v7463
    %7528 = vst [vmem:[#allocation2 + $0x28] sm:$0xff] %v7464
    %7529 = vst [vmem:[#allocation2 + $0x30] sm:$0xff] %v7465
    %7530 = vst [vmem:[#allocation2 + $0x38] sm:$0xff] %v7466
    %7531 = vst [vmem:[#allocation2 + $0x40] sm:$0xff] %v7467
    %7532 = vst [vmem:[#allocation2 + $0x48] sm:$0xff] %v7468
    %7533 = vst [vmem:[#allocation2 + $0x50] sm:$0xff] %v7469
    %7534 = vst [vmem:[#allocation2 + $0x58] sm:$0xff] %v7470
    %7535 = vst [vmem:[#allocation2 + $0x60] sm:$0xff] %v7471
    %7536 = vst [vmem:[#allocation2 + $0x68] sm:$0xff] %v7472
    %7537 = vst [vmem:[#allocation2 + $0x70] sm:$0xff] %v7473
    %7538 = vst [vmem:[#allocation2 + $0x78] sm:$0xff] %v7474
    %7539 = vst [vmem:[#allocation2 + $0x80] sm:$0xff] %v7475
    %7540 = vst [vmem:[#allocation2 + $0x88] sm:$0xff] %v7476
    %7541 = vst [vmem:[#allocation2 + $0x90] sm:$0xff] %v7477
    %7542 = vst [vmem:[#allocation2 + $0x98] sm:$0xff] %v7478
    %7543 = vst [vmem:[#allocation2 + $0xa0] sm:$0xff] %v7479
    %7544 = vst [vmem:[#allocation2 + $0xa8] sm:$0xff] %v7480
    %7545 = vst [vmem:[#allocation2 + $0xb0] sm:$0xff] %v7481
    %7546 = vst [vmem:[#allocation2 + $0xb8] sm:$0xff] %v7482
    %7547 = vst [vmem:[#allocation2 + $0xc0] sm:$0xff] %v7483
    %7548 = vst [vmem:[#allocation2 + $0xc8] sm:$0xff] %v7484
    %7549 = vst [vmem:[#allocation2 + $0xd0] sm:$0xff] %v7485
    %7550 = vst [vmem:[#allocation2 + $0xd8] sm:$0xff] %v7486
    %7551 = vst [vmem:[#allocation2 + $0xe0] sm:$0xff] %v7487
    %7552 = vst [vmem:[#allocation2 + $0xe8] sm:$0xff] %v7488
    %7553 = vst [vmem:[#allocation2 + $0xf0] sm:$0xff] %v7489
    %7554 = vst [vmem:[#allocation2 + $0xf8] sm:$0xff] %v7490
    %7555 = vst [vmem:[#allocation2 + $0x100] sm:$0xff] %v7491
    %7556 = vst [vmem:[#allocation2 + $0x108] sm:$0xff] %v7492
    %7557 = vst [vmem:[#allocation2 + $0x110] sm:$0xff] %v7493
    %7558 = vst [vmem:[#allocation2 + $0x118] sm:$0xff] %v7494
    %7559 = vst [vmem:[#allocation2 + $0x120] sm:$0xff] %v7495
    %7560 = vst [vmem:[#allocation2 + $0x128] sm:$0xff] %v7496
    %7561 = vst [vmem:[#allocation2 + $0x130] sm:$0xff] %v7497
    %7562 = vst [vmem:[#allocation2 + $0x138] sm:$0xff] %v7498
    %7563 = vst [vmem:[#allocation2 + $0x140] sm:$0xff] %v7499
    %7564 = vst [vmem:[#allocation2 + $0x148] sm:$0xff] %v7500
    %7565 = vst [vmem:[#allocation2 + $0x150] sm:$0xff] %v7501
    %7566 = vst [vmem:[#allocation2 + $0x158] sm:$0xff] %v7502
    %7567 = vst [vmem:[#allocation2 + $0x160] sm:$0xff] %v7503
    %7568 = vst [vmem:[#allocation2 + $0x168] sm:$0xff] %v7504
    %7569 = vst [vmem:[#allocation2 + $0x170] sm:$0xff] %v7505
    %7570 = vst [vmem:[#allocation2 + $0x178] sm:$0xff] %v7506
    %7571 = vst [vmem:[#allocation2 + $0x180] sm:$0xff] %v7507
    %7572 = vst [vmem:[#allocation2 + $0x188] sm:$0xff] %v7508
    %7573 = vst [vmem:[#allocation2 + $0x190] sm:$0xff] %v7509
    %7574 = vst [vmem:[#allocation2 + $0x198] sm:$0xff] %v7510
    %7575 = vst [vmem:[#allocation2 + $0x1a0] sm:$0xff] %v7511
    %7576 = vst [vmem:[#allocation2 + $0x1a8] sm:$0xff] %v7512
    %7577 = vst [vmem:[#allocation2 + $0x1b0] sm:$0xff] %v7513
    %7578 = vst [vmem:[#allocation2 + $0x1b8] sm:$0xff] %v7514
    %7579 = vst [vmem:[#allocation2 + $0x1c0] sm:$0xff] %v7515
    %7580 = vst [vmem:[#allocation2 + $0x1c8] sm:$0xff] %v7516
    %7581 = vst [vmem:[#allocation2 + $0x1d0] sm:$0xff] %v7517
    %7582 = vst [vmem:[#allocation2 + $0x1d8] sm:$0xff] %v7518
    %7583 = vst [vmem:[#allocation2 + $0x1e0] sm:$0xff] %v7519
    %7584 = vst [vmem:[#allocation2 + $0x1e8] sm:$0xff] %v7520
    %7585 = vst [vmem:[#allocation2 + $0x1f0] sm:$0xff] %v7521
    %7586 = vst [vmem:[#allocation2 + $0x1f8] sm:$0xff] %v7522
    %v7587 = vld [vmem:[%s6780] sm:$0xf]
    %v7588 = vld [vmem:[%s6780 + $0x4] sm:$0xf]
    %v7589 = vld [vmem:[%s6780 + $0x8] sm:$0x1]
    %v7590 = vld [vmem:[%s6780 + $0xc] sm:$0xf]
    %v7591 = vld [vmem:[%s6780 + $0x10] sm:$0xf]
    %v7592 = vld [vmem:[%s6780 + $0x14] sm:$0x1]
    %v7593 = vld [vmem:[%s6780 + $0x18] sm:$0xf]
    %v7594 = vld [vmem:[%s6780 + $0x1c] sm:$0xf]
    %v7595 = vld [vmem:[%s6780 + $0x20] sm:$0x1]
    %v7596 = vld [vmem:[%s6780 + $0x24] sm:$0xf]
    %v7597 = vld [vmem:[%s6780 + $0x28] sm:$0xf]
    %v7598 = vld [vmem:[%s6780 + $0x2c] sm:$0x1]
    %v7599 = vld [vmem:[%s6780 + $0x30] sm:$0xf]
    %v7600 = vld [vmem:[%s6780 + $0x34] sm:$0xf]
    %v7601 = vld [vmem:[%s6780 + $0x38] sm:$0x1]
    %v7602 = vld [vmem:[%s6780 + $0x3c] sm:$0xf]
    %v7603 = vld [vmem:[%s6780 + $0x40] sm:$0xf]
    %v7604 = vld [vmem:[%s6780 + $0x44] sm:$0x1]
    %v7605 = vld [vmem:[%s6780 + $0x48] sm:$0xf]
    %v7606 = vld [vmem:[%s6780 + $0x4c] sm:$0xf]
    %v7607 = vld [vmem:[%s6780 + $0x50] sm:$0x1]
    %v7608 = vld [vmem:[%s6780 + $0x54] sm:$0xf]
    %v7609 = vld [vmem:[%s6780 + $0x58] sm:$0xf]
    %v7610 = vld [vmem:[%s6780 + $0x5c] sm:$0x1]
    %v7611 = vld [vmem:[%s6780 + $0x60] sm:$0xf]
    %v7612 = vld [vmem:[%s6780 + $0x64] sm:$0xf]
    %v7613 = vld [vmem:[%s6780 + $0x68] sm:$0x1]
    %v7614 = vld [vmem:[%s6780 + $0x6c] sm:$0xf]
    %v7615 = vld [vmem:[%s6780 + $0x70] sm:$0xf]
    %v7616 = vld [vmem:[%s6780 + $0x74] sm:$0x1]
    %v7617 = vld [vmem:[%s6780 + $0x78] sm:$0xf]
    %v7618 = vld [vmem:[%s6780 + $0x7c] sm:$0xf]
    %v7619 = vld [vmem:[%s6780 + $0x80] sm:$0x1]
    %v7620 = vld [vmem:[%s6780 + $0x84] sm:$0xf]
    %v7621 = vld [vmem:[%s6780 + $0x88] sm:$0xf]
    %v7622 = vld [vmem:[%s6780 + $0x8c] sm:$0x1]
    %v7623 = vld [vmem:[%s6780 + $0x90] sm:$0xf]
    %v7624 = vld [vmem:[%s6780 + $0x94] sm:$0xf]
    %v7625 = vld [vmem:[%s6780 + $0x98] sm:$0x1]
    %v7626 = vld [vmem:[%s6780 + $0x9c] sm:$0xf]
    %v7627 = vld [vmem:[%s6780 + $0xa0] sm:$0xf]
    %v7628 = vld [vmem:[%s6780 + $0xa4] sm:$0x1]
    %v7629 = vld [vmem:[%s6780 + $0xa8] sm:$0xf]
    %v7630 = vld [vmem:[%s6780 + $0xac] sm:$0xf]
    %v7631 = vld [vmem:[%s6780 + $0xb0] sm:$0x1]
    %v7632 = vld [vmem:[%s6780 + $0xb4] sm:$0xf]
    %v7633 = vld [vmem:[%s6780 + $0xb8] sm:$0xf]
    %v7634 = vld [vmem:[%s6780 + $0xbc] sm:$0x1]
    %v7635 = vld [vmem:[%s6780 + $0xd8] sm:$0xf]
    %v7636 = vld [vmem:[%s6780 + $0xdc] sm:$0xf]
    %v7637 = vld [vmem:[%s6780 + $0xe0] sm:$0x1]
    %v7638 = vld [vmem:[%s6780 + $0xe4] sm:$0xf]
    %v7639 = vld [vmem:[%s6780 + $0xe8] sm:$0xf]
    %v7640 = vld [vmem:[%s6780 + $0xec] sm:$0x1]
    %v7641 = vld [vmem:[%s6780 + $0xf0] sm:$0xf]
    %v7642 = vld [vmem:[%s6780 + $0xf4] sm:$0xf]
    %v7643 = vld [vmem:[%s6780 + $0xf8] sm:$0x1]
    %v7644 = vld [vmem:[%s6780 + $0xfc] sm:$0xf]
    %v7645 = vld [vmem:[%s6780 + $0x100] sm:$0xf]
    %v7646 = vld [vmem:[%s6780 + $0x104] sm:$0x1]
    %v7647 = vld [vmem:[%s6780 + $0x108] sm:$0xf]
    %v7648 = vld [vmem:[%s6780 + $0x10c] sm:$0xf]
    %v7649 = vld [vmem:[%s6780 + $0x110] sm:$0x1]
    %v7650 = vld [vmem:[%s6780 + $0x114] sm:$0xf]
    %v7651 = vld [vmem:[%s6780 + $0x118] sm:$0xf]
    %v7652 = vld [vmem:[%s6780 + $0x11c] sm:$0x1]
    %v7653 = vld [vmem:[%s6780 + $0x120] sm:$0xf]
    %v7654 = vld [vmem:[%s6780 + $0x124] sm:$0xf]
    %v7655 = vld [vmem:[%s6780 + $0x128] sm:$0x1]
    %v7656 = vld [vmem:[%s6780 + $0x12c] sm:$0xf]
    %v7657 = vld [vmem:[%s6780 + $0x130] sm:$0xf]
    %v7658 = vld [vmem:[%s6780 + $0x134] sm:$0x1]
    %v7659 = vld [vmem:[%s6780 + $0x138] sm:$0xf]
    %v7660 = vld [vmem:[%s6780 + $0x13c] sm:$0xf]
    %v7661 = vld [vmem:[%s6780 + $0x140] sm:$0x1]
    %v7662 = vld [vmem:[%s6780 + $0x144] sm:$0xf]
    %v7663 = vld [vmem:[%s6780 + $0x148] sm:$0xf]
    %v7664 = vld [vmem:[%s6780 + $0x14c] sm:$0x1]
    %v7665 = vld [vmem:[%s6780 + $0x150] sm:$0xf]
    %v7666 = vld [vmem:[%s6780 + $0x154] sm:$0xf]
    %v7667 = vld [vmem:[%s6780 + $0x158] sm:$0x1]
    %v7668 = vld [vmem:[%s6780 + $0x15c] sm:$0xf]
    %v7669 = vld [vmem:[%s6780 + $0x160] sm:$0xf]
    %v7670 = vld [vmem:[%s6780 + $0x164] sm:$0x1]
    %v7671 = vld [vmem:[%s6780 + $0x168] sm:$0xf]
    %v7672 = vld [vmem:[%s6780 + $0x16c] sm:$0xf]
    %v7673 = vld [vmem:[%s6780 + $0x170] sm:$0x1]
    %v7674 = vld [vmem:[%s6780 + $0x174] sm:$0xf]
    %v7675 = vld [vmem:[%s6780 + $0x178] sm:$0xf]
    %v7676 = vld [vmem:[%s6780 + $0x17c] sm:$0x1]
    %v7677 = vld [vmem:[%s6780 + $0x180] sm:$0xf]
    %v7678 = vld [vmem:[%s6780 + $0x184] sm:$0xf]
    %v7679 = vld [vmem:[%s6780 + $0x188] sm:$0x1]
    %v7680 = vld [vmem:[%s6780 + $0x18c] sm:$0xf]
    %v7681 = vld [vmem:[%s6780 + $0x190] sm:$0xf]
    %v7682 = vld [vmem:[%s6780 + $0x194] sm:$0x1]
    %v7684 = vshrl.u32 %v7587, 16
    %v7686 = vrot.slane %v7684, 4
    %v7687 = vshll.u32 %v7587, 16
    %v7689 = vrot.slane %v7687, 5
    %v7690 = vor.u32 %v7686, %v7689
    %v7691 = vrot.slane %v7690, 4
    %v7693 = vshll.u32 %v7588, 16
    %v7695 = vrot.slane %v7693, 5
    %v7696 = vsel %vm793, %v7691, %v7695
    %v7697 = vshrl.u32 %v7588, 16
    %v7699 = vrot.slane %v7697, 4
    %v7700 = vor.u32 %v7699, %v7695
    %v7701 = vrot.slane %v7700, 4
    %v7703 = vshll.u32 %v7589, 16
    %v7705 = vrot.slane %v7703, 5
    %v7706 = vsel %vm793, %v7701, %v7705
    %v7708 = vshrl.u32 %v7590, 16
    %v7710 = vrot.slane %v7708, 4
    %v7711 = vshll.u32 %v7590, 16
    %v7713 = vrot.slane %v7711, 5
    %v7714 = vor.u32 %v7710, %v7713
    %v7715 = vrot.slane %v7714, 4
    %v7717 = vshll.u32 %v7591, 16
    %v7719 = vrot.slane %v7717, 5
    %v7720 = vsel %vm793, %v7715, %v7719
    %v7721 = vshrl.u32 %v7591, 16
    %v7723 = vrot.slane %v7721, 4
    %v7724 = vor.u32 %v7723, %v7719
    %v7725 = vrot.slane %v7724, 4
    %v7727 = vshll.u32 %v7592, 16
    %v7729 = vrot.slane %v7727, 5
    %v7730 = vsel %vm793, %v7725, %v7729
    %v7732 = vshrl.u32 %v7593, 16
    %v7734 = vrot.slane %v7732, 4
    %v7735 = vshll.u32 %v7593, 16
    %v7737 = vrot.slane %v7735, 5
    %v7738 = vor.u32 %v7734, %v7737
    %v7739 = vrot.slane %v7738, 4
    %v7741 = vshll.u32 %v7594, 16
    %v7743 = vrot.slane %v7741, 5
    %v7744 = vsel %vm793, %v7739, %v7743
    %v7745 = vshrl.u32 %v7594, 16
    %v7747 = vrot.slane %v7745, 4
    %v7748 = vor.u32 %v7747, %v7743
    %v7749 = vrot.slane %v7748, 4
    %v7751 = vshll.u32 %v7595, 16
    %v7753 = vrot.slane %v7751, 5
    %v7754 = vsel %vm793, %v7749, %v7753
    %v7756 = vshrl.u32 %v7596, 16
    %v7758 = vrot.slane %v7756, 4
    %v7759 = vshll.u32 %v7596, 16
    %v7761 = vrot.slane %v7759, 5
    %v7762 = vor.u32 %v7758, %v7761
    %v7763 = vrot.slane %v7762, 4
    %v7765 = vshll.u32 %v7597, 16
    %v7767 = vrot.slane %v7765, 5
    %v7768 = vsel %vm793, %v7763, %v7767
    %v7769 = vshrl.u32 %v7597, 16
    %v7771 = vrot.slane %v7769, 4
    %v7772 = vor.u32 %v7771, %v7767
    %v7773 = vrot.slane %v7772, 4
    %v7775 = vshll.u32 %v7598, 16
    %v7777 = vrot.slane %v7775, 5
    %v7778 = vsel %vm793, %v7773, %v7777
    %v7780 = vshrl.u32 %v7599, 16
    %v7782 = vrot.slane %v7780, 4
    %v7783 = vshll.u32 %v7599, 16
    %v7785 = vrot.slane %v7783, 5
    %v7786 = vor.u32 %v7782, %v7785
    %v7787 = vrot.slane %v7786, 4
    %v7789 = vshll.u32 %v7600, 16
    %v7791 = vrot.slane %v7789, 5
    %v7792 = vsel %vm793, %v7787, %v7791
    %v7793 = vshrl.u32 %v7600, 16
    %v7795 = vrot.slane %v7793, 4
    %v7796 = vor.u32 %v7795, %v7791
    %v7797 = vrot.slane %v7796, 4
    %v7799 = vshll.u32 %v7601, 16
    %v7801 = vrot.slane %v7799, 5
    %v7802 = vsel %vm793, %v7797, %v7801
    %v7804 = vshrl.u32 %v7602, 16
    %v7806 = vrot.slane %v7804, 4
    %v7807 = vshll.u32 %v7602, 16
    %v7809 = vrot.slane %v7807, 5
    %v7810 = vor.u32 %v7806, %v7809
    %v7811 = vrot.slane %v7810, 4
    %v7813 = vshll.u32 %v7603, 16
    %v7815 = vrot.slane %v7813, 5
    %v7816 = vsel %vm793, %v7811, %v7815
    %v7817 = vshrl.u32 %v7603, 16
    %v7819 = vrot.slane %v7817, 4
    %v7820 = vor.u32 %v7819, %v7815
    %v7821 = vrot.slane %v7820, 4
    %v7823 = vshll.u32 %v7604, 16
    %v7825 = vrot.slane %v7823, 5
    %v7826 = vsel %vm793, %v7821, %v7825
    %v7828 = vshrl.u32 %v7605, 16
    %v7830 = vrot.slane %v7828, 4
    %v7831 = vshll.u32 %v7605, 16
    %v7833 = vrot.slane %v7831, 5
    %v7834 = vor.u32 %v7830, %v7833
    %v7835 = vrot.slane %v7834, 4
    %v7837 = vshll.u32 %v7606, 16
    %v7839 = vrot.slane %v7837, 5
    %v7840 = vsel %vm793, %v7835, %v7839
    %v7841 = vshrl.u32 %v7606, 16
    %v7843 = vrot.slane %v7841, 4
    %v7844 = vor.u32 %v7843, %v7839
    %v7845 = vrot.slane %v7844, 4
    %v7847 = vshll.u32 %v7607, 16
    %v7849 = vrot.slane %v7847, 5
    %v7850 = vsel %vm793, %v7845, %v7849
    %v7852 = vshrl.u32 %v7608, 16
    %v7854 = vrot.slane %v7852, 4
    %v7855 = vshll.u32 %v7608, 16
    %v7857 = vrot.slane %v7855, 5
    %v7858 = vor.u32 %v7854, %v7857
    %v7859 = vrot.slane %v7858, 4
    %v7861 = vshll.u32 %v7609, 16
    %v7863 = vrot.slane %v7861, 5
    %v7864 = vsel %vm793, %v7859, %v7863
    %v7865 = vshrl.u32 %v7609, 16
    %v7867 = vrot.slane %v7865, 4
    %v7868 = vor.u32 %v7867, %v7863
    %v7869 = vrot.slane %v7868, 4
    %v7871 = vshll.u32 %v7610, 16
    %v7873 = vrot.slane %v7871, 5
    %v7874 = vsel %vm793, %v7869, %v7873
    %v7876 = vshrl.u32 %v7611, 16
    %v7878 = vrot.slane %v7876, 4
    %v7879 = vshll.u32 %v7611, 16
    %v7881 = vrot.slane %v7879, 5
    %v7882 = vor.u32 %v7878, %v7881
    %v7883 = vrot.slane %v7882, 4
    %v7885 = vshll.u32 %v7612, 16
    %v7887 = vrot.slane %v7885, 5
    %v7888 = vsel %vm793, %v7883, %v7887
    %v7889 = vshrl.u32 %v7612, 16
    %v7891 = vrot.slane %v7889, 4
    %v7892 = vor.u32 %v7891, %v7887
    %v7893 = vrot.slane %v7892, 4
    %v7895 = vshll.u32 %v7613, 16
    %v7897 = vrot.slane %v7895, 5
    %v7898 = vsel %vm793, %v7893, %v7897
    %v7900 = vshrl.u32 %v7614, 16
    %v7902 = vrot.slane %v7900, 4
    %v7903 = vshll.u32 %v7614, 16
    %v7905 = vrot.slane %v7903, 5
    %v7906 = vor.u32 %v7902, %v7905
    %v7907 = vrot.slane %v7906, 4
    %v7909 = vshll.u32 %v7615, 16
    %v7911 = vrot.slane %v7909, 5
    %v7912 = vsel %vm793, %v7907, %v7911
    %v7913 = vshrl.u32 %v7615, 16
    %v7915 = vrot.slane %v7913, 4
    %v7916 = vor.u32 %v7915, %v7911
    %v7917 = vrot.slane %v7916, 4
    %v7919 = vshll.u32 %v7616, 16
    %v7921 = vrot.slane %v7919, 5
    %v7922 = vsel %vm793, %v7917, %v7921
    %v7924 = vshrl.u32 %v7617, 16
    %v7926 = vrot.slane %v7924, 4
    %v7927 = vshll.u32 %v7617, 16
    %v7929 = vrot.slane %v7927, 5
    %v7930 = vor.u32 %v7926, %v7929
    %v7931 = vrot.slane %v7930, 4
    %v7933 = vshll.u32 %v7618, 16
    %v7935 = vrot.slane %v7933, 5
    %v7936 = vsel %vm793, %v7931, %v7935
    %v7937 = vshrl.u32 %v7618, 16
    %v7939 = vrot.slane %v7937, 4
    %v7940 = vor.u32 %v7939, %v7935
    %v7941 = vrot.slane %v7940, 4
    %v7943 = vshll.u32 %v7619, 16
    %v7945 = vrot.slane %v7943, 5
    %v7946 = vsel %vm793, %v7941, %v7945
    %v7948 = vshrl.u32 %v7620, 16
    %v7950 = vrot.slane %v7948, 4
    %v7951 = vshll.u32 %v7620, 16
    %v7953 = vrot.slane %v7951, 5
    %v7954 = vor.u32 %v7950, %v7953
    %v7955 = vrot.slane %v7954, 4
    %v7957 = vshll.u32 %v7621, 16
    %v7959 = vrot.slane %v7957, 5
    %v7960 = vsel %vm793, %v7955, %v7959
    %v7961 = vshrl.u32 %v7621, 16
    %v7963 = vrot.slane %v7961, 4
    %v7964 = vor.u32 %v7963, %v7959
    %v7965 = vrot.slane %v7964, 4
    %v7967 = vshll.u32 %v7622, 16
    %v7969 = vrot.slane %v7967, 5
    %v7970 = vsel %vm793, %v7965, %v7969
    %v7972 = vshrl.u32 %v7623, 16
    %v7974 = vrot.slane %v7972, 4
    %v7975 = vshll.u32 %v7623, 16
    %v7977 = vrot.slane %v7975, 5
    %v7978 = vor.u32 %v7974, %v7977
    %v7979 = vrot.slane %v7978, 4
    %v7981 = vshll.u32 %v7624, 16
    %v7983 = vrot.slane %v7981, 5
    %v7984 = vsel %vm793, %v7979, %v7983
    %v7985 = vshrl.u32 %v7624, 16
    %v7987 = vrot.slane %v7985, 4
    %v7988 = vor.u32 %v7987, %v7983
    %v7989 = vrot.slane %v7988, 4
    %v7991 = vshll.u32 %v7625, 16
    %v7993 = vrot.slane %v7991, 5
    %v7994 = vsel %vm793, %v7989, %v7993
    %v7996 = vshrl.u32 %v7626, 16
    %v7998 = vrot.slane %v7996, 4
    %v7999 = vshll.u32 %v7626, 16
    %v8001 = vrot.slane %v7999, 5
    %v8002 = vor.u32 %v7998, %v8001
    %v8003 = vrot.slane %v8002, 4
    %v8005 = vshll.u32 %v7627, 16
    %v8007 = vrot.slane %v8005, 5
    %v8008 = vsel %vm793, %v8003, %v8007
    %v8009 = vshrl.u32 %v7627, 16
    %v8011 = vrot.slane %v8009, 4
    %v8012 = vor.u32 %v8011, %v8007
    %v8013 = vrot.slane %v8012, 4
    %v8015 = vshll.u32 %v7628, 16
    %v8017 = vrot.slane %v8015, 5
    %v8018 = vsel %vm793, %v8013, %v8017
    %v8020 = vshrl.u32 %v7629, 16
    %v8022 = vrot.slane %v8020, 4
    %v8023 = vshll.u32 %v7629, 16
    %v8025 = vrot.slane %v8023, 5
    %v8026 = vor.u32 %v8022, %v8025
    %v8027 = vrot.slane %v8026, 4
    %v8029 = vshll.u32 %v7630, 16
    %v8031 = vrot.slane %v8029, 5
    %v8032 = vsel %vm793, %v8027, %v8031
    %v8033 = vshrl.u32 %v7630, 16
    %v8035 = vrot.slane %v8033, 4
    %v8036 = vor.u32 %v8035, %v8031
    %v8037 = vrot.slane %v8036, 4
    %v8039 = vshll.u32 %v7631, 16
    %v8041 = vrot.slane %v8039, 5
    %v8042 = vsel %vm793, %v8037, %v8041
    %v8044 = vshrl.u32 %v7632, 16
    %v8046 = vrot.slane %v8044, 4
    %v8047 = vshll.u32 %v7632, 16
    %v8049 = vrot.slane %v8047, 5
    %v8050 = vor.u32 %v8046, %v8049
    %v8051 = vrot.slane %v8050, 4
    %v8053 = vshll.u32 %v7633, 16
    %v8055 = vrot.slane %v8053, 5
    %v8056 = vsel %vm793, %v8051, %v8055
    %v8057 = vshrl.u32 %v7633, 16
    %v8059 = vrot.slane %v8057, 4
    %v8060 = vor.u32 %v8059, %v8055
    %v8061 = vrot.slane %v8060, 4
    %v8063 = vshll.u32 %v7634, 16
    %v8065 = vrot.slane %v8063, 5
    %v8066 = vsel %vm793, %v8061, %v8065
    %v8068 = vshrl.u32 %v7635, 16
    %v8070 = vrot.slane %v8068, 4
    %v8071 = vshll.u32 %v7635, 16
    %v8073 = vrot.slane %v8071, 5
    %v8074 = vor.u32 %v8070, %v8073
    %v8075 = vrot.slane %v8074, 4
    %v8077 = vshll.u32 %v7636, 16
    %v8079 = vrot.slane %v8077, 5
    %v8080 = vsel %vm793, %v8075, %v8079
    %v8081 = vshrl.u32 %v7636, 16
    %v8083 = vrot.slane %v8081, 4
    %v8084 = vor.u32 %v8083, %v8079
    %v8085 = vrot.slane %v8084, 4
    %v8087 = vshll.u32 %v7637, 16
    %v8089 = vrot.slane %v8087, 5
    %v8090 = vsel %vm793, %v8085, %v8089
    %v8092 = vshrl.u32 %v7638, 16
    %v8094 = vrot.slane %v8092, 4
    %v8095 = vshll.u32 %v7638, 16
    %v8097 = vrot.slane %v8095, 5
    %v8098 = vor.u32 %v8094, %v8097
    %v8099 = vrot.slane %v8098, 4
    %v8101 = vshll.u32 %v7639, 16
    %v8103 = vrot.slane %v8101, 5
    %v8104 = vsel %vm793, %v8099, %v8103
    %v8105 = vshrl.u32 %v7639, 16
    %v8107 = vrot.slane %v8105, 4
    %v8108 = vor.u32 %v8107, %v8103
    %v8109 = vrot.slane %v8108, 4
    %v8111 = vshll.u32 %v7640, 16
    %v8113 = vrot.slane %v8111, 5
    %v8114 = vsel %vm793, %v8109, %v8113
    %v8116 = vshrl.u32 %v7641, 16
    %v8118 = vrot.slane %v8116, 4
    %v8119 = vshll.u32 %v7641, 16
    %v8121 = vrot.slane %v8119, 5
    %v8122 = vor.u32 %v8118, %v8121
    %v8123 = vrot.slane %v8122, 4
    %v8125 = vshll.u32 %v7642, 16
    %v8127 = vrot.slane %v8125, 5
    %v8128 = vsel %vm793, %v8123, %v8127
    %v8129 = vshrl.u32 %v7642, 16
    %v8131 = vrot.slane %v8129, 4
    %v8132 = vor.u32 %v8131, %v8127
    %v8133 = vrot.slane %v8132, 4
    %v8135 = vshll.u32 %v7643, 16
    %v8137 = vrot.slane %v8135, 5
    %v8138 = vsel %vm793, %v8133, %v8137
    %v8140 = vshrl.u32 %v7644, 16
    %v8142 = vrot.slane %v8140, 4
    %v8143 = vshll.u32 %v7644, 16
    %v8145 = vrot.slane %v8143, 5
    %v8146 = vor.u32 %v8142, %v8145
    %v8147 = vrot.slane %v8146, 4
    %v8149 = vshll.u32 %v7645, 16
    %v8151 = vrot.slane %v8149, 5
    %v8152 = vsel %vm793, %v8147, %v8151
    %v8153 = vshrl.u32 %v7645, 16
    %v8155 = vrot.slane %v8153, 4
    %v8156 = vor.u32 %v8155, %v8151
    %v8157 = vrot.slane %v8156, 4
    %v8159 = vshll.u32 %v7646, 16
    %v8161 = vrot.slane %v8159, 5
    %v8162 = vsel %vm793, %v8157, %v8161
    %v8164 = vshrl.u32 %v7647, 16
    %v8166 = vrot.slane %v8164, 4
    %v8167 = vshll.u32 %v7647, 16
    %v8169 = vrot.slane %v8167, 5
    %v8170 = vor.u32 %v8166, %v8169
    %v8171 = vrot.slane %v8170, 4
    %v8173 = vshll.u32 %v7648, 16
    %v8175 = vrot.slane %v8173, 5
    %v8176 = vsel %vm793, %v8171, %v8175
    %v8177 = vshrl.u32 %v7648, 16
    %v8179 = vrot.slane %v8177, 4
    %v8180 = vor.u32 %v8179, %v8175
    %v8181 = vrot.slane %v8180, 4
    %v8183 = vshll.u32 %v7649, 16
    %v8185 = vrot.slane %v8183, 5
    %v8186 = vsel %vm793, %v8181, %v8185
    %v8188 = vshrl.u32 %v7650, 16
    %v8190 = vrot.slane %v8188, 4
    %v8191 = vshll.u32 %v7650, 16
    %v8193 = vrot.slane %v8191, 5
    %v8194 = vor.u32 %v8190, %v8193
    %v8195 = vrot.slane %v8194, 4
    %v8197 = vshll.u32 %v7651, 16
    %v8199 = vrot.slane %v8197, 5
    %v8200 = vsel %vm793, %v8195, %v8199
    %v8201 = vshrl.u32 %v7651, 16
    %v8203 = vrot.slane %v8201, 4
    %v8204 = vor.u32 %v8203, %v8199
    %v8205 = vrot.slane %v8204, 4
    %v8207 = vshll.u32 %v7652, 16
    %v8209 = vrot.slane %v8207, 5
    %v8210 = vsel %vm793, %v8205, %v8209
    %v8212 = vshrl.u32 %v7653, 16
    %v8214 = vrot.slane %v8212, 4
    %v8215 = vshll.u32 %v7653, 16
    %v8217 = vrot.slane %v8215, 5
    %v8218 = vor.u32 %v8214, %v8217
    %v8219 = vrot.slane %v8218, 4
    %v8221 = vshll.u32 %v7654, 16
    %v8223 = vrot.slane %v8221, 5
    %v8224 = vsel %vm793, %v8219, %v8223
    %v8225 = vshrl.u32 %v7654, 16
    %v8227 = vrot.slane %v8225, 4
    %v8228 = vor.u32 %v8227, %v8223
    %v8229 = vrot.slane %v8228, 4
    %v8231 = vshll.u32 %v7655, 16
    %v8233 = vrot.slane %v8231, 5
    %v8234 = vsel %vm793, %v8229, %v8233
    %v8236 = vshrl.u32 %v7656, 16
    %v8238 = vrot.slane %v8236, 4
    %v8239 = vshll.u32 %v7656, 16
    %v8241 = vrot.slane %v8239, 5
    %v8242 = vor.u32 %v8238, %v8241
    %v8243 = vrot.slane %v8242, 4
    %v8245 = vshll.u32 %v7657, 16
    %v8247 = vrot.slane %v8245, 5
    %v8248 = vsel %vm793, %v8243, %v8247
    %v8249 = vshrl.u32 %v7657, 16
    %v8251 = vrot.slane %v8249, 4
    %v8252 = vor.u32 %v8251, %v8247
    %v8253 = vrot.slane %v8252, 4
    %v8255 = vshll.u32 %v7658, 16
    %v8257 = vrot.slane %v8255, 5
    %v8258 = vsel %vm793, %v8253, %v8257
    %v8260 = vshrl.u32 %v7659, 16
    %v8262 = vrot.slane %v8260, 4
    %v8263 = vshll.u32 %v7659, 16
    %v8265 = vrot.slane %v8263, 5
    %v8266 = vor.u32 %v8262, %v8265
    %v8267 = vrot.slane %v8266, 4
    %v8269 = vshll.u32 %v7660, 16
    %v8271 = vrot.slane %v8269, 5
    %v8272 = vsel %vm793, %v8267, %v8271
    %v8273 = vshrl.u32 %v7660, 16
    %v8275 = vrot.slane %v8273, 4
    %v8276 = vor.u32 %v8275, %v8271
    %v8277 = vrot.slane %v8276, 4
    %v8279 = vshll.u32 %v7661, 16
    %v8281 = vrot.slane %v8279, 5
    %v8282 = vsel %vm793, %v8277, %v8281
    %v8284 = vshrl.u32 %v7662, 16
    %v8286 = vrot.slane %v8284, 4
    %v8287 = vshll.u32 %v7662, 16
    %v8289 = vrot.slane %v8287, 5
    %v8290 = vor.u32 %v8286, %v8289
    %v8291 = vrot.slane %v8290, 4
    %v8293 = vshll.u32 %v7663, 16
    %v8295 = vrot.slane %v8293, 5
    %v8296 = vsel %vm793, %v8291, %v8295
    %v8297 = vshrl.u32 %v7663, 16
    %v8299 = vrot.slane %v8297, 4
    %v8300 = vor.u32 %v8299, %v8295
    %v8301 = vrot.slane %v8300, 4
    %v8303 = vshll.u32 %v7664, 16
    %v8305 = vrot.slane %v8303, 5
    %v8306 = vsel %vm793, %v8301, %v8305
    %v8308 = vshrl.u32 %v7665, 16
    %v8310 = vrot.slane %v8308, 4
    %v8311 = vshll.u32 %v7665, 16
    %v8313 = vrot.slane %v8311, 5
    %v8314 = vor.u32 %v8310, %v8313
    %v8315 = vrot.slane %v8314, 4
    %v8317 = vshll.u32 %v7666, 16
    %v8319 = vrot.slane %v8317, 5
    %v8320 = vsel %vm793, %v8315, %v8319
    %v8321 = vshrl.u32 %v7666, 16
    %v8323 = vrot.slane %v8321, 4
    %v8324 = vor.u32 %v8323, %v8319
    %v8325 = vrot.slane %v8324, 4
    %v8327 = vshll.u32 %v7667, 16
    %v8329 = vrot.slane %v8327, 5
    %v8330 = vsel %vm793, %v8325, %v8329
    %v8332 = vshrl.u32 %v7668, 16
    %v8334 = vrot.slane %v8332, 4
    %v8335 = vshll.u32 %v7668, 16
    %v8337 = vrot.slane %v8335, 5
    %v8338 = vor.u32 %v8334, %v8337
    %v8339 = vrot.slane %v8338, 4
    %v8341 = vshll.u32 %v7669, 16
    %v8343 = vrot.slane %v8341, 5
    %v8344 = vsel %vm793, %v8339, %v8343
    %v8345 = vshrl.u32 %v7669, 16
    %v8347 = vrot.slane %v8345, 4
    %v8348 = vor.u32 %v8347, %v8343
    %v8349 = vrot.slane %v8348, 4
    %v8351 = vshll.u32 %v7670, 16
    %v8353 = vrot.slane %v8351, 5
    %v8354 = vsel %vm793, %v8349, %v8353
    %v8356 = vshrl.u32 %v7671, 16
    %v8358 = vrot.slane %v8356, 4
    %v8359 = vshll.u32 %v7671, 16
    %v8361 = vrot.slane %v8359, 5
    %v8362 = vor.u32 %v8358, %v8361
    %v8363 = vrot.slane %v8362, 4
    %v8365 = vshll.u32 %v7672, 16
    %v8367 = vrot.slane %v8365, 5
    %v8368 = vsel %vm793, %v8363, %v8367
    %v8369 = vshrl.u32 %v7672, 16
    %v8371 = vrot.slane %v8369, 4
    %v8372 = vor.u32 %v8371, %v8367
    %v8373 = vrot.slane %v8372, 4
    %v8375 = vshll.u32 %v7673, 16
    %v8377 = vrot.slane %v8375, 5
    %v8378 = vsel %vm793, %v8373, %v8377
    %v8380 = vshrl.u32 %v7674, 16
    %v8382 = vrot.slane %v8380, 4
    %v8383 = vshll.u32 %v7674, 16
    %v8385 = vrot.slane %v8383, 5
    %v8386 = vor.u32 %v8382, %v8385
    %v8387 = vrot.slane %v8386, 4
    %v8389 = vshll.u32 %v7675, 16
    %v8391 = vrot.slane %v8389, 5
    %v8392 = vsel %vm793, %v8387, %v8391
    %v8393 = vshrl.u32 %v7675, 16
    %v8395 = vrot.slane %v8393, 4
    %v8396 = vor.u32 %v8395, %v8391
    %v8397 = vrot.slane %v8396, 4
    %v8399 = vshll.u32 %v7676, 16
    %v8401 = vrot.slane %v8399, 5
    %v8402 = vsel %vm793, %v8397, %v8401
    %v8404 = vshrl.u32 %v7677, 16
    %v8406 = vrot.slane %v8404, 4
    %v8407 = vshll.u32 %v7677, 16
    %v8409 = vrot.slane %v8407, 5
    %v8410 = vor.u32 %v8406, %v8409
    %v8411 = vrot.slane %v8410, 4
    %v8413 = vshll.u32 %v7678, 16
    %v8415 = vrot.slane %v8413, 5
    %v8416 = vsel %vm793, %v8411, %v8415
    %v8417 = vshrl.u32 %v7678, 16
    %v8419 = vrot.slane %v8417, 4
    %v8420 = vor.u32 %v8419, %v8415
    %v8421 = vrot.slane %v8420, 4
    %v8423 = vshll.u32 %v7679, 16
    %v8425 = vrot.slane %v8423, 5
    %v8426 = vsel %vm793, %v8421, %v8425
    %v8428 = vshrl.u32 %v7680, 16
    %v8430 = vrot.slane %v8428, 4
    %v8431 = vshll.u32 %v7680, 16
    %v8433 = vrot.slane %v8431, 5
    %v8434 = vor.u32 %v8430, %v8433
    %v8435 = vrot.slane %v8434, 4
    %v8437 = vshll.u32 %v7681, 16
    %v8439 = vrot.slane %v8437, 5
    %v8440 = vsel %vm793, %v8435, %v8439
    %v8441 = vshrl.u32 %v7681, 16
    %v8443 = vrot.slane %v8441, 4
    %v8444 = vor.u32 %v8443, %v8439
    %v8445 = vrot.slane %v8444, 4
    %v8447 = vshll.u32 %v7682, 16
    %v8449 = vrot.slane %v8447, 5
    %v8450 = vsel %vm793, %v8445, %v8449
    %s8451 = scalar_lea.vmem %s1, 14
    %v8452 = vld [vmem:[%s8451] sm:$0x3]
    %v8453 = vunpack.c.l.b16 %v7696
    %v8454 = vunpack.c.l.b16 %v7706
    %v8455 = vunpack.c.l.b16 %v7720
    %v8456 = vunpack.c.l.b16 %v7730
    %v8457 = vunpack.c.l.b16 %v7744
    %v8458 = vunpack.c.l.b16 %v7754
    %v8459 = vunpack.c.l.b16 %v7768
    %v8460 = vunpack.c.l.b16 %v7778
    %v8461 = vunpack.c.l.b16 %v7792
    %v8462 = vunpack.c.l.b16 %v7802
    %v8463 = vunpack.c.l.b16 %v7816
    %v8464 = vunpack.c.l.b16 %v7826
    %v8465 = vunpack.c.l.b16 %v7840
    %v8466 = vunpack.c.l.b16 %v7850
    %v8467 = vunpack.c.l.b16 %v7864
    %v8468 = vunpack.c.l.b16 %v7874
    %v8469 = vunpack.c.l.b16 %v7888
    %v8470 = vunpack.c.l.b16 %v7898
    %v8471 = vunpack.c.l.b16 %v7912
    %v8472 = vunpack.c.l.b16 %v7922
    %v8473 = vunpack.c.l.b16 %v7936
    %v8474 = vunpack.c.l.b16 %v7946
    %v8475 = vunpack.c.l.b16 %v7960
    %v8476 = vunpack.c.l.b16 %v7970
    %v8477 = vunpack.c.l.b16 %v7984
    %v8478 = vunpack.c.l.b16 %v7994
    %v8479 = vunpack.c.l.b16 %v8008
    %v8480 = vunpack.c.l.b16 %v8018
    %v8481 = vunpack.c.l.b16 %v8032
    %v8482 = vunpack.c.l.b16 %v8042
    %v8483 = vunpack.c.l.b16 %v8056
    %v8484 = vunpack.c.l.b16 %v8066
    %v8485 = vunpack.c.l.b16 %v8080
    %v8486 = vunpack.c.l.b16 %v8090
    %v8487 = vunpack.c.l.b16 %v8104
    %v8488 = vunpack.c.l.b16 %v8114
    %v8489 = vunpack.c.l.b16 %v8128
    %v8490 = vunpack.c.l.b16 %v8138
    %v8491 = vunpack.c.l.b16 %v8152
    %v8492 = vunpack.c.l.b16 %v8162
    %v8493 = vunpack.c.l.b16 %v8176
    %v8494 = vunpack.c.l.b16 %v8186
    %v8495 = vunpack.c.l.b16 %v8200
    %v8496 = vunpack.c.l.b16 %v8210
    %v8497 = vunpack.c.l.b16 %v8224
    %v8498 = vunpack.c.l.b16 %v8234
    %v8499 = vunpack.c.l.b16 %v8248
    %v8500 = vunpack.c.l.b16 %v8258
    %v8501 = vunpack.c.l.b16 %v8272
    %v8502 = vunpack.c.l.b16 %v8282
    %v8503 = vunpack.c.l.b16 %v8296
    %v8504 = vunpack.c.l.b16 %v8306
    %v8505 = vunpack.c.l.b16 %v8320
    %v8506 = vunpack.c.l.b16 %v8330
    %v8507 = vunpack.c.l.b16 %v8344
    %v8508 = vunpack.c.l.b16 %v8354
    %v8509 = vunpack.c.l.b16 %v8368
    %v8510 = vunpack.c.l.b16 %v8378
    %v8511 = vunpack.c.l.b16 %v8392
    %v8512 = vunpack.c.l.b16 %v8402
    %v8513 = vunpack.c.l.b16 %v8416
    %v8514 = vunpack.c.l.b16 %v8426
    %v8515 = vunpack.c.l.b16 %v8440
    %v8516 = vunpack.c.l.b16 %v8450
    %v8517 = vpack.c.b16 %v8454, %v8453
    %v8518 = vpack.c.b16 %v8456, %v8455
    %v8519 = vpack.c.b16 %v8458, %v8457
    %v8520 = vpack.c.b16 %v8460, %v8459
    %v8521 = vpack.c.b16 %v8462, %v8461
    %v8522 = vpack.c.b16 %v8464, %v8463
    %v8523 = vpack.c.b16 %v8466, %v8465
    %v8524 = vpack.c.b16 %v8468, %v8467
    %v8525 = vpack.c.b16 %v8470, %v8469
    %v8526 = vpack.c.b16 %v8472, %v8471
    %v8527 = vpack.c.b16 %v8474, %v8473
    %v8528 = vpack.c.b16 %v8476, %v8475
    %v8529 = vpack.c.b16 %v8478, %v8477
    %v8530 = vpack.c.b16 %v8480, %v8479
    %v8531 = vpack.c.b16 %v8482, %v8481
    %v8532 = vpack.c.b16 %v8484, %v8483
    %v8533 = vpack.c.b16 %v8486, %v8485
    %v8534 = vpack.c.b16 %v8488, %v8487
    %v8535 = vpack.c.b16 %v8490, %v8489
    %v8536 = vpack.c.b16 %v8492, %v8491
    %v8537 = vpack.c.b16 %v8494, %v8493
    %v8538 = vpack.c.b16 %v8496, %v8495
    %v8539 = vpack.c.b16 %v8498, %v8497
    %v8540 = vpack.c.b16 %v8500, %v8499
    %v8541 = vpack.c.b16 %v8502, %v8501
    %v8542 = vpack.c.b16 %v8504, %v8503
    %v8543 = vpack.c.b16 %v8506, %v8505
    %v8544 = vpack.c.b16 %v8508, %v8507
    %v8545 = vpack.c.b16 %v8510, %v8509
    %v8546 = vpack.c.b16 %v8512, %v8511
    %v8547 = vpack.c.b16 %v8514, %v8513
    %v8548 = vpack.c.b16 %v8516, %v8515
    %v8550 = vsel %vm241, %v8517, 0
    %v8553 = vsel %vm241, %v8518, 0
    %v8556 = vsel %vm241, %v8519, 0
    %v8559 = vsel %vm241, %v8520, 0
    %v8562 = vsel %vm241, %v8521, 0
    %v8565 = vsel %vm241, %v8522, 0
    %v8568 = vsel %vm241, %v8523, 0
    %v8571 = vsel %vm241, %v8524, 0
    %v8574 = vsel %vm241, %v8525, 0
    %v8577 = vsel %vm241, %v8526, 0
    %v8580 = vsel %vm241, %v8527, 0
    %v8583 = vsel %vm241, %v8528, 0
    %v8586 = vsel %vm241, %v8529, 0
    %v8589 = vsel %vm241, %v8530, 0
    %v8592 = vsel %vm241, %v8531, 0
    %v8595 = vsel %vm241, %v8532, 0
    %v8598 = vsel %vm241, %v8533, 0
    %v8601 = vsel %vm241, %v8534, 0
    %v8604 = vsel %vm241, %v8535, 0
    %v8607 = vsel %vm241, %v8536, 0
    %v8610 = vsel %vm241, %v8537, 0
    %v8613 = vsel %vm241, %v8538, 0
    %v8616 = vsel %vm241, %v8539, 0
    %v8619 = vsel %vm241, %v8540, 0
    %v8622 = vsel %vm241, %v8541, 0
    %v8625 = vsel %vm241, %v8542, 0
    %v8628 = vsel %vm241, %v8543, 0
    %v8631 = vsel %vm241, %v8544, 0
    %v8634 = vsel %vm241, %v8545, 0
    %v8637 = vsel %vm241, %v8546, 0
    %v8640 = vsel %vm241, %v8547, 0
    %v8643 = vsel %vm241, %v8548, 0
    %v8646 = vsel %vm338, %v8452, 0
    %8648 = vmatprep.subr.bf16.mxu0 0
    %8649 = vmatpush1.bf16.msra.mxu0 0
    %8650 = vmatprep.subr.bf16.mxu0 0
    %8651 = vmatpush1.bf16.msra.mxu0 0
    %8652 = vmatprep.subr.bf16.mxu0 0
    %8653 = vmatpush1.bf16.msra.mxu0 0
    %8654 = vmatprep.subr.bf16.mxu0 0
    %8655 = vmatpush1.bf16.msra.mxu0 0
    %8656 = vmatprep.subr.bf16.mxu0 0
    %8657 = vmatpush1.bf16.msra.mxu0 0
    %8658 = vmatprep.subr.bf16.mxu0 0
    %8659 = vmatpush1.bf16.msra.mxu0 0
    %8660 = vmatprep.subr.bf16.mxu0 0
    %8661 = vmatpush1.bf16.msra.mxu0 0
    %8662 = vmatprep.subr.bf16.mxu0 0
    %8663 = vmatpush1.bf16.msra.mxu0 %v8646
    %8664 = vmatprep.subr.bf16.mxu0 0
    %8665 = vmatpush2.bf16.msra.mxu0 0
    %8666 = vmatprep.subr.bf16.mxu0 0
    %8667 = vmatpush2.bf16.msra.mxu0 0
    %8668 = vmatprep.subr.bf16.mxu0 0
    %8669 = vmatpush2.bf16.msra.mxu0 0
    %8670 = vmatprep.subr.bf16.mxu0 0
    %8671 = vmatpush2.bf16.msra.mxu0 0
    %8672 = vmatprep.subr.bf16.mxu0 0
    %8673 = vmatpush2.bf16.msra.mxu0 0
    %8674 = vmatprep.subr.bf16.mxu0 0
    %8675 = vmatpush2.bf16.msra.mxu0 0
    %8676 = vmatprep.subr.bf16.mxu0 0
    %8677 = vmatpush2.bf16.msra.mxu0 0
    %8678 = vmatprep.subr.bf16.mxu0 0
    %8679 = vmatpush2.bf16.msra.mxu0 0
    %8680 = vmatprep.mubr.bf16.mxu0 0
    %8681 = vmatmul.mubr.bf16.gmra.mxu0 %v8550
    %v8682 = vpop.f32.mrf.mxu0
    %v8683 = vadd.f32 0.0, %v8682
    %v8684 = vpop.f32.mrf.mxu0
    %v8685 = vpop.f32.mrf.mxu0
    %v8686 = vadd.f32 0.0, %v8685
    %v8687 = vpop.f32.mrf.mxu0
    %8688 = vmatprep.mubr.bf16.mxu0 0
    %8689 = vmatmul.mubr.bf16.gmra.mxu0 %v8553
    %v8690 = vpop.f32.mrf.mxu0
    %v8691 = vadd.f32 0.0, %v8690
    %v8692 = vpop.f32.mrf.mxu0
    %v8693 = vpop.f32.mrf.mxu0
    %v8694 = vadd.f32 0.0, %v8693
    %v8695 = vpop.f32.mrf.mxu0
    %8696 = vmatprep.mubr.bf16.mxu0 0
    %8697 = vmatmul.mubr.bf16.gmra.mxu0 %v8556
    %v8698 = vpop.f32.mrf.mxu0
    %v8699 = vadd.f32 0.0, %v8698
    %v8700 = vpop.f32.mrf.mxu0
    %v8701 = vpop.f32.mrf.mxu0
    %v8702 = vadd.f32 0.0, %v8701
    %v8703 = vpop.f32.mrf.mxu0
    %8704 = vmatprep.mubr.bf16.mxu0 0
    %8705 = vmatmul.mubr.bf16.gmra.mxu0 %v8559
    %v8706 = vpop.f32.mrf.mxu0
    %v8707 = vadd.f32 0.0, %v8706
    %v8708 = vpop.f32.mrf.mxu0
    %v8709 = vpop.f32.mrf.mxu0
    %v8710 = vadd.f32 0.0, %v8709
    %v8711 = vpop.f32.mrf.mxu0
    %8712 = vmatprep.mubr.bf16.mxu0 0
    %8713 = vmatmul.mubr.bf16.gmra.mxu0 %v8562
    %v8714 = vpop.f32.mrf.mxu0
    %v8715 = vadd.f32 0.0, %v8714
    %v8716 = vpop.f32.mrf.mxu0
    %v8717 = vpop.f32.mrf.mxu0
    %v8718 = vadd.f32 0.0, %v8717
    %v8719 = vpop.f32.mrf.mxu0
    %8720 = vmatprep.mubr.bf16.mxu0 0
    %8721 = vmatmul.mubr.bf16.gmra.mxu0 %v8565
    %v8722 = vpop.f32.mrf.mxu0
    %v8723 = vadd.f32 0.0, %v8722
    %v8724 = vpop.f32.mrf.mxu0
    %v8725 = vpop.f32.mrf.mxu0
    %v8726 = vadd.f32 0.0, %v8725
    %v8727 = vpop.f32.mrf.mxu0
    %8728 = vmatprep.mubr.bf16.mxu0 0
    %8729 = vmatmul.mubr.bf16.gmra.mxu0 %v8568
    %v8730 = vpop.f32.mrf.mxu0
    %v8731 = vadd.f32 0.0, %v8730
    %v8732 = vpop.f32.mrf.mxu0
    %v8733 = vpop.f32.mrf.mxu0
    %v8734 = vadd.f32 0.0, %v8733
    %v8735 = vpop.f32.mrf.mxu0
    %8736 = vmatprep.mubr.bf16.mxu0 0
    %8737 = vmatmul.mubr.bf16.gmra.mxu0 %v8571
    %v8738 = vpop.f32.mrf.mxu0
    %v8739 = vadd.f32 0.0, %v8738
    %v8740 = vpop.f32.mrf.mxu0
    %v8741 = vpop.f32.mrf.mxu0
    %v8742 = vadd.f32 0.0, %v8741
    %v8743 = vpop.f32.mrf.mxu0
    %8744 = vmatprep.mubr.bf16.mxu0 0
    %8745 = vmatmul.mubr.bf16.gmra.mxu0 %v8574
    %v8746 = vpop.f32.mrf.mxu0
    %v8747 = vadd.f32 0.0, %v8746
    %v8748 = vpop.f32.mrf.mxu0
    %v8749 = vpop.f32.mrf.mxu0
    %v8750 = vadd.f32 0.0, %v8749
    %v8751 = vpop.f32.mrf.mxu0
    %8752 = vmatprep.mubr.bf16.mxu0 0
    %8753 = vmatmul.mubr.bf16.gmra.mxu0 %v8577
    %v8754 = vpop.f32.mrf.mxu0
    %v8755 = vadd.f32 0.0, %v8754
    %v8756 = vpop.f32.mrf.mxu0
    %v8757 = vpop.f32.mrf.mxu0
    %v8758 = vadd.f32 0.0, %v8757
    %v8759 = vpop.f32.mrf.mxu0
    %8760 = vmatprep.mubr.bf16.mxu0 0
    %8761 = vmatmul.mubr.bf16.gmra.mxu0 %v8580
    %v8762 = vpop.f32.mrf.mxu0
    %v8763 = vadd.f32 0.0, %v8762
    %v8764 = vpop.f32.mrf.mxu0
    %v8765 = vpop.f32.mrf.mxu0
    %v8766 = vadd.f32 0.0, %v8765
    %v8767 = vpop.f32.mrf.mxu0
    %8768 = vmatprep.mubr.bf16.mxu0 0
    %8769 = vmatmul.mubr.bf16.gmra.mxu0 %v8583
    %v8770 = vpop.f32.mrf.mxu0
    %v8771 = vadd.f32 0.0, %v8770
    %v8772 = vpop.f32.mrf.mxu0
    %v8773 = vpop.f32.mrf.mxu0
    %v8774 = vadd.f32 0.0, %v8773
    %v8775 = vpop.f32.mrf.mxu0
    %8776 = vmatprep.mubr.bf16.mxu0 0
    %8777 = vmatmul.mubr.bf16.gmra.mxu0 %v8586
    %v8778 = vpop.f32.mrf.mxu0
    %v8779 = vadd.f32 0.0, %v8778
    %v8780 = vpop.f32.mrf.mxu0
    %v8781 = vpop.f32.mrf.mxu0
    %v8782 = vadd.f32 0.0, %v8781
    %v8783 = vpop.f32.mrf.mxu0
    %8784 = vmatprep.mubr.bf16.mxu0 0
    %8785 = vmatmul.mubr.bf16.gmra.mxu0 %v8589
    %v8786 = vpop.f32.mrf.mxu0
    %v8787 = vadd.f32 0.0, %v8786
    %v8788 = vpop.f32.mrf.mxu0
    %v8789 = vpop.f32.mrf.mxu0
    %v8790 = vadd.f32 0.0, %v8789
    %v8791 = vpop.f32.mrf.mxu0
    %8792 = vmatprep.mubr.bf16.mxu0 0
    %8793 = vmatmul.mubr.bf16.gmra.mxu0 %v8592
    %v8794 = vpop.f32.mrf.mxu0
    %v8795 = vadd.f32 0.0, %v8794
    %v8796 = vpop.f32.mrf.mxu0
    %v8797 = vpop.f32.mrf.mxu0
    %v8798 = vadd.f32 0.0, %v8797
    %v8799 = vpop.f32.mrf.mxu0
    %8800 = vmatprep.mubr.bf16.mxu0 0
    %8801 = vmatmul.mubr.bf16.gmra.mxu0 %v8595
    %v8802 = vpop.f32.mrf.mxu0
    %v8803 = vadd.f32 0.0, %v8802
    %v8804 = vpop.f32.mrf.mxu0
    %v8805 = vpop.f32.mrf.mxu0
    %v8806 = vadd.f32 0.0, %v8805
    %v8807 = vpop.f32.mrf.mxu0
    %8808 = vmatprep.mubr.bf16.mxu0 0
    %8809 = vmatmul.mubr.bf16.gmra.mxu0 %v8598
    %v8810 = vpop.f32.mrf.mxu0
    %v8811 = vadd.f32 0.0, %v8810
    %v8812 = vpop.f32.mrf.mxu0
    %v8813 = vpop.f32.mrf.mxu0
    %v8814 = vadd.f32 0.0, %v8813
    %v8815 = vpop.f32.mrf.mxu0
    %8816 = vmatprep.mubr.bf16.mxu0 0
    %8817 = vmatmul.mubr.bf16.gmra.mxu0 %v8601
    %v8818 = vpop.f32.mrf.mxu0
    %v8819 = vadd.f32 0.0, %v8818
    %v8820 = vpop.f32.mrf.mxu0
    %v8821 = vpop.f32.mrf.mxu0
    %v8822 = vadd.f32 0.0, %v8821
    %v8823 = vpop.f32.mrf.mxu0
    %8824 = vmatprep.mubr.bf16.mxu0 0
    %8825 = vmatmul.mubr.bf16.gmra.mxu0 %v8604
    %v8826 = vpop.f32.mrf.mxu0
    %v8827 = vadd.f32 0.0, %v8826
    %v8828 = vpop.f32.mrf.mxu0
    %v8829 = vpop.f32.mrf.mxu0
    %v8830 = vadd.f32 0.0, %v8829
    %v8831 = vpop.f32.mrf.mxu0
    %8832 = vmatprep.mubr.bf16.mxu0 0
    %8833 = vmatmul.mubr.bf16.gmra.mxu0 %v8607
    %v8834 = vpop.f32.mrf.mxu0
    %v8835 = vadd.f32 0.0, %v8834
    %v8836 = vpop.f32.mrf.mxu0
    %v8837 = vpop.f32.mrf.mxu0
    %v8838 = vadd.f32 0.0, %v8837
    %v8839 = vpop.f32.mrf.mxu0
    %8840 = vmatprep.mubr.bf16.mxu0 0
    %8841 = vmatmul.mubr.bf16.gmra.mxu0 %v8610
    %v8842 = vpop.f32.mrf.mxu0
    %v8843 = vadd.f32 0.0, %v8842
    %v8844 = vpop.f32.mrf.mxu0
    %v8845 = vpop.f32.mrf.mxu0
    %v8846 = vadd.f32 0.0, %v8845
    %v8847 = vpop.f32.mrf.mxu0
    %8848 = vmatprep.mubr.bf16.mxu0 0
    %8849 = vmatmul.mubr.bf16.gmra.mxu0 %v8613
    %v8850 = vpop.f32.mrf.mxu0
    %v8851 = vadd.f32 0.0, %v8850
    %v8852 = vpop.f32.mrf.mxu0
    %v8853 = vpop.f32.mrf.mxu0
    %v8854 = vadd.f32 0.0, %v8853
    %v8855 = vpop.f32.mrf.mxu0
    %8856 = vmatprep.mubr.bf16.mxu0 0
    %8857 = vmatmul.mubr.bf16.gmra.mxu0 %v8616
    %v8858 = vpop.f32.mrf.mxu0
    %v8859 = vadd.f32 0.0, %v8858
    %v8860 = vpop.f32.mrf.mxu0
    %v8861 = vpop.f32.mrf.mxu0
    %v8862 = vadd.f32 0.0, %v8861
    %v8863 = vpop.f32.mrf.mxu0
    %8864 = vmatprep.mubr.bf16.mxu0 0
    %8865 = vmatmul.mubr.bf16.gmra.mxu0 %v8619
    %v8866 = vpop.f32.mrf.mxu0
    %v8867 = vadd.f32 0.0, %v8866
    %v8868 = vpop.f32.mrf.mxu0
    %v8869 = vpop.f32.mrf.mxu0
    %v8870 = vadd.f32 0.0, %v8869
    %v8871 = vpop.f32.mrf.mxu0
    %8872 = vmatprep.mubr.bf16.mxu0 0
    %8873 = vmatmul.mubr.bf16.gmra.mxu0 %v8622
    %v8874 = vpop.f32.mrf.mxu0
    %v8875 = vadd.f32 0.0, %v8874
    %v8876 = vpop.f32.mrf.mxu0
    %v8877 = vpop.f32.mrf.mxu0
    %v8878 = vadd.f32 0.0, %v8877
    %v8879 = vpop.f32.mrf.mxu0
    %8880 = vmatprep.mubr.bf16.mxu0 0
    %8881 = vmatmul.mubr.bf16.gmra.mxu0 %v8625
    %v8882 = vpop.f32.mrf.mxu0
    %v8883 = vadd.f32 0.0, %v8882
    %v8884 = vpop.f32.mrf.mxu0
    %v8885 = vpop.f32.mrf.mxu0
    %v8886 = vadd.f32 0.0, %v8885
    %v8887 = vpop.f32.mrf.mxu0
    %8888 = vmatprep.mubr.bf16.mxu0 0
    %8889 = vmatmul.mubr.bf16.gmra.mxu0 %v8628
    %v8890 = vpop.f32.mrf.mxu0
    %v8891 = vadd.f32 0.0, %v8890
    %v8892 = vpop.f32.mrf.mxu0
    %v8893 = vpop.f32.mrf.mxu0
    %v8894 = vadd.f32 0.0, %v8893
    %v8895 = vpop.f32.mrf.mxu0
    %8896 = vmatprep.mubr.bf16.mxu0 0
    %8897 = vmatmul.mubr.bf16.gmra.mxu0 %v8631
    %v8898 = vpop.f32.mrf.mxu0
    %v8899 = vadd.f32 0.0, %v8898
    %v8900 = vpop.f32.mrf.mxu0
    %v8901 = vpop.f32.mrf.mxu0
    %v8902 = vadd.f32 0.0, %v8901
    %v8903 = vpop.f32.mrf.mxu0
    %8904 = vmatprep.mubr.bf16.mxu0 0
    %8905 = vmatmul.mubr.bf16.gmra.mxu0 %v8634
    %v8906 = vpop.f32.mrf.mxu0
    %v8907 = vadd.f32 0.0, %v8906
    %v8908 = vpop.f32.mrf.mxu0
    %v8909 = vpop.f32.mrf.mxu0
    %v8910 = vadd.f32 0.0, %v8909
    %v8911 = vpop.f32.mrf.mxu0
    %8912 = vmatprep.mubr.bf16.mxu0 0
    %8913 = vmatmul.mubr.bf16.gmra.mxu0 %v8637
    %v8914 = vpop.f32.mrf.mxu0
    %v8915 = vadd.f32 0.0, %v8914
    %v8916 = vpop.f32.mrf.mxu0
    %v8917 = vpop.f32.mrf.mxu0
    %v8918 = vadd.f32 0.0, %v8917
    %v8919 = vpop.f32.mrf.mxu0
    %8920 = vmatprep.mubr.bf16.mxu0 0
    %8921 = vmatmul.mubr.bf16.gmra.mxu0 %v8640
    %v8922 = vpop.f32.mrf.mxu0
    %v8923 = vadd.f32 0.0, %v8922
    %v8924 = vpop.f32.mrf.mxu0
    %v8925 = vpop.f32.mrf.mxu0
    %v8926 = vadd.f32 0.0, %v8925
    %v8927 = vpop.f32.mrf.mxu0
    %8928 = vmatprep.mubr.bf16.mxu0 0
    %8929 = vmatmul.mubr.bf16.gmra.mxu0 %v8643
    %v8930 = vpop.f32.mrf.mxu0
    %v8931 = vadd.f32 0.0, %v8930
    %v8932 = vpop.f32.mrf.mxu0
    %v8933 = vpop.f32.mrf.mxu0
    %v8934 = vadd.f32 0.0, %v8933
    %v8935 = vpop.f32.mrf.mxu0
    %8936 = vdwg.mxu0
    %v8937 = vld [vmem:[#allocation2] sm:$0xff]
    %v8938 = vld [vmem:[#allocation2 + $0x8] sm:$0xff]
    %v8939 = vld [vmem:[#allocation2 + $0x10] sm:$0xff]
    %v8940 = vld [vmem:[#allocation2 + $0x18] sm:$0xff]
    %v8941 = vld [vmem:[#allocation2 + $0x20] sm:$0xff]
    %v8942 = vld [vmem:[#allocation2 + $0x28] sm:$0xff]
    %v8943 = vld [vmem:[#allocation2 + $0x30] sm:$0xff]
    %v8944 = vld [vmem:[#allocation2 + $0x38] sm:$0xff]
    %v8945 = vld [vmem:[#allocation2 + $0x40] sm:$0xff]
    %v8946 = vld [vmem:[#allocation2 + $0x48] sm:$0xff]
    %v8947 = vld [vmem:[#allocation2 + $0x50] sm:$0xff]
    %v8948 = vld [vmem:[#allocation2 + $0x58] sm:$0xff]
    %v8949 = vld [vmem:[#allocation2 + $0x60] sm:$0xff]
    %v8950 = vld [vmem:[#allocation2 + $0x68] sm:$0xff]
    %v8951 = vld [vmem:[#allocation2 + $0x70] sm:$0xff]
    %v8952 = vld [vmem:[#allocation2 + $0x78] sm:$0xff]
    %v8953 = vld [vmem:[#allocation2 + $0x80] sm:$0xff]
    %v8954 = vld [vmem:[#allocation2 + $0x88] sm:$0xff]
    %v8955 = vld [vmem:[#allocation2 + $0x90] sm:$0xff]
    %v8956 = vld [vmem:[#allocation2 + $0x98] sm:$0xff]
    %v8957 = vld [vmem:[#allocation2 + $0xa0] sm:$0xff]
    %v8958 = vld [vmem:[#allocation2 + $0xa8] sm:$0xff]
    %v8959 = vld [vmem:[#allocation2 + $0xb0] sm:$0xff]
    %v8960 = vld [vmem:[#allocation2 + $0xb8] sm:$0xff]
    %v8961 = vld [vmem:[#allocation2 + $0xc0] sm:$0xff]
    %v8962 = vld [vmem:[#allocation2 + $0xc8] sm:$0xff]
    %v8963 = vld [vmem:[#allocation2 + $0xd0] sm:$0xff]
    %v8964 = vld [vmem:[#allocation2 + $0xd8] sm:$0xff]
    %v8965 = vld [vmem:[#allocation2 + $0xe0] sm:$0xff]
    %v8966 = vld [vmem:[#allocation2 + $0xe8] sm:$0xff]
    %v8967 = vld [vmem:[#allocation2 + $0xf0] sm:$0xff]
    %v8968 = vld [vmem:[#allocation2 + $0xf8] sm:$0xff]
    %v8969 = vld [vmem:[#allocation2 + $0x100] sm:$0xff]
    %v8970 = vld [vmem:[#allocation2 + $0x108] sm:$0xff]
    %v8971 = vld [vmem:[#allocation2 + $0x110] sm:$0xff]
    %v8972 = vld [vmem:[#allocation2 + $0x118] sm:$0xff]
    %v8973 = vld [vmem:[#allocation2 + $0x120] sm:$0xff]
    %v8974 = vld [vmem:[#allocation2 + $0x128] sm:$0xff]
    %v8975 = vld [vmem:[#allocation2 + $0x130] sm:$0xff]
    %v8976 = vld [vmem:[#allocation2 + $0x138] sm:$0xff]
    %v8977 = vld [vmem:[#allocation2 + $0x140] sm:$0xff]
    %v8978 = vld [vmem:[#allocation2 + $0x148] sm:$0xff]
    %v8979 = vld [vmem:[#allocation2 + $0x150] sm:$0xff]
    %v8980 = vld [vmem:[#allocation2 + $0x158] sm:$0xff]
    %v8981 = vld [vmem:[#allocation2 + $0x160] sm:$0xff]
    %v8982 = vld [vmem:[#allocation2 + $0x168] sm:$0xff]
    %v8983 = vld [vmem:[#allocation2 + $0x170] sm:$0xff]
    %v8984 = vld [vmem:[#allocation2 + $0x178] sm:$0xff]
    %v8985 = vld [vmem:[#allocation2 + $0x180] sm:$0xff]
    %v8986 = vld [vmem:[#allocation2 + $0x188] sm:$0xff]
    %v8987 = vld [vmem:[#allocation2 + $0x190] sm:$0xff]
    %v8988 = vld [vmem:[#allocation2 + $0x198] sm:$0xff]
    %v8989 = vld [vmem:[#allocation2 + $0x1a0] sm:$0xff]
    %v8990 = vld [vmem:[#allocation2 + $0x1a8] sm:$0xff]
    %v8991 = vld [vmem:[#allocation2 + $0x1b0] sm:$0xff]
    %v8992 = vld [vmem:[#allocation2 + $0x1b8] sm:$0xff]
    %v8993 = vld [vmem:[#allocation2 + $0x1c0] sm:$0xff]
    %v8994 = vld [vmem:[#allocation2 + $0x1c8] sm:$0xff]
    %v8995 = vld [vmem:[#allocation2 + $0x1d0] sm:$0xff]
    %v8996 = vld [vmem:[#allocation2 + $0x1d8] sm:$0xff]
    %v8997 = vld [vmem:[#allocation2 + $0x1e0] sm:$0xff]
    %v8998 = vld [vmem:[#allocation2 + $0x1e8] sm:$0xff]
    %v8999 = vld [vmem:[#allocation2 + $0x1f0] sm:$0xff]
    %v9000 = vld [vmem:[#allocation2 + $0x1f8] sm:$0xff]
    %v9001 = vadd.f32 %v8937, %v8683
    %v9002 = vadd.f32 %v8938, %v8686
    %v9003 = vadd.f32 %v8939, %v8691
    %v9004 = vadd.f32 %v8940, %v8694
    %v9005 = vadd.f32 %v8941, %v8699
    %v9006 = vadd.f32 %v8942, %v8702
    %v9007 = vadd.f32 %v8943, %v8707
    %v9008 = vadd.f32 %v8944, %v8710
    %v9009 = vadd.f32 %v8945, %v8715
    %v9010 = vadd.f32 %v8946, %v8718
    %v9011 = vadd.f32 %v8947, %v8723
    %v9012 = vadd.f32 %v8948, %v8726
    %v9013 = vadd.f32 %v8949, %v8731
    %v9014 = vadd.f32 %v8950, %v8734
    %v9015 = vadd.f32 %v8951, %v8739
    %v9016 = vadd.f32 %v8952, %v8742
    %v9017 = vadd.f32 %v8953, %v8747
    %v9018 = vadd.f32 %v8954, %v8750
    %v9019 = vadd.f32 %v8955, %v8755
    %v9020 = vadd.f32 %v8956, %v8758
    %v9021 = vadd.f32 %v8957, %v8763
    %v9022 = vadd.f32 %v8958, %v8766
    %v9023 = vadd.f32 %v8959, %v8771
    %v9024 = vadd.f32 %v8960, %v8774
    %v9025 = vadd.f32 %v8961, %v8779
    %v9026 = vadd.f32 %v8962, %v8782
    %v9027 = vadd.f32 %v8963, %v8787
    %v9028 = vadd.f32 %v8964, %v8790
    %v9029 = vadd.f32 %v8965, %v8795
    %v9030 = vadd.f32 %v8966, %v8798
    %v9031 = vadd.f32 %v8967, %v8803
    %v9032 = vadd.f32 %v8968, %v8806
    %v9033 = vadd.f32 %v8969, %v8811
    %v9034 = vadd.f32 %v8970, %v8814
    %v9035 = vadd.f32 %v8971, %v8819
    %v9036 = vadd.f32 %v8972, %v8822
    %v9037 = vadd.f32 %v8973, %v8827
    %v9038 = vadd.f32 %v8974, %v8830
    %v9039 = vadd.f32 %v8975, %v8835
    %v9040 = vadd.f32 %v8976, %v8838
    %v9041 = vadd.f32 %v8977, %v8843
    %v9042 = vadd.f32 %v8978, %v8846
    %v9043 = vadd.f32 %v8979, %v8851
    %v9044 = vadd.f32 %v8980, %v8854
    %v9045 = vadd.f32 %v8981, %v8859
    %v9046 = vadd.f32 %v8982, %v8862
    %v9047 = vadd.f32 %v8983, %v8867
    %v9048 = vadd.f32 %v8984, %v8870
    %v9049 = vadd.f32 %v8985, %v8875
    %v9050 = vadd.f32 %v8986, %v8878
    %v9051 = vadd.f32 %v8987, %v8883
    %v9052 = vadd.f32 %v8988, %v8886
    %v9053 = vadd.f32 %v8989, %v8891
    %v9054 = vadd.f32 %v8990, %v8894
    %v9055 = vadd.f32 %v8991, %v8899
    %v9056 = vadd.f32 %v8992, %v8902
    %v9057 = vadd.f32 %v8993, %v8907
    %v9058 = vadd.f32 %v8994, %v8910
    %v9059 = vadd.f32 %v8995, %v8915
    %v9060 = vadd.f32 %v8996, %v8918
    %v9061 = vadd.f32 %v8997, %v8923
    %v9062 = vadd.f32 %v8998, %v8926
    %v9063 = vadd.f32 %v8999, %v8931
    %v9064 = vadd.f32 %v9000, %v8934
    %9065 = vst [vmem:[#allocation2] sm:$0xff] %v9001
    %9066 = vst [vmem:[#allocation2 + $0x8] sm:$0xff] %v9002
    %9067 = vst [vmem:[#allocation2 + $0x10] sm:$0xff] %v9003
    %9068 = vst [vmem:[#allocation2 + $0x18] sm:$0xff] %v9004
    %9069 = vst [vmem:[#allocation2 + $0x20] sm:$0xff] %v9005
    %9070 = vst [vmem:[#allocation2 + $0x28] sm:$0xff] %v9006
    %9071 = vst [vmem:[#allocation2 + $0x30] sm:$0xff] %v9007
    %9072 = vst [vmem:[#allocation2 + $0x38] sm:$0xff] %v9008
    %9073 = vst [vmem:[#allocation2 + $0x40] sm:$0xff] %v9009
    %9074 = vst [vmem:[#allocation2 + $0x48] sm:$0xff] %v9010
    %9075 = vst [vmem:[#allocation2 + $0x50] sm:$0xff] %v9011
    %9076 = vst [vmem:[#allocation2 + $0x58] sm:$0xff] %v9012
    %9077 = vst [vmem:[#allocation2 + $0x60] sm:$0xff] %v9013
    %9078 = vst [vmem:[#allocation2 + $0x68] sm:$0xff] %v9014
    %9079 = vst [vmem:[#allocation2 + $0x70] sm:$0xff] %v9015
    %9080 = vst [vmem:[#allocation2 + $0x78] sm:$0xff] %v9016
    %9081 = vst [vmem:[#allocation2 + $0x80] sm:$0xff] %v9017
    %9082 = vst [vmem:[#allocation2 + $0x88] sm:$0xff] %v9018
    %9083 = vst [vmem:[#allocation2 + $0x90] sm:$0xff] %v9019
    %9084 = vst [vmem:[#allocation2 + $0x98] sm:$0xff] %v9020
    %9085 = vst [vmem:[#allocation2 + $0xa0] sm:$0xff] %v9021
    %9086 = vst [vmem:[#allocation2 + $0xa8] sm:$0xff] %v9022
    %9087 = vst [vmem:[#allocation2 + $0xb0] sm:$0xff] %v9023
    %9088 = vst [vmem:[#allocation2 + $0xb8] sm:$0xff] %v9024
    %9089 = vst [vmem:[#allocation2 + $0xc0] sm:$0xff] %v9025
    %9090 = vst [vmem:[#allocation2 + $0xc8] sm:$0xff] %v9026
    %9091 = vst [vmem:[#allocation2 + $0xd0] sm:$0xff] %v9027
    %9092 = vst [vmem:[#allocation2 + $0xd8] sm:$0xff] %v9028
    %9093 = vst [vmem:[#allocation2 + $0xe0] sm:$0xff] %v9029
    %9094 = vst [vmem:[#allocation2 + $0xe8] sm:$0xff] %v9030
    %9095 = vst [vmem:[#allocation2 + $0xf0] sm:$0xff] %v9031
    %9096 = vst [vmem:[#allocation2 + $0xf8] sm:$0xff] %v9032
    %9097 = vst [vmem:[#allocation2 + $0x100] sm:$0xff] %v9033
    %9098 = vst [vmem:[#allocation2 + $0x108] sm:$0xff] %v9034
    %9099 = vst [vmem:[#allocation2 + $0x110] sm:$0xff] %v9035
    %9100 = vst [vmem:[#allocation2 + $0x118] sm:$0xff] %v9036
    %9101 = vst [vmem:[#allocation2 + $0x120] sm:$0xff] %v9037
    %9102 = vst [vmem:[#allocation2 + $0x128] sm:$0xff] %v9038
    %9103 = vst [vmem:[#allocation2 + $0x130] sm:$0xff] %v9039
    %9104 = vst [vmem:[#allocation2 + $0x138] sm:$0xff] %v9040
    %9105 = vst [vmem:[#allocation2 + $0x140] sm:$0xff] %v9041
    %9106 = vst [vmem:[#allocation2 + $0x148] sm:$0xff] %v9042
    %9107 = vst [vmem:[#allocation2 + $0x150] sm:$0xff] %v9043
    %9108 = vst [vmem:[#allocation2 + $0x158] sm:$0xff] %v9044
    %9109 = vst [vmem:[#allocation2 + $0x160] sm:$0xff] %v9045
    %9110 = vst [vmem:[#allocation2 + $0x168] sm:$0xff] %v9046
    %9111 = vst [vmem:[#allocation2 + $0x170] sm:$0xff] %v9047
    %9112 = vst [vmem:[#allocation2 + $0x178] sm:$0xff] %v9048
    %9113 = vst [vmem:[#allocation2 + $0x180] sm:$0xff] %v9049
    %9114 = vst [vmem:[#allocation2 + $0x188] sm:$0xff] %v9050
    %9115 = vst [vmem:[#allocation2 + $0x190] sm:$0xff] %v9051
    %9116 = vst [vmem:[#allocation2 + $0x198] sm:$0xff] %v9052
    %9117 = vst [vmem:[#allocation2 + $0x1a0] sm:$0xff] %v9053
    %9118 = vst [vmem:[#allocation2 + $0x1a8] sm:$0xff] %v9054
    %9119 = vst [vmem:[#allocation2 + $0x1b0] sm:$0xff] %v9055
    %9120 = vst [vmem:[#allocation2 + $0x1b8] sm:$0xff] %v9056
    %9121 = vst [vmem:[#allocation2 + $0x1c0] sm:$0xff] %v9057
    %9122 = vst [vmem:[#allocation2 + $0x1c8] sm:$0xff] %v9058
    %9123 = vst [vmem:[#allocation2 + $0x1d0] sm:$0xff] %v9059
    %9124 = vst [vmem:[#allocation2 + $0x1d8] sm:$0xff] %v9060
    %9125 = vst [vmem:[#allocation2 + $0x1e0] sm:$0xff] %v9061
    %9126 = vst [vmem:[#allocation2 + $0x1e8] sm:$0xff] %v9062
    %9127 = vst [vmem:[#allocation2 + $0x1f0] sm:$0xff] %v9063
    %9128 = vst [vmem:[#allocation2 + $0x1f8] sm:$0xff] %v9064
    %v9129 = vld [vmem:[%s6780] sm:$0xe]
    %v9130 = vld [vmem:[%s6780 + $0x4] sm:$0xf]
    %v9131 = vld [vmem:[%s6780 + $0x8] sm:$0x1]
    %v9132 = vld [vmem:[%s6780 + $0xc] sm:$0xe]
    %v9133 = vld [vmem:[%s6780 + $0x10] sm:$0xf]
    %v9134 = vld [vmem:[%s6780 + $0x14] sm:$0x1]
    %v9135 = vld [vmem:[%s6780 + $0x18] sm:$0xe]
    %v9136 = vld [vmem:[%s6780 + $0x1c] sm:$0xf]
    %v9137 = vld [vmem:[%s6780 + $0x20] sm:$0x1]
    %v9138 = vld [vmem:[%s6780 + $0x24] sm:$0xe]
    %v9139 = vld [vmem:[%s6780 + $0x28] sm:$0xf]
    %v9140 = vld [vmem:[%s6780 + $0x2c] sm:$0x1]
    %v9141 = vld [vmem:[%s6780 + $0x30] sm:$0xe]
    %v9142 = vld [vmem:[%s6780 + $0x34] sm:$0xf]
    %v9143 = vld [vmem:[%s6780 + $0x38] sm:$0x1]
    %v9144 = vld [vmem:[%s6780 + $0x3c] sm:$0xe]
    %v9145 = vld [vmem:[%s6780 + $0x40] sm:$0xf]
    %v9146 = vld [vmem:[%s6780 + $0x44] sm:$0x1]
    %v9147 = vld [vmem:[%s6780 + $0x48] sm:$0xe]
    %v9148 = vld [vmem:[%s6780 + $0x4c] sm:$0xf]
    %v9149 = vld [vmem:[%s6780 + $0x50] sm:$0x1]
    %v9150 = vld [vmem:[%s6780 + $0x54] sm:$0xe]
    %v9151 = vld [vmem:[%s6780 + $0x58] sm:$0xf]
    %v9152 = vld [vmem:[%s6780 + $0x5c] sm:$0x1]
    %v9153 = vld [vmem:[%s6780 + $0x60] sm:$0xe]
    %v9154 = vld [vmem:[%s6780 + $0x64] sm:$0xf]
    %v9155 = vld [vmem:[%s6780 + $0x68] sm:$0x1]
    %v9156 = vld [vmem:[%s6780 + $0x6c] sm:$0xe]
    %v9157 = vld [vmem:[%s6780 + $0x70] sm:$0xf]
    %v9158 = vld [vmem:[%s6780 + $0x74] sm:$0x1]
    %v9159 = vld [vmem:[%s6780 + $0x78] sm:$0xe]
    %v9160 = vld [vmem:[%s6780 + $0x7c] sm:$0xf]
    %v9161 = vld [vmem:[%s6780 + $0x80] sm:$0x1]
    %v9162 = vld [vmem:[%s6780 + $0x84] sm:$0xe]
    %v9163 = vld [vmem:[%s6780 + $0x88] sm:$0xf]
    %v9164 = vld [vmem:[%s6780 + $0x8c] sm:$0x1]
    %v9165 = vld [vmem:[%s6780 + $0x90] sm:$0xe]
    %v9166 = vld [vmem:[%s6780 + $0x94] sm:$0xf]
    %v9167 = vld [vmem:[%s6780 + $0x98] sm:$0x1]
    %v9168 = vld [vmem:[%s6780 + $0x9c] sm:$0xe]
    %v9169 = vld [vmem:[%s6780 + $0xa0] sm:$0xf]
    %v9170 = vld [vmem:[%s6780 + $0xa4] sm:$0x1]
    %v9171 = vld [vmem:[%s6780 + $0xa8] sm:$0xe]
    %v9172 = vld [vmem:[%s6780 + $0xac] sm:$0xf]
    %v9173 = vld [vmem:[%s6780 + $0xb0] sm:$0x1]
    %v9174 = vld [vmem:[%s6780 + $0xb4] sm:$0xe]
    %v9175 = vld [vmem:[%s6780 + $0xb8] sm:$0xf]
    %v9176 = vld [vmem:[%s6780 + $0xbc] sm:$0x1]
    %v9177 = vld [vmem:[%s6780 + $0xd8] sm:$0xe]
    %v9178 = vld [vmem:[%s6780 + $0xdc] sm:$0xf]
    %v9179 = vld [vmem:[%s6780 + $0xe0] sm:$0x1]
    %v9180 = vld [vmem:[%s6780 + $0xe4] sm:$0xe]
    %v9181 = vld [vmem:[%s6780 + $0xe8] sm:$0xf]
    %v9182 = vld [vmem:[%s6780 + $0xec] sm:$0x1]
    %v9183 = vld [vmem:[%s6780 + $0xf0] sm:$0xe]
    %v9184 = vld [vmem:[%s6780 + $0xf4] sm:$0xf]
    %v9185 = vld [vmem:[%s6780 + $0xf8] sm:$0x1]
    %v9186 = vld [vmem:[%s6780 + $0xfc] sm:$0xe]
    %v9187 = vld [vmem:[%s6780 + $0x100] sm:$0xf]
    %v9188 = vld [vmem:[%s6780 + $0x104] sm:$0x1]
    %v9189 = vld [vmem:[%s6780 + $0x108] sm:$0xe]
    %v9190 = vld [vmem:[%s6780 + $0x10c] sm:$0xf]
    %v9191 = vld [vmem:[%s6780 + $0x110] sm:$0x1]
    %v9192 = vld [vmem:[%s6780 + $0x114] sm:$0xe]
    %v9193 = vld [vmem:[%s6780 + $0x118] sm:$0xf]
    %v9194 = vld [vmem:[%s6780 + $0x11c] sm:$0x1]
    %v9195 = vld [vmem:[%s6780 + $0x120] sm:$0xe]
    %v9196 = vld [vmem:[%s6780 + $0x124] sm:$0xf]
    %v9197 = vld [vmem:[%s6780 + $0x128] sm:$0x1]
    %v9198 = vld [vmem:[%s6780 + $0x12c] sm:$0xe]
    %v9199 = vld [vmem:[%s6780 + $0x130] sm:$0xf]
    %v9200 = vld [vmem:[%s6780 + $0x134] sm:$0x1]
    %v9201 = vld [vmem:[%s6780 + $0x138] sm:$0xe]
    %v9202 = vld [vmem:[%s6780 + $0x13c] sm:$0xf]
    %v9203 = vld [vmem:[%s6780 + $0x140] sm:$0x1]
    %v9204 = vld [vmem:[%s6780 + $0x144] sm:$0xe]
    %v9205 = vld [vmem:[%s6780 + $0x148] sm:$0xf]
    %v9206 = vld [vmem:[%s6780 + $0x14c] sm:$0x1]
    %v9207 = vld [vmem:[%s6780 + $0x150] sm:$0xe]
    %v9208 = vld [vmem:[%s6780 + $0x154] sm:$0xf]
    %v9209 = vld [vmem:[%s6780 + $0x158] sm:$0x1]
    %v9210 = vld [vmem:[%s6780 + $0x15c] sm:$0xe]
    %v9211 = vld [vmem:[%s6780 + $0x160] sm:$0xf]
    %v9212 = vld [vmem:[%s6780 + $0x164] sm:$0x1]
    %v9213 = vld [vmem:[%s6780 + $0x168] sm:$0xe]
    %v9214 = vld [vmem:[%s6780 + $0x16c] sm:$0xf]
    %v9215 = vld [vmem:[%s6780 + $0x170] sm:$0x1]
    %v9216 = vld [vmem:[%s6780 + $0x174] sm:$0xe]
    %v9217 = vld [vmem:[%s6780 + $0x178] sm:$0xf]
    %v9218 = vld [vmem:[%s6780 + $0x17c] sm:$0x1]
    %v9219 = vld [vmem:[%s6780 + $0x180] sm:$0xe]
    %v9220 = vld [vmem:[%s6780 + $0x184] sm:$0xf]
    %v9221 = vld [vmem:[%s6780 + $0x188] sm:$0x1]
    %v9222 = vld [vmem:[%s6780 + $0x18c] sm:$0xe]
    %v9223 = vld [vmem:[%s6780 + $0x190] sm:$0xf]
    %v9224 = vld [vmem:[%s6780 + $0x194] sm:$0x1]
    %v9321 = vrot.slane %v9129, 5
    %v9322 = vrot.slane %v9321, 4
    %v9323 = vrot.slane %v9130, 5
    %v9324 = vsel %vm2434, %v9322, %v9323
    %v9325 = vrot.slane %v9323, 4
    %v9326 = vrot.slane %v9131, 5
    %v9327 = vsel %vm2434, %v9325, %v9326
    %v9328 = vrot.slane %v9132, 5
    %v9329 = vrot.slane %v9328, 4
    %v9330 = vrot.slane %v9133, 5
    %v9331 = vsel %vm2434, %v9329, %v9330
    %v9332 = vrot.slane %v9330, 4
    %v9333 = vrot.slane %v9134, 5
    %v9334 = vsel %vm2434, %v9332, %v9333
    %v9335 = vrot.slane %v9135, 5
    %v9336 = vrot.slane %v9335, 4
    %v9337 = vrot.slane %v9136, 5
    %v9338 = vsel %vm2434, %v9336, %v9337
    %v9339 = vrot.slane %v9337, 4
    %v9340 = vrot.slane %v9137, 5
    %v9341 = vsel %vm2434, %v9339, %v9340
    %v9342 = vrot.slane %v9138, 5
    %v9343 = vrot.slane %v9342, 4
    %v9344 = vrot.slane %v9139, 5
    %v9345 = vsel %vm2434, %v9343, %v9344
    %v9346 = vrot.slane %v9344, 4
    %v9347 = vrot.slane %v9140, 5
    %v9348 = vsel %vm2434, %v9346, %v9347
    %v9349 = vrot.slane %v9141, 5
    %v9350 = vrot.slane %v9349, 4
    %v9351 = vrot.slane %v9142, 5
    %v9352 = vsel %vm2434, %v9350, %v9351
    %v9353 = vrot.slane %v9351, 4
    %v9354 = vrot.slane %v9143, 5
    %v9355 = vsel %vm2434, %v9353, %v9354
    %v9356 = vrot.slane %v9144, 5
    %v9357 = vrot.slane %v9356, 4
    %v9358 = vrot.slane %v9145, 5
    %v9359 = vsel %vm2434, %v9357, %v9358
    %v9360 = vrot.slane %v9358, 4
    %v9361 = vrot.slane %v9146, 5
    %v9362 = vsel %vm2434, %v9360, %v9361
    %v9363 = vrot.slane %v9147, 5
    %v9364 = vrot.slane %v9363, 4
    %v9365 = vrot.slane %v9148, 5
    %v9366 = vsel %vm2434, %v9364, %v9365
    %v9367 = vrot.slane %v9365, 4
    %v9368 = vrot.slane %v9149, 5
    %v9369 = vsel %vm2434, %v9367, %v9368
    %v9370 = vrot.slane %v9150, 5
    %v9371 = vrot.slane %v9370, 4
    %v9372 = vrot.slane %v9151, 5
    %v9373 = vsel %vm2434, %v9371, %v9372
    %v9374 = vrot.slane %v9372, 4
    %v9375 = vrot.slane %v9152, 5
    %v9376 = vsel %vm2434, %v9374, %v9375
    %v9377 = vrot.slane %v9153, 5
    %v9378 = vrot.slane %v9377, 4
    %v9379 = vrot.slane %v9154, 5
    %v9380 = vsel %vm2434, %v9378, %v9379
    %v9381 = vrot.slane %v9379, 4
    %v9382 = vrot.slane %v9155, 5
    %v9383 = vsel %vm2434, %v9381, %v9382
    %v9384 = vrot.slane %v9156, 5
    %v9385 = vrot.slane %v9384, 4
    %v9386 = vrot.slane %v9157, 5
    %v9387 = vsel %vm2434, %v9385, %v9386
    %v9388 = vrot.slane %v9386, 4
    %v9389 = vrot.slane %v9158, 5
    %v9390 = vsel %vm2434, %v9388, %v9389
    %v9391 = vrot.slane %v9159, 5
    %v9392 = vrot.slane %v9391, 4
    %v9393 = vrot.slane %v9160, 5
    %v9394 = vsel %vm2434, %v9392, %v9393
    %v9395 = vrot.slane %v9393, 4
    %v9396 = vrot.slane %v9161, 5
    %v9397 = vsel %vm2434, %v9395, %v9396
    %v9398 = vrot.slane %v9162, 5
    %v9399 = vrot.slane %v9398, 4
    %v9400 = vrot.slane %v9163, 5
    %v9401 = vsel %vm2434, %v9399, %v9400
    %v9402 = vrot.slane %v9400, 4
    %v9403 = vrot.slane %v9164, 5
    %v9404 = vsel %vm2434, %v9402, %v9403
    %v9405 = vrot.slane %v9165, 5
    %v9406 = vrot.slane %v9405, 4
    %v9407 = vrot.slane %v9166, 5
    %v9408 = vsel %vm2434, %v9406, %v9407
    %v9409 = vrot.slane %v9407, 4
    %v9410 = vrot.slane %v9167, 5
    %v9411 = vsel %vm2434, %v9409, %v9410
    %v9412 = vrot.slane %v9168, 5
    %v9413 = vrot.slane %v9412, 4
    %v9414 = vrot.slane %v9169, 5
    %v9415 = vsel %vm2434, %v9413, %v9414
    %v9416 = vrot.slane %v9414, 4
    %v9417 = vrot.slane %v9170, 5
    %v9418 = vsel %vm2434, %v9416, %v9417
    %v9419 = vrot.slane %v9171, 5
    %v9420 = vrot.slane %v9419, 4
    %v9421 = vrot.slane %v9172, 5
    %v9422 = vsel %vm2434, %v9420, %v9421
    %v9423 = vrot.slane %v9421, 4
    %v9424 = vrot.slane %v9173, 5
    %v9425 = vsel %vm2434, %v9423, %v9424
    %v9426 = vrot.slane %v9174, 5
    %v9427 = vrot.slane %v9426, 4
    %v9428 = vrot.slane %v9175, 5
    %v9429 = vsel %vm2434, %v9427, %v9428
    %v9430 = vrot.slane %v9428, 4
    %v9431 = vrot.slane %v9176, 5
    %v9432 = vsel %vm2434, %v9430, %v9431
    %v9433 = vrot.slane %v9177, 5
    %v9434 = vrot.slane %v9433, 4
    %v9435 = vrot.slane %v9178, 5
    %v9436 = vsel %vm2434, %v9434, %v9435
    %v9437 = vrot.slane %v9435, 4
    %v9438 = vrot.slane %v9179, 5
    %v9439 = vsel %vm2434, %v9437, %v9438
    %v9440 = vrot.slane %v9180, 5
    %v9441 = vrot.slane %v9440, 4
    %v9442 = vrot.slane %v9181, 5
    %v9443 = vsel %vm2434, %v9441, %v9442
    %v9444 = vrot.slane %v9442, 4
    %v9445 = vrot.slane %v9182, 5
    %v9446 = vsel %vm2434, %v9444, %v9445
    %v9447 = vrot.slane %v9183, 5
    %v9448 = vrot.slane %v9447, 4
    %v9449 = vrot.slane %v9184, 5
    %v9450 = vsel %vm2434, %v9448, %v9449
    %v9451 = vrot.slane %v9449, 4
    %v9452 = vrot.slane %v9185, 5
    %v9453 = vsel %vm2434, %v9451, %v9452
    %v9454 = vrot.slane %v9186, 5
    %v9455 = vrot.slane %v9454, 4
    %v9456 = vrot.slane %v9187, 5
    %v9457 = vsel %vm2434, %v9455, %v9456
    %v9458 = vrot.slane %v9456, 4
    %v9459 = vrot.slane %v9188, 5
    %v9460 = vsel %vm2434, %v9458, %v9459
    %v9461 = vrot.slane %v9189, 5
    %v9462 = vrot.slane %v9461, 4
    %v9463 = vrot.slane %v9190, 5
    %v9464 = vsel %vm2434, %v9462, %v9463
    %v9465 = vrot.slane %v9463, 4
    %v9466 = vrot.slane %v9191, 5
    %v9467 = vsel %vm2434, %v9465, %v9466
    %v9468 = vrot.slane %v9192, 5
    %v9469 = vrot.slane %v9468, 4
    %v9470 = vrot.slane %v9193, 5
    %v9471 = vsel %vm2434, %v9469, %v9470
    %v9472 = vrot.slane %v9470, 4
    %v9473 = vrot.slane %v9194, 5
    %v9474 = vsel %vm2434, %v9472, %v9473
    %v9475 = vrot.slane %v9195, 5
    %v9476 = vrot.slane %v9475, 4
    %v9477 = vrot.slane %v9196, 5
    %v9478 = vsel %vm2434, %v9476, %v9477
    %v9479 = vrot.slane %v9477, 4
    %v9480 = vrot.slane %v9197, 5
    %v9481 = vsel %vm2434, %v9479, %v9480
    %v9482 = vrot.slane %v9198, 5
    %v9483 = vrot.slane %v9482, 4
    %v9484 = vrot.slane %v9199, 5
    %v9485 = vsel %vm2434, %v9483, %v9484
    %v9486 = vrot.slane %v9484, 4
    %v9487 = vrot.slane %v9200, 5
    %v9488 = vsel %vm2434, %v9486, %v9487
    %v9489 = vrot.slane %v9201, 5
    %v9490 = vrot.slane %v9489, 4
    %v9491 = vrot.slane %v9202, 5
    %v9492 = vsel %vm2434, %v9490, %v9491
    %v9493 = vrot.slane %v9491, 4
    %v9494 = vrot.slane %v9203, 5
    %v9495 = vsel %vm2434, %v9493, %v9494
    %v9496 = vrot.slane %v9204, 5
    %v9497 = vrot.slane %v9496, 4
    %v9498 = vrot.slane %v9205, 5
    %v9499 = vsel %vm2434, %v9497, %v9498
    %v9500 = vrot.slane %v9498, 4
    %v9501 = vrot.slane %v9206, 5
    %v9502 = vsel %vm2434, %v9500, %v9501
    %v9503 = vrot.slane %v9207, 5
    %v9504 = vrot.slane %v9503, 4
    %v9505 = vrot.slane %v9208, 5
    %v9506 = vsel %vm2434, %v9504, %v9505
    %v9507 = vrot.slane %v9505, 4
    %v9508 = vrot.slane %v9209, 5
    %v9509 = vsel %vm2434, %v9507, %v9508
    %v9510 = vrot.slane %v9210, 5
    %v9511 = vrot.slane %v9510, 4
    %v9512 = vrot.slane %v9211, 5
    %v9513 = vsel %vm2434, %v9511, %v9512
    %v9514 = vrot.slane %v9512, 4
    %v9515 = vrot.slane %v9212, 5
    %v9516 = vsel %vm2434, %v9514, %v9515
    %v9517 = vrot.slane %v9213, 5
    %v9518 = vrot.slane %v9517, 4
    %v9519 = vrot.slane %v9214, 5
    %v9520 = vsel %vm2434, %v9518, %v9519
    %v9521 = vrot.slane %v9519, 4
    %v9522 = vrot.slane %v9215, 5
    %v9523 = vsel %vm2434, %v9521, %v9522
    %v9524 = vrot.slane %v9216, 5
    %v9525 = vrot.slane %v9524, 4
    %v9526 = vrot.slane %v9217, 5
    %v9527 = vsel %vm2434, %v9525, %v9526
    %v9528 = vrot.slane %v9526, 4
    %v9529 = vrot.slane %v9218, 5
    %v9530 = vsel %vm2434, %v9528, %v9529
    %v9531 = vrot.slane %v9219, 5
    %v9532 = vrot.slane %v9531, 4
    %v9533 = vrot.slane %v9220, 5
    %v9534 = vsel %vm2434, %v9532, %v9533
    %v9535 = vrot.slane %v9533, 4
    %v9536 = vrot.slane %v9221, 5
    %v9537 = vsel %vm2434, %v9535, %v9536
    %v9538 = vrot.slane %v9222, 5
    %v9539 = vrot.slane %v9538, 4
    %v9540 = vrot.slane %v9223, 5
    %v9541 = vsel %vm2434, %v9539, %v9540
    %v9542 = vrot.slane %v9540, 4
    %v9543 = vrot.slane %v9224, 5
    %v9544 = vsel %vm2434, %v9542, %v9543
    %s9545 = scalar_lea.vmem %s1, 16
    %v9546 = vld [vmem:[%s9545] sm:$0x3]
    %v9547 = vunpack.c.l.b16 %v9324
    %v9548 = vunpack.c.l.b16 %v9327
    %v9549 = vunpack.c.l.b16 %v9331
    %v9550 = vunpack.c.l.b16 %v9334
    %v9551 = vunpack.c.l.b16 %v9338
    %v9552 = vunpack.c.l.b16 %v9341
    %v9553 = vunpack.c.l.b16 %v9345
    %v9554 = vunpack.c.l.b16 %v9348
    %v9555 = vunpack.c.l.b16 %v9352
    %v9556 = vunpack.c.l.b16 %v9355
    %v9557 = vunpack.c.l.b16 %v9359
    %v9558 = vunpack.c.l.b16 %v9362
    %v9559 = vunpack.c.l.b16 %v9366
    %v9560 = vunpack.c.l.b16 %v9369
    %v9561 = vunpack.c.l.b16 %v9373
    %v9562 = vunpack.c.l.b16 %v9376
    %v9563 = vunpack.c.l.b16 %v9380
    %v9564 = vunpack.c.l.b16 %v9383
    %v9565 = vunpack.c.l.b16 %v9387
    %v9566 = vunpack.c.l.b16 %v9390
    %v9567 = vunpack.c.l.b16 %v9394
    %v9568 = vunpack.c.l.b16 %v9397
    %v9569 = vunpack.c.l.b16 %v9401
    %v9570 = vunpack.c.l.b16 %v9404
    %v9571 = vunpack.c.l.b16 %v9408
    %v9572 = vunpack.c.l.b16 %v9411
    %v9573 = vunpack.c.l.b16 %v9415
    %v9574 = vunpack.c.l.b16 %v9418
    %v9575 = vunpack.c.l.b16 %v9422
    %v9576 = vunpack.c.l.b16 %v9425
    %v9577 = vunpack.c.l.b16 %v9429
    %v9578 = vunpack.c.l.b16 %v9432
    %v9579 = vunpack.c.l.b16 %v9436
    %v9580 = vunpack.c.l.b16 %v9439
    %v9581 = vunpack.c.l.b16 %v9443
    %v9582 = vunpack.c.l.b16 %v9446
    %v9583 = vunpack.c.l.b16 %v9450
    %v9584 = vunpack.c.l.b16 %v9453
    %v9585 = vunpack.c.l.b16 %v9457
    %v9586 = vunpack.c.l.b16 %v9460
    %v9587 = vunpack.c.l.b16 %v9464
    %v9588 = vunpack.c.l.b16 %v9467
    %v9589 = vunpack.c.l.b16 %v9471
    %v9590 = vunpack.c.l.b16 %v9474
    %v9591 = vunpack.c.l.b16 %v9478
    %v9592 = vunpack.c.l.b16 %v9481
    %v9593 = vunpack.c.l.b16 %v9485
    %v9594 = vunpack.c.l.b16 %v9488
    %v9595 = vunpack.c.l.b16 %v9492
    %v9596 = vunpack.c.l.b16 %v9495
    %v9597 = vunpack.c.l.b16 %v9499
    %v9598 = vunpack.c.l.b16 %v9502
    %v9599 = vunpack.c.l.b16 %v9506
    %v9600 = vunpack.c.l.b16 %v9509
    %v9601 = vunpack.c.l.b16 %v9513
    %v9602 = vunpack.c.l.b16 %v9516
    %v9603 = vunpack.c.l.b16 %v9520
    %v9604 = vunpack.c.l.b16 %v9523
    %v9605 = vunpack.c.l.b16 %v9527
    %v9606 = vunpack.c.l.b16 %v9530
    %v9607 = vunpack.c.l.b16 %v9534
    %v9608 = vunpack.c.l.b16 %v9537
    %v9609 = vunpack.c.l.b16 %v9541
    %v9610 = vunpack.c.l.b16 %v9544
    %v9611 = vpack.c.b16 %v9548, %v9547
    %v9612 = vpack.c.b16 %v9550, %v9549
    %v9613 = vpack.c.b16 %v9552, %v9551
    %v9614 = vpack.c.b16 %v9554, %v9553
    %v9615 = vpack.c.b16 %v9556, %v9555
    %v9616 = vpack.c.b16 %v9558, %v9557
    %v9617 = vpack.c.b16 %v9560, %v9559
    %v9618 = vpack.c.b16 %v9562, %v9561
    %v9619 = vpack.c.b16 %v9564, %v9563
    %v9620 = vpack.c.b16 %v9566, %v9565
    %v9621 = vpack.c.b16 %v9568, %v9567
    %v9622 = vpack.c.b16 %v9570, %v9569
    %v9623 = vpack.c.b16 %v9572, %v9571
    %v9624 = vpack.c.b16 %v9574, %v9573
    %v9625 = vpack.c.b16 %v9576, %v9575
    %v9626 = vpack.c.b16 %v9578, %v9577
    %v9627 = vpack.c.b16 %v9580, %v9579
    %v9628 = vpack.c.b16 %v9582, %v9581
    %v9629 = vpack.c.b16 %v9584, %v9583
    %v9630 = vpack.c.b16 %v9586, %v9585
    %v9631 = vpack.c.b16 %v9588, %v9587
    %v9632 = vpack.c.b16 %v9590, %v9589
    %v9633 = vpack.c.b16 %v9592, %v9591
    %v9634 = vpack.c.b16 %v9594, %v9593
    %v9635 = vpack.c.b16 %v9596, %v9595
    %v9636 = vpack.c.b16 %v9598, %v9597
    %v9637 = vpack.c.b16 %v9600, %v9599
    %v9638 = vpack.c.b16 %v9602, %v9601
    %v9639 = vpack.c.b16 %v9604, %v9603
    %v9640 = vpack.c.b16 %v9606, %v9605
    %v9641 = vpack.c.b16 %v9608, %v9607
    %v9642 = vpack.c.b16 %v9610, %v9609
    %v9644 = vsel %vm241, %v9611, 0
    %v9647 = vsel %vm241, %v9612, 0
    %v9650 = vsel %vm241, %v9613, 0
    %v9653 = vsel %vm241, %v9614, 0
    %v9656 = vsel %vm241, %v9615, 0
    %v9659 = vsel %vm241, %v9616, 0
    %v9662 = vsel %vm241, %v9617, 0
    %v9665 = vsel %vm241, %v9618, 0
    %v9668 = vsel %vm241, %v9619, 0
    %v9671 = vsel %vm241, %v9620, 0
    %v9674 = vsel %vm241, %v9621, 0
    %v9677 = vsel %vm241, %v9622, 0
    %v9680 = vsel %vm241, %v9623, 0
    %v9683 = vsel %vm241, %v9624, 0
    %v9686 = vsel %vm241, %v9625, 0
    %v9689 = vsel %vm241, %v9626, 0
    %v9692 = vsel %vm241, %v9627, 0
    %v9695 = vsel %vm241, %v9628, 0
    %v9698 = vsel %vm241, %v9629, 0
    %v9701 = vsel %vm241, %v9630, 0
    %v9704 = vsel %vm241, %v9631, 0
    %v9707 = vsel %vm241, %v9632, 0
    %v9710 = vsel %vm241, %v9633, 0
    %v9713 = vsel %vm241, %v9634, 0
    %v9716 = vsel %vm241, %v9635, 0
    %v9719 = vsel %vm241, %v9636, 0
    %v9722 = vsel %vm241, %v9637, 0
    %v9725 = vsel %vm241, %v9638, 0
    %v9728 = vsel %vm241, %v9639, 0
    %v9731 = vsel %vm241, %v9640, 0
    %v9734 = vsel %vm241, %v9641, 0
    %v9737 = vsel %vm241, %v9642, 0
    %v9740 = vsel %vm338, %v9546, 0
    %9742 = vmatprep.subr.bf16.mxu0 0
    %9743 = vmatpush1.bf16.msra.mxu0 0
    %9744 = vmatprep.subr.bf16.mxu0 0
    %9745 = vmatpush1.bf16.msra.mxu0 0
    %9746 = vmatprep.subr.bf16.mxu0 0
    %9747 = vmatpush1.bf16.msra.mxu0 0
    %9748 = vmatprep.subr.bf16.mxu0 0
    %9749 = vmatpush1.bf16.msra.mxu0 0
    %9750 = vmatprep.subr.bf16.mxu0 0
    %9751 = vmatpush1.bf16.msra.mxu0 0
    %9752 = vmatprep.subr.bf16.mxu0 0
    %9753 = vmatpush1.bf16.msra.mxu0 0
    %9754 = vmatprep.subr.bf16.mxu0 0
    %9755 = vmatpush1.bf16.msra.mxu0 0
    %9756 = vmatprep.subr.bf16.mxu0 0
    %9757 = vmatpush1.bf16.msra.mxu0 %v9740
    %9758 = vmatprep.subr.bf16.mxu0 0
    %9759 = vmatpush2.bf16.msra.mxu0 0
    %9760 = vmatprep.subr.bf16.mxu0 0
    %9761 = vmatpush2.bf16.msra.mxu0 0
    %9762 = vmatprep.subr.bf16.mxu0 0
    %9763 = vmatpush2.bf16.msra.mxu0 0
    %9764 = vmatprep.subr.bf16.mxu0 0
    %9765 = vmatpush2.bf16.msra.mxu0 0
    %9766 = vmatprep.subr.bf16.mxu0 0
    %9767 = vmatpush2.bf16.msra.mxu0 0
    %9768 = vmatprep.subr.bf16.mxu0 0
    %9769 = vmatpush2.bf16.msra.mxu0 0
    %9770 = vmatprep.subr.bf16.mxu0 0
    %9771 = vmatpush2.bf16.msra.mxu0 0
    %9772 = vmatprep.subr.bf16.mxu0 0
    %9773 = vmatpush2.bf16.msra.mxu0 0
    %9774 = vmatprep.mubr.bf16.mxu0 0
    %9775 = vmatmul.mubr.bf16.gmra.mxu0 %v9644
    %v9776 = vpop.f32.mrf.mxu0
    %v9777 = vadd.f32 0.0, %v9776
    %v9778 = vpop.f32.mrf.mxu0
    %v9779 = vpop.f32.mrf.mxu0
    %v9780 = vadd.f32 0.0, %v9779
    %v9781 = vpop.f32.mrf.mxu0
    %9782 = vmatprep.mubr.bf16.mxu0 0
    %9783 = vmatmul.mubr.bf16.gmra.mxu0 %v9647
    %v9784 = vpop.f32.mrf.mxu0
    %v9785 = vadd.f32 0.0, %v9784
    %v9786 = vpop.f32.mrf.mxu0
    %v9787 = vpop.f32.mrf.mxu0
    %v9788 = vadd.f32 0.0, %v9787
    %v9789 = vpop.f32.mrf.mxu0
    %9790 = vmatprep.mubr.bf16.mxu0 0
    %9791 = vmatmul.mubr.bf16.gmra.mxu0 %v9650
    %v9792 = vpop.f32.mrf.mxu0
    %v9793 = vadd.f32 0.0, %v9792
    %v9794 = vpop.f32.mrf.mxu0
    %v9795 = vpop.f32.mrf.mxu0
    %v9796 = vadd.f32 0.0, %v9795
    %v9797 = vpop.f32.mrf.mxu0
    %9798 = vmatprep.mubr.bf16.mxu0 0
    %9799 = vmatmul.mubr.bf16.gmra.mxu0 %v9653
    %v9800 = vpop.f32.mrf.mxu0
    %v9801 = vadd.f32 0.0, %v9800
    %v9802 = vpop.f32.mrf.mxu0
    %v9803 = vpop.f32.mrf.mxu0
    %v9804 = vadd.f32 0.0, %v9803
    %v9805 = vpop.f32.mrf.mxu0
    %9806 = vmatprep.mubr.bf16.mxu0 0
    %9807 = vmatmul.mubr.bf16.gmra.mxu0 %v9656
    %v9808 = vpop.f32.mrf.mxu0
    %v9809 = vadd.f32 0.0, %v9808
    %v9810 = vpop.f32.mrf.mxu0
    %v9811 = vpop.f32.mrf.mxu0
    %v9812 = vadd.f32 0.0, %v9811
    %v9813 = vpop.f32.mrf.mxu0
    %9814 = vmatprep.mubr.bf16.mxu0 0
    %9815 = vmatmul.mubr.bf16.gmra.mxu0 %v9659
    %v9816 = vpop.f32.mrf.mxu0
    %v9817 = vadd.f32 0.0, %v9816
    %v9818 = vpop.f32.mrf.mxu0
    %v9819 = vpop.f32.mrf.mxu0
    %v9820 = vadd.f32 0.0, %v9819
    %v9821 = vpop.f32.mrf.mxu0
    %9822 = vmatprep.mubr.bf16.mxu0 0
    %9823 = vmatmul.mubr.bf16.gmra.mxu0 %v9662
    %v9824 = vpop.f32.mrf.mxu0
    %v9825 = vadd.f32 0.0, %v9824
    %v9826 = vpop.f32.mrf.mxu0
    %v9827 = vpop.f32.mrf.mxu0
    %v9828 = vadd.f32 0.0, %v9827
    %v9829 = vpop.f32.mrf.mxu0
    %9830 = vmatprep.mubr.bf16.mxu0 0
    %9831 = vmatmul.mubr.bf16.gmra.mxu0 %v9665
    %v9832 = vpop.f32.mrf.mxu0
    %v9833 = vadd.f32 0.0, %v9832
    %v9834 = vpop.f32.mrf.mxu0
    %v9835 = vpop.f32.mrf.mxu0
    %v9836 = vadd.f32 0.0, %v9835
    %v9837 = vpop.f32.mrf.mxu0
    %9838 = vmatprep.mubr.bf16.mxu0 0
    %9839 = vmatmul.mubr.bf16.gmra.mxu0 %v9668
    %v9840 = vpop.f32.mrf.mxu0
    %v9841 = vadd.f32 0.0, %v9840
    %v9842 = vpop.f32.mrf.mxu0
    %v9843 = vpop.f32.mrf.mxu0
    %v9844 = vadd.f32 0.0, %v9843
    %v9845 = vpop.f32.mrf.mxu0
    %9846 = vmatprep.mubr.bf16.mxu0 0
    %9847 = vmatmul.mubr.bf16.gmra.mxu0 %v9671
    %v9848 = vpop.f32.mrf.mxu0
    %v9849 = vadd.f32 0.0, %v9848
    %v9850 = vpop.f32.mrf.mxu0
    %v9851 = vpop.f32.mrf.mxu0
    %v9852 = vadd.f32 0.0, %v9851
    %v9853 = vpop.f32.mrf.mxu0
    %9854 = vmatprep.mubr.bf16.mxu0 0
    %9855 = vmatmul.mubr.bf16.gmra.mxu0 %v9674
    %v9856 = vpop.f32.mrf.mxu0
    %v9857 = vadd.f32 0.0, %v9856
    %v9858 = vpop.f32.mrf.mxu0
    %v9859 = vpop.f32.mrf.mxu0
    %v9860 = vadd.f32 0.0, %v9859
    %v9861 = vpop.f32.mrf.mxu0
    %9862 = vmatprep.mubr.bf16.mxu0 0
    %9863 = vmatmul.mubr.bf16.gmra.mxu0 %v9677
    %v9864 = vpop.f32.mrf.mxu0
    %v9865 = vadd.f32 0.0, %v9864
    %v9866 = vpop.f32.mrf.mxu0
    %v9867 = vpop.f32.mrf.mxu0
    %v9868 = vadd.f32 0.0, %v9867
    %v9869 = vpop.f32.mrf.mxu0
    %9870 = vmatprep.mubr.bf16.mxu0 0
    %9871 = vmatmul.mubr.bf16.gmra.mxu0 %v9680
    %v9872 = vpop.f32.mrf.mxu0
    %v9873 = vadd.f32 0.0, %v9872
    %v9874 = vpop.f32.mrf.mxu0
    %v9875 = vpop.f32.mrf.mxu0
    %v9876 = vadd.f32 0.0, %v9875
    %v9877 = vpop.f32.mrf.mxu0
    %9878 = vmatprep.mubr.bf16.mxu0 0
    %9879 = vmatmul.mubr.bf16.gmra.mxu0 %v9683
    %v9880 = vpop.f32.mrf.mxu0
    %v9881 = vadd.f32 0.0, %v9880
    %v9882 = vpop.f32.mrf.mxu0
    %v9883 = vpop.f32.mrf.mxu0
    %v9884 = vadd.f32 0.0, %v9883
    %v9885 = vpop.f32.mrf.mxu0
    %9886 = vmatprep.mubr.bf16.mxu0 0
    %9887 = vmatmul.mubr.bf16.gmra.mxu0 %v9686
    %v9888 = vpop.f32.mrf.mxu0
    %v9889 = vadd.f32 0.0, %v9888
    %v9890 = vpop.f32.mrf.mxu0
    %v9891 = vpop.f32.mrf.mxu0
    %v9892 = vadd.f32 0.0, %v9891
    %v9893 = vpop.f32.mrf.mxu0
    %9894 = vmatprep.mubr.bf16.mxu0 0
    %9895 = vmatmul.mubr.bf16.gmra.mxu0 %v9689
    %v9896 = vpop.f32.mrf.mxu0
    %v9897 = vadd.f32 0.0, %v9896
    %v9898 = vpop.f32.mrf.mxu0
    %v9899 = vpop.f32.mrf.mxu0
    %v9900 = vadd.f32 0.0, %v9899
    %v9901 = vpop.f32.mrf.mxu0
    %9902 = vmatprep.mubr.bf16.mxu0 0
    %9903 = vmatmul.mubr.bf16.gmra.mxu0 %v9692
    %v9904 = vpop.f32.mrf.mxu0
    %v9905 = vadd.f32 0.0, %v9904
    %v9906 = vpop.f32.mrf.mxu0
    %v9907 = vpop.f32.mrf.mxu0
    %v9908 = vadd.f32 0.0, %v9907
    %v9909 = vpop.f32.mrf.mxu0
    %9910 = vmatprep.mubr.bf16.mxu0 0
    %9911 = vmatmul.mubr.bf16.gmra.mxu0 %v9695
    %v9912 = vpop.f32.mrf.mxu0
    %v9913 = vadd.f32 0.0, %v9912
    %v9914 = vpop.f32.mrf.mxu0
    %v9915 = vpop.f32.mrf.mxu0
    %v9916 = vadd.f32 0.0, %v9915
    %v9917 = vpop.f32.mrf.mxu0
    %9918 = vmatprep.mubr.bf16.mxu0 0
    %9919 = vmatmul.mubr.bf16.gmra.mxu0 %v9698
    %v9920 = vpop.f32.mrf.mxu0
    %v9921 = vadd.f32 0.0, %v9920
    %v9922 = vpop.f32.mrf.mxu0
    %v9923 = vpop.f32.mrf.mxu0
    %v9924 = vadd.f32 0.0, %v9923
    %v9925 = vpop.f32.mrf.mxu0
    %9926 = vmatprep.mubr.bf16.mxu0 0
    %9927 = vmatmul.mubr.bf16.gmra.mxu0 %v9701
    %v9928 = vpop.f32.mrf.mxu0
    %v9929 = vadd.f32 0.0, %v9928
    %v9930 = vpop.f32.mrf.mxu0
    %v9931 = vpop.f32.mrf.mxu0
    %v9932 = vadd.f32 0.0, %v9931
    %v9933 = vpop.f32.mrf.mxu0
    %9934 = vmatprep.mubr.bf16.mxu0 0
    %9935 = vmatmul.mubr.bf16.gmra.mxu0 %v9704
    %v9936 = vpop.f32.mrf.mxu0
    %v9937 = vadd.f32 0.0, %v9936
    %v9938 = vpop.f32.mrf.mxu0
    %v9939 = vpop.f32.mrf.mxu0
    %v9940 = vadd.f32 0.0, %v9939
    %v9941 = vpop.f32.mrf.mxu0
    %9942 = vmatprep.mubr.bf16.mxu0 0
    %9943 = vmatmul.mubr.bf16.gmra.mxu0 %v9707
    %v9944 = vpop.f32.mrf.mxu0
    %v9945 = vadd.f32 0.0, %v9944
    %v9946 = vpop.f32.mrf.mxu0
    %v9947 = vpop.f32.mrf.mxu0
    %v9948 = vadd.f32 0.0, %v9947
    %v9949 = vpop.f32.mrf.mxu0
    %9950 = vmatprep.mubr.bf16.mxu0 0
    %9951 = vmatmul.mubr.bf16.gmra.mxu0 %v9710
    %v9952 = vpop.f32.mrf.mxu0
    %v9953 = vadd.f32 0.0, %v9952
    %v9954 = vpop.f32.mrf.mxu0
    %v9955 = vpop.f32.mrf.mxu0
    %v9956 = vadd.f32 0.0, %v9955
    %v9957 = vpop.f32.mrf.mxu0
    %9958 = vmatprep.mubr.bf16.mxu0 0
    %9959 = vmatmul.mubr.bf16.gmra.mxu0 %v9713
    %v9960 = vpop.f32.mrf.mxu0
    %v9961 = vadd.f32 0.0, %v9960
    %v9962 = vpop.f32.mrf.mxu0
    %v9963 = vpop.f32.mrf.mxu0
    %v9964 = vadd.f32 0.0, %v9963
    %v9965 = vpop.f32.mrf.mxu0
    %9966 = vmatprep.mubr.bf16.mxu0 0
    %9967 = vmatmul.mubr.bf16.gmra.mxu0 %v9716
    %v9968 = vpop.f32.mrf.mxu0
    %v9969 = vadd.f32 0.0, %v9968
    %v9970 = vpop.f32.mrf.mxu0
    %v9971 = vpop.f32.mrf.mxu0
    %v9972 = vadd.f32 0.0, %v9971
    %v9973 = vpop.f32.mrf.mxu0
    %9974 = vmatprep.mubr.bf16.mxu0 0
    %9975 = vmatmul.mubr.bf16.gmra.mxu0 %v9719
    %v9976 = vpop.f32.mrf.mxu0
    %v9977 = vadd.f32 0.0, %v9976
    %v9978 = vpop.f32.mrf.mxu0
    %v9979 = vpop.f32.mrf.mxu0
    %v9980 = vadd.f32 0.0, %v9979
    %v9981 = vpop.f32.mrf.mxu0
    %9982 = vmatprep.mubr.bf16.mxu0 0
    %9983 = vmatmul.mubr.bf16.gmra.mxu0 %v9722
    %v9984 = vpop.f32.mrf.mxu0
    %v9985 = vadd.f32 0.0, %v9984
    %v9986 = vpop.f32.mrf.mxu0
    %v9987 = vpop.f32.mrf.mxu0
    %v9988 = vadd.f32 0.0, %v9987
    %v9989 = vpop.f32.mrf.mxu0
    %9990 = vmatprep.mubr.bf16.mxu0 0
    %9991 = vmatmul.mubr.bf16.gmra.mxu0 %v9725
    %v9992 = vpop.f32.mrf.mxu0
    %v9993 = vadd.f32 0.0, %v9992
    %v9994 = vpop.f32.mrf.mxu0
    %v9995 = vpop.f32.mrf.mxu0
    %v9996 = vadd.f32 0.0, %v9995
    %v9997 = vpop.f32.mrf.mxu0
    %9998 = vmatprep.mubr.bf16.mxu0 0
    %9999 = vmatmul.mubr.bf16.gmra.mxu0 %v9728
    %v10000 = vpop.f32.mrf.mxu0
    %v10001 = vadd.f32 0.0, %v10000
    %v10002 = vpop.f32.mrf.mxu0
    %v10003 = vpop.f32.mrf.mxu0
    %v10004 = vadd.f32 0.0, %v10003
    %v10005 = vpop.f32.mrf.mxu0
    %10006 = vmatprep.mubr.bf16.mxu0 0
    %10007 = vmatmul.mubr.bf16.gmra.mxu0 %v9731
    %v10008 = vpop.f32.mrf.mxu0
    %v10009 = vadd.f32 0.0, %v10008
    %v10010 = vpop.f32.mrf.mxu0
    %v10011 = vpop.f32.mrf.mxu0
    %v10012 = vadd.f32 0.0, %v10011
    %v10013 = vpop.f32.mrf.mxu0
    %10014 = vmatprep.mubr.bf16.mxu0 0
    %10015 = vmatmul.mubr.bf16.gmra.mxu0 %v9734
    %v10016 = vpop.f32.mrf.mxu0
    %v10017 = vadd.f32 0.0, %v10016
    %v10018 = vpop.f32.mrf.mxu0
    %v10019 = vpop.f32.mrf.mxu0
    %v10020 = vadd.f32 0.0, %v10019
    %v10021 = vpop.f32.mrf.mxu0
    %10022 = vmatprep.mubr.bf16.mxu0 0
    %10023 = vmatmul.mubr.bf16.gmra.mxu0 %v9737
    %v10024 = vpop.f32.mrf.mxu0
    %v10025 = vadd.f32 0.0, %v10024
    %v10026 = vpop.f32.mrf.mxu0
    %v10027 = vpop.f32.mrf.mxu0
    %v10028 = vadd.f32 0.0, %v10027
    %v10029 = vpop.f32.mrf.mxu0
    %10030 = vdwg.mxu0
    %v10031 = vld [vmem:[#allocation2] sm:$0xff]
    %v10032 = vld [vmem:[#allocation2 + $0x8] sm:$0xff]
    %v10033 = vld [vmem:[#allocation2 + $0x10] sm:$0xff]
    %v10034 = vld [vmem:[#allocation2 + $0x18] sm:$0xff]
    %v10035 = vld [vmem:[#allocation2 + $0x20] sm:$0xff]
    %v10036 = vld [vmem:[#allocation2 + $0x28] sm:$0xff]
    %v10037 = vld [vmem:[#allocation2 + $0x30] sm:$0xff]
    %v10038 = vld [vmem:[#allocation2 + $0x38] sm:$0xff]
    %v10039 = vld [vmem:[#allocation2 + $0x40] sm:$0xff]
    %v10040 = vld [vmem:[#allocation2 + $0x48] sm:$0xff]
    %v10041 = vld [vmem:[#allocation2 + $0x50] sm:$0xff]
    %v10042 = vld [vmem:[#allocation2 + $0x58] sm:$0xff]
    %v10043 = vld [vmem:[#allocation2 + $0x60] sm:$0xff]
    %v10044 = vld [vmem:[#allocation2 + $0x68] sm:$0xff]
    %v10045 = vld [vmem:[#allocation2 + $0x70] sm:$0xff]
    %v10046 = vld [vmem:[#allocation2 + $0x78] sm:$0xff]
    %v10047 = vld [vmem:[#allocation2 + $0x80] sm:$0xff]
    %v10048 = vld [vmem:[#allocation2 + $0x88] sm:$0xff]
    %v10049 = vld [vmem:[#allocation2 + $0x90] sm:$0xff]
    %v10050 = vld [vmem:[#allocation2 + $0x98] sm:$0xff]
    %v10051 = vld [vmem:[#allocation2 + $0xa0] sm:$0xff]
    %v10052 = vld [vmem:[#allocation2 + $0xa8] sm:$0xff]
    %v10053 = vld [vmem:[#allocation2 + $0xb0] sm:$0xff]
    %v10054 = vld [vmem:[#allocation2 + $0xb8] sm:$0xff]
    %v10055 = vld [vmem:[#allocation2 + $0xc0] sm:$0xff]
    %v10056 = vld [vmem:[#allocation2 + $0xc8] sm:$0xff]
    %v10057 = vld [vmem:[#allocation2 + $0xd0] sm:$0xff]
    %v10058 = vld [vmem:[#allocation2 + $0xd8] sm:$0xff]
    %v10059 = vld [vmem:[#allocation2 + $0xe0] sm:$0xff]
    %v10060 = vld [vmem:[#allocation2 + $0xe8] sm:$0xff]
    %v10061 = vld [vmem:[#allocation2 + $0xf0] sm:$0xff]
    %v10062 = vld [vmem:[#allocation2 + $0xf8] sm:$0xff]
    %v10063 = vld [vmem:[#allocation2 + $0x100] sm:$0xff]
    %v10064 = vld [vmem:[#allocation2 + $0x108] sm:$0xff]
    %v10065 = vld [vmem:[#allocation2 + $0x110] sm:$0xff]
    %v10066 = vld [vmem:[#allocation2 + $0x118] sm:$0xff]
    %v10067 = vld [vmem:[#allocation2 + $0x120] sm:$0xff]
    %v10068 = vld [vmem:[#allocation2 + $0x128] sm:$0xff]
    %v10069 = vld [vmem:[#allocation2 + $0x130] sm:$0xff]
    %v10070 = vld [vmem:[#allocation2 + $0x138] sm:$0xff]
    %v10071 = vld [vmem:[#allocation2 + $0x140] sm:$0xff]
    %v10072 = vld [vmem:[#allocation2 + $0x148] sm:$0xff]
    %v10073 = vld [vmem:[#allocation2 + $0x150] sm:$0xff]
    %v10074 = vld [vmem:[#allocation2 + $0x158] sm:$0xff]
    %v10075 = vld [vmem:[#allocation2 + $0x160] sm:$0xff]
    %v10076 = vld [vmem:[#allocation2 + $0x168] sm:$0xff]
    %v10077 = vld [vmem:[#allocation2 + $0x170] sm:$0xff]
    %v10078 = vld [vmem:[#allocation2 + $0x178] sm:$0xff]
    %v10079 = vld [vmem:[#allocation2 + $0x180] sm:$0xff]
    %v10080 = vld [vmem:[#allocation2 + $0x188] sm:$0xff]
    %v10081 = vld [vmem:[#allocation2 + $0x190] sm:$0xff]
    %v10082 = vld [vmem:[#allocation2 + $0x198] sm:$0xff]
    %v10083 = vld [vmem:[#allocation2 + $0x1a0] sm:$0xff]
    %v10084 = vld [vmem:[#allocation2 + $0x1a8] sm:$0xff]
    %v10085 = vld [vmem:[#allocation2 + $0x1b0] sm:$0xff]
    %v10086 = vld [vmem:[#allocation2 + $0x1b8] sm:$0xff]
    %v10087 = vld [vmem:[#allocation2 + $0x1c0] sm:$0xff]
    %v10088 = vld [vmem:[#allocation2 + $0x1c8] sm:$0xff]
    %v10089 = vld [vmem:[#allocation2 + $0x1d0] sm:$0xff]
    %v10090 = vld [vmem:[#allocation2 + $0x1d8] sm:$0xff]
    %v10091 = vld [vmem:[#allocation2 + $0x1e0] sm:$0xff]
    %v10092 = vld [vmem:[#allocation2 + $0x1e8] sm:$0xff]
    %v10093 = vld [vmem:[#allocation2 + $0x1f0] sm:$0xff]
    %v10094 = vld [vmem:[#allocation2 + $0x1f8] sm:$0xff]
    %v10095 = vadd.f32 %v10031, %v9777
    %v10096 = vadd.f32 %v10032, %v9780
    %v10097 = vadd.f32 %v10033, %v9785
    %v10098 = vadd.f32 %v10034, %v9788
    %v10099 = vadd.f32 %v10035, %v9793
    %v10100 = vadd.f32 %v10036, %v9796
    %v10101 = vadd.f32 %v10037, %v9801
    %v10102 = vadd.f32 %v10038, %v9804
    %v10103 = vadd.f32 %v10039, %v9809
    %v10104 = vadd.f32 %v10040, %v9812
    %v10105 = vadd.f32 %v10041, %v9817
    %v10106 = vadd.f32 %v10042, %v9820
    %v10107 = vadd.f32 %v10043, %v9825
    %v10108 = vadd.f32 %v10044, %v9828
    %v10109 = vadd.f32 %v10045, %v9833
    %v10110 = vadd.f32 %v10046, %v9836
    %v10111 = vadd.f32 %v10047, %v9841
    %v10112 = vadd.f32 %v10048, %v9844
    %v10113 = vadd.f32 %v10049, %v9849
    %v10114 = vadd.f32 %v10050, %v9852
    %v10115 = vadd.f32 %v10051, %v9857
    %v10116 = vadd.f32 %v10052, %v9860
    %v10117 = vadd.f32 %v10053, %v9865
    %v10118 = vadd.f32 %v10054, %v9868
    %v10119 = vadd.f32 %v10055, %v9873
    %v10120 = vadd.f32 %v10056, %v9876
    %v10121 = vadd.f32 %v10057, %v9881
    %v10122 = vadd.f32 %v10058, %v9884
    %v10123 = vadd.f32 %v10059, %v9889
    %v10124 = vadd.f32 %v10060, %v9892
    %v10125 = vadd.f32 %v10061, %v9897
    %v10126 = vadd.f32 %v10062, %v9900
    %v10127 = vadd.f32 %v10063, %v9905
    %v10128 = vadd.f32 %v10064, %v9908
    %v10129 = vadd.f32 %v10065, %v9913
    %v10130 = vadd.f32 %v10066, %v9916
    %v10131 = vadd.f32 %v10067, %v9921
    %v10132 = vadd.f32 %v10068, %v9924
    %v10133 = vadd.f32 %v10069, %v9929
    %v10134 = vadd.f32 %v10070, %v9932
    %v10135 = vadd.f32 %v10071, %v9937
    %v10136 = vadd.f32 %v10072, %v9940
    %v10137 = vadd.f32 %v10073, %v9945
    %v10138 = vadd.f32 %v10074, %v9948
    %v10139 = vadd.f32 %v10075, %v9953
    %v10140 = vadd.f32 %v10076, %v9956
    %v10141 = vadd.f32 %v10077, %v9961
    %v10142 = vadd.f32 %v10078, %v9964
    %v10143 = vadd.f32 %v10079, %v9969
    %v10144 = vadd.f32 %v10080, %v9972
    %v10145 = vadd.f32 %v10081, %v9977
    %v10146 = vadd.f32 %v10082, %v9980
    %v10147 = vadd.f32 %v10083, %v9985
    %v10148 = vadd.f32 %v10084, %v9988
    %v10149 = vadd.f32 %v10085, %v9993
    %v10150 = vadd.f32 %v10086, %v9996
    %v10151 = vadd.f32 %v10087, %v10001
    %v10152 = vadd.f32 %v10088, %v10004
    %v10153 = vadd.f32 %v10089, %v10009
    %v10154 = vadd.f32 %v10090, %v10012
    %v10155 = vadd.f32 %v10091, %v10017
    %v10156 = vadd.f32 %v10092, %v10020
    %v10157 = vadd.f32 %v10093, %v10025
    %v10158 = vadd.f32 %v10094, %v10028
    %10159 = vst [vmem:[#allocation2] sm:$0xff] %v10095
    %10160 = vst [vmem:[#allocation2 + $0x8] sm:$0xff] %v10096
    %10161 = vst [vmem:[#allocation2 + $0x10] sm:$0xff] %v10097
    %10162 = vst [vmem:[#allocation2 + $0x18] sm:$0xff] %v10098
    %10163 = vst [vmem:[#allocation2 + $0x20] sm:$0xff] %v10099
    %10164 = vst [vmem:[#allocation2 + $0x28] sm:$0xff] %v10100
    %10165 = vst [vmem:[#allocation2 + $0x30] sm:$0xff] %v10101
    %10166 = vst [vmem:[#allocation2 + $0x38] sm:$0xff] %v10102
    %10167 = vst [vmem:[#allocation2 + $0x40] sm:$0xff] %v10103
    %10168 = vst [vmem:[#allocation2 + $0x48] sm:$0xff] %v10104
    %10169 = vst [vmem:[#allocation2 + $0x50] sm:$0xff] %v10105
    %10170 = vst [vmem:[#allocation2 + $0x58] sm:$0xff] %v10106
    %10171 = vst [vmem:[#allocation2 + $0x60] sm:$0xff] %v10107
    %10172 = vst [vmem:[#allocation2 + $0x68] sm:$0xff] %v10108
    %10173 = vst [vmem:[#allocation2 + $0x70] sm:$0xff] %v10109
    %10174 = vst [vmem:[#allocation2 + $0x78] sm:$0xff] %v10110
    %10175 = vst [vmem:[#allocation2 + $0x80] sm:$0xff] %v10111
    %10176 = vst [vmem:[#allocation2 + $0x88] sm:$0xff] %v10112
    %10177 = vst [vmem:[#allocation2 + $0x90] sm:$0xff] %v10113
    %10178 = vst [vmem:[#allocation2 + $0x98] sm:$0xff] %v10114
    %10179 = vst [vmem:[#allocation2 + $0xa0] sm:$0xff] %v10115
    %10180 = vst [vmem:[#allocation2 + $0xa8] sm:$0xff] %v10116
    %10181 = vst [vmem:[#allocation2 + $0xb0] sm:$0xff] %v10117
    %10182 = vst [vmem:[#allocation2 + $0xb8] sm:$0xff] %v10118
    %10183 = vst [vmem:[#allocation2 + $0xc0] sm:$0xff] %v10119
    %10184 = vst [vmem:[#allocation2 + $0xc8] sm:$0xff] %v10120
    %10185 = vst [vmem:[#allocation2 + $0xd0] sm:$0xff] %v10121
    %10186 = vst [vmem:[#allocation2 + $0xd8] sm:$0xff] %v10122
    %10187 = vst [vmem:[#allocation2 + $0xe0] sm:$0xff] %v10123
    %10188 = vst [vmem:[#allocation2 + $0xe8] sm:$0xff] %v10124
    %10189 = vst [vmem:[#allocation2 + $0xf0] sm:$0xff] %v10125
    %10190 = vst [vmem:[#allocation2 + $0xf8] sm:$0xff] %v10126
    %10191 = vst [vmem:[#allocation2 + $0x100] sm:$0xff] %v10127
    %10192 = vst [vmem:[#allocation2 + $0x108] sm:$0xff] %v10128
    %10193 = vst [vmem:[#allocation2 + $0x110] sm:$0xff] %v10129
    %10194 = vst [vmem:[#allocation2 + $0x118] sm:$0xff] %v10130
    %10195 = vst [vmem:[#allocation2 + $0x120] sm:$0xff] %v10131
    %10196 = vst [vmem:[#allocation2 + $0x128] sm:$0xff] %v10132
    %10197 = vst [vmem:[#allocation2 + $0x130] sm:$0xff] %v10133
    %10198 = vst [vmem:[#allocation2 + $0x138] sm:$0xff] %v10134
    %10199 = vst [vmem:[#allocation2 + $0x140] sm:$0xff] %v10135
    %10200 = vst [vmem:[#allocation2 + $0x148] sm:$0xff] %v10136
    %10201 = vst [vmem:[#allocation2 + $0x150] sm:$0xff] %v10137
    %10202 = vst [vmem:[#allocation2 + $0x158] sm:$0xff] %v10138
    %10203 = vst [vmem:[#allocation2 + $0x160] sm:$0xff] %v10139
    %10204 = vst [vmem:[#allocation2 + $0x168] sm:$0xff] %v10140
    %10205 = vst [vmem:[#allocation2 + $0x170] sm:$0xff] %v10141
    %10206 = vst [vmem:[#allocation2 + $0x178] sm:$0xff] %v10142
    %10207 = vst [vmem:[#allocation2 + $0x180] sm:$0xff] %v10143
    %10208 = vst [vmem:[#allocation2 + $0x188] sm:$0xff] %v10144
    %10209 = vst [vmem:[#allocation2 + $0x190] sm:$0xff] %v10145
    %10210 = vst [vmem:[#allocation2 + $0x198] sm:$0xff] %v10146
    %10211 = vst [vmem:[#allocation2 + $0x1a0] sm:$0xff] %v10147
    %10212 = vst [vmem:[#allocation2 + $0x1a8] sm:$0xff] %v10148
    %10213 = vst [vmem:[#allocation2 + $0x1b0] sm:$0xff] %v10149
    %10214 = vst [vmem:[#allocation2 + $0x1b8] sm:$0xff] %v10150
    %10215 = vst [vmem:[#allocation2 + $0x1c0] sm:$0xff] %v10151
    %10216 = vst [vmem:[#allocation2 + $0x1c8] sm:$0xff] %v10152
    %10217 = vst [vmem:[#allocation2 + $0x1d0] sm:$0xff] %v10153
    %10218 = vst [vmem:[#allocation2 + $0x1d8] sm:$0xff] %v10154
    %10219 = vst [vmem:[#allocation2 + $0x1e0] sm:$0xff] %v10155
    %10220 = vst [vmem:[#allocation2 + $0x1e8] sm:$0xff] %v10156
    %10221 = vst [vmem:[#allocation2 + $0x1f0] sm:$0xff] %v10157
    %10222 = vst [vmem:[#allocation2 + $0x1f8] sm:$0xff] %v10158
    %v10223 = vld [vmem:[#allocation2] sm:$0xff]
    %v10224 = vld [vmem:[#allocation2 + $0x8] sm:$0xff]
    %v10225 = vld [vmem:[#allocation2 + $0x10] sm:$0xff]
    %v10226 = vld [vmem:[#allocation2 + $0x18] sm:$0xff]
    %v10227 = vld [vmem:[#allocation2 + $0x20] sm:$0xff]
    %v10228 = vld [vmem:[#allocation2 + $0x28] sm:$0xff]
    %v10229 = vld [vmem:[#allocation2 + $0x30] sm:$0xff]
    %v10230 = vld [vmem:[#allocation2 + $0x38] sm:$0xff]
    %v10231 = vld [vmem:[#allocation2 + $0x40] sm:$0xff]
    %v10232 = vld [vmem:[#allocation2 + $0x48] sm:$0xff]
    %v10233 = vld [vmem:[#allocation2 + $0x50] sm:$0xff]
    %v10234 = vld [vmem:[#allocation2 + $0x58] sm:$0xff]
    %v10235 = vld [vmem:[#allocation2 + $0x60] sm:$0xff]
    %v10236 = vld [vmem:[#allocation2 + $0x68] sm:$0xff]
    %v10237 = vld [vmem:[#allocation2 + $0x70] sm:$0xff]
    %v10238 = vld [vmem:[#allocation2 + $0x78] sm:$0xff]
    %v10239 = vld [vmem:[#allocation2 + $0x80] sm:$0xff]
    %v10240 = vld [vmem:[#allocation2 + $0x88] sm:$0xff]
    %v10241 = vld [vmem:[#allocation2 + $0x90] sm:$0xff]
    %v10242 = vld [vmem:[#allocation2 + $0x98] sm:$0xff]
    %v10243 = vld [vmem:[#allocation2 + $0xa0] sm:$0xff]
    %v10244 = vld [vmem:[#allocation2 + $0xa8] sm:$0xff]
    %v10245 = vld [vmem:[#allocation2 + $0xb0] sm:$0xff]
    %v10246 = vld [vmem:[#allocation2 + $0xb8] sm:$0xff]
    %v10247 = vld [vmem:[#allocation2 + $0xc0] sm:$0xff]
    %v10248 = vld [vmem:[#allocation2 + $0xc8] sm:$0xff]
    %v10249 = vld [vmem:[#allocation2 + $0xd0] sm:$0xff]
    %v10250 = vld [vmem:[#allocation2 + $0xd8] sm:$0xff]
    %v10251 = vld [vmem:[#allocation2 + $0xe0] sm:$0xff]
    %v10252 = vld [vmem:[#allocation2 + $0xe8] sm:$0xff]
    %v10253 = vld [vmem:[#allocation2 + $0xf0] sm:$0xff]
    %v10254 = vld [vmem:[#allocation2 + $0xf8] sm:$0xff]
    %v10255 = vld [vmem:[#allocation2 + $0x100] sm:$0xff]
    %v10256 = vld [vmem:[#allocation2 + $0x108] sm:$0xff]
    %v10257 = vld [vmem:[#allocation2 + $0x110] sm:$0xff]
    %v10258 = vld [vmem:[#allocation2 + $0x118] sm:$0xff]
    %v10259 = vld [vmem:[#allocation2 + $0x120] sm:$0xff]
    %v10260 = vld [vmem:[#allocation2 + $0x128] sm:$0xff]
    %v10261 = vld [vmem:[#allocation2 + $0x130] sm:$0xff]
    %v10262 = vld [vmem:[#allocation2 + $0x138] sm:$0xff]
    %v10263 = vld [vmem:[#allocation2 + $0x140] sm:$0xff]
    %v10264 = vld [vmem:[#allocation2 + $0x148] sm:$0xff]
    %v10265 = vld [vmem:[#allocation2 + $0x150] sm:$0xff]
    %v10266 = vld [vmem:[#allocation2 + $0x158] sm:$0xff]
    %v10267 = vld [vmem:[#allocation2 + $0x160] sm:$0xff]
    %v10268 = vld [vmem:[#allocation2 + $0x168] sm:$0xff]
    %v10269 = vld [vmem:[#allocation2 + $0x170] sm:$0xff]
    %v10270 = vld [vmem:[#allocation2 + $0x178] sm:$0xff]
    %v10271 = vld [vmem:[#allocation2 + $0x180] sm:$0xff]
    %v10272 = vld [vmem:[#allocation2 + $0x188] sm:$0xff]
    %v10273 = vld [vmem:[#allocation2 + $0x190] sm:$0xff]
    %v10274 = vld [vmem:[#allocation2 + $0x198] sm:$0xff]
    %v10275 = vld [vmem:[#allocation2 + $0x1a0] sm:$0xff]
    %v10276 = vld [vmem:[#allocation2 + $0x1a8] sm:$0xff]
    %v10277 = vld [vmem:[#allocation2 + $0x1b0] sm:$0xff]
    %v10278 = vld [vmem:[#allocation2 + $0x1b8] sm:$0xff]
    %v10279 = vld [vmem:[#allocation2 + $0x1c0] sm:$0xff]
    %v10280 = vld [vmem:[#allocation2 + $0x1c8] sm:$0xff]
    %v10281 = vld [vmem:[#allocation2 + $0x1d0] sm:$0xff]
    %v10282 = vld [vmem:[#allocation2 + $0x1d8] sm:$0xff]
    %v10283 = vld [vmem:[#allocation2 + $0x1e0] sm:$0xff]
    %v10284 = vld [vmem:[#allocation2 + $0x1e8] sm:$0xff]
    %v10285 = vld [vmem:[#allocation2 + $0x1f0] sm:$0xff]
    %v10286 = vld [vmem:[#allocation2 + $0x1f8] sm:$0xff]
    %v10287 = vpack.c.bf16 %v10224, %v10223
    %v10288 = vpack.c.bf16 %v10226, %v10225
    %v10289 = vpack.c.bf16 %v10228, %v10227
    %v10290 = vpack.c.bf16 %v10230, %v10229
    %v10291 = vpack.c.bf16 %v10232, %v10231
    %v10292 = vpack.c.bf16 %v10234, %v10233
    %v10293 = vpack.c.bf16 %v10236, %v10235
    %v10294 = vpack.c.bf16 %v10238, %v10237
    %v10295 = vpack.c.bf16 %v10240, %v10239
    %v10296 = vpack.c.bf16 %v10242, %v10241
    %v10297 = vpack.c.bf16 %v10244, %v10243
    %v10298 = vpack.c.bf16 %v10246, %v10245
    %v10299 = vpack.c.bf16 %v10248, %v10247
    %v10300 = vpack.c.bf16 %v10250, %v10249
    %v10301 = vpack.c.bf16 %v10252, %v10251
    %v10302 = vpack.c.bf16 %v10254, %v10253
    %v10303 = vpack.c.bf16 %v10256, %v10255
    %v10304 = vpack.c.bf16 %v10258, %v10257
    %v10305 = vpack.c.bf16 %v10260, %v10259
    %v10306 = vpack.c.bf16 %v10262, %v10261
    %v10307 = vpack.c.bf16 %v10264, %v10263
    %v10308 = vpack.c.bf16 %v10266, %v10265
    %v10309 = vpack.c.bf16 %v10268, %v10267
    %v10310 = vpack.c.bf16 %v10270, %v10269
    %v10311 = vpack.c.bf16 %v10272, %v10271
    %v10312 = vpack.c.bf16 %v10274, %v10273
    %v10313 = vpack.c.bf16 %v10276, %v10275
    %v10314 = vpack.c.bf16 %v10278, %v10277
    %v10315 = vpack.c.bf16 %v10280, %v10279
    %v10316 = vpack.c.bf16 %v10282, %v10281
    %v10317 = vpack.c.bf16 %v10284, %v10283
    %v10318 = vpack.c.bf16 %v10286, %v10285
    %v10351 = vunpack.c.l.b16 %v10287
    %v10352 = vunpack.c.h.b16 %v10287
    %v10353 = vunpack.c.l.b16 %v10288
    %v10354 = vunpack.c.h.b16 %v10288
    %v10355 = vunpack.c.l.b16 %v10289
    %v10356 = vunpack.c.h.b16 %v10289
    %v10357 = vunpack.c.l.b16 %v10290
    %v10358 = vunpack.c.h.b16 %v10290
    %v10359 = vunpack.c.l.b16 %v10291
    %v10360 = vunpack.c.h.b16 %v10291
    %v10361 = vunpack.c.l.b16 %v10292
    %v10362 = vunpack.c.h.b16 %v10292
    %v10363 = vunpack.c.l.b16 %v10293
    %v10364 = vunpack.c.h.b16 %v10293
    %v10365 = vunpack.c.l.b16 %v10294
    %v10366 = vunpack.c.h.b16 %v10294
    %v10367 = vunpack.c.l.b16 %v10295
    %v10368 = vunpack.c.h.b16 %v10295
    %v10369 = vunpack.c.l.b16 %v10296
    %v10370 = vunpack.c.h.b16 %v10296
    %v10371 = vunpack.c.l.b16 %v10297
    %v10372 = vunpack.c.h.b16 %v10297
    %v10373 = vunpack.c.l.b16 %v10298
    %v10374 = vunpack.c.h.b16 %v10298
    %v10375 = vunpack.c.l.b16 %v10299
    %v10376 = vunpack.c.h.b16 %v10299
    %v10377 = vunpack.c.l.b16 %v10300
    %v10378 = vunpack.c.h.b16 %v10300
    %v10379 = vunpack.c.l.b16 %v10301
    %v10380 = vunpack.c.h.b16 %v10301
    %v10381 = vunpack.c.l.b16 %v10302
    %v10382 = vunpack.c.h.b16 %v10302
    %v10383 = vunpack.c.l.b16 %v10303
    %v10384 = vunpack.c.h.b16 %v10303
    %v10385 = vunpack.c.l.b16 %v10304
    %v10386 = vunpack.c.h.b16 %v10304
    %v10387 = vunpack.c.l.b16 %v10305
    %v10388 = vunpack.c.h.b16 %v10305
    %v10389 = vunpack.c.l.b16 %v10306
    %v10390 = vunpack.c.h.b16 %v10306
    %v10391 = vunpack.c.l.b16 %v10307
    %v10392 = vunpack.c.h.b16 %v10307
    %v10393 = vunpack.c.l.b16 %v10308
    %v10394 = vunpack.c.h.b16 %v10308
    %v10395 = vunpack.c.l.b16 %v10309
    %v10396 = vunpack.c.h.b16 %v10309
    %v10397 = vunpack.c.l.b16 %v10310
    %v10398 = vunpack.c.h.b16 %v10310
    %v10399 = vunpack.c.l.b16 %v10311
    %v10400 = vunpack.c.h.b16 %v10311
    %v10401 = vunpack.c.l.b16 %v10312
    %v10402 = vunpack.c.h.b16 %v10312
    %v10403 = vunpack.c.l.b16 %v10313
    %v10404 = vunpack.c.h.b16 %v10313
    %v10405 = vunpack.c.l.b16 %v10314
    %v10406 = vunpack.c.h.b16 %v10314
    %v10407 = vunpack.c.l.b16 %v10315
    %v10408 = vunpack.c.h.b16 %v10315
    %v10409 = vunpack.c.l.b16 %v10316
    %v10410 = vunpack.c.h.b16 %v10316
    %v10411 = vunpack.c.l.b16 %v10317
    %v10412 = vunpack.c.h.b16 %v10317
    %v10413 = vunpack.c.l.b16 %v10318
    %v10414 = vunpack.c.h.b16 %v10318
    %v10415 = vpack.c.b16 %v10351, %v10351
    %v10416 = vpack.c.b16 %v10352, %v10352
    %v10417 = vpack.c.b16 %v10353, %v10353
    %v10418 = vpack.c.b16 %v10354, %v10354
    %v10419 = vpack.c.b16 %v10355, %v10355
    %v10420 = vpack.c.b16 %v10356, %v10356
    %v10421 = vpack.c.b16 %v10357, %v10357
    %v10422 = vpack.c.b16 %v10358, %v10358
    %v10423 = vpack.c.b16 %v10359, %v10359
    %v10424 = vpack.c.b16 %v10360, %v10360
    %v10425 = vpack.c.b16 %v10361, %v10361
    %v10426 = vpack.c.b16 %v10362, %v10362
    %v10427 = vpack.c.b16 %v10363, %v10363
    %v10428 = vpack.c.b16 %v10364, %v10364
    %v10429 = vpack.c.b16 %v10365, %v10365
    %v10430 = vpack.c.b16 %v10366, %v10366
    %v10431 = vpack.c.b16 %v10367, %v10367
    %v10432 = vpack.c.b16 %v10368, %v10368
    %v10433 = vpack.c.b16 %v10369, %v10369
    %v10434 = vpack.c.b16 %v10370, %v10370
    %v10435 = vpack.c.b16 %v10371, %v10371
    %v10436 = vpack.c.b16 %v10372, %v10372
    %v10437 = vpack.c.b16 %v10373, %v10373
    %v10438 = vpack.c.b16 %v10374, %v10374
    %v10439 = vpack.c.b16 %v10375, %v10375
    %v10440 = vpack.c.b16 %v10376, %v10376
    %v10441 = vpack.c.b16 %v10377, %v10377
    %v10442 = vpack.c.b16 %v10378, %v10378
    %v10443 = vpack.c.b16 %v10379, %v10379
    %v10444 = vpack.c.b16 %v10380, %v10380
    %v10445 = vpack.c.b16 %v10381, %v10381
    %v10446 = vpack.c.b16 %v10382, %v10382
    %v10447 = vpack.c.b16 %v10383, %v10383
    %v10448 = vpack.c.b16 %v10384, %v10384
    %v10449 = vpack.c.b16 %v10385, %v10385
    %v10450 = vpack.c.b16 %v10386, %v10386
    %v10451 = vpack.c.b16 %v10387, %v10387
    %v10452 = vpack.c.b16 %v10388, %v10388
    %v10453 = vpack.c.b16 %v10389, %v10389
    %v10454 = vpack.c.b16 %v10390, %v10390
    %v10455 = vpack.c.b16 %v10391, %v10391
    %v10456 = vpack.c.b16 %v10392, %v10392
    %v10457 = vpack.c.b16 %v10393, %v10393
    %v10458 = vpack.c.b16 %v10394, %v10394
    %v10459 = vpack.c.b16 %v10395, %v10395
    %v10460 = vpack.c.b16 %v10396, %v10396
    %v10461 = vpack.c.b16 %v10397, %v10397
    %v10462 = vpack.c.b16 %v10398, %v10398
    %v10463 = vpack.c.b16 %v10399, %v10399
    %v10464 = vpack.c.b16 %v10400, %v10400
    %v10465 = vpack.c.b16 %v10401, %v10401
    %v10466 = vpack.c.b16 %v10402, %v10402
    %v10467 = vpack.c.b16 %v10403, %v10403
    %v10468 = vpack.c.b16 %v10404, %v10404
    %v10469 = vpack.c.b16 %v10405, %v10405
    %v10470 = vpack.c.b16 %v10406, %v10406
    %v10471 = vpack.c.b16 %v10407, %v10407
    %v10472 = vpack.c.b16 %v10408, %v10408
    %v10473 = vpack.c.b16 %v10409, %v10409
    %v10474 = vpack.c.b16 %v10410, %v10410
    %v10475 = vpack.c.b16 %v10411, %v10411
    %v10476 = vpack.c.b16 %v10412, %v10412
    %v10477 = vpack.c.b16 %v10413, %v10413
    %v10478 = vpack.c.b16 %v10414, %v10414
    %10543 = vst [vmem:[#allocation3] sm:$0xf] %v10415
    %10544 = vst [vmem:[#allocation3 + $0x4] sm:$0xf] %v10416
    %10545 = vst [vmem:[#allocation3 + $0x8] sm:$0xf] %v10417
    %10546 = vst [vmem:[#allocation3 + $0xc] sm:$0xf] %v10418
    %10547 = vst [vmem:[#allocation3 + $0x10] sm:$0xf] %v10419
    %10548 = vst [vmem:[#allocation3 + $0x14] sm:$0xf] %v10420
    %10549 = vst [vmem:[#allocation3 + $0x18] sm:$0xf] %v10421
    %10550 = vst [vmem:[#allocation3 + $0x1c] sm:$0xf] %v10422
    %10551 = vst [vmem:[#allocation3 + $0x20] sm:$0xf] %v10423
    %10552 = vst [vmem:[#allocation3 + $0x24] sm:$0xf] %v10424
    %10553 = vst [vmem:[#allocation3 + $0x28] sm:$0xf] %v10425
    %10554 = vst [vmem:[#allocation3 + $0x2c] sm:$0xf] %v10426
    %10555 = vst [vmem:[#allocation3 + $0x30] sm:$0xf] %v10427
    %10556 = vst [vmem:[#allocation3 + $0x34] sm:$0xf] %v10428
    %10557 = vst [vmem:[#allocation3 + $0x38] sm:$0xf] %v10429
    %10558 = vst [vmem:[#allocation3 + $0x3c] sm:$0xf] %v10430
    %10559 = vst [vmem:[#allocation3 + $0x40] sm:$0xf] %v10431
    %10560 = vst [vmem:[#allocation3 + $0x44] sm:$0xf] %v10432
    %10561 = vst [vmem:[#allocation3 + $0x48] sm:$0xf] %v10433
    %10562 = vst [vmem:[#allocation3 + $0x4c] sm:$0xf] %v10434
    %10563 = vst [vmem:[#allocation3 + $0x50] sm:$0xf] %v10435
    %10564 = vst [vmem:[#allocation3 + $0x54] sm:$0xf] %v10436
    %10565 = vst [vmem:[#allocation3 + $0x58] sm:$0xf] %v10437
    %10566 = vst [vmem:[#allocation3 + $0x5c] sm:$0xf] %v10438
    %10567 = vst [vmem:[#allocation3 + $0x60] sm:$0xf] %v10439
    %10568 = vst [vmem:[#allocation3 + $0x64] sm:$0xf] %v10440
    %10569 = vst [vmem:[#allocation3 + $0x68] sm:$0xf] %v10441
    %10570 = vst [vmem:[#allocation3 + $0x6c] sm:$0xf] %v10442
    %10571 = vst [vmem:[#allocation3 + $0x70] sm:$0xf] %v10443
    %10572 = vst [vmem:[#allocation3 + $0x74] sm:$0xf] %v10444
    %10573 = vst [vmem:[#allocation3 + $0x78] sm:$0xf] %v10445
    %10574 = vst [vmem:[#allocation3 + $0x7c] sm:$0xf] %v10446
    %10575 = vst [vmem:[#allocation3 + $0x80] sm:$0xf] %v10447
    %10576 = vst [vmem:[#allocation3 + $0x84] sm:$0xf] %v10448
    %10577 = vst [vmem:[#allocation3 + $0x88] sm:$0xf] %v10449
    %10578 = vst [vmem:[#allocation3 + $0x8c] sm:$0xf] %v10450
    %10579 = vst [vmem:[#allocation3 + $0x90] sm:$0xf] %v10451
    %10580 = vst [vmem:[#allocation3 + $0x94] sm:$0xf] %v10452
    %10581 = vst [vmem:[#allocation3 + $0x98] sm:$0xf] %v10453
    %10582 = vst [vmem:[#allocation3 + $0x9c] sm:$0xf] %v10454
    %10583 = vst [vmem:[#allocation3 + $0xa0] sm:$0xf] %v10455
    %10584 = vst [vmem:[#allocation3 + $0xa4] sm:$0xf] %v10456
    %10585 = vst [vmem:[#allocation3 + $0xa8] sm:$0xf] %v10457
    %10586 = vst [vmem:[#allocation3 + $0xac] sm:$0xf] %v10458
    %10587 = vst [vmem:[#allocation3 + $0xb0] sm:$0xf] %v10459
    %10588 = vst [vmem:[#allocation3 + $0xb4] sm:$0xf] %v10460
    %10589 = vst [vmem:[#allocation3 + $0xb8] sm:$0xf] %v10461
    %10590 = vst [vmem:[#allocation3 + $0xbc] sm:$0xf] %v10462
    %10591 = vst [vmem:[#allocation3 + $0xc0] sm:$0xf] %v10463
    %10592 = vst [vmem:[#allocation3 + $0xc4] sm:$0xf] %v10464
    %10593 = vst [vmem:[#allocation3 + $0xc8] sm:$0xf] %v10465
    %10594 = vst [vmem:[#allocation3 + $0xcc] sm:$0xf] %v10466
    %10595 = vst [vmem:[#allocation3 + $0xd0] sm:$0xf] %v10467
    %10596 = vst [vmem:[#allocation3 + $0xd4] sm:$0xf] %v10468
    %10597 = vst [vmem:[#allocation3 + $0xd8] sm:$0xf] %v10469
    %10598 = vst [vmem:[#allocation3 + $0xdc] sm:$0xf] %v10470
    %10599 = vst [vmem:[#allocation3 + $0xe0] sm:$0xf] %v10471
    %10600 = vst [vmem:[#allocation3 + $0xe4] sm:$0xf] %v10472
    %10601 = vst [vmem:[#allocation3 + $0xe8] sm:$0xf] %v10473
    %10602 = vst [vmem:[#allocation3 + $0xec] sm:$0xf] %v10474
    %10603 = vst [vmem:[#allocation3 + $0xf0] sm:$0xf] %v10475
    %10604 = vst [vmem:[#allocation3 + $0xf4] sm:$0xf] %v10476
    %10605 = vst [vmem:[#allocation3 + $0xf8] sm:$0xf] %v10477
    %10606 = vst [vmem:[#allocation3 + $0xfc] sm:$0xf] %v10478
    %v10607 = vadd.f32 %v10223, %v10224
    %v10608 = vadd.f32 %v10607, %v10225
    %v10609 = vadd.f32 %v10608, %v10226
    %v10610 = vadd.f32 %v10609, %v10227
    %v10611 = vadd.f32 %v10610, %v10228
    %v10612 = vadd.f32 %v10611, %v10229
    %v10613 = vadd.f32 %v10612, %v10230
    %v10614 = vadd.f32 %v10613, %v10231
    %v10615 = vadd.f32 %v10614, %v10232
    %v10616 = vadd.f32 %v10615, %v10233
    %v10617 = vadd.f32 %v10616, %v10234
    %v10618 = vadd.f32 %v10617, %v10235
    %v10619 = vadd.f32 %v10618, %v10236
    %v10620 = vadd.f32 %v10619, %v10237
    %v10621 = vadd.f32 %v10620, %v10238
    %v10622 = vadd.f32 %v10621, %v10239
    %v10623 = vadd.f32 %v10622, %v10240
    %v10624 = vadd.f32 %v10623, %v10241
    %v10625 = vadd.f32 %v10624, %v10242
    %v10626 = vadd.f32 %v10625, %v10243
    %v10627 = vadd.f32 %v10626, %v10244
    %v10628 = vadd.f32 %v10627, %v10245
    %v10629 = vadd.f32 %v10628, %v10246
    %v10630 = vadd.f32 %v10629, %v10247
    %v10631 = vadd.f32 %v10630, %v10248
    %v10632 = vadd.f32 %v10631, %v10249
    %v10633 = vadd.f32 %v10632, %v10250
    %v10634 = vadd.f32 %v10633, %v10251
    %v10635 = vadd.f32 %v10634, %v10252
    %v10636 = vadd.f32 %v10635, %v10253
    %v10637 = vadd.f32 %v10636, %v10254
    %v10638 = vadd.f32 %v10637, %v10255
    %v10639 = vadd.f32 %v10638, %v10256
    %v10640 = vadd.f32 %v10639, %v10257
    %v10641 = vadd.f32 %v10640, %v10258
    %v10642 = vadd.f32 %v10641, %v10259
    %v10643 = vadd.f32 %v10642, %v10260
    %v10644 = vadd.f32 %v10643, %v10261
    %v10645 = vadd.f32 %v10644, %v10262
    %v10646 = vadd.f32 %v10645, %v10263
    %v10647 = vadd.f32 %v10646, %v10264
    %v10648 = vadd.f32 %v10647, %v10265
    %v10649 = vadd.f32 %v10648, %v10266
    %v10650 = vadd.f32 %v10649, %v10267
    %v10651 = vadd.f32 %v10650, %v10268
    %v10652 = vadd.f32 %v10651, %v10269
    %v10653 = vadd.f32 %v10652, %v10270
    %v10654 = vadd.f32 %v10653, %v10271
    %v10655 = vadd.f32 %v10654, %v10272
    %v10656 = vadd.f32 %v10655, %v10273
    %v10657 = vadd.f32 %v10656, %v10274
    %v10658 = vadd.f32 %v10657, %v10275
    %v10659 = vadd.f32 %v10658, %v10276
    %v10660 = vadd.f32 %v10659, %v10277
    %v10661 = vadd.f32 %v10660, %v10278
    %v10662 = vadd.f32 %v10661, %v10279
    %v10663 = vadd.f32 %v10662, %v10280
    %v10664 = vadd.f32 %v10663, %v10281
    %v10665 = vadd.f32 %v10664, %v10282
    %v10666 = vadd.f32 %v10665, %v10283
    %v10667 = vadd.f32 %v10666, %v10284
    %v10668 = vadd.f32 %v10667, %v10285
    %v10669 = vadd.f32 %v10668, %v10286
    %v10670 = vrot.slane %v10669, 4
    %v10671 = vadd.f32 %v10669, %v10670
    %v10672 = vrot.slane %v10671, 2
    %v10673 = vadd.f32 %v10671, %v10672
    %v10674 = vrot.slane %v10673, 1
    %v10675 = vadd.f32 %v10673, %v10674
    %v10676 = vmul.f32 %v10675, 0.001953125
    %v10677 = vsub.f32 %v10223, %v10676
    %v10678 = vsub.f32 %v10224, %v10676
    %v10679 = vsub.f32 %v10225, %v10676
    %v10680 = vsub.f32 %v10226, %v10676
    %v10681 = vsub.f32 %v10227, %v10676
    %v10682 = vsub.f32 %v10228, %v10676
    %v10683 = vsub.f32 %v10229, %v10676
    %v10684 = vsub.f32 %v10230, %v10676
    %v10685 = vsub.f32 %v10231, %v10676
    %v10686 = vsub.f32 %v10232, %v10676
    %v10687 = vsub.f32 %v10233, %v10676
    %v10688 = vsub.f32 %v10234, %v10676
    %v10689 = vsub.f32 %v10235, %v10676
    %v10690 = vsub.f32 %v10236, %v10676
    %v10691 = vsub.f32 %v10237, %v10676
    %v10692 = vsub.f32 %v10238, %v10676
    %v10693 = vsub.f32 %v10239, %v10676
    %v10694 = vsub.f32 %v10240, %v10676
    %v10695 = vsub.f32 %v10241, %v10676
    %v10696 = vsub.f32 %v10242, %v10676
    %v10697 = vsub.f32 %v10243, %v10676
    %v10698 = vsub.f32 %v10244, %v10676
    %v10699 = vsub.f32 %v10245, %v10676
    %v10700 = vsub.f32 %v10246, %v10676
    %v10701 = vsub.f32 %v10247, %v10676
    %v10702 = vsub.f32 %v10248, %v10676
    %v10703 = vsub.f32 %v10249, %v10676
    %v10704 = vsub.f32 %v10250, %v10676
    %v10705 = vsub.f32 %v10251, %v10676
    %v10706 = vsub.f32 %v10252, %v10676
    %v10707 = vsub.f32 %v10253, %v10676
    %v10708 = vsub.f32 %v10254, %v10676
    %v10709 = vsub.f32 %v10255, %v10676
    %v10710 = vsub.f32 %v10256, %v10676
    %v10711 = vsub.f32 %v10257, %v10676
    %v10712 = vsub.f32 %v10258, %v10676
    %v10713 = vsub.f32 %v10259, %v10676
    %v10714 = vsub.f32 %v10260, %v10676
    %v10715 = vsub.f32 %v10261, %v10676
    %v10716 = vsub.f32 %v10262, %v10676
    %v10717 = vsub.f32 %v10263, %v10676
    %v10718 = vsub.f32 %v10264, %v10676
    %v10719 = vsub.f32 %v10265, %v10676
    %v10720 = vsub.f32 %v10266, %v10676
    %v10721 = vsub.f32 %v10267, %v10676
    %v10722 = vsub.f32 %v10268, %v10676
    %v10723 = vsub.f32 %v10269, %v10676
    %v10724 = vsub.f32 %v10270, %v10676
    %v10725 = vsub.f32 %v10271, %v10676
    %v10726 = vsub.f32 %v10272, %v10676
    %v10727 = vsub.f32 %v10273, %v10676
    %v10728 = vsub.f32 %v10274, %v10676
    %v10729 = vsub.f32 %v10275, %v10676
    %v10730 = vsub.f32 %v10276, %v10676
    %v10731 = vsub.f32 %v10277, %v10676
    %v10732 = vsub.f32 %v10278, %v10676
    %v10733 = vsub.f32 %v10279, %v10676
    %v10734 = vsub.f32 %v10280, %v10676
    %v10735 = vsub.f32 %v10281, %v10676
    %v10736 = vsub.f32 %v10282, %v10676
    %v10737 = vsub.f32 %v10283, %v10676
    %v10738 = vsub.f32 %v10284, %v10676
    %v10739 = vsub.f32 %v10285, %v10676
    %v10740 = vsub.f32 %v10286, %v10676
    %v10741 = vmul.f32 %v10677, %v10677
    %v10742 = vmul.f32 %v10678, %v10678
    %v10743 = vmul.f32 %v10679, %v10679
    %v10744 = vmul.f32 %v10680, %v10680
    %v10745 = vmul.f32 %v10681, %v10681
    %v10746 = vmul.f32 %v10682, %v10682
    %v10747 = vmul.f32 %v10683, %v10683
    %v10748 = vmul.f32 %v10684, %v10684
    %v10749 = vmul.f32 %v10685, %v10685
    %v10750 = vmul.f32 %v10686, %v10686
    %v10751 = vmul.f32 %v10687, %v10687
    %v10752 = vmul.f32 %v10688, %v10688
    %v10753 = vmul.f32 %v10689, %v10689
    %v10754 = vmul.f32 %v10690, %v10690
    %v10755 = vmul.f32 %v10691, %v10691
    %v10756 = vmul.f32 %v10692, %v10692
    %v10757 = vmul.f32 %v10693, %v10693
    %v10758 = vmul.f32 %v10694, %v10694
    %v10759 = vmul.f32 %v10695, %v10695
    %v10760 = vmul.f32 %v10696, %v10696
    %v10761 = vmul.f32 %v10697, %v10697
    %v10762 = vmul.f32 %v10698, %v10698
    %v10763 = vmul.f32 %v10699, %v10699
    %v10764 = vmul.f32 %v10700, %v10700
    %v10765 = vmul.f32 %v10701, %v10701
    %v10766 = vmul.f32 %v10702, %v10702
    %v10767 = vmul.f32 %v10703, %v10703
    %v10768 = vmul.f32 %v10704, %v10704
    %v10769 = vmul.f32 %v10705, %v10705
    %v10770 = vmul.f32 %v10706, %v10706
    %v10771 = vmul.f32 %v10707, %v10707
    %v10772 = vmul.f32 %v10708, %v10708
    %v10773 = vmul.f32 %v10709, %v10709
    %v10774 = vmul.f32 %v10710, %v10710
    %v10775 = vmul.f32 %v10711, %v10711
    %v10776 = vmul.f32 %v10712, %v10712
    %v10777 = vmul.f32 %v10713, %v10713
    %v10778 = vmul.f32 %v10714, %v10714
    %v10779 = vmul.f32 %v10715, %v10715
    %v10780 = vmul.f32 %v10716, %v10716
    %v10781 = vmul.f32 %v10717, %v10717
    %v10782 = vmul.f32 %v10718, %v10718
    %v10783 = vmul.f32 %v10719, %v10719
    %v10784 = vmul.f32 %v10720, %v10720
    %v10785 = vmul.f32 %v10721, %v10721
    %v10786 = vmul.f32 %v10722, %v10722
    %v10787 = vmul.f32 %v10723, %v10723
    %v10788 = vmul.f32 %v10724, %v10724
    %v10789 = vmul.f32 %v10725, %v10725
    %v10790 = vmul.f32 %v10726, %v10726
    %v10791 = vmul.f32 %v10727, %v10727
    %v10792 = vmul.f32 %v10728, %v10728
    %v10793 = vmul.f32 %v10729, %v10729
    %v10794 = vmul.f32 %v10730, %v10730
    %v10795 = vmul.f32 %v10731, %v10731
    %v10796 = vmul.f32 %v10732, %v10732
    %v10797 = vmul.f32 %v10733, %v10733
    %v10798 = vmul.f32 %v10734, %v10734
    %v10799 = vmul.f32 %v10735, %v10735
    %v10800 = vmul.f32 %v10736, %v10736
    %v10801 = vmul.f32 %v10737, %v10737
    %v10802 = vmul.f32 %v10738, %v10738
    %v10803 = vmul.f32 %v10739, %v10739
    %v10804 = vmul.f32 %v10740, %v10740
    %v10805 = vadd.f32 %v10741, %v10742
    %v10806 = vadd.f32 %v10805, %v10743
    %v10807 = vadd.f32 %v10806, %v10744
    %v10808 = vadd.f32 %v10807, %v10745
    %v10809 = vadd.f32 %v10808, %v10746
    %v10810 = vadd.f32 %v10809, %v10747
    %v10811 = vadd.f32 %v10810, %v10748
    %v10812 = vadd.f32 %v10811, %v10749
    %v10813 = vadd.f32 %v10812, %v10750
    %v10814 = vadd.f32 %v10813, %v10751
    %v10815 = vadd.f32 %v10814, %v10752
    %v10816 = vadd.f32 %v10815, %v10753
    %v10817 = vadd.f32 %v10816, %v10754
    %v10818 = vadd.f32 %v10817, %v10755
    %v10819 = vadd.f32 %v10818, %v10756
    %v10820 = vadd.f32 %v10819, %v10757
    %v10821 = vadd.f32 %v10820, %v10758
    %v10822 = vadd.f32 %v10821, %v10759
    %v10823 = vadd.f32 %v10822, %v10760
    %v10824 = vadd.f32 %v10823, %v10761
    %v10825 = vadd.f32 %v10824, %v10762
    %v10826 = vadd.f32 %v10825, %v10763
    %v10827 = vadd.f32 %v10826, %v10764
    %v10828 = vadd.f32 %v10827, %v10765
    %v10829 = vadd.f32 %v10828, %v10766
    %v10830 = vadd.f32 %v10829, %v10767
    %v10831 = vadd.f32 %v10830, %v10768
    %v10832 = vadd.f32 %v10831, %v10769
    %v10833 = vadd.f32 %v10832, %v10770
    %v10834 = vadd.f32 %v10833, %v10771
    %v10835 = vadd.f32 %v10834, %v10772
    %v10836 = vadd.f32 %v10835, %v10773
    %v10837 = vadd.f32 %v10836, %v10774
    %v10838 = vadd.f32 %v10837, %v10775
    %v10839 = vadd.f32 %v10838, %v10776
    %v10840 = vadd.f32 %v10839, %v10777
    %v10841 = vadd.f32 %v10840, %v10778
    %v10842 = vadd.f32 %v10841, %v10779
    %v10843 = vadd.f32 %v10842, %v10780
    %v10844 = vadd.f32 %v10843, %v10781
    %v10845 = vadd.f32 %v10844, %v10782
    %v10846 = vadd.f32 %v10845, %v10783
    %v10847 = vadd.f32 %v10846, %v10784
    %v10848 = vadd.f32 %v10847, %v10785
    %v10849 = vadd.f32 %v10848, %v10786
    %v10850 = vadd.f32 %v10849, %v10787
    %v10851 = vadd.f32 %v10850, %v10788
    %v10852 = vadd.f32 %v10851, %v10789
    %v10853 = vadd.f32 %v10852, %v10790
    %v10854 = vadd.f32 %v10853, %v10791
    %v10855 = vadd.f32 %v10854, %v10792
    %v10856 = vadd.f32 %v10855, %v10793
    %v10857 = vadd.f32 %v10856, %v10794
    %v10858 = vadd.f32 %v10857, %v10795
    %v10859 = vadd.f32 %v10858, %v10796
    %v10860 = vadd.f32 %v10859, %v10797
    %v10861 = vadd.f32 %v10860, %v10798
    %v10862 = vadd.f32 %v10861, %v10799
    %v10863 = vadd.f32 %v10862, %v10800
    %v10864 = vadd.f32 %v10863, %v10801
    %v10865 = vadd.f32 %v10864, %v10802
    %v10866 = vadd.f32 %v10865, %v10803
    %v10867 = vadd.f32 %v10866, %v10804
    %v10868 = vrot.slane %v10867, 4
    %v10869 = vadd.f32 %v10867, %v10868
    %v10870 = vrot.slane %v10869, 2
    %v10871 = vadd.f32 %v10869, %v10870
    %v10872 = vrot.slane %v10871, 1
    %v10873 = vadd.f32 %v10871, %v10872
    %vm10874 = vcmask 1040384
    %v10875 = vsel %vm10874, %v10675, %v10873
    %10876 = vst [vmem:[#allocation5] sm:$0x3] %v10875
    // Predicated region
    $region10: #{tpu_custom_call.1} parent=1 // pred_check
      _
    $region11: #{tpu_custom_call.1} parent=1 // pred_check_branch
      %10878 = sbr.rel (0) target = $region13
    $region12: #{tpu_custom_call.1} parent=1 // pred_region
      %s10880 = ssub.s32 4096, 4096
      %10881 = vsyncadd [#allocation4], %s10880
      %s10882 = sshll.u32 [#allocation3], 4
      %s10883 = int_to_ptr.vmem [resolvable:$true] %s10882
      %10888 = dma.vmem_to_hbm [thread:$0]  %s10883, 4096, %s2, [#allocation4], 64, 64, 4
    $region13: #{tpu_custom_call.1} parent=1 // pred_fallthru
      _
    // Predicated region
    $region14: #{tpu_custom_call.1} parent=1 // pred_check
      _
    $region15: #{tpu_custom_call.1} parent=1 // pred_check_branch
      %10890 = sbr.rel (0) target = $region17
    $region16: #{tpu_custom_call.1} parent=1 // pred_region
      %s10892 = ssub.s32 32, 32
      %10893 = vsyncadd [#allocation6], %s10892
      %s10895 = sshll.u32 [#allocation5], 4
      %s10896 = int_to_ptr.vmem [resolvable:$true] %s10895
      %10898 = dma.vmem_to_hbm [thread:$0]  %s10896, 32, %s3, [#allocation6]
    $region17: #{tpu_custom_call.1} parent=1 // pred_fallthru
      _
    // Predicated region
    $region18: #{tpu_custom_call.1} parent=1 // pred_check
      _
    $region19: #{tpu_custom_call.1} parent=1 // pred_check_branch
      %10900 = sbr.rel (0) target = $region21
    $region20: #{tpu_custom_call.1} parent=1 // pred_region
      %10901 = dma.done [#allocation4], 4096
    $region21: #{tpu_custom_call.1} parent=1 // pred_fallthru
      _
    // Predicated region
    $region22: #{tpu_custom_call.1} parent=1 // pred_check
      _
    $region23: #{tpu_custom_call.1} parent=1 // pred_check_branch
      %10903 = sbr.rel (0) target = $region25
    $region24: #{tpu_custom_call.1} parent=1 // pred_region
      %10904 = dma.done [#allocation6], 32
    $region25: #{tpu_custom_call.1} parent=1 // pred_fallthru
      _
    %10905 = vsyncpa [#allocation4], 1
    %10906 = vsyncpa [#allocation6], 1

</llo_original>
